<compile_context>
chip_gen: v6e
topology: v6e:2x2x1
jax: 0.10.0
libtpu: 0.0.40
codegen_flags: <defaults>
</compile_context>

<pallas_src>
import jax
import jax.numpy as jnp
from jax.experimental import pallas as pl
from jax.experimental.pallas import tpu as pltpu


def _resblock_kernel(x_ref, w1_ref, w2_ref, o_ref, staged_ref, acc_ref):
    # x_ref     : (NB, H, W, C)       f32  input block (NHWC)
    # w*_ref    : (3, 3*C, C)         bf16 per-ky stacked [(kx,Cin) x Cout]
    # o_ref     : (NB, H, W, C)       f32  output block
    # staged_ref: (NB, H+2, W, 3*C)   f32  kx-folded, zero-haloed staging buffer
    # acc_ref   : (NB*H*W, C)         f32  matmul accumulator
    NB, H, W, C = x_ref.shape
    K3 = 3 * C
    M = NB * H * W

    # Zero only the halo (top/bottom rows + the kx=0 / kx=2 edge columns).
    # The data region is fully overwritten by every stage() call below.
    staged_ref[:, 0:1] = jnp.zeros((NB, 1, W, K3), jnp.float32)
    staged_ref[:, H + 1:H + 2] = jnp.zeros((NB, 1, W, K3), jnp.float32)
    staged_ref[:, 1:H + 1, 0:1, 0:C] = jnp.zeros((NB, H, 1, C), jnp.float32)
    staged_ref[:, 1:H + 1, W - 1:W, 2 * C:3 * C] = jnp.zeros(
        (NB, H, 1, C), jnp.float32)

    def stage(src):
        # src: (NB, H, W, C) f32 value.  Writes the three kx-shifted copies
        # side by side on the lane axis (lane offsets 0, C, 2C are multiples
        # of 128 -> lane aligned; only two small sublane-offset copies remain).
        staged_ref[:, 1:H + 1, :, C:2 * C] = src                        # kx = 1
        staged_ref[:, 1:H + 1, 1:W, 0:C] = src[:, :, :W - 1, :]         # kx = 0
        staged_ref[:, 1:H + 1, :W - 1, 2 * C:3 * C] = src[:, :, 1:, :]  # kx = 2

    def conv(w_ref):
        # 3 matmuls (one per ky), K = 3*C, accumulated in VMEM scratch.
        for ky in range(3):
            patch = staged_ref[:, ky:ky + H].reshape(M, K3)
            part = jnp.dot(patch.astype(jnp.bfloat16), w_ref[ky],
                           preferred_element_type=jnp.float32)
            if ky == 0:
                acc_ref[...] = part
            else:
                acc_ref[...] += part

    stage(x_ref[...])
    conv(w1_ref)
    # ReLU'd conv1 output is staged directly (no intermediate VMEM buffer).
    stage(jnp.maximum(acc_ref[...], 0.0).reshape(NB, H, W, C))
    conv(w2_ref)
    # Residual uses the original (pre-ReLU, f32) input.
    o_ref[...] = (acc_ref[...].reshape(NB, H, W, C)
                  + x_ref[...]).astype(o_ref.dtype)


def residual_block_nhwc(x_nhwc, w1_oihw, w2_oihw, *, block_n=2):
    """x_nhwc: (N, H, W, C) f32; w*_oihw: (Cout, Cin, 3, 3) f32 (PyTorch)."""
    N, H, W, C = x_nhwc.shape
    if N % block_n != 0:
        block_n = 1
    M = block_n * H * W

    def _prep(w):
        # OIHW -> (ky, kx, Cin, Cout) -> (3, 3*Cin, Cout); bf16 for the MXU
        # and to halve the dominant weight HBM traffic.
        return (jnp.transpose(w, (2, 3, 1, 0))
                .reshape(3, 3 * C, C)
                .astype(jnp.bfloat16))

    w1_t = _prep(w1_oihw)
    w2_t = _prep(w2_oihw)

    return pl.pallas_call(
        _resblock_kernel,
        out_shape=jax.ShapeDtypeStruct((N, H, W, C), x_nhwc.dtype),
        grid_spec=pltpu.PrefetchScalarGridSpec(
            num_scalar_prefetch=0,
            grid=(N // block_n,),
            in_specs=[
                pl.BlockSpec((block_n, H, W, C), lambda n: (n, 0, 0, 0)),
                # Grid-invariant weights: constant block index -> fetched once,
                # not re-DMA'd between grid steps.
                pl.BlockSpec((3, 3 * C, C), lambda n: (0, 0, 0)),
                pl.BlockSpec((3, 3 * C, C), lambda n: (0, 0, 0)),
            ],
            out_specs=pl.BlockSpec((block_n, H, W, C), lambda n: (n, 0, 0, 0)),
            scratch_shapes=[
                pltpu.VMEM((block_n, H + 2, W, 3 * C), jnp.float32),  # staged
                pltpu.VMEM((M, C), jnp.float32),                      # acc
            ],
        ),
        compiler_params=pltpu.CompilerParams(
            dimension_semantics=("parallel",),
        ),
    )(x_nhwc, w1_t, w2_t)


def residual_block_nchw(x_nchw, w1_oihw, w2_oihw):
    """PyTorch-facing wrapper: NCHW in, NCHW out."""
    x_nhwc = jnp.transpose(x_nchw, (0, 2, 3, 1))
    y_nhwc = residual_block_nhwc(x_nhwc, w1_oihw, w2_oihw)
    return jnp.transpose(y_nhwc, (0, 3, 1, 2))


def _reference_nhwc(x_nhwc, w1_oihw, w2_oihw):
    dn = ("NHWC", "HWIO", "NHWC")
    w1 = jnp.transpose(w1_oihw, (2, 3, 1, 0))
    w2 = jnp.transpose(w2_oihw, (2, 3, 1, 0))
    h = jax.lax.conv_general_dilated(x_nhwc, w1, (1, 1), "SAME",
                                     dimension_numbers=dn)
    h = jnp.maximum(h, 0.0)
    o = jax.lax.conv_general_dilated(h, w2, (1, 1), "SAME",
                                     dimension_numbers=dn)
    return o + x_nhwc


if __name__ == "__main__":
    # Module hard-codes 256 channels; batch=4 so the grid has 2 steps of
    # 2 images each (M=128 per matmul, and 2 grid steps for v7x's 2 TCs).
    N, C, H, W = 4, 256, 8, 8

    key = jax.random.PRNGKey(0)
    kx_, k1, k2 = jax.random.split(key, 3)
    x_nchw = jax.random.normal(kx_, (N, C, H, W), dtype=jnp.float32)
    # deterministic synthetic weights, PyTorch OIHW layout, bias=False
    w1 = 0.03 * jax.random.normal(k1, (C, C, 3, 3), dtype=jnp.float32)
    w2 = 0.03 * jax.random.normal(k2, (C, C, 3, 3), dtype=jnp.float32)

    y = residual_block_nchw(x_nchw, w1, w2)
    y = jax.block_until_ready(y)

    # correctness vs f32 XLA conv reference; tolerance relaxed for the bf16
    # matmul operands (accumulation stays f32).
    x_nhwc = jnp.transpose(x_nchw, (0, 2, 3, 1))
    y_ref = jnp.transpose(_reference_nhwc(x_nhwc, w1, w2), (0, 3, 1, 2))
    assert y.shape == (N, C, H, W)
    max_err = float(jnp.max(jnp.abs(y - y_ref)))
    assert jnp.allclose(y, y_ref, rtol=5e-2, atol=5e-2), max_err

    print("KERNEL_OK")
</pallas_src>

<mosaic_0001>
module attributes {stable_mosaic.version = 11 : i64} {
  func.func @_resblock_kernel(%arg0: i32, %arg1: memref<2x8x8x256xf32, #tpu.memory_space<vmem>>, %arg2: memref<3x768x256xbf16, #tpu.memory_space<vmem>>, %arg3: memref<3x768x256xbf16, #tpu.memory_space<vmem>>, %arg4: memref<2x8x8x256xf32, #tpu.memory_space<vmem>>, %arg5: memref<2x10x8x768xf32, #tpu.memory_space<vmem>>, %arg6: memref<128x256xf32, #tpu.memory_space<vmem>>) attributes {dimension_semantics = [#tpu.dimension_semantics<parallel>], iteration_bounds = array<i64: 2>, scalar_prefetch = 0 : i64, scratch_operands = 2 : i64, tpu.core_type = #tpu.core_type<tc>, window_params = [{transform_indices = @transform_0, window_bounds = array<i64: 2, 8, 8, 256>}, {pipeline_mode = #tpu.pipeline_mode<synchronous>, transform_indices = @transform_1, window_bounds = array<i64: 3, 768, 256>}, {pipeline_mode = #tpu.pipeline_mode<synchronous>, transform_indices = @transform_2, window_bounds = array<i64: 3, 768, 256>}, {transform_indices = @transform_3, window_bounds = array<i64: 2, 8, 8, 256>}]} {
    %cst = arith.constant 0.000000e+00 : f32
    %0 = vector.broadcast %cst : f32 to vector<2x1x8x768xf32>
    %c0 = arith.constant 0 : index
    %c0_0 = arith.constant 0 : index
    %c0_1 = arith.constant 0 : index
    %c0_2 = arith.constant 0 : index
    %1 = vector.load %arg5[%c0, %c0_0, %c0_1, %c0_2] : memref<2x10x8x768xf32, #tpu.memory_space<vmem>>, vector<2x1x8x768xf32>
    tpu.vector_store %arg5[%c0, %c0_0, %c0_1, %c0_2], %0 {strides = array<i32>} : memref<2x10x8x768xf32, #tpu.memory_space<vmem>>, vector<2x1x8x768xf32>,
    %cst_3 = arith.constant 0.000000e+00 : f32
    %2 = vector.broadcast %cst_3 : f32 to vector<2x1x8x768xf32>
    %c0_4 = arith.constant 0 : index
    %c9 = arith.constant 9 : index
    %c0_5 = arith.constant 0 : index
    %c0_6 = arith.constant 0 : index
    %3 = vector.load %arg5[%c0_4, %c9, %c0_5, %c0_6] : memref<2x10x8x768xf32, #tpu.memory_space<vmem>>, vector<2x1x8x768xf32>
    tpu.vector_store %arg5[%c0_4, %c9, %c0_5, %c0_6], %2 {strides = array<i32>} : memref<2x10x8x768xf32, #tpu.memory_space<vmem>>, vector<2x1x8x768xf32>,
    %cst_7 = arith.constant 0.000000e+00 : f32
    %4 = vector.broadcast %cst_7 : f32 to vector<2x8x1x256xf32>
    %c0_8 = arith.constant 0 : index
    %c1 = arith.constant 1 : index
    %c0_9 = arith.constant 0 : index
    %c0_10 = arith.constant 0 : index
    %5 = vector.load %arg5[%c0_8, %c1, %c0_9, %c0_10] : memref<2x10x8x768xf32, #tpu.memory_space<vmem>>, vector<2x8x1x256xf32>
    tpu.vector_store %arg5[%c0_8, %c1, %c0_9, %c0_10], %4 {strides = array<i32>} : memref<2x10x8x768xf32, #tpu.memory_space<vmem>>, vector<2x8x1x256xf32>,
    %cst_11 = arith.constant 0.000000e+00 : f32
    %6 = vector.broadcast %cst_11 : f32 to vector<2x8x1x256xf32>
    %c0_12 = arith.constant 0 : index
    %c1_13 = arith.constant 1 : index
    %c7 = arith.constant 7 : index
    %c512 = arith.constant 512 : index
    %7 = vector.load %arg5[%c0_12, %c1_13, %c7, %c512] : memref<2x10x8x768xf32, #tpu.memory_space<vmem>>, vector<2x8x1x256xf32>
    tpu.vector_store %arg5[%c0_12, %c1_13, %c7, %c512], %6 {strides = array<i32>} : memref<2x10x8x768xf32, #tpu.memory_space<vmem>>, vector<2x8x1x256xf32>,
    %c0_14 = arith.constant 0 : index
    %c0_15 = arith.constant 0 : index
    %c0_16 = arith.constant 0 : index
    %c0_17 = arith.constant 0 : index
    %8 = vector.load %arg1[%c0_14, %c0_15, %c0_16, %c0_17] : memref<2x8x8x256xf32, #tpu.memory_space<vmem>>, vector<2x8x8x256xf32>
    %c0_18 = arith.constant 0 : index
    %c1_19 = arith.constant 1 : index
    %c0_20 = arith.constant 0 : index
    %c256 = arith.constant 256 : index
    %9 = vector.load %arg5[%c0_18, %c1_19, %c0_20, %c256] : memref<2x10x8x768xf32, #tpu.memory_space<vmem>>, vector<2x8x8x256xf32>
    tpu.vector_store %arg5[%c0_18, %c1_19, %c0_20, %c256], %8 {strides = array<i32>} : memref<2x10x8x768xf32, #tpu.memory_space<vmem>>, vector<2x8x8x256xf32>,
    %10 = vector.extract_strided_slice %8 {offsets = [0, 0, 0, 0], sizes = [2, 8, 7, 256], strides = [1, 1, 1, 1]} : vector<2x8x8x256xf32> to vector<2x8x7x256xf32>
    %c0_21 = arith.constant 0 : index
    %c1_22 = arith.constant 1 : index
    %c1_23 = arith.constant 1 : index
    %c0_24 = arith.constant 0 : index
    %11 = vector.load %arg5[%c0_21, %c1_22, %c1_23, %c0_24] : memref<2x10x8x768xf32, #tpu.memory_space<vmem>>, vector<2x8x7x256xf32>
    tpu.vector_store %arg5[%c0_21, %c1_22, %c1_23, %c0_24], %10 {strides = array<i32>} : memref<2x10x8x768xf32, #tpu.memory_space<vmem>>, vector<2x8x7x256xf32>,
    %12 = vector.extract_strided_slice %8 {offsets = [0, 0, 1, 0], sizes = [2, 8, 7, 256], strides = [1, 1, 1, 1]} : vector<2x8x8x256xf32> to vector<2x8x7x256xf32>
    %c0_25 = arith.constant 0 : index
    %c1_26 = arith.constant 1 : index
    %c0_27 = arith.constant 0 : index
    %c512_28 = arith.constant 512 : index
    %13 = vector.load %arg5[%c0_25, %c1_26, %c0_27, %c512_28] : memref<2x10x8x768xf32, #tpu.memory_space<vmem>>, vector<2x8x7x256xf32>
    tpu.vector_store %arg5[%c0_25, %c1_26, %c0_27, %c512_28], %12 {strides = array<i32>} : memref<2x10x8x768xf32, #tpu.memory_space<vmem>>, vector<2x8x7x256xf32>,
    %c0_29 = arith.constant 0 : index
    %c0_30 = arith.constant 0 : index
    %c0_31 = arith.constant 0 : index
    %c0_32 = arith.constant 0 : index
    %14 = vector.load %arg5[%c0_29, %c0_30, %c0_31, %c0_32] : memref<2x10x8x768xf32, #tpu.memory_space<vmem>>, vector<2x8x8x768xf32>
    %15 = vector.shape_cast %14 : vector<2x8x8x768xf32> to vector<128x768xf32>
    %16 = arith.truncf %15 : vector<128x768xf32> to vector<128x768xbf16>
    %c0_33 = arith.constant 0 : index
    %c0_34 = arith.constant 0 : index
    %c0_35 = arith.constant 0 : index
    %17 = vector.load %arg2[%c0_33, %c0_34, %c0_35] : memref<3x768x256xbf16, #tpu.memory_space<vmem>>, vector<1x768x256xbf16>
    %18 = vector.shape_cast %17 : vector<1x768x256xbf16> to vector<768x256xbf16>
    %cst_36 = arith.constant dense<0.000000e+00> : vector<128x256xf32>
    %19 = tpu.matmul %16, %18, %cst_36 {dimension_numbers = #tpu.dot_dimension_numbers<[1], [0], [0], [1], [0, 0, 1, 1], [], []>} : vector<128x768xbf16>, vector<768x256xbf16>, vector<128x256xf32> -> vector<128x256xf32>
    %c0_37 = arith.constant 0 : index
    %c0_38 = arith.constant 0 : index
    %20 = vector.load %arg6[%c0_37, %c0_38] : memref<128x256xf32, #tpu.memory_space<vmem>>, vector<128x256xf32>
    tpu.vector_store %arg6[%c0_37, %c0_38], %19 {strides = array<i32>} : memref<128x256xf32, #tpu.memory_space<vmem>>, vector<128x256xf32>,
    %c0_39 = arith.constant 0 : index
    %c1_40 = arith.constant 1 : index
    %c0_41 = arith.constant 0 : index
    %c0_42 = arith.constant 0 : index
    %21 = vector.load %arg5[%c0_39, %c1_40, %c0_41, %c0_42] : memref<2x10x8x768xf32, #tpu.memory_space<vmem>>, vector<2x8x8x768xf32>
    %22 = vector.shape_cast %21 : vector<2x8x8x768xf32> to vector<128x768xf32>
    %23 = arith.truncf %22 : vector<128x768xf32> to vector<128x768xbf16>
    %c1_43 = arith.constant 1 : index
    %c0_44 = arith.constant 0 : index
    %c0_45 = arith.constant 0 : index
    %24 = vector.load %arg2[%c1_43, %c0_44, %c0_45] : memref<3x768x256xbf16, #tpu.memory_space<vmem>>, vector<1x768x256xbf16>
    %25 = vector.shape_cast %24 : vector<1x768x256xbf16> to vector<768x256xbf16>
    %cst_46 = arith.constant dense<0.000000e+00> : vector<128x256xf32>
    %26 = tpu.matmul %23, %25, %cst_46 {dimension_numbers = #tpu.dot_dimension_numbers<[1], [0], [0], [1], [0, 0, 1, 1], [], []>} : vector<128x768xbf16>, vector<768x256xbf16>, vector<128x256xf32> -> vector<128x256xf32>
    %c0_47 = arith.constant 0 : index
    %c0_48 = arith.constant 0 : index
    %27 = vector.load %arg6[%c0_47, %c0_48] : memref<128x256xf32, #tpu.memory_space<vmem>>, vector<128x256xf32>
    %28 = arith.addf %27, %26 : vector<128x256xf32>
    %c0_49 = arith.constant 0 : index
    %c0_50 = arith.constant 0 : index
    %29 = vector.load %arg6[%c0_49, %c0_50] : memref<128x256xf32, #tpu.memory_space<vmem>>, vector<128x256xf32>
    tpu.vector_store %arg6[%c0_49, %c0_50], %28 {strides = array<i32>} : memref<128x256xf32, #tpu.memory_space<vmem>>, vector<128x256xf32>,
    %c0_51 = arith.constant 0 : index
    %c2 = arith.constant 2 : index
    %c0_52 = arith.constant 0 : index
    %c0_53 = arith.constant 0 : index
    %30 = vector.load %arg5[%c0_51, %c2, %c0_52, %c0_53] : memref<2x10x8x768xf32, #tpu.memory_space<vmem>>, vector<2x8x8x768xf32>
    %31 = vector.shape_cast %30 : vector<2x8x8x768xf32> to vector<128x768xf32>
    %32 = arith.truncf %31 : vector<128x768xf32> to vector<128x768xbf16>
    %c2_54 = arith.constant 2 : index
    %c0_55 = arith.constant 0 : index
    %c0_56 = arith.constant 0 : index
    %33 = vector.load %arg2[%c2_54, %c0_55, %c0_56] : memref<3x768x256xbf16, #tpu.memory_space<vmem>>, vector<1x768x256xbf16>
    %34 = vector.shape_cast %33 : vector<1x768x256xbf16> to vector<768x256xbf16>
    %cst_57 = arith.constant dense<0.000000e+00> : vector<128x256xf32>
    %35 = tpu.matmul %32, %34, %cst_57 {dimension_numbers = #tpu.dot_dimension_numbers<[1], [0], [0], [1], [0, 0, 1, 1], [], []>} : vector<128x768xbf16>, vector<768x256xbf16>, vector<128x256xf32> -> vector<128x256xf32>
    %c0_58 = arith.constant 0 : index
    %c0_59 = arith.constant 0 : index
    %36 = vector.load %arg6[%c0_58, %c0_59] : memref<128x256xf32, #tpu.memory_space<vmem>>, vector<128x256xf32>
    %37 = arith.addf %36, %35 : vector<128x256xf32>
    %c0_60 = arith.constant 0 : index
    %c0_61 = arith.constant 0 : index
    %38 = vector.load %arg6[%c0_60, %c0_61] : memref<128x256xf32, #tpu.memory_space<vmem>>, vector<128x256xf32>
    tpu.vector_store %arg6[%c0_60, %c0_61], %37 {strides = array<i32>} : memref<128x256xf32, #tpu.memory_space<vmem>>, vector<128x256xf32>,
    %c0_62 = arith.constant 0 : index
    %c0_63 = arith.constant 0 : index
    %39 = vector.load %arg6[%c0_62, %c0_63] : memref<128x256xf32, #tpu.memory_space<vmem>>, vector<128x256xf32>
    %cst_64 = arith.constant 0.000000e+00 : f32
    %40 = vector.broadcast %cst_64 : f32 to vector<128x256xf32>
    %41 = arith.maximumf %39, %40 : vector<128x256xf32>
    %42 = vector.shape_cast %41 : vector<128x256xf32> to vector<2x8x8x256xf32>
    %c0_65 = arith.constant 0 : index
    %c1_66 = arith.constant 1 : index
    %c0_67 = arith.constant 0 : index
    %c256_68 = arith.constant 256 : index
    %43 = vector.load %arg5[%c0_65, %c1_66, %c0_67, %c256_68] : memref<2x10x8x768xf32, #tpu.memory_space<vmem>>, vector<2x8x8x256xf32>
    tpu.vector_store %arg5[%c0_65, %c1_66, %c0_67, %c256_68], %42 {strides = array<i32>} : memref<2x10x8x768xf32, #tpu.memory_space<vmem>>, vector<2x8x8x256xf32>,
    %44 = vector.extract_strided_slice %42 {offsets = [0, 0, 0, 0], sizes = [2, 8, 7, 256], strides = [1, 1, 1, 1]} : vector<2x8x8x256xf32> to vector<2x8x7x256xf32>
    %c0_69 = arith.constant 0 : index
    %c1_70 = arith.constant 1 : index
    %c1_71 = arith.constant 1 : index
    %c0_72 = arith.constant 0 : index
    %45 = vector.load %arg5[%c0_69, %c1_70, %c1_71, %c0_72] : memref<2x10x8x768xf32, #tpu.memory_space<vmem>>, vector<2x8x7x256xf32>
    tpu.vector_store %arg5[%c0_69, %c1_70, %c1_71, %c0_72], %44 {strides = array<i32>} : memref<2x10x8x768xf32, #tpu.memory_space<vmem>>, vector<2x8x7x256xf32>,
    %46 = vector.extract_strided_slice %42 {offsets = [0, 0, 1, 0], sizes = [2, 8, 7, 256], strides = [1, 1, 1, 1]} : vector<2x8x8x256xf32> to vector<2x8x7x256xf32>
    %c0_73 = arith.constant 0 : index
    %c1_74 = arith.constant 1 : index
    %c0_75 = arith.constant 0 : index
    %c512_76 = arith.constant 512 : index
    %47 = vector.load %arg5[%c0_73, %c1_74, %c0_75, %c512_76] : memref<2x10x8x768xf32, #tpu.memory_space<vmem>>, vector<2x8x7x256xf32>
    tpu.vector_store %arg5[%c0_73, %c1_74, %c0_75, %c512_76], %46 {strides = array<i32>} : memref<2x10x8x768xf32, #tpu.memory_space<vmem>>, vector<2x8x7x256xf32>,
    %c0_77 = arith.constant 0 : index
    %c0_78 = arith.constant 0 : index
    %c0_79 = arith.constant 0 : index
    %c0_80 = arith.constant 0 : index
    %48 = vector.load %arg5[%c0_77, %c0_78, %c0_79, %c0_80] : memref<2x10x8x768xf32, #tpu.memory_space<vmem>>, vector<2x8x8x768xf32>
    %49 = vector.shape_cast %48 : vector<2x8x8x768xf32> to vector<128x768xf32>
    %50 = arith.truncf %49 : vector<128x768xf32> to vector<128x768xbf16>
    %c0_81 = arith.constant 0 : index
    %c0_82 = arith.constant 0 : index
    %c0_83 = arith.constant 0 : index
    %51 = vector.load %arg3[%c0_81, %c0_82, %c0_83] : memref<3x768x256xbf16, #tpu.memory_space<vmem>>, vector<1x768x256xbf16>
    %52 = vector.shape_cast %51 : vector<1x768x256xbf16> to vector<768x256xbf16>
    %cst_84 = arith.constant dense<0.000000e+00> : vector<128x256xf32>
    %53 = tpu.matmul %50, %52, %cst_84 {dimension_numbers = #tpu.dot_dimension_numbers<[1], [0], [0], [1], [0, 0, 1, 1], [], []>} : vector<128x768xbf16>, vector<768x256xbf16>, vector<128x256xf32> -> vector<128x256xf32>
    %c0_85 = arith.constant 0 : index
    %c0_86 = arith.constant 0 : index
    %54 = vector.load %arg6[%c0_85, %c0_86] : memref<128x256xf32, #tpu.memory_space<vmem>>, vector<128x256xf32>
    tpu.vector_store %arg6[%c0_85, %c0_86], %53 {strides = array<i32>} : memref<128x256xf32, #tpu.memory_space<vmem>>, vector<128x256xf32>,
    %c0_87 = arith.constant 0 : index
    %c1_88 = arith.constant 1 : index
    %c0_89 = arith.constant 0 : index
    %c0_90 = arith.constant 0 : index
    %55 = vector.load %arg5[%c0_87, %c1_88, %c0_89, %c0_90] : memref<2x10x8x768xf32, #tpu.memory_space<vmem>>, vector<2x8x8x768xf32>
    %56 = vector.shape_cast %55 : vector<2x8x8x768xf32> to vector<128x768xf32>
    %57 = arith.truncf %56 : vector<128x768xf32> to vector<128x768xbf16>
    %c1_91 = arith.constant 1 : index
    %c0_92 = arith.constant 0 : index
    %c0_93 = arith.constant 0 : index
    %58 = vector.load %arg3[%c1_91, %c0_92, %c0_93] : memref<3x768x256xbf16, #tpu.memory_space<vmem>>, vector<1x768x256xbf16>
    %59 = vector.shape_cast %58 : vector<1x768x256xbf16> to vector<768x256xbf16>
    %cst_94 = arith.constant dense<0.000000e+00> : vector<128x256xf32>
    %60 = tpu.matmul %57, %59, %cst_94 {dimension_numbers = #tpu.dot_dimension_numbers<[1], [0], [0], [1], [0, 0, 1, 1], [], []>} : vector<128x768xbf16>, vector<768x256xbf16>, vector<128x256xf32> -> vector<128x256xf32>
    %c0_95 = arith.constant 0 : index
    %c0_96 = arith.constant 0 : index
    %61 = vector.load %arg6[%c0_95, %c0_96] : memref<128x256xf32, #tpu.memory_space<vmem>>, vector<128x256xf32>
    %62 = arith.addf %61, %60 : vector<128x256xf32>
    %c0_97 = arith.constant 0 : index
    %c0_98 = arith.constant 0 : index
    %63 = vector.load %arg6[%c0_97, %c0_98] : memref<128x256xf32, #tpu.memory_space<vmem>>, vector<128x256xf32>
    tpu.vector_store %arg6[%c0_97, %c0_98], %62 {strides = array<i32>} : memref<128x256xf32, #tpu.memory_space<vmem>>, vector<128x256xf32>,
    %c0_99 = arith.constant 0 : index
    %c2_100 = arith.constant 2 : index
    %c0_101 = arith.constant 0 : index
    %c0_102 = arith.constant 0 : index
    %64 = vector.load %arg5[%c0_99, %c2_100, %c0_101, %c0_102] : memref<2x10x8x768xf32, #tpu.memory_space<vmem>>, vector<2x8x8x768xf32>
    %65 = vector.shape_cast %64 : vector<2x8x8x768xf32> to vector<128x768xf32>
    %66 = arith.truncf %65 : vector<128x768xf32> to vector<128x768xbf16>
    %c2_103 = arith.constant 2 : index
    %c0_104 = arith.constant 0 : index
    %c0_105 = arith.constant 0 : index
    %67 = vector.load %arg3[%c2_103, %c0_104, %c0_105] : memref<3x768x256xbf16, #tpu.memory_space<vmem>>, vector<1x768x256xbf16>
    %68 = vector.shape_cast %67 : vector<1x768x256xbf16> to vector<768x256xbf16>
    %cst_106 = arith.constant dense<0.000000e+00> : vector<128x256xf32>
    %69 = tpu.matmul %66, %68, %cst_106 {dimension_numbers = #tpu.dot_dimension_numbers<[1], [0], [0], [1], [0, 0, 1, 1], [], []>} : vector<128x768xbf16>, vector<768x256xbf16>, vector<128x256xf32> -> vector<128x256xf32>
    %c0_107 = arith.constant 0 : index
    %c0_108 = arith.constant 0 : index
    %70 = vector.load %arg6[%c0_107, %c0_108] : memref<128x256xf32, #tpu.memory_space<vmem>>, vector<128x256xf32>
    %71 = arith.addf %70, %69 : vector<128x256xf32>
    %c0_109 = arith.constant 0 : index
    %c0_110 = arith.constant 0 : index
    %72 = vector.load %arg6[%c0_109, %c0_110] : memref<128x256xf32, #tpu.memory_space<vmem>>, vector<128x256xf32>
    tpu.vector_store %arg6[%c0_109, %c0_110], %71 {strides = array<i32>} : memref<128x256xf32, #tpu.memory_space<vmem>>, vector<128x256xf32>,
    %c0_111 = arith.constant 0 : index
    %c0_112 = arith.constant 0 : index
    %73 = vector.load %arg6[%c0_111, %c0_112] : memref<128x256xf32, #tpu.memory_space<vmem>>, vector<128x256xf32>
    %74 = vector.shape_cast %73 : vector<128x256xf32> to vector<2x8x8x256xf32>
    %c0_113 = arith.constant 0 : index
    %c0_114 = arith.constant 0 : index
    %c0_115 = arith.constant 0 : index
    %c0_116 = arith.constant 0 : index
    %75 = vector.load %arg1[%c0_113, %c0_114, %c0_115, %c0_116] : memref<2x8x8x256xf32, #tpu.memory_space<vmem>>, vector<2x8x8x256xf32>
    %76 = arith.addf %74, %75 : vector<2x8x8x256xf32>
    %c0_117 = arith.constant 0 : index
    %c0_118 = arith.constant 0 : index
    %c0_119 = arith.constant 0 : index
    %c0_120 = arith.constant 0 : index
    %77 = vector.load %arg4[%c0_117, %c0_118, %c0_119, %c0_120] : memref<2x8x8x256xf32, #tpu.memory_space<vmem>>, vector<2x8x8x256xf32>
    tpu.vector_store %arg4[%c0_117, %c0_118, %c0_119, %c0_120], %76 {strides = array<i32>} : memref<2x8x8x256xf32, #tpu.memory_space<vmem>>, vector<2x8x8x256xf32>,
    return
  }
  func.func @transform_0(%arg0: i32) -> (i32, i32, i32, i32) {
    %c0_i32 = arith.constant 0 : i32
    %c0_i32_0 = arith.constant 0 : i32
    %c0_i32_1 = arith.constant 0 : i32
    %c0_i32_2 = arith.constant 0 : i32
    return %arg0, %c0_i32, %c0_i32_0, %c0_i32_1 : i32, i32, i32, i32
  }
  func.func @transform_1(%arg0: i32) -> (i32, i32, i32) {
    %c0_i32 = arith.constant 0 : i32
    %c0_i32_0 = arith.constant 0 : i32
    %c0_i32_1 = arith.constant 0 : i32
    %c0_i32_2 = arith.constant 0 : i32
    return %c0_i32, %c0_i32_0, %c0_i32_1 : i32, i32, i32
  }
  func.func @transform_2(%arg0: i32) -> (i32, i32, i32) {
    %c0_i32 = arith.constant 0 : i32
    %c0_i32_0 = arith.constant 0 : i32
    %c0_i32_1 = arith.constant 0 : i32
    %c0_i32_2 = arith.constant 0 : i32
    return %c0_i32, %c0_i32_0, %c0_i32_1 : i32, i32, i32
  }
  func.func @transform_3(%arg0: i32) -> (i32, i32, i32, i32) {
    %c0_i32 = arith.constant 0 : i32
    %c0_i32_0 = arith.constant 0 : i32
    %c0_i32_1 = arith.constant 0 : i32
    %c0_i32_2 = arith.constant 0 : i32
    return %arg0, %c0_i32, %c0_i32_0, %c0_i32_1 : i32, i32, i32, i32
  }
}

</mosaic_0001>

<llo_original>
// kernel: tpu_custom_call.1
$region0: #{tpu_custom_call.1}
  #allocation0 [shape = 'u32[]', space=smem, size = 0x4, offset = 0x4, fixed_abs, tag = 'smem constant byte address 0x4 - core index']
  #allocation1 [shape = 'u32[144,128]{1,0:T(1,128)}', space=vmem, size = 0x12000, scoped, tag = 'internal scratch']
  #allocation2 [shape = 'f32[2,10,8,768]{3,2,1,0:T(8,128)}', space=vmem, size = 0x78000, scoped, tag = 'scratch operand']
  #allocation3 [shape = 'f32[128,256]{1,0:T(8,128)}', space=vmem, size = 0x20000, scoped, tag = 'scratch operand']
  %s0 = inlined_call_operand.hbm [shape: f32[4,8,8,256], index: 0, kind: input, shape index: {}]
  %s1 = inlined_call_operand.hbm [shape: bf16[3,768,256], index: 1, kind: input, shape index: {}]
  %s2 = inlined_call_operand.hbm [shape: bf16[3,768,256], index: 2, kind: input, shape index: {}]
  %s3 = inlined_call_operand.hbm [shape: f32[4,8,8,256], index: 3, kind: output, shape index: {}]
  %s4 = sld [smem:[#allocation0]]
  $region57: #{tpu_custom_call.1} parent=0
    _
  %s6 = ssub.s32 1, %s4
  %s7 = scalar_select 0, %s6, %s4
  $region1: #{tpu_custom_call.1} parent=0
    #allocation4 [shape = 'u8[262144]{0}', space=vmem, size = 0x40000, scoped, tag = 'input window, operand 0']
    #allocation5 [shape = 's32[2]{0}', space=sflag, size = 0x8, scoped, tag = 'scoped memory for tpu_custom_call.1']
    #allocation6 [shape = 's32[2]{0}', space=sflag, size = 0x8, scoped, tag = 'scoped memory for tpu_custom_call.1']
    #allocation7 [shape = 'u8[1179648]{0}', space=vmem, size = 0x120000, scoped, tag = 'input window, operand 1, single buffered']
    #allocation8 [shape = 's32[1]{0}', space=sflag, size = 0x4, scoped, tag = 'scoped memory for tpu_custom_call.1']
    #allocation9 [shape = 'u8[1179648]{0}', space=vmem, size = 0x120000, scoped, tag = 'input window, operand 2, single buffered']
    #allocation10 [shape = 'u8[262144]{0}', space=vmem, size = 0x40000, scoped, tag = 'output window, operand 0']
    %8 = vsyncpa [#allocation5], 0
    %s9 = scalar_lea.sflag [#allocation5], 1
    %10 = vsyncpa %s9, 0
    %11 = vsyncpa [#allocation8], 0
    %12 = vsyncpa [#allocation6], 0
    %s13 = scalar_lea.sflag [#allocation6], 1
    %14 = vsyncpa %s13, 0
    loop: start=0, step=1, limit=4
    $region2: #{tpu_custom_call.1} parent=1 // loop_pre_header
      _
    $region3: #{tpu_custom_call.1} parent=1 // loop_header
      %s16 = sphi 0, %s20
      %p17 = scmp.ge.s32.totalorder %s16, 4
      %s26 = sphi 0, %s28
      %s29 = sphi 0, %s26
      %s30 = sphi 0, %s29
      %s46 = sphi 0, %s30
      %s50 = sphi 0, %s50
      %s52 = sphi 0, %s50
      %s53 = sphi 0, %s52
      %s67 = sphi 0, %s53
      %s71 = sphi 0, %s71
      %s73 = sphi 0, %s71
      %s74 = sphi 0, %s73
      %s88 = sphi 0, %s74
      %s94 = sphi 0, %s96
      %s97 = sphi 0, %s94
      %s98 = sphi 0, %s97
      %s114 = sphi 0, %s98
    $region4: #{tpu_custom_call.1} parent=1 // loop_header_branch
      %19 = sbr.rel (%p17) target = $region8
    $region5: #{tpu_custom_call.1} parent=1 // loop_body
      %s21 = ssub.s32 %s16, 1
      %s22 = ssub.s32 %s16, 2
      %s23 = sadd.s32 %s16, 1
      %s24 = ssub.s32 %s16, %s23
      %p25 = scmp.eq.s32.totalorder %s24, 0
      %s27 = sadd.s32 %s26, 1
      %s28 = scalar_select %p25, %s26, %s27
      %p31 = pneg %p25
      %p32 = scmp.eq.s32.totalorder %s16, 1
      %p33 = por %p31, %p32
      %p34 = scmp.ne.s32.totalorder %s26, %s29
      %p35 = scmp.eq.s32.totalorder %s16, 0
      %p36 = por %p34, %p35
      %p37 = scmp.ne.s32.totalorder %s26, %s29
      %p38 = scmp.eq.s32.totalorder %s21, 1
      %p39 = por %p37, %p38
      %p40 = scmp.ne.s32.totalorder %s29, %s30
      %p41 = scmp.eq.s32.totalorder %s21, 0
      %p42 = por %p40, %p41
      %p43 = scmp.ne.s32.totalorder %s29, %s30
      %p44 = scmp.eq.s32.totalorder %s22, 1
      %p45 = por %p43, %p44
      %p47 = scmp.ne.s32.totalorder %s30, %s46
      %p48 = scmp.eq.s32.totalorder %s22, 0
      %p49 = por %p47, %p48
      %s51 = sadd.s32 %s50, 1
      %p54 = scmp.eq.s32.totalorder %s16, 1
      %p55 = scmp.ne.s32.totalorder %s50, %s52
      %p56 = scmp.eq.s32.totalorder %s16, 0
      %p57 = por %p55, %p56
      %p58 = scmp.ne.s32.totalorder %s50, %s52
      %p59 = scmp.eq.s32.totalorder %s21, 1
      %p60 = por %p58, %p59
      %p61 = scmp.ne.s32.totalorder %s52, %s53
      %p62 = scmp.eq.s32.totalorder %s21, 0
      %p63 = por %p61, %p62
      %p64 = scmp.ne.s32.totalorder %s52, %s53
      %p65 = scmp.eq.s32.totalorder %s22, 1
      %p66 = por %p64, %p65
      %p68 = scmp.ne.s32.totalorder %s53, %s67
      %p69 = scmp.eq.s32.totalorder %s22, 0
      %p70 = por %p68, %p69
      %s72 = sadd.s32 %s71, 1
      %p75 = scmp.eq.s32.totalorder %s16, 1
      %p76 = scmp.ne.s32.totalorder %s71, %s73
      %p77 = scmp.eq.s32.totalorder %s16, 0
      %p78 = por %p76, %p77
      %p79 = scmp.ne.s32.totalorder %s71, %s73
      %p80 = scmp.eq.s32.totalorder %s21, 1
      %p81 = por %p79, %p80
      %p82 = scmp.ne.s32.totalorder %s73, %s74
      %p83 = scmp.eq.s32.totalorder %s21, 0
      %p84 = por %p82, %p83
      %p85 = scmp.ne.s32.totalorder %s73, %s74
      %p86 = scmp.eq.s32.totalorder %s22, 1
      %p87 = por %p85, %p86
      %p89 = scmp.ne.s32.totalorder %s74, %s88
      %p90 = scmp.eq.s32.totalorder %s22, 0
      %p91 = por %p89, %p90
      %s92 = ssub.s32 %s16, %s23
      %p93 = scmp.eq.s32.totalorder %s92, 0
      %s95 = sadd.s32 %s94, 1
      %s96 = scalar_select %p93, %s94, %s95
      %p99 = pneg %p93
      %p100 = scmp.eq.s32.totalorder %s16, 1
      %p101 = por %p99, %p100
      %p102 = scmp.ne.s32.totalorder %s94, %s97
      %p103 = scmp.eq.s32.totalorder %s16, 0
      %p104 = por %p102, %p103
      %p105 = scmp.ne.s32.totalorder %s94, %s97
      %p106 = scmp.eq.s32.totalorder %s21, 1
      %p107 = por %p105, %p106
      %p108 = scmp.ne.s32.totalorder %s97, %s98
      %p109 = scmp.eq.s32.totalorder %s21, 0
      %p110 = por %p108, %p109
      %p111 = scmp.ne.s32.totalorder %s97, %s98
      %p112 = scmp.eq.s32.totalorder %s22, 1
      %p113 = por %p111, %p112
      %p115 = scmp.ne.s32.totalorder %s98, %s114
      %p116 = scmp.eq.s32.totalorder %s22, 0
      %p117 = por %p115, %p116
      %p118 = scmp.le.s32.totalorder 1, %s16
      %p119 = scmp.lt.s32.totalorder %s16, 3
      %p120 = pnand %p118, %p119
      %p121 = pneg %p120
      // Predicated region
      $region9: #{tpu_custom_call.1} parent=5 // pred_check
        _
      $region10: #{tpu_custom_call.1} parent=5 // pred_check_branch
        %123 = sbr.rel (%p120) target = $region12
      $region11: #{tpu_custom_call.1} parent=5 // pred_region
        %s124 = ssub.s32 %s16, 1
        // Predicated region
        $region13: #{tpu_custom_call.1} parent=11 // pred_check
          %p125 = pneg %p63
        $region14: #{tpu_custom_call.1} parent=11 // pred_check_branch
          %127 = sbr.rel (%p125) target = $region16
        $region15: #{tpu_custom_call.1} parent=11 // pred_region
          %s129 = ssub.s32 36864, 36864
          %130 = vsyncadd [#allocation8], %s129
          %s131 = sshll.u32 [#allocation7], 4
          %s132 = int_to_ptr.vmem [resolvable:$true] %s131
          %137 = dma.hbm_to_vmem [thread:$0]  %s1, 36864, %s132, [#allocation8], 128, 128, 8
        $region16: #{tpu_custom_call.1} parent=11 // pred_fallthru
          _
        // Predicated region
        $region17: #{tpu_custom_call.1} parent=11 // pred_check
          %p138 = pneg %p84
        $region18: #{tpu_custom_call.1} parent=11 // pred_check_branch
          %140 = sbr.rel (%p138) target = $region20
        $region19: #{tpu_custom_call.1} parent=11 // pred_region
          %s142 = ssub.s32 36864, 36864
          %143 = vsyncadd [#allocation8], %s142
          %s144 = sshll.u32 [#allocation9], 4
          %s145 = int_to_ptr.vmem [resolvable:$true] %s144
          %150 = dma.hbm_to_vmem [thread:$0]  %s2, 36864, %s145, [#allocation8], 128, 128, 8
        $region20: #{tpu_custom_call.1} parent=11 // pred_fallthru
          _
      $region12: #{tpu_custom_call.1} parent=5 // pred_fallthru
        _
      %p151 = scmp.lt.s32.totalorder %s16, 2
      // Predicated region
      $region21: #{tpu_custom_call.1} parent=5 // pred_check
        %p152 = pneg %p151
      $region22: #{tpu_custom_call.1} parent=5 // pred_check_branch
        %154 = sbr.rel (%p152) target = $region24
      $region23: #{tpu_custom_call.1} parent=5 // pred_region
        // Predicated region
        $region25: #{tpu_custom_call.1} parent=23 // pred_check
          %p155 = pneg %p36
        $region26: #{tpu_custom_call.1} parent=23 // pred_check_branch
          %157 = sbr.rel (%p155) target = $region28
        $region27: #{tpu_custom_call.1} parent=23 // pred_region
          %s158 = sand.u32 %s26, 1
          %s159 = scalar_lea.sflag [#allocation5], %s158
          %s160 = sand.u32 %s26, 1
          %s161 = smul.addr %s160, 256
          %s162 = scalar_lea.vmem [#allocation4], %s161
          %s163 = smul.u32 2, %s16
          %s165 = ssub.s32 4096, 4096
          %166 = vsyncadd %s159, %s165
          %s167 = smul.addr %s163, 16
          %s168 = smul.addr %s167, 128
          %s169 = scalar_lea.hbm %s0, %s168
          %s170 = sshll.u32 %s162, 4
          %s171 = int_to_ptr.vmem [resolvable:$true] %s170
          %176 = dma.hbm_to_vmem [thread:$0]  %s169, 4096, %s171, %s159, 256, 256, 16
        $region28: #{tpu_custom_call.1} parent=23 // pred_fallthru
          _
      $region24: #{tpu_custom_call.1} parent=5 // pred_fallthru
        _
      %p177 = scmp.le.s32.totalorder 1, %s16
      %p178 = scmp.lt.s32.totalorder %s16, 3
      %p179 = pnand %p177, %p178
      %p180 = pneg %p179
      // Predicated region
      $region29: #{tpu_custom_call.1} parent=5 // pred_check
        _
      $region30: #{tpu_custom_call.1} parent=5 // pred_check_branch
        %182 = sbr.rel (%p179) target = $region32
      $region31: #{tpu_custom_call.1} parent=5 // pred_region
        %s183 = ssub.s32 %s16, 1
        %s184 = sand.u32 %s29, 1
        %s185 = scalar_lea.sflag [#allocation5], %s184
        %s186 = sand.u32 %s29, 1
        %s187 = smul.addr %s186, 256
        %s188 = scalar_lea.vmem [#allocation4], %s187
        // Predicated region
        $region33: #{tpu_custom_call.1} parent=31 // pred_check
          %p189 = pneg %p42
        $region34: #{tpu_custom_call.1} parent=31 // pred_check_branch
          %191 = sbr.rel (%p189) target = $region36
        $region35: #{tpu_custom_call.1} parent=31 // pred_region
          %192 = dma.done %s185, 4096
        $region36: #{tpu_custom_call.1} parent=31 // pred_fallthru
          _
        // Predicated region
        $region37: #{tpu_custom_call.1} parent=31 // pred_check
          %p193 = pneg %p63
        $region38: #{tpu_custom_call.1} parent=31 // pred_check_branch
          %195 = sbr.rel (%p193) target = $region40
        $region39: #{tpu_custom_call.1} parent=31 // pred_region
          %196 = dma.done [#allocation8], 36864
        $region40: #{tpu_custom_call.1} parent=31 // pred_fallthru
          _
        // Predicated region
        $region41: #{tpu_custom_call.1} parent=31 // pred_check
          %p197 = pneg %p84
        $region42: #{tpu_custom_call.1} parent=31 // pred_check_branch
          %199 = sbr.rel (%p197) target = $region44
        $region43: #{tpu_custom_call.1} parent=31 // pred_region
          %200 = dma.done [#allocation8], 36864
        $region44: #{tpu_custom_call.1} parent=31 // pred_fallthru
          _
        %s201 = sand.u32 %s29, 1
        %s202 = scalar_lea.sflag [#allocation5], %s201
        %s203 = sand.u32 %s29, 1
        %s204 = smul.addr %s203, 256
        %s205 = scalar_lea.vmem [#allocation4], %s204
        %p206 = pneg %p42
        %p207 = pneg %p39
        %p208 = pneg %p63
        %p209 = pneg %p60
        %p210 = pneg %p84
        %p211 = pneg %p81
        %p212 = pneg %p110
        %p213 = pneg %p107
        %s214 = sand.u32 %s97, 1
        %s215 = scalar_lea.sflag [#allocation6], %s214
        %s216 = sand.u32 %s97, 1
        %s217 = smul.addr %s216, 256
        %s218 = scalar_lea.vmem [#allocation10], %s217
        %s219 = smul.u32 2, %s21
        %s220 = smul.u32 2, %s21
        %221 = vst [vmem:[#allocation2] sm:$0xff] 0.0
        %222 = vst [vmem:[#allocation2 + $0x8] sm:$0xff] 0.0
        %223 = vst [vmem:[#allocation2 + $0x10] sm:$0xff] 0.0
        %224 = vst [vmem:[#allocation2 + $0x18] sm:$0xff] 0.0
        %225 = vst [vmem:[#allocation2 + $0x20] sm:$0xff] 0.0
        %226 = vst [vmem:[#allocation2 + $0x28] sm:$0xff] 0.0
        %227 = vst [vmem:[#allocation2 + $0x1e0] sm:$0xff] 0.0
        %228 = vst [vmem:[#allocation2 + $0x1e8] sm:$0xff] 0.0
        %229 = vst [vmem:[#allocation2 + $0x1f0] sm:$0xff] 0.0
        %230 = vst [vmem:[#allocation2 + $0x1f8] sm:$0xff] 0.0
        %231 = vst [vmem:[#allocation2 + $0x200] sm:$0xff] 0.0
        %232 = vst [vmem:[#allocation2 + $0x208] sm:$0xff] 0.0
        %s233 = scalar_lea.vmem [#allocation2], 432
        %234 = vst [vmem:[%s233] sm:$0xff] 0.0
        %235 = vst [vmem:[%s233 + $0x8] sm:$0xff] 0.0
        %236 = vst [vmem:[%s233 + $0x10] sm:$0xff] 0.0
        %237 = vst [vmem:[%s233 + $0x18] sm:$0xff] 0.0
        %238 = vst [vmem:[%s233 + $0x20] sm:$0xff] 0.0
        %239 = vst [vmem:[%s233 + $0x28] sm:$0xff] 0.0
        %240 = vst [vmem:[%s233 + $0x1e0] sm:$0xff] 0.0
        %241 = vst [vmem:[%s233 + $0x1e8] sm:$0xff] 0.0
        %242 = vst [vmem:[%s233 + $0x1f0] sm:$0xff] 0.0
        %243 = vst [vmem:[%s233 + $0x1f8] sm:$0xff] 0.0
        %244 = vst [vmem:[%s233 + $0x200] sm:$0xff] 0.0
        %245 = vst [vmem:[%s233 + $0x208] sm:$0xff] 0.0
        %s246 = scalar_lea.vmem [#allocation2], 48
        %v247 = vlaneseq
        %vm248 = vcmp.ge.s32.totalorder %v247, 0
        %vm249 = vcmp.lt.s32.totalorder %v247, 256
        %vm250 = vmand %vm248, %vm249
        %251 = vst.msk [vmem:[%s246] ss:$8 sm:$0x3] %vm250, 0.0
        %252 = vst.msk [vmem:[%s246] ss:$8 sm:$0x0] %vm250, 0.0
        %s253 = scalar_lea.vmem %s246, 48 [#allocation2]
        %254 = vst.msk [vmem:[%s253] ss:$8 sm:$0x3] %vm250, 0.0
        %255 = vst.msk [vmem:[%s253] ss:$8 sm:$0x0] %vm250, 0.0
        %s256 = scalar_lea.vmem %s246, 96 [#allocation2]
        %257 = vst.msk [vmem:[%s256] ss:$8 sm:$0x3] %vm250, 0.0
        %258 = vst.msk [vmem:[%s256] ss:$8 sm:$0x0] %vm250, 0.0
        %s259 = scalar_lea.vmem %s246, 144 [#allocation2]
        %260 = vst.msk [vmem:[%s259] ss:$8 sm:$0x3] %vm250, 0.0
        %261 = vst.msk [vmem:[%s259] ss:$8 sm:$0x0] %vm250, 0.0
        %s262 = scalar_lea.vmem %s246, 192 [#allocation2]
        %263 = vst.msk [vmem:[%s262] ss:$8 sm:$0x3] %vm250, 0.0
        %264 = vst.msk [vmem:[%s262] ss:$8 sm:$0x0] %vm250, 0.0
        %s265 = scalar_lea.vmem %s246, 240 [#allocation2]
        %266 = vst.msk [vmem:[%s265] ss:$8 sm:$0x3] %vm250, 0.0
        %267 = vst.msk [vmem:[%s265] ss:$8 sm:$0x0] %vm250, 0.0
        %s268 = scalar_lea.vmem %s246, 288 [#allocation2]
        %269 = vst.msk [vmem:[%s268] ss:$8 sm:$0x3] %vm250, 0.0
        %270 = vst.msk [vmem:[%s268] ss:$8 sm:$0x0] %vm250, 0.0
        %s271 = scalar_lea.vmem %s246, 336 [#allocation2]
        %272 = vst.msk [vmem:[%s271] ss:$8 sm:$0x3] %vm250, 0.0
        %273 = vst.msk [vmem:[%s271] ss:$8 sm:$0x0] %vm250, 0.0
        %s274 = scalar_lea.vmem %s246, 480 [#allocation2]
        %275 = vst.msk [vmem:[%s274] ss:$8 sm:$0x3] %vm250, 0.0
        %276 = vst.msk [vmem:[%s274] ss:$8 sm:$0x0] %vm250, 0.0
        %s277 = scalar_lea.vmem %s246, 528 [#allocation2]
        %278 = vst.msk [vmem:[%s277] ss:$8 sm:$0x3] %vm250, 0.0
        %279 = vst.msk [vmem:[%s277] ss:$8 sm:$0x0] %vm250, 0.0
        %s280 = scalar_lea.vmem %s246, 576 [#allocation2]
        %281 = vst.msk [vmem:[%s280] ss:$8 sm:$0x3] %vm250, 0.0
        %282 = vst.msk [vmem:[%s280] ss:$8 sm:$0x0] %vm250, 0.0
        %s283 = scalar_lea.vmem %s246, 624 [#allocation2]
        %284 = vst.msk [vmem:[%s283] ss:$8 sm:$0x3] %vm250, 0.0
        %285 = vst.msk [vmem:[%s283] ss:$8 sm:$0x0] %vm250, 0.0
        %s286 = scalar_lea.vmem %s246, 672 [#allocation2]
        %287 = vst.msk [vmem:[%s286] ss:$8 sm:$0x3] %vm250, 0.0
        %288 = vst.msk [vmem:[%s286] ss:$8 sm:$0x0] %vm250, 0.0
        %s289 = scalar_lea.vmem %s246, 720 [#allocation2]
        %290 = vst.msk [vmem:[%s289] ss:$8 sm:$0x3] %vm250, 0.0
        %291 = vst.msk [vmem:[%s289] ss:$8 sm:$0x0] %vm250, 0.0
        %s292 = scalar_lea.vmem %s246, 768 [#allocation2]
        %293 = vst.msk [vmem:[%s292] ss:$8 sm:$0x3] %vm250, 0.0
        %294 = vst.msk [vmem:[%s292] ss:$8 sm:$0x0] %vm250, 0.0
        %s295 = scalar_lea.vmem %s246, 816 [#allocation2]
        %296 = vst.msk [vmem:[%s295] ss:$8 sm:$0x3] %vm250, 0.0
        %297 = vst.msk [vmem:[%s295] ss:$8 sm:$0x0] %vm250, 0.0
        %s298 = scalar_lea.vmem %s246, 39 [#allocation2]
        %299 = vst.msk [vmem:[%s298] ss:$8 sm:$0x3] %vm250, 0.0
        %300 = vst.msk [vmem:[%s298] ss:$8 sm:$0x0] %vm250, 0.0
        %s301 = scalar_lea.vmem %s246, 87 [#allocation2]
        %302 = vst.msk [vmem:[%s301] ss:$8 sm:$0x3] %vm250, 0.0
        %303 = vst.msk [vmem:[%s301] ss:$8 sm:$0x0] %vm250, 0.0
        %s304 = scalar_lea.vmem %s246, 135 [#allocation2]
        %305 = vst.msk [vmem:[%s304] ss:$8 sm:$0x3] %vm250, 0.0
        %306 = vst.msk [vmem:[%s304] ss:$8 sm:$0x0] %vm250, 0.0
        %s307 = scalar_lea.vmem %s246, 183 [#allocation2]
        %308 = vst.msk [vmem:[%s307] ss:$8 sm:$0x3] %vm250, 0.0
        %309 = vst.msk [vmem:[%s307] ss:$8 sm:$0x0] %vm250, 0.0
        %s310 = scalar_lea.vmem %s246, 231 [#allocation2]
        %311 = vst.msk [vmem:[%s310] ss:$8 sm:$0x3] %vm250, 0.0
        %312 = vst.msk [vmem:[%s310] ss:$8 sm:$0x0] %vm250, 0.0
        %s313 = scalar_lea.vmem %s246, 279 [#allocation2]
        %314 = vst.msk [vmem:[%s313] ss:$8 sm:$0x3] %vm250, 0.0
        %315 = vst.msk [vmem:[%s313] ss:$8 sm:$0x0] %vm250, 0.0
        %s316 = scalar_lea.vmem %s246, 327 [#allocation2]
        %317 = vst.msk [vmem:[%s316] ss:$8 sm:$0x3] %vm250, 0.0
        %318 = vst.msk [vmem:[%s316] ss:$8 sm:$0x0] %vm250, 0.0
        %s319 = scalar_lea.vmem %s246, 375 [#allocation2]
        %320 = vst.msk [vmem:[%s319] ss:$8 sm:$0x3] %vm250, 0.0
        %321 = vst.msk [vmem:[%s319] ss:$8 sm:$0x0] %vm250, 0.0
        %s322 = scalar_lea.vmem %s246, 519 [#allocation2]
        %323 = vst.msk [vmem:[%s322] ss:$8 sm:$0x3] %vm250, 0.0
        %324 = vst.msk [vmem:[%s322] ss:$8 sm:$0x0] %vm250, 0.0
        %s325 = scalar_lea.vmem %s246, 567 [#allocation2]
        %326 = vst.msk [vmem:[%s325] ss:$8 sm:$0x3] %vm250, 0.0
        %327 = vst.msk [vmem:[%s325] ss:$8 sm:$0x0] %vm250, 0.0
        %s328 = scalar_lea.vmem %s246, 615 [#allocation2]
        %329 = vst.msk [vmem:[%s328] ss:$8 sm:$0x3] %vm250, 0.0
        %330 = vst.msk [vmem:[%s328] ss:$8 sm:$0x0] %vm250, 0.0
        %s331 = scalar_lea.vmem %s246, 663 [#allocation2]
        %332 = vst.msk [vmem:[%s331] ss:$8 sm:$0x3] %vm250, 0.0
        %333 = vst.msk [vmem:[%s331] ss:$8 sm:$0x0] %vm250, 0.0
        %s334 = scalar_lea.vmem %s246, 711 [#allocation2]
        %335 = vst.msk [vmem:[%s334] ss:$8 sm:$0x3] %vm250, 0.0
        %336 = vst.msk [vmem:[%s334] ss:$8 sm:$0x0] %vm250, 0.0
        %s337 = scalar_lea.vmem %s246, 759 [#allocation2]
        %338 = vst.msk [vmem:[%s337] ss:$8 sm:$0x3] %vm250, 0.0
        %339 = vst.msk [vmem:[%s337] ss:$8 sm:$0x0] %vm250, 0.0
        %s340 = scalar_lea.vmem %s246, 807 [#allocation2]
        %341 = vst.msk [vmem:[%s340] ss:$8 sm:$0x3] %vm250, 0.0
        %342 = vst.msk [vmem:[%s340] ss:$8 sm:$0x0] %vm250, 0.0
        %s343 = scalar_lea.vmem %s246, 855 [#allocation2]
        %344 = vst.msk [vmem:[%s343] ss:$8 sm:$0x3] %vm250, 0.0
        %345 = vst.msk [vmem:[%s343] ss:$8 sm:$0x0] %vm250, 0.0
        %v346 = vld [vmem:[%s188] sm:$0xff]
        %v347 = vld [vmem:[%s188 + $0x8] sm:$0xff]
        %v348 = vld [vmem:[%s188 + $0x10] sm:$0xff]
        %v349 = vld [vmem:[%s188 + $0x18] sm:$0xff]
        %v350 = vld [vmem:[%s188 + $0x20] sm:$0xff]
        %v351 = vld [vmem:[%s188 + $0x28] sm:$0xff]
        %v352 = vld [vmem:[%s188 + $0x30] sm:$0xff]
        %v353 = vld [vmem:[%s188 + $0x38] sm:$0xff]
        %v354 = vld [vmem:[%s188 + $0x40] sm:$0xff]
        %v355 = vld [vmem:[%s188 + $0x48] sm:$0xff]
        %v356 = vld [vmem:[%s188 + $0x50] sm:$0xff]
        %v357 = vld [vmem:[%s188 + $0x58] sm:$0xff]
        %v358 = vld [vmem:[%s188 + $0x60] sm:$0xff]
        %v359 = vld [vmem:[%s188 + $0x68] sm:$0xff]
        %v360 = vld [vmem:[%s188 + $0x70] sm:$0xff]
        %v361 = vld [vmem:[%s188 + $0x78] sm:$0xff]
        %v362 = vld [vmem:[%s188 + $0x80] sm:$0xff]
        %v363 = vld [vmem:[%s188 + $0x88] sm:$0xff]
        %v364 = vld [vmem:[%s188 + $0x90] sm:$0xff]
        %v365 = vld [vmem:[%s188 + $0x98] sm:$0xff]
        %v366 = vld [vmem:[%s188 + $0xa0] sm:$0xff]
        %v367 = vld [vmem:[%s188 + $0xa8] sm:$0xff]
        %v368 = vld [vmem:[%s188 + $0xb0] sm:$0xff]
        %v369 = vld [vmem:[%s188 + $0xb8] sm:$0xff]
        %v370 = vld [vmem:[%s188 + $0xc0] sm:$0xff]
        %v371 = vld [vmem:[%s188 + $0xc8] sm:$0xff]
        %v372 = vld [vmem:[%s188 + $0xd0] sm:$0xff]
        %v373 = vld [vmem:[%s188 + $0xd8] sm:$0xff]
        %v374 = vld [vmem:[%s188 + $0xe0] sm:$0xff]
        %v375 = vld [vmem:[%s188 + $0xe8] sm:$0xff]
        %v376 = vld [vmem:[%s188 + $0xf0] sm:$0xff]
        %v377 = vld [vmem:[%s188 + $0xf8] sm:$0xff]
        %378 = vst [vmem:[%s246 + $0x10] sm:$0xff] %v346
        %379 = vst [vmem:[%s246 + $0x18] sm:$0xff] %v347
        %380 = vst [vmem:[%s246 + $0x40] sm:$0xff] %v348
        %381 = vst [vmem:[%s246 + $0x48] sm:$0xff] %v349
        %382 = vst [vmem:[%s246 + $0x70] sm:$0xff] %v350
        %383 = vst [vmem:[%s246 + $0x78] sm:$0xff] %v351
        %384 = vst [vmem:[%s246 + $0xa0] sm:$0xff] %v352
        %385 = vst [vmem:[%s246 + $0xa8] sm:$0xff] %v353
        %386 = vst [vmem:[%s246 + $0xd0] sm:$0xff] %v354
        %387 = vst [vmem:[%s246 + $0xd8] sm:$0xff] %v355
        %388 = vst [vmem:[%s246 + $0x100] sm:$0xff] %v356
        %389 = vst [vmem:[%s246 + $0x108] sm:$0xff] %v357
        %390 = vst [vmem:[%s246 + $0x130] sm:$0xff] %v358
        %391 = vst [vmem:[%s246 + $0x138] sm:$0xff] %v359
        %392 = vst [vmem:[%s246 + $0x160] sm:$0xff] %v360
        %393 = vst [vmem:[%s246 + $0x168] sm:$0xff] %v361
        %394 = vst [vmem:[%s246 + $0x1f0] sm:$0xff] %v362
        %395 = vst [vmem:[%s246 + $0x1f8] sm:$0xff] %v363
        %396 = vst [vmem:[%s246 + $0x220] sm:$0xff] %v364
        %397 = vst [vmem:[%s246 + $0x228] sm:$0xff] %v365
        %398 = vst [vmem:[%s246 + $0x250] sm:$0xff] %v366
        %399 = vst [vmem:[%s246 + $0x258] sm:$0xff] %v367
        %400 = vst [vmem:[%s246 + $0x280] sm:$0xff] %v368
        %401 = vst [vmem:[%s246 + $0x288] sm:$0xff] %v369
        %402 = vst [vmem:[%s246 + $0x2b0] sm:$0xff] %v370
        %403 = vst [vmem:[%s246 + $0x2b8] sm:$0xff] %v371
        %404 = vst [vmem:[%s246 + $0x2e0] sm:$0xff] %v372
        %405 = vst [vmem:[%s246 + $0x2e8] sm:$0xff] %v373
        %406 = vst [vmem:[%s246 + $0x310] sm:$0xff] %v374
        %407 = vst [vmem:[%s246 + $0x318] sm:$0xff] %v375
        %408 = vst [vmem:[%s246 + $0x340] sm:$0xff] %v376
        %409 = vst [vmem:[%s246 + $0x348] sm:$0xff] %v377
        %v442 = vrot.slane %v346, 7
        %v443 = vrot.slane %v347, 7
        %v444 = vrot.slane %v348, 7
        %v445 = vrot.slane %v349, 7
        %v446 = vrot.slane %v350, 7
        %v447 = vrot.slane %v351, 7
        %v448 = vrot.slane %v352, 7
        %v449 = vrot.slane %v353, 7
        %v450 = vrot.slane %v354, 7
        %v451 = vrot.slane %v355, 7
        %v452 = vrot.slane %v356, 7
        %v453 = vrot.slane %v357, 7
        %v454 = vrot.slane %v358, 7
        %v455 = vrot.slane %v359, 7
        %v456 = vrot.slane %v360, 7
        %v457 = vrot.slane %v361, 7
        %v458 = vrot.slane %v362, 7
        %v459 = vrot.slane %v363, 7
        %v460 = vrot.slane %v364, 7
        %v461 = vrot.slane %v365, 7
        %v462 = vrot.slane %v366, 7
        %v463 = vrot.slane %v367, 7
        %v464 = vrot.slane %v368, 7
        %v465 = vrot.slane %v369, 7
        %v466 = vrot.slane %v370, 7
        %v467 = vrot.slane %v371, 7
        %v468 = vrot.slane %v372, 7
        %v469 = vrot.slane %v373, 7
        %v470 = vrot.slane %v374, 7
        %v471 = vrot.slane %v375, 7
        %v472 = vrot.slane %v376, 7
        %v473 = vrot.slane %v377, 7
        %506 = vst [vmem:[%s246] sm:$0xfe] %v442
        %507 = vst [vmem:[%s246 + $0x8] sm:$0xfe] %v443
        %508 = vst [vmem:[%s246 + $0x30] sm:$0xfe] %v444
        %509 = vst [vmem:[%s246 + $0x38] sm:$0xfe] %v445
        %510 = vst [vmem:[%s246 + $0x60] sm:$0xfe] %v446
        %511 = vst [vmem:[%s246 + $0x68] sm:$0xfe] %v447
        %512 = vst [vmem:[%s246 + $0x90] sm:$0xfe] %v448
        %513 = vst [vmem:[%s246 + $0x98] sm:$0xfe] %v449
        %514 = vst [vmem:[%s246 + $0xc0] sm:$0xfe] %v450
        %515 = vst [vmem:[%s246 + $0xc8] sm:$0xfe] %v451
        %516 = vst [vmem:[%s246 + $0xf0] sm:$0xfe] %v452
        %517 = vst [vmem:[%s246 + $0xf8] sm:$0xfe] %v453
        %518 = vst [vmem:[%s246 + $0x120] sm:$0xfe] %v454
        %519 = vst [vmem:[%s246 + $0x128] sm:$0xfe] %v455
        %520 = vst [vmem:[%s246 + $0x150] sm:$0xfe] %v456
        %521 = vst [vmem:[%s246 + $0x158] sm:$0xfe] %v457
        %522 = vst [vmem:[%s246 + $0x1e0] sm:$0xfe] %v458
        %523 = vst [vmem:[%s246 + $0x1e8] sm:$0xfe] %v459
        %524 = vst [vmem:[%s246 + $0x210] sm:$0xfe] %v460
        %525 = vst [vmem:[%s246 + $0x218] sm:$0xfe] %v461
        %526 = vst [vmem:[%s246 + $0x240] sm:$0xfe] %v462
        %527 = vst [vmem:[%s246 + $0x248] sm:$0xfe] %v463
        %528 = vst [vmem:[%s246 + $0x270] sm:$0xfe] %v464
        %529 = vst [vmem:[%s246 + $0x278] sm:$0xfe] %v465
        %530 = vst [vmem:[%s246 + $0x2a0] sm:$0xfe] %v466
        %531 = vst [vmem:[%s246 + $0x2a8] sm:$0xfe] %v467
        %532 = vst [vmem:[%s246 + $0x2d0] sm:$0xfe] %v468
        %533 = vst [vmem:[%s246 + $0x2d8] sm:$0xfe] %v469
        %534 = vst [vmem:[%s246 + $0x300] sm:$0xfe] %v470
        %535 = vst [vmem:[%s246 + $0x308] sm:$0xfe] %v471
        %536 = vst [vmem:[%s246 + $0x330] sm:$0xfe] %v472
        %537 = vst [vmem:[%s246 + $0x338] sm:$0xfe] %v473
        %v538 = vrot.slane %v346, 1
        %v539 = vrot.slane %v347, 1
        %v540 = vrot.slane %v348, 1
        %v541 = vrot.slane %v349, 1
        %v542 = vrot.slane %v350, 1
        %v543 = vrot.slane %v351, 1
        %v544 = vrot.slane %v352, 1
        %v545 = vrot.slane %v353, 1
        %v546 = vrot.slane %v354, 1
        %v547 = vrot.slane %v355, 1
        %v548 = vrot.slane %v356, 1
        %v549 = vrot.slane %v357, 1
        %v550 = vrot.slane %v358, 1
        %v551 = vrot.slane %v359, 1
        %v552 = vrot.slane %v360, 1
        %v553 = vrot.slane %v361, 1
        %v554 = vrot.slane %v362, 1
        %v555 = vrot.slane %v363, 1
        %v556 = vrot.slane %v364, 1
        %v557 = vrot.slane %v365, 1
        %v558 = vrot.slane %v366, 1
        %v559 = vrot.slane %v367, 1
        %v560 = vrot.slane %v368, 1
        %v561 = vrot.slane %v369, 1
        %v562 = vrot.slane %v370, 1
        %v563 = vrot.slane %v371, 1
        %v564 = vrot.slane %v372, 1
        %v565 = vrot.slane %v373, 1
        %v566 = vrot.slane %v374, 1
        %v567 = vrot.slane %v375, 1
        %v568 = vrot.slane %v376, 1
        %v569 = vrot.slane %v377, 1
        %602 = vst [vmem:[%s246 + $0x20] sm:$0x7f] %v538
        %603 = vst [vmem:[%s246 + $0x28] sm:$0x7f] %v539
        %604 = vst [vmem:[%s246 + $0x50] sm:$0x7f] %v540
        %605 = vst [vmem:[%s246 + $0x58] sm:$0x7f] %v541
        %606 = vst [vmem:[%s246 + $0x80] sm:$0x7f] %v542
        %607 = vst [vmem:[%s246 + $0x88] sm:$0x7f] %v543
        %608 = vst [vmem:[%s246 + $0xb0] sm:$0x7f] %v544
        %609 = vst [vmem:[%s246 + $0xb8] sm:$0x7f] %v545
        %610 = vst [vmem:[%s246 + $0xe0] sm:$0x7f] %v546
        %611 = vst [vmem:[%s246 + $0xe8] sm:$0x7f] %v547
        %612 = vst [vmem:[%s246 + $0x110] sm:$0x7f] %v548
        %613 = vst [vmem:[%s246 + $0x118] sm:$0x7f] %v549
        %614 = vst [vmem:[%s246 + $0x140] sm:$0x7f] %v550
        %615 = vst [vmem:[%s246 + $0x148] sm:$0x7f] %v551
        %616 = vst [vmem:[%s246 + $0x170] sm:$0x7f] %v552
        %617 = vst [vmem:[%s246 + $0x178] sm:$0x7f] %v553
        %618 = vst [vmem:[%s246 + $0x200] sm:$0x7f] %v554
        %619 = vst [vmem:[%s246 + $0x208] sm:$0x7f] %v555
        %620 = vst [vmem:[%s246 + $0x230] sm:$0x7f] %v556
        %621 = vst [vmem:[%s246 + $0x238] sm:$0x7f] %v557
        %622 = vst [vmem:[%s246 + $0x260] sm:$0x7f] %v558
        %623 = vst [vmem:[%s246 + $0x268] sm:$0x7f] %v559
        %624 = vst [vmem:[%s246 + $0x290] sm:$0x7f] %v560
        %625 = vst [vmem:[%s246 + $0x298] sm:$0x7f] %v561
        %626 = vst [vmem:[%s246 + $0x2c0] sm:$0x7f] %v562
        %627 = vst [vmem:[%s246 + $0x2c8] sm:$0x7f] %v563
        %628 = vst [vmem:[%s246 + $0x2f0] sm:$0x7f] %v564
        %629 = vst [vmem:[%s246 + $0x2f8] sm:$0x7f] %v565
        %630 = vst [vmem:[%s246 + $0x320] sm:$0x7f] %v566
        %631 = vst [vmem:[%s246 + $0x328] sm:$0x7f] %v567
        %632 = vst [vmem:[%s246 + $0x350] sm:$0x7f] %v568
        %633 = vst [vmem:[%s246 + $0x358] sm:$0x7f] %v569
        %v634 = vld [vmem:[#allocation2] sm:$0xff]
        %v635 = vld [vmem:[#allocation2 + $0x8] sm:$0xff]
        %v636 = vld [vmem:[#allocation2 + $0x10] sm:$0xff]
        %v637 = vld [vmem:[#allocation2 + $0x18] sm:$0xff]
        %v638 = vld [vmem:[#allocation2 + $0x20] sm:$0xff]
        %v639 = vld [vmem:[#allocation2 + $0x28] sm:$0xff]
        %v640 = vld [vmem:[#allocation2 + $0x30] sm:$0xff]
        %v641 = vld [vmem:[#allocation2 + $0x38] sm:$0xff]
        %v642 = vld [vmem:[#allocation2 + $0x40] sm:$0xff]
        %v643 = vld [vmem:[#allocation2 + $0x48] sm:$0xff]
        %v644 = vld [vmem:[#allocation2 + $0x50] sm:$0xff]
        %v645 = vld [vmem:[#allocation2 + $0x58] sm:$0xff]
        %v646 = vld [vmem:[#allocation2 + $0x60] sm:$0xff]
        %v647 = vld [vmem:[#allocation2 + $0x68] sm:$0xff]
        %v648 = vld [vmem:[#allocation2 + $0x70] sm:$0xff]
        %v649 = vld [vmem:[#allocation2 + $0x78] sm:$0xff]
        %v650 = vld [vmem:[#allocation2 + $0x80] sm:$0xff]
        %v651 = vld [vmem:[#allocation2 + $0x88] sm:$0xff]
        %v652 = vld [vmem:[#allocation2 + $0x90] sm:$0xff]
        %v653 = vld [vmem:[#allocation2 + $0x98] sm:$0xff]
        %v654 = vld [vmem:[#allocation2 + $0xa0] sm:$0xff]
        %v655 = vld [vmem:[#allocation2 + $0xa8] sm:$0xff]
        %v656 = vld [vmem:[#allocation2 + $0xb0] sm:$0xff]
        %v657 = vld [vmem:[#allocation2 + $0xb8] sm:$0xff]
        %v658 = vld [vmem:[#allocation2 + $0xc0] sm:$0xff]
        %v659 = vld [vmem:[#allocation2 + $0xc8] sm:$0xff]
        %v660 = vld [vmem:[#allocation2 + $0xd0] sm:$0xff]
        %v661 = vld [vmem:[#allocation2 + $0xd8] sm:$0xff]
        %v662 = vld [vmem:[#allocation2 + $0xe0] sm:$0xff]
        %v663 = vld [vmem:[#allocation2 + $0xe8] sm:$0xff]
        %v664 = vld [vmem:[#allocation2 + $0xf0] sm:$0xff]
        %v665 = vld [vmem:[#allocation2 + $0xf8] sm:$0xff]
        %v666 = vld [vmem:[#allocation2 + $0x100] sm:$0xff]
        %v667 = vld [vmem:[#allocation2 + $0x108] sm:$0xff]
        %v668 = vld [vmem:[#allocation2 + $0x110] sm:$0xff]
        %v669 = vld [vmem:[#allocation2 + $0x118] sm:$0xff]
        %v670 = vld [vmem:[#allocation2 + $0x120] sm:$0xff]
        %v671 = vld [vmem:[#allocation2 + $0x128] sm:$0xff]
        %v672 = vld [vmem:[#allocation2 + $0x130] sm:$0xff]
        %v673 = vld [vmem:[#allocation2 + $0x138] sm:$0xff]
        %v674 = vld [vmem:[#allocation2 + $0x140] sm:$0xff]
        %v675 = vld [vmem:[#allocation2 + $0x148] sm:$0xff]
        %v676 = vld [vmem:[#allocation2 + $0x150] sm:$0xff]
        %v677 = vld [vmem:[#allocation2 + $0x158] sm:$0xff]
        %v678 = vld [vmem:[#allocation2 + $0x160] sm:$0xff]
        %v679 = vld [vmem:[#allocation2 + $0x168] sm:$0xff]
        %v680 = vld [vmem:[#allocation2 + $0x170] sm:$0xff]
        %v681 = vld [vmem:[#allocation2 + $0x178] sm:$0xff]
        %v682 = vld [vmem:[#allocation2 + $0x1e0] sm:$0xff]
        %v683 = vld [vmem:[#allocation2 + $0x1e8] sm:$0xff]
        %v684 = vld [vmem:[#allocation2 + $0x1f0] sm:$0xff]
        %v685 = vld [vmem:[#allocation2 + $0x1f8] sm:$0xff]
        %v686 = vld [vmem:[#allocation2 + $0x200] sm:$0xff]
        %v687 = vld [vmem:[#allocation2 + $0x208] sm:$0xff]
        %v688 = vld [vmem:[#allocation2 + $0x210] sm:$0xff]
        %v689 = vld [vmem:[#allocation2 + $0x218] sm:$0xff]
        %v690 = vld [vmem:[#allocation2 + $0x220] sm:$0xff]
        %v691 = vld [vmem:[#allocation2 + $0x228] sm:$0xff]
        %v692 = vld [vmem:[#allocation2 + $0x230] sm:$0xff]
        %v693 = vld [vmem:[#allocation2 + $0x238] sm:$0xff]
        %v694 = vld [vmem:[#allocation2 + $0x240] sm:$0xff]
        %v695 = vld [vmem:[#allocation2 + $0x248] sm:$0xff]
        %v696 = vld [vmem:[#allocation2 + $0x250] sm:$0xff]
        %v697 = vld [vmem:[#allocation2 + $0x258] sm:$0xff]
        %v698 = vld [vmem:[#allocation2 + $0x260] sm:$0xff]
        %v699 = vld [vmem:[#allocation2 + $0x268] sm:$0xff]
        %v700 = vld [vmem:[#allocation2 + $0x270] sm:$0xff]
        %v701 = vld [vmem:[#allocation2 + $0x278] sm:$0xff]
        %v702 = vld [vmem:[#allocation2 + $0x280] sm:$0xff]
        %v703 = vld [vmem:[#allocation2 + $0x288] sm:$0xff]
        %v704 = vld [vmem:[#allocation2 + $0x290] sm:$0xff]
        %v705 = vld [vmem:[#allocation2 + $0x298] sm:$0xff]
        %v706 = vld [vmem:[#allocation2 + $0x2a0] sm:$0xff]
        %v707 = vld [vmem:[#allocation2 + $0x2a8] sm:$0xff]
        %v708 = vld [vmem:[#allocation2 + $0x2b0] sm:$0xff]
        %v709 = vld [vmem:[#allocation2 + $0x2b8] sm:$0xff]
        %v710 = vld [vmem:[#allocation2 + $0x2c0] sm:$0xff]
        %v711 = vld [vmem:[#allocation2 + $0x2c8] sm:$0xff]
        %v712 = vld [vmem:[#allocation2 + $0x2d0] sm:$0xff]
        %v713 = vld [vmem:[#allocation2 + $0x2d8] sm:$0xff]
        %v714 = vld [vmem:[#allocation2 + $0x2e0] sm:$0xff]
        %v715 = vld [vmem:[#allocation2 + $0x2e8] sm:$0xff]
        %v716 = vld [vmem:[#allocation2 + $0x2f0] sm:$0xff]
        %v717 = vld [vmem:[#allocation2 + $0x2f8] sm:$0xff]
        %v718 = vld [vmem:[#allocation2 + $0x300] sm:$0xff]
        %v719 = vld [vmem:[#allocation2 + $0x308] sm:$0xff]
        %v720 = vld [vmem:[#allocation2 + $0x310] sm:$0xff]
        %v721 = vld [vmem:[#allocation2 + $0x318] sm:$0xff]
        %v722 = vld [vmem:[#allocation2 + $0x320] sm:$0xff]
        %v723 = vld [vmem:[#allocation2 + $0x328] sm:$0xff]
        %v724 = vld [vmem:[#allocation2 + $0x330] sm:$0xff]
        %v725 = vld [vmem:[#allocation2 + $0x338] sm:$0xff]
        %v726 = vld [vmem:[#allocation2 + $0x340] sm:$0xff]
        %v727 = vld [vmem:[#allocation2 + $0x348] sm:$0xff]
        %v728 = vld [vmem:[#allocation2 + $0x350] sm:$0xff]
        %v729 = vld [vmem:[#allocation2 + $0x358] sm:$0xff]
        %v730 = vpack.c.bf16 %v640, %v634
        %v731 = vpack.c.bf16 %v641, %v635
        %v732 = vpack.c.bf16 %v642, %v636
        %v733 = vpack.c.bf16 %v643, %v637
        %v734 = vpack.c.bf16 %v644, %v638
        %v735 = vpack.c.bf16 %v645, %v639
        %v736 = vpack.c.bf16 %v652, %v646
        %v737 = vpack.c.bf16 %v653, %v647
        %v738 = vpack.c.bf16 %v654, %v648
        %v739 = vpack.c.bf16 %v655, %v649
        %v740 = vpack.c.bf16 %v656, %v650
        %v741 = vpack.c.bf16 %v657, %v651
        %v742 = vpack.c.bf16 %v664, %v658
        %v743 = vpack.c.bf16 %v665, %v659
        %v744 = vpack.c.bf16 %v666, %v660
        %v745 = vpack.c.bf16 %v667, %v661
        %v746 = vpack.c.bf16 %v668, %v662
        %v747 = vpack.c.bf16 %v669, %v663
        %v748 = vpack.c.bf16 %v676, %v670
        %v749 = vpack.c.bf16 %v677, %v671
        %v750 = vpack.c.bf16 %v678, %v672
        %v751 = vpack.c.bf16 %v679, %v673
        %v752 = vpack.c.bf16 %v680, %v674
        %v753 = vpack.c.bf16 %v681, %v675
        %v754 = vpack.c.bf16 %v688, %v682
        %v755 = vpack.c.bf16 %v689, %v683
        %v756 = vpack.c.bf16 %v690, %v684
        %v757 = vpack.c.bf16 %v691, %v685
        %v758 = vpack.c.bf16 %v692, %v686
        %v759 = vpack.c.bf16 %v693, %v687
        %v760 = vpack.c.bf16 %v700, %v694
        %v761 = vpack.c.bf16 %v701, %v695
        %v762 = vpack.c.bf16 %v702, %v696
        %v763 = vpack.c.bf16 %v703, %v697
        %v764 = vpack.c.bf16 %v704, %v698
        %v765 = vpack.c.bf16 %v705, %v699
        %v766 = vpack.c.bf16 %v712, %v706
        %v767 = vpack.c.bf16 %v713, %v707
        %v768 = vpack.c.bf16 %v714, %v708
        %v769 = vpack.c.bf16 %v715, %v709
        %v770 = vpack.c.bf16 %v716, %v710
        %v771 = vpack.c.bf16 %v717, %v711
        %v772 = vpack.c.bf16 %v724, %v718
        %v773 = vpack.c.bf16 %v725, %v719
        %v774 = vpack.c.bf16 %v726, %v720
        %v775 = vpack.c.bf16 %v727, %v721
        %v776 = vpack.c.bf16 %v728, %v722
        %v777 = vpack.c.bf16 %v729, %v723
        %v778 = vld [vmem:[#allocation7] sm:$0xff]
        %v779 = vld [vmem:[#allocation7 + $0x8] sm:$0xff]
        %v780 = vld [vmem:[#allocation7 + $0x10] sm:$0xff]
        %v781 = vld [vmem:[#allocation7 + $0x18] sm:$0xff]
        %v782 = vld [vmem:[#allocation7 + $0x20] sm:$0xff]
        %v783 = vld [vmem:[#allocation7 + $0x28] sm:$0xff]
        %v784 = vld [vmem:[#allocation7 + $0x30] sm:$0xff]
        %v785 = vld [vmem:[#allocation7 + $0x38] sm:$0xff]
        %v786 = vld [vmem:[#allocation7 + $0x40] sm:$0xff]
        %v787 = vld [vmem:[#allocation7 + $0x48] sm:$0xff]
        %v788 = vld [vmem:[#allocation7 + $0x50] sm:$0xff]
        %v789 = vld [vmem:[#allocation7 + $0x58] sm:$0xff]
        %v790 = vld [vmem:[#allocation7 + $0x60] sm:$0xff]
        %v791 = vld [vmem:[#allocation7 + $0x68] sm:$0xff]
        %v792 = vld [vmem:[#allocation7 + $0x70] sm:$0xff]
        %v793 = vld [vmem:[#allocation7 + $0x78] sm:$0xff]
        %v794 = vld [vmem:[#allocation7 + $0x80] sm:$0xff]
        %v795 = vld [vmem:[#allocation7 + $0x88] sm:$0xff]
        %v796 = vld [vmem:[#allocation7 + $0x90] sm:$0xff]
        %v797 = vld [vmem:[#allocation7 + $0x98] sm:$0xff]
        %v798 = vld [vmem:[#allocation7 + $0xa0] sm:$0xff]
        %v799 = vld [vmem:[#allocation7 + $0xa8] sm:$0xff]
        %v800 = vld [vmem:[#allocation7 + $0xb0] sm:$0xff]
        %v801 = vld [vmem:[#allocation7 + $0xb8] sm:$0xff]
        %v802 = vld [vmem:[#allocation7 + $0xc0] sm:$0xff]
        %v803 = vld [vmem:[#allocation7 + $0xc8] sm:$0xff]
        %v804 = vld [vmem:[#allocation7 + $0xd0] sm:$0xff]
        %v805 = vld [vmem:[#allocation7 + $0xd8] sm:$0xff]
        %v806 = vld [vmem:[#allocation7 + $0xe0] sm:$0xff]
        %v807 = vld [vmem:[#allocation7 + $0xe8] sm:$0xff]
        %v808 = vld [vmem:[#allocation7 + $0xf0] sm:$0xff]
        %v809 = vld [vmem:[#allocation7 + $0xf8] sm:$0xff]
        %v810 = vld [vmem:[#allocation7 + $0x100] sm:$0xff]
        %v811 = vld [vmem:[#allocation7 + $0x108] sm:$0xff]
        %v812 = vld [vmem:[#allocation7 + $0x110] sm:$0xff]
        %v813 = vld [vmem:[#allocation7 + $0x118] sm:$0xff]
        %v814 = vld [vmem:[#allocation7 + $0x120] sm:$0xff]
        %v815 = vld [vmem:[#allocation7 + $0x128] sm:$0xff]
        %v816 = vld [vmem:[#allocation7 + $0x130] sm:$0xff]
        %v817 = vld [vmem:[#allocation7 + $0x138] sm:$0xff]
        %v818 = vld [vmem:[#allocation7 + $0x140] sm:$0xff]
        %v819 = vld [vmem:[#allocation7 + $0x148] sm:$0xff]
        %v820 = vld [vmem:[#allocation7 + $0x150] sm:$0xff]
        %v821 = vld [vmem:[#allocation7 + $0x158] sm:$0xff]
        %v822 = vld [vmem:[#allocation7 + $0x160] sm:$0xff]
        %v823 = vld [vmem:[#allocation7 + $0x168] sm:$0xff]
        %v824 = vld [vmem:[#allocation7 + $0x170] sm:$0xff]
        %v825 = vld [vmem:[#allocation7 + $0x178] sm:$0xff]
        %v826 = vld [vmem:[#allocation7 + $0x180] sm:$0xff]
        %v827 = vld [vmem:[#allocation7 + $0x188] sm:$0xff]
        %v828 = vld [vmem:[#allocation7 + $0x190] sm:$0xff]
        %v829 = vld [vmem:[#allocation7 + $0x198] sm:$0xff]
        %v830 = vld [vmem:[#allocation7 + $0x1a0] sm:$0xff]
        %v831 = vld [vmem:[#allocation7 + $0x1a8] sm:$0xff]
        %v832 = vld [vmem:[#allocation7 + $0x1b0] sm:$0xff]
        %v833 = vld [vmem:[#allocation7 + $0x1b8] sm:$0xff]
        %v834 = vld [vmem:[#allocation7 + $0x1c0] sm:$0xff]
        %v835 = vld [vmem:[#allocation7 + $0x1c8] sm:$0xff]
        %v836 = vld [vmem:[#allocation7 + $0x1d0] sm:$0xff]
        %v837 = vld [vmem:[#allocation7 + $0x1d8] sm:$0xff]
        %v838 = vld [vmem:[#allocation7 + $0x1e0] sm:$0xff]
        %v839 = vld [vmem:[#allocation7 + $0x1e8] sm:$0xff]
        %v840 = vld [vmem:[#allocation7 + $0x1f0] sm:$0xff]
        %v841 = vld [vmem:[#allocation7 + $0x1f8] sm:$0xff]
        %v842 = vld [vmem:[#allocation7 + $0x200] sm:$0xff]
        %v843 = vld [vmem:[#allocation7 + $0x208] sm:$0xff]
        %v844 = vld [vmem:[#allocation7 + $0x210] sm:$0xff]
        %v845 = vld [vmem:[#allocation7 + $0x218] sm:$0xff]
        %v846 = vld [vmem:[#allocation7 + $0x220] sm:$0xff]
        %v847 = vld [vmem:[#allocation7 + $0x228] sm:$0xff]
        %v848 = vld [vmem:[#allocation7 + $0x230] sm:$0xff]
        %v849 = vld [vmem:[#allocation7 + $0x238] sm:$0xff]
        %v850 = vld [vmem:[#allocation7 + $0x240] sm:$0xff]
        %v851 = vld [vmem:[#allocation7 + $0x248] sm:$0xff]
        %v852 = vld [vmem:[#allocation7 + $0x250] sm:$0xff]
        %v853 = vld [vmem:[#allocation7 + $0x258] sm:$0xff]
        %v854 = vld [vmem:[#allocation7 + $0x260] sm:$0xff]
        %v855 = vld [vmem:[#allocation7 + $0x268] sm:$0xff]
        %v856 = vld [vmem:[#allocation7 + $0x270] sm:$0xff]
        %v857 = vld [vmem:[#allocation7 + $0x278] sm:$0xff]
        %v858 = vld [vmem:[#allocation7 + $0x280] sm:$0xff]
        %v859 = vld [vmem:[#allocation7 + $0x288] sm:$0xff]
        %v860 = vld [vmem:[#allocation7 + $0x290] sm:$0xff]
        %v861 = vld [vmem:[#allocation7 + $0x298] sm:$0xff]
        %v862 = vld [vmem:[#allocation7 + $0x2a0] sm:$0xff]
        %v863 = vld [vmem:[#allocation7 + $0x2a8] sm:$0xff]
        %v864 = vld [vmem:[#allocation7 + $0x2b0] sm:$0xff]
        %v865 = vld [vmem:[#allocation7 + $0x2b8] sm:$0xff]
        %v866 = vld [vmem:[#allocation7 + $0x2c0] sm:$0xff]
        %v867 = vld [vmem:[#allocation7 + $0x2c8] sm:$0xff]
        %v868 = vld [vmem:[#allocation7 + $0x2d0] sm:$0xff]
        %v869 = vld [vmem:[#allocation7 + $0x2d8] sm:$0xff]
        %v870 = vld [vmem:[#allocation7 + $0x2e0] sm:$0xff]
        %v871 = vld [vmem:[#allocation7 + $0x2e8] sm:$0xff]
        %v872 = vld [vmem:[#allocation7 + $0x2f0] sm:$0xff]
        %v873 = vld [vmem:[#allocation7 + $0x2f8] sm:$0xff]
        %v970 = vunpack.c.l.b16 %v778
        %v971 = vunpack.c.h.b16 %v778
        %v972 = vunpack.c.l.b16 %v779
        %v973 = vunpack.c.h.b16 %v779
        %v974 = vunpack.c.l.b16 %v780
        %v975 = vunpack.c.h.b16 %v780
        %v976 = vunpack.c.l.b16 %v781
        %v977 = vunpack.c.h.b16 %v781
        %v978 = vunpack.c.l.b16 %v782
        %v979 = vunpack.c.h.b16 %v782
        %v980 = vunpack.c.l.b16 %v783
        %v981 = vunpack.c.h.b16 %v783
        %v982 = vunpack.c.l.b16 %v784
        %v983 = vunpack.c.h.b16 %v784
        %v984 = vunpack.c.l.b16 %v785
        %v985 = vunpack.c.h.b16 %v785
        %v986 = vunpack.c.l.b16 %v786
        %v987 = vunpack.c.h.b16 %v786
        %v988 = vunpack.c.l.b16 %v787
        %v989 = vunpack.c.h.b16 %v787
        %v990 = vunpack.c.l.b16 %v788
        %v991 = vunpack.c.h.b16 %v788
        %v992 = vunpack.c.l.b16 %v789
        %v993 = vunpack.c.h.b16 %v789
        %v994 = vunpack.c.l.b16 %v790
        %v995 = vunpack.c.h.b16 %v790
        %v996 = vunpack.c.l.b16 %v791
        %v997 = vunpack.c.h.b16 %v791
        %v998 = vunpack.c.l.b16 %v792
        %v999 = vunpack.c.h.b16 %v792
        %v1000 = vunpack.c.l.b16 %v793
        %v1001 = vunpack.c.h.b16 %v793
        %v1002 = vunpack.c.l.b16 %v794
        %v1003 = vunpack.c.h.b16 %v794
        %v1004 = vunpack.c.l.b16 %v795
        %v1005 = vunpack.c.h.b16 %v795
        %v1006 = vunpack.c.l.b16 %v796
        %v1007 = vunpack.c.h.b16 %v796
        %v1008 = vunpack.c.l.b16 %v797
        %v1009 = vunpack.c.h.b16 %v797
        %v1010 = vunpack.c.l.b16 %v798
        %v1011 = vunpack.c.h.b16 %v798
        %v1012 = vunpack.c.l.b16 %v799
        %v1013 = vunpack.c.h.b16 %v799
        %v1014 = vunpack.c.l.b16 %v800
        %v1015 = vunpack.c.h.b16 %v800
        %v1016 = vunpack.c.l.b16 %v801
        %v1017 = vunpack.c.h.b16 %v801
        %v1018 = vunpack.c.l.b16 %v802
        %v1019 = vunpack.c.h.b16 %v802
        %v1020 = vunpack.c.l.b16 %v803
        %v1021 = vunpack.c.h.b16 %v803
        %v1022 = vunpack.c.l.b16 %v804
        %v1023 = vunpack.c.h.b16 %v804
        %v1024 = vunpack.c.l.b16 %v805
        %v1025 = vunpack.c.h.b16 %v805
        %v1026 = vunpack.c.l.b16 %v806
        %v1027 = vunpack.c.h.b16 %v806
        %v1028 = vunpack.c.l.b16 %v807
        %v1029 = vunpack.c.h.b16 %v807
        %v1030 = vunpack.c.l.b16 %v808
        %v1031 = vunpack.c.h.b16 %v808
        %v1032 = vunpack.c.l.b16 %v809
        %v1033 = vunpack.c.h.b16 %v809
        %v1034 = vunpack.c.l.b16 %v810
        %v1035 = vunpack.c.h.b16 %v810
        %v1036 = vunpack.c.l.b16 %v811
        %v1037 = vunpack.c.h.b16 %v811
        %v1038 = vunpack.c.l.b16 %v812
        %v1039 = vunpack.c.h.b16 %v812
        %v1040 = vunpack.c.l.b16 %v813
        %v1041 = vunpack.c.h.b16 %v813
        %v1042 = vunpack.c.l.b16 %v814
        %v1043 = vunpack.c.h.b16 %v814
        %v1044 = vunpack.c.l.b16 %v815
        %v1045 = vunpack.c.h.b16 %v815
        %v1046 = vunpack.c.l.b16 %v816
        %v1047 = vunpack.c.h.b16 %v816
        %v1048 = vunpack.c.l.b16 %v817
        %v1049 = vunpack.c.h.b16 %v817
        %v1050 = vunpack.c.l.b16 %v818
        %v1051 = vunpack.c.h.b16 %v818
        %v1052 = vunpack.c.l.b16 %v819
        %v1053 = vunpack.c.h.b16 %v819
        %v1054 = vunpack.c.l.b16 %v820
        %v1055 = vunpack.c.h.b16 %v820
        %v1056 = vunpack.c.l.b16 %v821
        %v1057 = vunpack.c.h.b16 %v821
        %v1058 = vunpack.c.l.b16 %v822
        %v1059 = vunpack.c.h.b16 %v822
        %v1060 = vunpack.c.l.b16 %v823
        %v1061 = vunpack.c.h.b16 %v823
        %v1062 = vunpack.c.l.b16 %v824
        %v1063 = vunpack.c.h.b16 %v824
        %v1064 = vunpack.c.l.b16 %v825
        %v1065 = vunpack.c.h.b16 %v825
        %v1066 = vunpack.c.l.b16 %v826
        %v1067 = vunpack.c.h.b16 %v826
        %v1068 = vunpack.c.l.b16 %v827
        %v1069 = vunpack.c.h.b16 %v827
        %v1070 = vunpack.c.l.b16 %v828
        %v1071 = vunpack.c.h.b16 %v828
        %v1072 = vunpack.c.l.b16 %v829
        %v1073 = vunpack.c.h.b16 %v829
        %v1074 = vunpack.c.l.b16 %v830
        %v1075 = vunpack.c.h.b16 %v830
        %v1076 = vunpack.c.l.b16 %v831
        %v1077 = vunpack.c.h.b16 %v831
        %v1078 = vunpack.c.l.b16 %v832
        %v1079 = vunpack.c.h.b16 %v832
        %v1080 = vunpack.c.l.b16 %v833
        %v1081 = vunpack.c.h.b16 %v833
        %v1082 = vunpack.c.l.b16 %v834
        %v1083 = vunpack.c.h.b16 %v834
        %v1084 = vunpack.c.l.b16 %v835
        %v1085 = vunpack.c.h.b16 %v835
        %v1086 = vunpack.c.l.b16 %v836
        %v1087 = vunpack.c.h.b16 %v836
        %v1088 = vunpack.c.l.b16 %v837
        %v1089 = vunpack.c.h.b16 %v837
        %v1090 = vunpack.c.l.b16 %v838
        %v1091 = vunpack.c.h.b16 %v838
        %v1092 = vunpack.c.l.b16 %v839
        %v1093 = vunpack.c.h.b16 %v839
        %v1094 = vunpack.c.l.b16 %v840
        %v1095 = vunpack.c.h.b16 %v840
        %v1096 = vunpack.c.l.b16 %v841
        %v1097 = vunpack.c.h.b16 %v841
        %v1098 = vunpack.c.l.b16 %v842
        %v1099 = vunpack.c.h.b16 %v842
        %v1100 = vunpack.c.l.b16 %v843
        %v1101 = vunpack.c.h.b16 %v843
        %v1102 = vunpack.c.l.b16 %v844
        %v1103 = vunpack.c.h.b16 %v844
        %v1104 = vunpack.c.l.b16 %v845
        %v1105 = vunpack.c.h.b16 %v845
        %v1106 = vunpack.c.l.b16 %v846
        %v1107 = vunpack.c.h.b16 %v846
        %v1108 = vunpack.c.l.b16 %v847
        %v1109 = vunpack.c.h.b16 %v847
        %v1110 = vunpack.c.l.b16 %v848
        %v1111 = vunpack.c.h.b16 %v848
        %v1112 = vunpack.c.l.b16 %v849
        %v1113 = vunpack.c.h.b16 %v849
        %v1114 = vunpack.c.l.b16 %v850
        %v1115 = vunpack.c.h.b16 %v850
        %v1116 = vunpack.c.l.b16 %v851
        %v1117 = vunpack.c.h.b16 %v851
        %v1118 = vunpack.c.l.b16 %v852
        %v1119 = vunpack.c.h.b16 %v852
        %v1120 = vunpack.c.l.b16 %v853
        %v1121 = vunpack.c.h.b16 %v853
        %v1122 = vunpack.c.l.b16 %v854
        %v1123 = vunpack.c.h.b16 %v854
        %v1124 = vunpack.c.l.b16 %v855
        %v1125 = vunpack.c.h.b16 %v855
        %v1126 = vunpack.c.l.b16 %v856
        %v1127 = vunpack.c.h.b16 %v856
        %v1128 = vunpack.c.l.b16 %v857
        %v1129 = vunpack.c.h.b16 %v857
        %v1130 = vunpack.c.l.b16 %v858
        %v1131 = vunpack.c.h.b16 %v858
        %v1132 = vunpack.c.l.b16 %v859
        %v1133 = vunpack.c.h.b16 %v859
        %v1134 = vunpack.c.l.b16 %v860
        %v1135 = vunpack.c.h.b16 %v860
        %v1136 = vunpack.c.l.b16 %v861
        %v1137 = vunpack.c.h.b16 %v861
        %v1138 = vunpack.c.l.b16 %v862
        %v1139 = vunpack.c.h.b16 %v862
        %v1140 = vunpack.c.l.b16 %v863
        %v1141 = vunpack.c.h.b16 %v863
        %v1142 = vunpack.c.l.b16 %v864
        %v1143 = vunpack.c.h.b16 %v864
        %v1144 = vunpack.c.l.b16 %v865
        %v1145 = vunpack.c.h.b16 %v865
        %v1146 = vunpack.c.l.b16 %v866
        %v1147 = vunpack.c.h.b16 %v866
        %v1148 = vunpack.c.l.b16 %v867
        %v1149 = vunpack.c.h.b16 %v867
        %v1150 = vunpack.c.l.b16 %v868
        %v1151 = vunpack.c.h.b16 %v868
        %v1152 = vunpack.c.l.b16 %v869
        %v1153 = vunpack.c.h.b16 %v869
        %v1154 = vunpack.c.l.b16 %v870
        %v1155 = vunpack.c.h.b16 %v870
        %v1156 = vunpack.c.l.b16 %v871
        %v1157 = vunpack.c.h.b16 %v871
        %v1158 = vunpack.c.l.b16 %v872
        %v1159 = vunpack.c.h.b16 %v872
        %v1160 = vunpack.c.l.b16 %v873
        %v1161 = vunpack.c.h.b16 %v873
        %v1162 = vpack.c.b16 %v972, %v970
        %v1163 = vpack.c.b16 %v973, %v971
        %v1164 = vpack.c.b16 %v976, %v974
        %v1165 = vpack.c.b16 %v977, %v975
        %v1166 = vpack.c.b16 %v980, %v978
        %v1167 = vpack.c.b16 %v981, %v979
        %v1168 = vpack.c.b16 %v984, %v982
        %v1169 = vpack.c.b16 %v985, %v983
        %v1170 = vpack.c.b16 %v988, %v986
        %v1171 = vpack.c.b16 %v989, %v987
        %v1172 = vpack.c.b16 %v992, %v990
        %v1173 = vpack.c.b16 %v993, %v991
        %v1174 = vpack.c.b16 %v996, %v994
        %v1175 = vpack.c.b16 %v997, %v995
        %v1176 = vpack.c.b16 %v1000, %v998
        %v1177 = vpack.c.b16 %v1001, %v999
        %v1178 = vpack.c.b16 %v1004, %v1002
        %v1179 = vpack.c.b16 %v1005, %v1003
        %v1180 = vpack.c.b16 %v1008, %v1006
        %v1181 = vpack.c.b16 %v1009, %v1007
        %v1182 = vpack.c.b16 %v1012, %v1010
        %v1183 = vpack.c.b16 %v1013, %v1011
        %v1184 = vpack.c.b16 %v1016, %v1014
        %v1185 = vpack.c.b16 %v1017, %v1015
        %v1186 = vpack.c.b16 %v1020, %v1018
        %v1187 = vpack.c.b16 %v1021, %v1019
        %v1188 = vpack.c.b16 %v1024, %v1022
        %v1189 = vpack.c.b16 %v1025, %v1023
        %v1190 = vpack.c.b16 %v1028, %v1026
        %v1191 = vpack.c.b16 %v1029, %v1027
        %v1192 = vpack.c.b16 %v1032, %v1030
        %v1193 = vpack.c.b16 %v1033, %v1031
        %v1194 = vpack.c.b16 %v1036, %v1034
        %v1195 = vpack.c.b16 %v1037, %v1035
        %v1196 = vpack.c.b16 %v1040, %v1038
        %v1197 = vpack.c.b16 %v1041, %v1039
        %v1198 = vpack.c.b16 %v1044, %v1042
        %v1199 = vpack.c.b16 %v1045, %v1043
        %v1200 = vpack.c.b16 %v1048, %v1046
        %v1201 = vpack.c.b16 %v1049, %v1047
        %v1202 = vpack.c.b16 %v1052, %v1050
        %v1203 = vpack.c.b16 %v1053, %v1051
        %v1204 = vpack.c.b16 %v1056, %v1054
        %v1205 = vpack.c.b16 %v1057, %v1055
        %v1206 = vpack.c.b16 %v1060, %v1058
        %v1207 = vpack.c.b16 %v1061, %v1059
        %v1208 = vpack.c.b16 %v1064, %v1062
        %v1209 = vpack.c.b16 %v1065, %v1063
        %v1210 = vpack.c.b16 %v1068, %v1066
        %v1211 = vpack.c.b16 %v1069, %v1067
        %v1212 = vpack.c.b16 %v1072, %v1070
        %v1213 = vpack.c.b16 %v1073, %v1071
        %v1214 = vpack.c.b16 %v1076, %v1074
        %v1215 = vpack.c.b16 %v1077, %v1075
        %v1216 = vpack.c.b16 %v1080, %v1078
        %v1217 = vpack.c.b16 %v1081, %v1079
        %v1218 = vpack.c.b16 %v1084, %v1082
        %v1219 = vpack.c.b16 %v1085, %v1083
        %v1220 = vpack.c.b16 %v1088, %v1086
        %v1221 = vpack.c.b16 %v1089, %v1087
        %v1222 = vpack.c.b16 %v1092, %v1090
        %v1223 = vpack.c.b16 %v1093, %v1091
        %v1224 = vpack.c.b16 %v1096, %v1094
        %v1225 = vpack.c.b16 %v1097, %v1095
        %v1226 = vpack.c.b16 %v1100, %v1098
        %v1227 = vpack.c.b16 %v1101, %v1099
        %v1228 = vpack.c.b16 %v1104, %v1102
        %v1229 = vpack.c.b16 %v1105, %v1103
        %v1230 = vpack.c.b16 %v1108, %v1106
        %v1231 = vpack.c.b16 %v1109, %v1107
        %v1232 = vpack.c.b16 %v1112, %v1110
        %v1233 = vpack.c.b16 %v1113, %v1111
        %v1234 = vpack.c.b16 %v1116, %v1114
        %v1235 = vpack.c.b16 %v1117, %v1115
        %v1236 = vpack.c.b16 %v1120, %v1118
        %v1237 = vpack.c.b16 %v1121, %v1119
        %v1238 = vpack.c.b16 %v1124, %v1122
        %v1239 = vpack.c.b16 %v1125, %v1123
        %v1240 = vpack.c.b16 %v1128, %v1126
        %v1241 = vpack.c.b16 %v1129, %v1127
        %v1242 = vpack.c.b16 %v1132, %v1130
        %v1243 = vpack.c.b16 %v1133, %v1131
        %v1244 = vpack.c.b16 %v1136, %v1134
        %v1245 = vpack.c.b16 %v1137, %v1135
        %v1246 = vpack.c.b16 %v1140, %v1138
        %v1247 = vpack.c.b16 %v1141, %v1139
        %v1248 = vpack.c.b16 %v1144, %v1142
        %v1249 = vpack.c.b16 %v1145, %v1143
        %v1250 = vpack.c.b16 %v1148, %v1146
        %v1251 = vpack.c.b16 %v1149, %v1147
        %v1252 = vpack.c.b16 %v1152, %v1150
        %v1253 = vpack.c.b16 %v1153, %v1151
        %v1254 = vpack.c.b16 %v1156, %v1154
        %v1255 = vpack.c.b16 %v1157, %v1155
        %v1256 = vpack.c.b16 %v1160, %v1158
        %v1257 = vpack.c.b16 %v1161, %v1159
        %1354 = vmatprep.subr.bf16.mxu0 %v1177
        %1355 = vmatpush1.bf16.msra.mxu0 %v1176
        %1356 = vmatprep.subr.bf16.mxu0 %v1175
        %1357 = vmatpush1.bf16.msra.mxu0 %v1174
        %1358 = vmatprep.subr.bf16.mxu0 %v1173
        %1359 = vmatpush1.bf16.msra.mxu0 %v1172
        %1360 = vmatprep.subr.bf16.mxu0 %v1171
        %1361 = vmatpush1.bf16.msra.mxu0 %v1170
        %1362 = vmatprep.subr.bf16.mxu0 %v1169
        %1363 = vmatpush1.bf16.msra.mxu0 %v1168
        %1364 = vmatprep.subr.bf16.mxu0 %v1167
        %1365 = vmatpush1.bf16.msra.mxu0 %v1166
        %1366 = vmatprep.subr.bf16.mxu0 %v1165
        %1367 = vmatpush1.bf16.msra.mxu0 %v1164
        %1368 = vmatprep.subr.bf16.mxu0 %v1163
        %1369 = vmatpush1.bf16.msra.mxu0 %v1162
        %1370 = vmatprep.subr.bf16.mxu0 %v1193
        %1371 = vmatpush2.bf16.msra.mxu0 %v1192
        %1372 = vmatprep.subr.bf16.mxu0 %v1191
        %1373 = vmatpush2.bf16.msra.mxu0 %v1190
        %1374 = vmatprep.subr.bf16.mxu0 %v1189
        %1375 = vmatpush2.bf16.msra.mxu0 %v1188
        %1376 = vmatprep.subr.bf16.mxu0 %v1187
        %1377 = vmatpush2.bf16.msra.mxu0 %v1186
        %1378 = vmatprep.subr.bf16.mxu0 %v1185
        %1379 = vmatpush2.bf16.msra.mxu0 %v1184
        %1380 = vmatprep.subr.bf16.mxu0 %v1183
        %1381 = vmatpush2.bf16.msra.mxu0 %v1182
        %1382 = vmatprep.subr.bf16.mxu0 %v1181
        %1383 = vmatpush2.bf16.msra.mxu0 %v1180
        %1384 = vmatprep.subr.bf16.mxu0 %v1179
        %1385 = vmatpush2.bf16.msra.mxu0 %v1178
        %1386 = vmatprep.mubr.bf16.mxu0 %v731
        %1387 = vmatmul.mubr.bf16.gmra.mxu0 %v730
        %v1388 = vpop.f32.mrf.mxu0
        %v1389 = vadd.f32 0.0, %v1388
        %v1390 = vpop.f32.mrf.mxu0
        %v1391 = vadd.f32 0.0, %v1390
        %v1392 = vpop.f32.mrf.mxu0
        %v1393 = vadd.f32 0.0, %v1392
        %v1394 = vpop.f32.mrf.mxu0
        %v1395 = vadd.f32 0.0, %v1394
        %1396 = vmatprep.mubr.bf16.mxu0 %v737
        %1397 = vmatmul.mubr.bf16.gmra.mxu0 %v736
        %v1398 = vpop.f32.mrf.mxu0
        %v1399 = vadd.f32 0.0, %v1398
        %v1400 = vpop.f32.mrf.mxu0
        %v1401 = vadd.f32 0.0, %v1400
        %v1402 = vpop.f32.mrf.mxu0
        %v1403 = vadd.f32 0.0, %v1402
        %v1404 = vpop.f32.mrf.mxu0
        %v1405 = vadd.f32 0.0, %v1404
        %1406 = vmatprep.mubr.bf16.mxu0 %v743
        %1407 = vmatmul.mubr.bf16.gmra.mxu0 %v742
        %v1408 = vpop.f32.mrf.mxu0
        %v1409 = vadd.f32 0.0, %v1408
        %v1410 = vpop.f32.mrf.mxu0
        %v1411 = vadd.f32 0.0, %v1410
        %v1412 = vpop.f32.mrf.mxu0
        %v1413 = vadd.f32 0.0, %v1412
        %v1414 = vpop.f32.mrf.mxu0
        %v1415 = vadd.f32 0.0, %v1414
        %1416 = vmatprep.mubr.bf16.mxu0 %v749
        %1417 = vmatmul.mubr.bf16.gmra.mxu0 %v748
        %v1418 = vpop.f32.mrf.mxu0
        %v1419 = vadd.f32 0.0, %v1418
        %v1420 = vpop.f32.mrf.mxu0
        %v1421 = vadd.f32 0.0, %v1420
        %v1422 = vpop.f32.mrf.mxu0
        %v1423 = vadd.f32 0.0, %v1422
        %v1424 = vpop.f32.mrf.mxu0
        %v1425 = vadd.f32 0.0, %v1424
        %1426 = vmatprep.mubr.bf16.mxu0 %v755
        %1427 = vmatmul.mubr.bf16.gmra.mxu0 %v754
        %v1428 = vpop.f32.mrf.mxu0
        %v1429 = vadd.f32 0.0, %v1428
        %v1430 = vpop.f32.mrf.mxu0
        %v1431 = vadd.f32 0.0, %v1430
        %v1432 = vpop.f32.mrf.mxu0
        %v1433 = vadd.f32 0.0, %v1432
        %v1434 = vpop.f32.mrf.mxu0
        %v1435 = vadd.f32 0.0, %v1434
        %1436 = vmatprep.mubr.bf16.mxu0 %v761
        %1437 = vmatmul.mubr.bf16.gmra.mxu0 %v760
        %v1438 = vpop.f32.mrf.mxu0
        %v1439 = vadd.f32 0.0, %v1438
        %v1440 = vpop.f32.mrf.mxu0
        %v1441 = vadd.f32 0.0, %v1440
        %v1442 = vpop.f32.mrf.mxu0
        %v1443 = vadd.f32 0.0, %v1442
        %v1444 = vpop.f32.mrf.mxu0
        %v1445 = vadd.f32 0.0, %v1444
        %1446 = vmatprep.mubr.bf16.mxu0 %v767
        %1447 = vmatmul.mubr.bf16.gmra.mxu0 %v766
        %v1448 = vpop.f32.mrf.mxu0
        %v1449 = vadd.f32 0.0, %v1448
        %v1450 = vpop.f32.mrf.mxu0
        %v1451 = vadd.f32 0.0, %v1450
        %v1452 = vpop.f32.mrf.mxu0
        %v1453 = vadd.f32 0.0, %v1452
        %v1454 = vpop.f32.mrf.mxu0
        %v1455 = vadd.f32 0.0, %v1454
        %1456 = vmatprep.mubr.bf16.mxu0 %v773
        %1457 = vmatmul.mubr.bf16.gmra.mxu0 %v772
        %v1458 = vpop.f32.mrf.mxu0
        %v1459 = vadd.f32 0.0, %v1458
        %v1460 = vpop.f32.mrf.mxu0
        %v1461 = vadd.f32 0.0, %v1460
        %v1462 = vpop.f32.mrf.mxu0
        %v1463 = vadd.f32 0.0, %v1462
        %v1464 = vpop.f32.mrf.mxu0
        %v1465 = vadd.f32 0.0, %v1464
        %1466 = vdwg.mxu0
        %1467 = vmatprep.subr.bf16.mxu0 %v1209
        %1468 = vmatpush1.bf16.msra.mxu0 %v1208
        %1469 = vmatprep.subr.bf16.mxu0 %v1207
        %1470 = vmatpush1.bf16.msra.mxu0 %v1206
        %1471 = vmatprep.subr.bf16.mxu0 %v1205
        %1472 = vmatpush1.bf16.msra.mxu0 %v1204
        %1473 = vmatprep.subr.bf16.mxu0 %v1203
        %1474 = vmatpush1.bf16.msra.mxu0 %v1202
        %1475 = vmatprep.subr.bf16.mxu0 %v1201
        %1476 = vmatpush1.bf16.msra.mxu0 %v1200
        %1477 = vmatprep.subr.bf16.mxu0 %v1199
        %1478 = vmatpush1.bf16.msra.mxu0 %v1198
        %1479 = vmatprep.subr.bf16.mxu0 %v1197
        %1480 = vmatpush1.bf16.msra.mxu0 %v1196
        %1481 = vmatprep.subr.bf16.mxu0 %v1195
        %1482 = vmatpush1.bf16.msra.mxu0 %v1194
        %1483 = vmatprep.subr.bf16.mxu0 %v1225
        %1484 = vmatpush2.bf16.msra.mxu0 %v1224
        %1485 = vmatprep.subr.bf16.mxu0 %v1223
        %1486 = vmatpush2.bf16.msra.mxu0 %v1222
        %1487 = vmatprep.subr.bf16.mxu0 %v1221
        %1488 = vmatpush2.bf16.msra.mxu0 %v1220
        %1489 = vmatprep.subr.bf16.mxu0 %v1219
        %1490 = vmatpush2.bf16.msra.mxu0 %v1218
        %1491 = vmatprep.subr.bf16.mxu0 %v1217
        %1492 = vmatpush2.bf16.msra.mxu0 %v1216
        %1493 = vmatprep.subr.bf16.mxu0 %v1215
        %1494 = vmatpush2.bf16.msra.mxu0 %v1214
        %1495 = vmatprep.subr.bf16.mxu0 %v1213
        %1496 = vmatpush2.bf16.msra.mxu0 %v1212
        %1497 = vmatprep.subr.bf16.mxu0 %v1211
        %1498 = vmatpush2.bf16.msra.mxu0 %v1210
        %1499 = vmatprep.mubr.bf16.mxu0 %v733
        %1500 = vmatmul.mubr.bf16.gmra.mxu0 %v732
        %v1501 = vpop.f32.mrf.mxu0
        %v1502 = vadd.f32 %v1389, %v1501
        %v1503 = vpop.f32.mrf.mxu0
        %v1504 = vadd.f32 %v1391, %v1503
        %v1505 = vpop.f32.mrf.mxu0
        %v1506 = vadd.f32 %v1393, %v1505
        %v1507 = vpop.f32.mrf.mxu0
        %v1508 = vadd.f32 %v1395, %v1507
        %1509 = vmatprep.mubr.bf16.mxu0 %v739
        %1510 = vmatmul.mubr.bf16.gmra.mxu0 %v738
        %v1511 = vpop.f32.mrf.mxu0
        %v1512 = vadd.f32 %v1399, %v1511
        %v1513 = vpop.f32.mrf.mxu0
        %v1514 = vadd.f32 %v1401, %v1513
        %v1515 = vpop.f32.mrf.mxu0
        %v1516 = vadd.f32 %v1403, %v1515
        %v1517 = vpop.f32.mrf.mxu0
        %v1518 = vadd.f32 %v1405, %v1517
        %1519 = vmatprep.mubr.bf16.mxu0 %v745
        %1520 = vmatmul.mubr.bf16.gmra.mxu0 %v744
        %v1521 = vpop.f32.mrf.mxu0
        %v1522 = vadd.f32 %v1409, %v1521
        %v1523 = vpop.f32.mrf.mxu0
        %v1524 = vadd.f32 %v1411, %v1523
        %v1525 = vpop.f32.mrf.mxu0
        %v1526 = vadd.f32 %v1413, %v1525
        %v1527 = vpop.f32.mrf.mxu0
        %v1528 = vadd.f32 %v1415, %v1527
        %1529 = vmatprep.mubr.bf16.mxu0 %v751
        %1530 = vmatmul.mubr.bf16.gmra.mxu0 %v750
        %v1531 = vpop.f32.mrf.mxu0
        %v1532 = vadd.f32 %v1419, %v1531
        %v1533 = vpop.f32.mrf.mxu0
        %v1534 = vadd.f32 %v1421, %v1533
        %v1535 = vpop.f32.mrf.mxu0
        %v1536 = vadd.f32 %v1423, %v1535
        %v1537 = vpop.f32.mrf.mxu0
        %v1538 = vadd.f32 %v1425, %v1537
        %1539 = vmatprep.mubr.bf16.mxu0 %v757
        %1540 = vmatmul.mubr.bf16.gmra.mxu0 %v756
        %v1541 = vpop.f32.mrf.mxu0
        %v1542 = vadd.f32 %v1429, %v1541
        %v1543 = vpop.f32.mrf.mxu0
        %v1544 = vadd.f32 %v1431, %v1543
        %v1545 = vpop.f32.mrf.mxu0
        %v1546 = vadd.f32 %v1433, %v1545
        %v1547 = vpop.f32.mrf.mxu0
        %v1548 = vadd.f32 %v1435, %v1547
        %1549 = vmatprep.mubr.bf16.mxu0 %v763
        %1550 = vmatmul.mubr.bf16.gmra.mxu0 %v762
        %v1551 = vpop.f32.mrf.mxu0
        %v1552 = vadd.f32 %v1439, %v1551
        %v1553 = vpop.f32.mrf.mxu0
        %v1554 = vadd.f32 %v1441, %v1553
        %v1555 = vpop.f32.mrf.mxu0
        %v1556 = vadd.f32 %v1443, %v1555
        %v1557 = vpop.f32.mrf.mxu0
        %v1558 = vadd.f32 %v1445, %v1557
        %1559 = vmatprep.mubr.bf16.mxu0 %v769
        %1560 = vmatmul.mubr.bf16.gmra.mxu0 %v768
        %v1561 = vpop.f32.mrf.mxu0
        %v1562 = vadd.f32 %v1449, %v1561
        %v1563 = vpop.f32.mrf.mxu0
        %v1564 = vadd.f32 %v1451, %v1563
        %v1565 = vpop.f32.mrf.mxu0
        %v1566 = vadd.f32 %v1453, %v1565
        %v1567 = vpop.f32.mrf.mxu0
        %v1568 = vadd.f32 %v1455, %v1567
        %1569 = vmatprep.mubr.bf16.mxu0 %v775
        %1570 = vmatmul.mubr.bf16.gmra.mxu0 %v774
        %v1571 = vpop.f32.mrf.mxu0
        %v1572 = vadd.f32 %v1459, %v1571
        %v1573 = vpop.f32.mrf.mxu0
        %v1574 = vadd.f32 %v1461, %v1573
        %v1575 = vpop.f32.mrf.mxu0
        %v1576 = vadd.f32 %v1463, %v1575
        %v1577 = vpop.f32.mrf.mxu0
        %v1578 = vadd.f32 %v1465, %v1577
        %1579 = vdwg.mxu0
        %1580 = vmatprep.subr.bf16.mxu0 %v1241
        %1581 = vmatpush1.bf16.msra.mxu0 %v1240
        %1582 = vmatprep.subr.bf16.mxu0 %v1239
        %1583 = vmatpush1.bf16.msra.mxu0 %v1238
        %1584 = vmatprep.subr.bf16.mxu0 %v1237
        %1585 = vmatpush1.bf16.msra.mxu0 %v1236
        %1586 = vmatprep.subr.bf16.mxu0 %v1235
        %1587 = vmatpush1.bf16.msra.mxu0 %v1234
        %1588 = vmatprep.subr.bf16.mxu0 %v1233
        %1589 = vmatpush1.bf16.msra.mxu0 %v1232
        %1590 = vmatprep.subr.bf16.mxu0 %v1231
        %1591 = vmatpush1.bf16.msra.mxu0 %v1230
        %1592 = vmatprep.subr.bf16.mxu0 %v1229
        %1593 = vmatpush1.bf16.msra.mxu0 %v1228
        %1594 = vmatprep.subr.bf16.mxu0 %v1227
        %1595 = vmatpush1.bf16.msra.mxu0 %v1226
        %1596 = vmatprep.subr.bf16.mxu0 %v1257
        %1597 = vmatpush2.bf16.msra.mxu0 %v1256
        %1598 = vmatprep.subr.bf16.mxu0 %v1255
        %1599 = vmatpush2.bf16.msra.mxu0 %v1254
        %1600 = vmatprep.subr.bf16.mxu0 %v1253
        %1601 = vmatpush2.bf16.msra.mxu0 %v1252
        %1602 = vmatprep.subr.bf16.mxu0 %v1251
        %1603 = vmatpush2.bf16.msra.mxu0 %v1250
        %1604 = vmatprep.subr.bf16.mxu0 %v1249
        %1605 = vmatpush2.bf16.msra.mxu0 %v1248
        %1606 = vmatprep.subr.bf16.mxu0 %v1247
        %1607 = vmatpush2.bf16.msra.mxu0 %v1246
        %1608 = vmatprep.subr.bf16.mxu0 %v1245
        %1609 = vmatpush2.bf16.msra.mxu0 %v1244
        %1610 = vmatprep.subr.bf16.mxu0 %v1243
        %1611 = vmatpush2.bf16.msra.mxu0 %v1242
        %1612 = vmatprep.mubr.bf16.mxu0 %v735
        %1613 = vmatmul.mubr.bf16.gmra.mxu0 %v734
        %v1614 = vpop.f32.mrf.mxu0
        %v1615 = vadd.f32 %v1502, %v1614
        %v1616 = vpop.f32.mrf.mxu0
        %v1617 = vadd.f32 %v1504, %v1616
        %v1618 = vpop.f32.mrf.mxu0
        %v1619 = vadd.f32 %v1506, %v1618
        %v1620 = vpop.f32.mrf.mxu0
        %v1621 = vadd.f32 %v1508, %v1620
        %1622 = vmatprep.mubr.bf16.mxu0 %v741
        %1623 = vmatmul.mubr.bf16.gmra.mxu0 %v740
        %v1624 = vpop.f32.mrf.mxu0
        %v1625 = vadd.f32 %v1512, %v1624
        %v1626 = vpop.f32.mrf.mxu0
        %v1627 = vadd.f32 %v1514, %v1626
        %v1628 = vpop.f32.mrf.mxu0
        %v1629 = vadd.f32 %v1516, %v1628
        %v1630 = vpop.f32.mrf.mxu0
        %v1631 = vadd.f32 %v1518, %v1630
        %1632 = vmatprep.mubr.bf16.mxu0 %v747
        %1633 = vmatmul.mubr.bf16.gmra.mxu0 %v746
        %v1634 = vpop.f32.mrf.mxu0
        %v1635 = vadd.f32 %v1522, %v1634
        %v1636 = vpop.f32.mrf.mxu0
        %v1637 = vadd.f32 %v1524, %v1636
        %v1638 = vpop.f32.mrf.mxu0
        %v1639 = vadd.f32 %v1526, %v1638
        %v1640 = vpop.f32.mrf.mxu0
        %v1641 = vadd.f32 %v1528, %v1640
        %1642 = vmatprep.mubr.bf16.mxu0 %v753
        %1643 = vmatmul.mubr.bf16.gmra.mxu0 %v752
        %v1644 = vpop.f32.mrf.mxu0
        %v1645 = vadd.f32 %v1532, %v1644
        %v1646 = vpop.f32.mrf.mxu0
        %v1647 = vadd.f32 %v1534, %v1646
        %v1648 = vpop.f32.mrf.mxu0
        %v1649 = vadd.f32 %v1536, %v1648
        %v1650 = vpop.f32.mrf.mxu0
        %v1651 = vadd.f32 %v1538, %v1650
        %1652 = vmatprep.mubr.bf16.mxu0 %v759
        %1653 = vmatmul.mubr.bf16.gmra.mxu0 %v758
        %v1654 = vpop.f32.mrf.mxu0
        %v1655 = vadd.f32 %v1542, %v1654
        %v1656 = vpop.f32.mrf.mxu0
        %v1657 = vadd.f32 %v1544, %v1656
        %v1658 = vpop.f32.mrf.mxu0
        %v1659 = vadd.f32 %v1546, %v1658
        %v1660 = vpop.f32.mrf.mxu0
        %v1661 = vadd.f32 %v1548, %v1660
        %1662 = vmatprep.mubr.bf16.mxu0 %v765
        %1663 = vmatmul.mubr.bf16.gmra.mxu0 %v764
        %v1664 = vpop.f32.mrf.mxu0
        %v1665 = vadd.f32 %v1552, %v1664
        %v1666 = vpop.f32.mrf.mxu0
        %v1667 = vadd.f32 %v1554, %v1666
        %v1668 = vpop.f32.mrf.mxu0
        %v1669 = vadd.f32 %v1556, %v1668
        %v1670 = vpop.f32.mrf.mxu0
        %v1671 = vadd.f32 %v1558, %v1670
        %1672 = vmatprep.mubr.bf16.mxu0 %v771
        %1673 = vmatmul.mubr.bf16.gmra.mxu0 %v770
        %v1674 = vpop.f32.mrf.mxu0
        %v1675 = vadd.f32 %v1562, %v1674
        %v1676 = vpop.f32.mrf.mxu0
        %v1677 = vadd.f32 %v1564, %v1676
        %v1678 = vpop.f32.mrf.mxu0
        %v1679 = vadd.f32 %v1566, %v1678
        %v1680 = vpop.f32.mrf.mxu0
        %v1681 = vadd.f32 %v1568, %v1680
        %1682 = vmatprep.mubr.bf16.mxu0 %v777
        %1683 = vmatmul.mubr.bf16.gmra.mxu0 %v776
        %v1684 = vpop.f32.mrf.mxu0
        %v1685 = vadd.f32 %v1572, %v1684
        %v1686 = vpop.f32.mrf.mxu0
        %v1687 = vadd.f32 %v1574, %v1686
        %v1688 = vpop.f32.mrf.mxu0
        %v1689 = vadd.f32 %v1576, %v1688
        %v1690 = vpop.f32.mrf.mxu0
        %v1691 = vadd.f32 %v1578, %v1690
        %1692 = vdwg.mxu0
        %1693 = vst [vmem:[#allocation3] sm:$0xff] %v1615
        %1694 = vst [vmem:[#allocation3 + $0x8] sm:$0xff] %v1617
        %1695 = vst [vmem:[#allocation3 + $0x10] sm:$0xff] %v1619
        %1696 = vst [vmem:[#allocation3 + $0x18] sm:$0xff] %v1621
        %1697 = vst [vmem:[#allocation3 + $0x20] sm:$0xff] %v1625
        %1698 = vst [vmem:[#allocation3 + $0x28] sm:$0xff] %v1627
        %1699 = vst [vmem:[#allocation3 + $0x30] sm:$0xff] %v1629
        %1700 = vst [vmem:[#allocation3 + $0x38] sm:$0xff] %v1631
        %1701 = vst [vmem:[#allocation3 + $0x40] sm:$0xff] %v1635
        %1702 = vst [vmem:[#allocation3 + $0x48] sm:$0xff] %v1637
        %1703 = vst [vmem:[#allocation3 + $0x50] sm:$0xff] %v1639
        %1704 = vst [vmem:[#allocation3 + $0x58] sm:$0xff] %v1641
        %1705 = vst [vmem:[#allocation3 + $0x60] sm:$0xff] %v1645
        %1706 = vst [vmem:[#allocation3 + $0x68] sm:$0xff] %v1647
        %1707 = vst [vmem:[#allocation3 + $0x70] sm:$0xff] %v1649
        %1708 = vst [vmem:[#allocation3 + $0x78] sm:$0xff] %v1651
        %1709 = vst [vmem:[#allocation3 + $0x80] sm:$0xff] %v1655
        %1710 = vst [vmem:[#allocation3 + $0x88] sm:$0xff] %v1657
        %1711 = vst [vmem:[#allocation3 + $0x90] sm:$0xff] %v1659
        %1712 = vst [vmem:[#allocation3 + $0x98] sm:$0xff] %v1661
        %1713 = vst [vmem:[#allocation3 + $0xa0] sm:$0xff] %v1665
        %1714 = vst [vmem:[#allocation3 + $0xa8] sm:$0xff] %v1667
        %1715 = vst [vmem:[#allocation3 + $0xb0] sm:$0xff] %v1669
        %1716 = vst [vmem:[#allocation3 + $0xb8] sm:$0xff] %v1671
        %1717 = vst [vmem:[#allocation3 + $0xc0] sm:$0xff] %v1675
        %1718 = vst [vmem:[#allocation3 + $0xc8] sm:$0xff] %v1677
        %1719 = vst [vmem:[#allocation3 + $0xd0] sm:$0xff] %v1679
        %1720 = vst [vmem:[#allocation3 + $0xd8] sm:$0xff] %v1681
        %1721 = vst [vmem:[#allocation3 + $0xe0] sm:$0xff] %v1685
        %1722 = vst [vmem:[#allocation3 + $0xe8] sm:$0xff] %v1687
        %1723 = vst [vmem:[#allocation3 + $0xf0] sm:$0xff] %v1689
        %1724 = vst [vmem:[#allocation3 + $0xf8] sm:$0xff] %v1691
        %v1725 = vld [vmem:[%s246] sm:$0xff]
        %v1726 = vld [vmem:[%s246 + $0x8] sm:$0xff]
        %v1727 = vld [vmem:[%s246 + $0x10] sm:$0xff]
        %v1728 = vld [vmem:[%s246 + $0x18] sm:$0xff]
        %v1729 = vld [vmem:[%s246 + $0x20] sm:$0xff]
        %v1730 = vld [vmem:[%s246 + $0x28] sm:$0xff]
        %v1731 = vld [vmem:[%s246 + $0x30] sm:$0xff]
        %v1732 = vld [vmem:[%s246 + $0x38] sm:$0xff]
        %v1733 = vld [vmem:[%s246 + $0x40] sm:$0xff]
        %v1734 = vld [vmem:[%s246 + $0x48] sm:$0xff]
        %v1735 = vld [vmem:[%s246 + $0x50] sm:$0xff]
        %v1736 = vld [vmem:[%s246 + $0x58] sm:$0xff]
        %v1737 = vld [vmem:[%s246 + $0x60] sm:$0xff]
        %v1738 = vld [vmem:[%s246 + $0x68] sm:$0xff]
        %v1739 = vld [vmem:[%s246 + $0x70] sm:$0xff]
        %v1740 = vld [vmem:[%s246 + $0x78] sm:$0xff]
        %v1741 = vld [vmem:[%s246 + $0x80] sm:$0xff]
        %v1742 = vld [vmem:[%s246 + $0x88] sm:$0xff]
        %v1743 = vld [vmem:[%s246 + $0x90] sm:$0xff]
        %v1744 = vld [vmem:[%s246 + $0x98] sm:$0xff]
        %v1745 = vld [vmem:[%s246 + $0xa0] sm:$0xff]
        %v1746 = vld [vmem:[%s246 + $0xa8] sm:$0xff]
        %v1747 = vld [vmem:[%s246 + $0xb0] sm:$0xff]
        %v1748 = vld [vmem:[%s246 + $0xb8] sm:$0xff]
        %v1749 = vld [vmem:[%s246 + $0xc0] sm:$0xff]
        %v1750 = vld [vmem:[%s246 + $0xc8] sm:$0xff]
        %v1751 = vld [vmem:[%s246 + $0xd0] sm:$0xff]
        %v1752 = vld [vmem:[%s246 + $0xd8] sm:$0xff]
        %v1753 = vld [vmem:[%s246 + $0xe0] sm:$0xff]
        %v1754 = vld [vmem:[%s246 + $0xe8] sm:$0xff]
        %v1755 = vld [vmem:[%s246 + $0xf0] sm:$0xff]
        %v1756 = vld [vmem:[%s246 + $0xf8] sm:$0xff]
        %v1757 = vld [vmem:[%s246 + $0x100] sm:$0xff]
        %v1758 = vld [vmem:[%s246 + $0x108] sm:$0xff]
        %v1759 = vld [vmem:[%s246 + $0x110] sm:$0xff]
        %v1760 = vld [vmem:[%s246 + $0x118] sm:$0xff]
        %v1761 = vld [vmem:[%s246 + $0x120] sm:$0xff]
        %v1762 = vld [vmem:[%s246 + $0x128] sm:$0xff]
        %v1763 = vld [vmem:[%s246 + $0x130] sm:$0xff]
        %v1764 = vld [vmem:[%s246 + $0x138] sm:$0xff]
        %v1765 = vld [vmem:[%s246 + $0x140] sm:$0xff]
        %v1766 = vld [vmem:[%s246 + $0x148] sm:$0xff]
        %v1767 = vld [vmem:[%s246 + $0x150] sm:$0xff]
        %v1768 = vld [vmem:[%s246 + $0x158] sm:$0xff]
        %v1769 = vld [vmem:[%s246 + $0x160] sm:$0xff]
        %v1770 = vld [vmem:[%s246 + $0x168] sm:$0xff]
        %v1771 = vld [vmem:[%s246 + $0x170] sm:$0xff]
        %v1772 = vld [vmem:[%s246 + $0x178] sm:$0xff]
        %v1773 = vld [vmem:[%s246 + $0x1e0] sm:$0xff]
        %v1774 = vld [vmem:[%s246 + $0x1e8] sm:$0xff]
        %v1775 = vld [vmem:[%s246 + $0x1f0] sm:$0xff]
        %v1776 = vld [vmem:[%s246 + $0x1f8] sm:$0xff]
        %v1777 = vld [vmem:[%s246 + $0x200] sm:$0xff]
        %v1778 = vld [vmem:[%s246 + $0x208] sm:$0xff]
        %v1779 = vld [vmem:[%s246 + $0x210] sm:$0xff]
        %v1780 = vld [vmem:[%s246 + $0x218] sm:$0xff]
        %v1781 = vld [vmem:[%s246 + $0x220] sm:$0xff]
        %v1782 = vld [vmem:[%s246 + $0x228] sm:$0xff]
        %v1783 = vld [vmem:[%s246 + $0x230] sm:$0xff]
        %v1784 = vld [vmem:[%s246 + $0x238] sm:$0xff]
        %v1785 = vld [vmem:[%s246 + $0x240] sm:$0xff]
        %v1786 = vld [vmem:[%s246 + $0x248] sm:$0xff]
        %v1787 = vld [vmem:[%s246 + $0x250] sm:$0xff]
        %v1788 = vld [vmem:[%s246 + $0x258] sm:$0xff]
        %v1789 = vld [vmem:[%s246 + $0x260] sm:$0xff]
        %v1790 = vld [vmem:[%s246 + $0x268] sm:$0xff]
        %v1791 = vld [vmem:[%s246 + $0x270] sm:$0xff]
        %v1792 = vld [vmem:[%s246 + $0x278] sm:$0xff]
        %v1793 = vld [vmem:[%s246 + $0x280] sm:$0xff]
        %v1794 = vld [vmem:[%s246 + $0x288] sm:$0xff]
        %v1795 = vld [vmem:[%s246 + $0x290] sm:$0xff]
        %v1796 = vld [vmem:[%s246 + $0x298] sm:$0xff]
        %v1797 = vld [vmem:[%s246 + $0x2a0] sm:$0xff]
        %v1798 = vld [vmem:[%s246 + $0x2a8] sm:$0xff]
        %v1799 = vld [vmem:[%s246 + $0x2b0] sm:$0xff]
        %v1800 = vld [vmem:[%s246 + $0x2b8] sm:$0xff]
        %v1801 = vld [vmem:[%s246 + $0x2c0] sm:$0xff]
        %v1802 = vld [vmem:[%s246 + $0x2c8] sm:$0xff]
        %v1803 = vld [vmem:[%s246 + $0x2d0] sm:$0xff]
        %v1804 = vld [vmem:[%s246 + $0x2d8] sm:$0xff]
        %v1805 = vld [vmem:[%s246 + $0x2e0] sm:$0xff]
        %v1806 = vld [vmem:[%s246 + $0x2e8] sm:$0xff]
        %v1807 = vld [vmem:[%s246 + $0x2f0] sm:$0xff]
        %v1808 = vld [vmem:[%s246 + $0x2f8] sm:$0xff]
        %v1809 = vld [vmem:[%s246 + $0x300] sm:$0xff]
        %v1810 = vld [vmem:[%s246 + $0x308] sm:$0xff]
        %v1811 = vld [vmem:[%s246 + $0x310] sm:$0xff]
        %v1812 = vld [vmem:[%s246 + $0x318] sm:$0xff]
        %v1813 = vld [vmem:[%s246 + $0x320] sm:$0xff]
        %v1814 = vld [vmem:[%s246 + $0x328] sm:$0xff]
        %v1815 = vld [vmem:[%s246 + $0x330] sm:$0xff]
        %v1816 = vld [vmem:[%s246 + $0x338] sm:$0xff]
        %v1817 = vld [vmem:[%s246 + $0x340] sm:$0xff]
        %v1818 = vld [vmem:[%s246 + $0x348] sm:$0xff]
        %v1819 = vld [vmem:[%s246 + $0x350] sm:$0xff]
        %v1820 = vld [vmem:[%s246 + $0x358] sm:$0xff]
        %v1821 = vpack.c.bf16 %v1731, %v1725
        %v1822 = vpack.c.bf16 %v1732, %v1726
        %v1823 = vpack.c.bf16 %v1733, %v1727
        %v1824 = vpack.c.bf16 %v1734, %v1728
        %v1825 = vpack.c.bf16 %v1735, %v1729
        %v1826 = vpack.c.bf16 %v1736, %v1730
        %v1827 = vpack.c.bf16 %v1743, %v1737
        %v1828 = vpack.c.bf16 %v1744, %v1738
        %v1829 = vpack.c.bf16 %v1745, %v1739
        %v1830 = vpack.c.bf16 %v1746, %v1740
        %v1831 = vpack.c.bf16 %v1747, %v1741
        %v1832 = vpack.c.bf16 %v1748, %v1742
        %v1833 = vpack.c.bf16 %v1755, %v1749
        %v1834 = vpack.c.bf16 %v1756, %v1750
        %v1835 = vpack.c.bf16 %v1757, %v1751
        %v1836 = vpack.c.bf16 %v1758, %v1752
        %v1837 = vpack.c.bf16 %v1759, %v1753
        %v1838 = vpack.c.bf16 %v1760, %v1754
        %v1839 = vpack.c.bf16 %v1767, %v1761
        %v1840 = vpack.c.bf16 %v1768, %v1762
        %v1841 = vpack.c.bf16 %v1769, %v1763
        %v1842 = vpack.c.bf16 %v1770, %v1764
        %v1843 = vpack.c.bf16 %v1771, %v1765
        %v1844 = vpack.c.bf16 %v1772, %v1766
        %v1845 = vpack.c.bf16 %v1779, %v1773
        %v1846 = vpack.c.bf16 %v1780, %v1774
        %v1847 = vpack.c.bf16 %v1781, %v1775
        %v1848 = vpack.c.bf16 %v1782, %v1776
        %v1849 = vpack.c.bf16 %v1783, %v1777
        %v1850 = vpack.c.bf16 %v1784, %v1778
        %v1851 = vpack.c.bf16 %v1791, %v1785
        %v1852 = vpack.c.bf16 %v1792, %v1786
        %v1853 = vpack.c.bf16 %v1793, %v1787
        %v1854 = vpack.c.bf16 %v1794, %v1788
        %v1855 = vpack.c.bf16 %v1795, %v1789
        %v1856 = vpack.c.bf16 %v1796, %v1790
        %v1857 = vpack.c.bf16 %v1803, %v1797
        %v1858 = vpack.c.bf16 %v1804, %v1798
        %v1859 = vpack.c.bf16 %v1805, %v1799
        %v1860 = vpack.c.bf16 %v1806, %v1800
        %v1861 = vpack.c.bf16 %v1807, %v1801
        %v1862 = vpack.c.bf16 %v1808, %v1802
        %v1863 = vpack.c.bf16 %v1815, %v1809
        %v1864 = vpack.c.bf16 %v1816, %v1810
        %v1865 = vpack.c.bf16 %v1817, %v1811
        %v1866 = vpack.c.bf16 %v1818, %v1812
        %v1867 = vpack.c.bf16 %v1819, %v1813
        %v1868 = vpack.c.bf16 %v1820, %v1814
        %s1869 = scalar_lea.vmem [#allocation7], 768
        %v1870 = vld [vmem:[%s1869] sm:$0xff]
        %v1871 = vld [vmem:[%s1869 + $0x8] sm:$0xff]
        %v1872 = vld [vmem:[%s1869 + $0x10] sm:$0xff]
        %v1873 = vld [vmem:[%s1869 + $0x18] sm:$0xff]
        %v1874 = vld [vmem:[%s1869 + $0x20] sm:$0xff]
        %v1875 = vld [vmem:[%s1869 + $0x28] sm:$0xff]
        %v1876 = vld [vmem:[%s1869 + $0x30] sm:$0xff]
        %v1877 = vld [vmem:[%s1869 + $0x38] sm:$0xff]
        %v1878 = vld [vmem:[%s1869 + $0x40] sm:$0xff]
        %v1879 = vld [vmem:[%s1869 + $0x48] sm:$0xff]
        %v1880 = vld [vmem:[%s1869 + $0x50] sm:$0xff]
        %v1881 = vld [vmem:[%s1869 + $0x58] sm:$0xff]
        %v1882 = vld [vmem:[%s1869 + $0x60] sm:$0xff]
        %v1883 = vld [vmem:[%s1869 + $0x68] sm:$0xff]
        %v1884 = vld [vmem:[%s1869 + $0x70] sm:$0xff]
        %v1885 = vld [vmem:[%s1869 + $0x78] sm:$0xff]
        %v1886 = vld [vmem:[%s1869 + $0x80] sm:$0xff]
        %v1887 = vld [vmem:[%s1869 + $0x88] sm:$0xff]
        %v1888 = vld [vmem:[%s1869 + $0x90] sm:$0xff]
        %v1889 = vld [vmem:[%s1869 + $0x98] sm:$0xff]
        %v1890 = vld [vmem:[%s1869 + $0xa0] sm:$0xff]
        %v1891 = vld [vmem:[%s1869 + $0xa8] sm:$0xff]
        %v1892 = vld [vmem:[%s1869 + $0xb0] sm:$0xff]
        %v1893 = vld [vmem:[%s1869 + $0xb8] sm:$0xff]
        %v1894 = vld [vmem:[%s1869 + $0xc0] sm:$0xff]
        %v1895 = vld [vmem:[%s1869 + $0xc8] sm:$0xff]
        %v1896 = vld [vmem:[%s1869 + $0xd0] sm:$0xff]
        %v1897 = vld [vmem:[%s1869 + $0xd8] sm:$0xff]
        %v1898 = vld [vmem:[%s1869 + $0xe0] sm:$0xff]
        %v1899 = vld [vmem:[%s1869 + $0xe8] sm:$0xff]
        %v1900 = vld [vmem:[%s1869 + $0xf0] sm:$0xff]
        %v1901 = vld [vmem:[%s1869 + $0xf8] sm:$0xff]
        %v1902 = vld [vmem:[%s1869 + $0x100] sm:$0xff]
        %v1903 = vld [vmem:[%s1869 + $0x108] sm:$0xff]
        %v1904 = vld [vmem:[%s1869 + $0x110] sm:$0xff]
        %v1905 = vld [vmem:[%s1869 + $0x118] sm:$0xff]
        %v1906 = vld [vmem:[%s1869 + $0x120] sm:$0xff]
        %v1907 = vld [vmem:[%s1869 + $0x128] sm:$0xff]
        %v1908 = vld [vmem:[%s1869 + $0x130] sm:$0xff]
        %v1909 = vld [vmem:[%s1869 + $0x138] sm:$0xff]
        %v1910 = vld [vmem:[%s1869 + $0x140] sm:$0xff]
        %v1911 = vld [vmem:[%s1869 + $0x148] sm:$0xff]
        %v1912 = vld [vmem:[%s1869 + $0x150] sm:$0xff]
        %v1913 = vld [vmem:[%s1869 + $0x158] sm:$0xff]
        %v1914 = vld [vmem:[%s1869 + $0x160] sm:$0xff]
        %v1915 = vld [vmem:[%s1869 + $0x168] sm:$0xff]
        %v1916 = vld [vmem:[%s1869 + $0x170] sm:$0xff]
        %v1917 = vld [vmem:[%s1869 + $0x178] sm:$0xff]
        %v1918 = vld [vmem:[%s1869 + $0x180] sm:$0xff]
        %v1919 = vld [vmem:[%s1869 + $0x188] sm:$0xff]
        %v1920 = vld [vmem:[%s1869 + $0x190] sm:$0xff]
        %v1921 = vld [vmem:[%s1869 + $0x198] sm:$0xff]
        %v1922 = vld [vmem:[%s1869 + $0x1a0] sm:$0xff]
        %v1923 = vld [vmem:[%s1869 + $0x1a8] sm:$0xff]
        %v1924 = vld [vmem:[%s1869 + $0x1b0] sm:$0xff]
        %v1925 = vld [vmem:[%s1869 + $0x1b8] sm:$0xff]
        %v1926 = vld [vmem:[%s1869 + $0x1c0] sm:$0xff]
        %v1927 = vld [vmem:[%s1869 + $0x1c8] sm:$0xff]
        %v1928 = vld [vmem:[%s1869 + $0x1d0] sm:$0xff]
        %v1929 = vld [vmem:[%s1869 + $0x1d8] sm:$0xff]
        %v1930 = vld [vmem:[%s1869 + $0x1e0] sm:$0xff]
        %v1931 = vld [vmem:[%s1869 + $0x1e8] sm:$0xff]
        %v1932 = vld [vmem:[%s1869 + $0x1f0] sm:$0xff]
        %v1933 = vld [vmem:[%s1869 + $0x1f8] sm:$0xff]
        %v1934 = vld [vmem:[%s1869 + $0x200] sm:$0xff]
        %v1935 = vld [vmem:[%s1869 + $0x208] sm:$0xff]
        %v1936 = vld [vmem:[%s1869 + $0x210] sm:$0xff]
        %v1937 = vld [vmem:[%s1869 + $0x218] sm:$0xff]
        %v1938 = vld [vmem:[%s1869 + $0x220] sm:$0xff]
        %v1939 = vld [vmem:[%s1869 + $0x228] sm:$0xff]
        %v1940 = vld [vmem:[%s1869 + $0x230] sm:$0xff]
        %v1941 = vld [vmem:[%s1869 + $0x238] sm:$0xff]
        %v1942 = vld [vmem:[%s1869 + $0x240] sm:$0xff]
        %v1943 = vld [vmem:[%s1869 + $0x248] sm:$0xff]
        %v1944 = vld [vmem:[%s1869 + $0x250] sm:$0xff]
        %v1945 = vld [vmem:[%s1869 + $0x258] sm:$0xff]
        %v1946 = vld [vmem:[%s1869 + $0x260] sm:$0xff]
        %v1947 = vld [vmem:[%s1869 + $0x268] sm:$0xff]
        %v1948 = vld [vmem:[%s1869 + $0x270] sm:$0xff]
        %v1949 = vld [vmem:[%s1869 + $0x278] sm:$0xff]
        %v1950 = vld [vmem:[%s1869 + $0x280] sm:$0xff]
        %v1951 = vld [vmem:[%s1869 + $0x288] sm:$0xff]
        %v1952 = vld [vmem:[%s1869 + $0x290] sm:$0xff]
        %v1953 = vld [vmem:[%s1869 + $0x298] sm:$0xff]
        %v1954 = vld [vmem:[%s1869 + $0x2a0] sm:$0xff]
        %v1955 = vld [vmem:[%s1869 + $0x2a8] sm:$0xff]
        %v1956 = vld [vmem:[%s1869 + $0x2b0] sm:$0xff]
        %v1957 = vld [vmem:[%s1869 + $0x2b8] sm:$0xff]
        %v1958 = vld [vmem:[%s1869 + $0x2c0] sm:$0xff]
        %v1959 = vld [vmem:[%s1869 + $0x2c8] sm:$0xff]
        %v1960 = vld [vmem:[%s1869 + $0x2d0] sm:$0xff]
        %v1961 = vld [vmem:[%s1869 + $0x2d8] sm:$0xff]
        %v1962 = vld [vmem:[%s1869 + $0x2e0] sm:$0xff]
        %v1963 = vld [vmem:[%s1869 + $0x2e8] sm:$0xff]
        %v1964 = vld [vmem:[%s1869 + $0x2f0] sm:$0xff]
        %v1965 = vld [vmem:[%s1869 + $0x2f8] sm:$0xff]
        %v2062 = vunpack.c.l.b16 %v1870
        %v2063 = vunpack.c.h.b16 %v1870
        %v2064 = vunpack.c.l.b16 %v1871
        %v2065 = vunpack.c.h.b16 %v1871
        %v2066 = vunpack.c.l.b16 %v1872
        %v2067 = vunpack.c.h.b16 %v1872
        %v2068 = vunpack.c.l.b16 %v1873
        %v2069 = vunpack.c.h.b16 %v1873
        %v2070 = vunpack.c.l.b16 %v1874
        %v2071 = vunpack.c.h.b16 %v1874
        %v2072 = vunpack.c.l.b16 %v1875
        %v2073 = vunpack.c.h.b16 %v1875
        %v2074 = vunpack.c.l.b16 %v1876
        %v2075 = vunpack.c.h.b16 %v1876
        %v2076 = vunpack.c.l.b16 %v1877
        %v2077 = vunpack.c.h.b16 %v1877
        %v2078 = vunpack.c.l.b16 %v1878
        %v2079 = vunpack.c.h.b16 %v1878
        %v2080 = vunpack.c.l.b16 %v1879
        %v2081 = vunpack.c.h.b16 %v1879
        %v2082 = vunpack.c.l.b16 %v1880
        %v2083 = vunpack.c.h.b16 %v1880
        %v2084 = vunpack.c.l.b16 %v1881
        %v2085 = vunpack.c.h.b16 %v1881
        %v2086 = vunpack.c.l.b16 %v1882
        %v2087 = vunpack.c.h.b16 %v1882
        %v2088 = vunpack.c.l.b16 %v1883
        %v2089 = vunpack.c.h.b16 %v1883
        %v2090 = vunpack.c.l.b16 %v1884
        %v2091 = vunpack.c.h.b16 %v1884
        %v2092 = vunpack.c.l.b16 %v1885
        %v2093 = vunpack.c.h.b16 %v1885
        %v2094 = vunpack.c.l.b16 %v1886
        %v2095 = vunpack.c.h.b16 %v1886
        %v2096 = vunpack.c.l.b16 %v1887
        %v2097 = vunpack.c.h.b16 %v1887
        %v2098 = vunpack.c.l.b16 %v1888
        %v2099 = vunpack.c.h.b16 %v1888
        %v2100 = vunpack.c.l.b16 %v1889
        %v2101 = vunpack.c.h.b16 %v1889
        %v2102 = vunpack.c.l.b16 %v1890
        %v2103 = vunpack.c.h.b16 %v1890
        %v2104 = vunpack.c.l.b16 %v1891
        %v2105 = vunpack.c.h.b16 %v1891
        %v2106 = vunpack.c.l.b16 %v1892
        %v2107 = vunpack.c.h.b16 %v1892
        %v2108 = vunpack.c.l.b16 %v1893
        %v2109 = vunpack.c.h.b16 %v1893
        %v2110 = vunpack.c.l.b16 %v1894
        %v2111 = vunpack.c.h.b16 %v1894
        %v2112 = vunpack.c.l.b16 %v1895
        %v2113 = vunpack.c.h.b16 %v1895
        %v2114 = vunpack.c.l.b16 %v1896
        %v2115 = vunpack.c.h.b16 %v1896
        %v2116 = vunpack.c.l.b16 %v1897
        %v2117 = vunpack.c.h.b16 %v1897
        %v2118 = vunpack.c.l.b16 %v1898
        %v2119 = vunpack.c.h.b16 %v1898
        %v2120 = vunpack.c.l.b16 %v1899
        %v2121 = vunpack.c.h.b16 %v1899
        %v2122 = vunpack.c.l.b16 %v1900
        %v2123 = vunpack.c.h.b16 %v1900
        %v2124 = vunpack.c.l.b16 %v1901
        %v2125 = vunpack.c.h.b16 %v1901
        %v2126 = vunpack.c.l.b16 %v1902
        %v2127 = vunpack.c.h.b16 %v1902
        %v2128 = vunpack.c.l.b16 %v1903
        %v2129 = vunpack.c.h.b16 %v1903
        %v2130 = vunpack.c.l.b16 %v1904
        %v2131 = vunpack.c.h.b16 %v1904
        %v2132 = vunpack.c.l.b16 %v1905
        %v2133 = vunpack.c.h.b16 %v1905
        %v2134 = vunpack.c.l.b16 %v1906
        %v2135 = vunpack.c.h.b16 %v1906
        %v2136 = vunpack.c.l.b16 %v1907
        %v2137 = vunpack.c.h.b16 %v1907
        %v2138 = vunpack.c.l.b16 %v1908
        %v2139 = vunpack.c.h.b16 %v1908
        %v2140 = vunpack.c.l.b16 %v1909
        %v2141 = vunpack.c.h.b16 %v1909
        %v2142 = vunpack.c.l.b16 %v1910
        %v2143 = vunpack.c.h.b16 %v1910
        %v2144 = vunpack.c.l.b16 %v1911
        %v2145 = vunpack.c.h.b16 %v1911
        %v2146 = vunpack.c.l.b16 %v1912
        %v2147 = vunpack.c.h.b16 %v1912
        %v2148 = vunpack.c.l.b16 %v1913
        %v2149 = vunpack.c.h.b16 %v1913
        %v2150 = vunpack.c.l.b16 %v1914
        %v2151 = vunpack.c.h.b16 %v1914
        %v2152 = vunpack.c.l.b16 %v1915
        %v2153 = vunpack.c.h.b16 %v1915
        %v2154 = vunpack.c.l.b16 %v1916
        %v2155 = vunpack.c.h.b16 %v1916
        %v2156 = vunpack.c.l.b16 %v1917
        %v2157 = vunpack.c.h.b16 %v1917
        %v2158 = vunpack.c.l.b16 %v1918
        %v2159 = vunpack.c.h.b16 %v1918
        %v2160 = vunpack.c.l.b16 %v1919
        %v2161 = vunpack.c.h.b16 %v1919
        %v2162 = vunpack.c.l.b16 %v1920
        %v2163 = vunpack.c.h.b16 %v1920
        %v2164 = vunpack.c.l.b16 %v1921
        %v2165 = vunpack.c.h.b16 %v1921
        %v2166 = vunpack.c.l.b16 %v1922
        %v2167 = vunpack.c.h.b16 %v1922
        %v2168 = vunpack.c.l.b16 %v1923
        %v2169 = vunpack.c.h.b16 %v1923
        %v2170 = vunpack.c.l.b16 %v1924
        %v2171 = vunpack.c.h.b16 %v1924
        %v2172 = vunpack.c.l.b16 %v1925
        %v2173 = vunpack.c.h.b16 %v1925
        %v2174 = vunpack.c.l.b16 %v1926
        %v2175 = vunpack.c.h.b16 %v1926
        %v2176 = vunpack.c.l.b16 %v1927
        %v2177 = vunpack.c.h.b16 %v1927
        %v2178 = vunpack.c.l.b16 %v1928
        %v2179 = vunpack.c.h.b16 %v1928
        %v2180 = vunpack.c.l.b16 %v1929
        %v2181 = vunpack.c.h.b16 %v1929
        %v2182 = vunpack.c.l.b16 %v1930
        %v2183 = vunpack.c.h.b16 %v1930
        %v2184 = vunpack.c.l.b16 %v1931
        %v2185 = vunpack.c.h.b16 %v1931
        %v2186 = vunpack.c.l.b16 %v1932
        %v2187 = vunpack.c.h.b16 %v1932
        %v2188 = vunpack.c.l.b16 %v1933
        %v2189 = vunpack.c.h.b16 %v1933
        %v2190 = vunpack.c.l.b16 %v1934
        %v2191 = vunpack.c.h.b16 %v1934
        %v2192 = vunpack.c.l.b16 %v1935
        %v2193 = vunpack.c.h.b16 %v1935
        %v2194 = vunpack.c.l.b16 %v1936
        %v2195 = vunpack.c.h.b16 %v1936
        %v2196 = vunpack.c.l.b16 %v1937
        %v2197 = vunpack.c.h.b16 %v1937
        %v2198 = vunpack.c.l.b16 %v1938
        %v2199 = vunpack.c.h.b16 %v1938
        %v2200 = vunpack.c.l.b16 %v1939
        %v2201 = vunpack.c.h.b16 %v1939
        %v2202 = vunpack.c.l.b16 %v1940
        %v2203 = vunpack.c.h.b16 %v1940
        %v2204 = vunpack.c.l.b16 %v1941
        %v2205 = vunpack.c.h.b16 %v1941
        %v2206 = vunpack.c.l.b16 %v1942
        %v2207 = vunpack.c.h.b16 %v1942
        %v2208 = vunpack.c.l.b16 %v1943
        %v2209 = vunpack.c.h.b16 %v1943
        %v2210 = vunpack.c.l.b16 %v1944
        %v2211 = vunpack.c.h.b16 %v1944
        %v2212 = vunpack.c.l.b16 %v1945
        %v2213 = vunpack.c.h.b16 %v1945
        %v2214 = vunpack.c.l.b16 %v1946
        %v2215 = vunpack.c.h.b16 %v1946
        %v2216 = vunpack.c.l.b16 %v1947
        %v2217 = vunpack.c.h.b16 %v1947
        %v2218 = vunpack.c.l.b16 %v1948
        %v2219 = vunpack.c.h.b16 %v1948
        %v2220 = vunpack.c.l.b16 %v1949
        %v2221 = vunpack.c.h.b16 %v1949
        %v2222 = vunpack.c.l.b16 %v1950
        %v2223 = vunpack.c.h.b16 %v1950
        %v2224 = vunpack.c.l.b16 %v1951
        %v2225 = vunpack.c.h.b16 %v1951
        %v2226 = vunpack.c.l.b16 %v1952
        %v2227 = vunpack.c.h.b16 %v1952
        %v2228 = vunpack.c.l.b16 %v1953
        %v2229 = vunpack.c.h.b16 %v1953
        %v2230 = vunpack.c.l.b16 %v1954
        %v2231 = vunpack.c.h.b16 %v1954
        %v2232 = vunpack.c.l.b16 %v1955
        %v2233 = vunpack.c.h.b16 %v1955
        %v2234 = vunpack.c.l.b16 %v1956
        %v2235 = vunpack.c.h.b16 %v1956
        %v2236 = vunpack.c.l.b16 %v1957
        %v2237 = vunpack.c.h.b16 %v1957
        %v2238 = vunpack.c.l.b16 %v1958
        %v2239 = vunpack.c.h.b16 %v1958
        %v2240 = vunpack.c.l.b16 %v1959
        %v2241 = vunpack.c.h.b16 %v1959
        %v2242 = vunpack.c.l.b16 %v1960
        %v2243 = vunpack.c.h.b16 %v1960
        %v2244 = vunpack.c.l.b16 %v1961
        %v2245 = vunpack.c.h.b16 %v1961
        %v2246 = vunpack.c.l.b16 %v1962
        %v2247 = vunpack.c.h.b16 %v1962
        %v2248 = vunpack.c.l.b16 %v1963
        %v2249 = vunpack.c.h.b16 %v1963
        %v2250 = vunpack.c.l.b16 %v1964
        %v2251 = vunpack.c.h.b16 %v1964
        %v2252 = vunpack.c.l.b16 %v1965
        %v2253 = vunpack.c.h.b16 %v1965
        %v2254 = vpack.c.b16 %v2064, %v2062
        %v2255 = vpack.c.b16 %v2065, %v2063
        %v2256 = vpack.c.b16 %v2068, %v2066
        %v2257 = vpack.c.b16 %v2069, %v2067
        %v2258 = vpack.c.b16 %v2072, %v2070
        %v2259 = vpack.c.b16 %v2073, %v2071
        %v2260 = vpack.c.b16 %v2076, %v2074
        %v2261 = vpack.c.b16 %v2077, %v2075
        %v2262 = vpack.c.b16 %v2080, %v2078
        %v2263 = vpack.c.b16 %v2081, %v2079
        %v2264 = vpack.c.b16 %v2084, %v2082
        %v2265 = vpack.c.b16 %v2085, %v2083
        %v2266 = vpack.c.b16 %v2088, %v2086
        %v2267 = vpack.c.b16 %v2089, %v2087
        %v2268 = vpack.c.b16 %v2092, %v2090
        %v2269 = vpack.c.b16 %v2093, %v2091
        %v2270 = vpack.c.b16 %v2096, %v2094
        %v2271 = vpack.c.b16 %v2097, %v2095
        %v2272 = vpack.c.b16 %v2100, %v2098
        %v2273 = vpack.c.b16 %v2101, %v2099
        %v2274 = vpack.c.b16 %v2104, %v2102
        %v2275 = vpack.c.b16 %v2105, %v2103
        %v2276 = vpack.c.b16 %v2108, %v2106
        %v2277 = vpack.c.b16 %v2109, %v2107
        %v2278 = vpack.c.b16 %v2112, %v2110
        %v2279 = vpack.c.b16 %v2113, %v2111
        %v2280 = vpack.c.b16 %v2116, %v2114
        %v2281 = vpack.c.b16 %v2117, %v2115
        %v2282 = vpack.c.b16 %v2120, %v2118
        %v2283 = vpack.c.b16 %v2121, %v2119
        %v2284 = vpack.c.b16 %v2124, %v2122
        %v2285 = vpack.c.b16 %v2125, %v2123
        %v2286 = vpack.c.b16 %v2128, %v2126
        %v2287 = vpack.c.b16 %v2129, %v2127
        %v2288 = vpack.c.b16 %v2132, %v2130
        %v2289 = vpack.c.b16 %v2133, %v2131
        %v2290 = vpack.c.b16 %v2136, %v2134
        %v2291 = vpack.c.b16 %v2137, %v2135
        %v2292 = vpack.c.b16 %v2140, %v2138
        %v2293 = vpack.c.b16 %v2141, %v2139
        %v2294 = vpack.c.b16 %v2144, %v2142
        %v2295 = vpack.c.b16 %v2145, %v2143
        %v2296 = vpack.c.b16 %v2148, %v2146
        %v2297 = vpack.c.b16 %v2149, %v2147
        %v2298 = vpack.c.b16 %v2152, %v2150
        %v2299 = vpack.c.b16 %v2153, %v2151
        %v2300 = vpack.c.b16 %v2156, %v2154
        %v2301 = vpack.c.b16 %v2157, %v2155
        %v2302 = vpack.c.b16 %v2160, %v2158
        %v2303 = vpack.c.b16 %v2161, %v2159
        %v2304 = vpack.c.b16 %v2164, %v2162
        %v2305 = vpack.c.b16 %v2165, %v2163
        %v2306 = vpack.c.b16 %v2168, %v2166
        %v2307 = vpack.c.b16 %v2169, %v2167
        %v2308 = vpack.c.b16 %v2172, %v2170
        %v2309 = vpack.c.b16 %v2173, %v2171
        %v2310 = vpack.c.b16 %v2176, %v2174
        %v2311 = vpack.c.b16 %v2177, %v2175
        %v2312 = vpack.c.b16 %v2180, %v2178
        %v2313 = vpack.c.b16 %v2181, %v2179
        %v2314 = vpack.c.b16 %v2184, %v2182
        %v2315 = vpack.c.b16 %v2185, %v2183
        %v2316 = vpack.c.b16 %v2188, %v2186
        %v2317 = vpack.c.b16 %v2189, %v2187
        %v2318 = vpack.c.b16 %v2192, %v2190
        %v2319 = vpack.c.b16 %v2193, %v2191
        %v2320 = vpack.c.b16 %v2196, %v2194
        %v2321 = vpack.c.b16 %v2197, %v2195
        %v2322 = vpack.c.b16 %v2200, %v2198
        %v2323 = vpack.c.b16 %v2201, %v2199
        %v2324 = vpack.c.b16 %v2204, %v2202
        %v2325 = vpack.c.b16 %v2205, %v2203
        %v2326 = vpack.c.b16 %v2208, %v2206
        %v2327 = vpack.c.b16 %v2209, %v2207
        %v2328 = vpack.c.b16 %v2212, %v2210
        %v2329 = vpack.c.b16 %v2213, %v2211
        %v2330 = vpack.c.b16 %v2216, %v2214
        %v2331 = vpack.c.b16 %v2217, %v2215
        %v2332 = vpack.c.b16 %v2220, %v2218
        %v2333 = vpack.c.b16 %v2221, %v2219
        %v2334 = vpack.c.b16 %v2224, %v2222
        %v2335 = vpack.c.b16 %v2225, %v2223
        %v2336 = vpack.c.b16 %v2228, %v2226
        %v2337 = vpack.c.b16 %v2229, %v2227
        %v2338 = vpack.c.b16 %v2232, %v2230
        %v2339 = vpack.c.b16 %v2233, %v2231
        %v2340 = vpack.c.b16 %v2236, %v2234
        %v2341 = vpack.c.b16 %v2237, %v2235
        %v2342 = vpack.c.b16 %v2240, %v2238
        %v2343 = vpack.c.b16 %v2241, %v2239
        %v2344 = vpack.c.b16 %v2244, %v2242
        %v2345 = vpack.c.b16 %v2245, %v2243
        %v2346 = vpack.c.b16 %v2248, %v2246
        %v2347 = vpack.c.b16 %v2249, %v2247
        %v2348 = vpack.c.b16 %v2252, %v2250
        %v2349 = vpack.c.b16 %v2253, %v2251
        %2446 = vmatprep.subr.bf16.mxu0 %v2269
        %2447 = vmatpush1.bf16.msra.mxu0 %v2268
        %2448 = vmatprep.subr.bf16.mxu0 %v2267
        %2449 = vmatpush1.bf16.msra.mxu0 %v2266
        %2450 = vmatprep.subr.bf16.mxu0 %v2265
        %2451 = vmatpush1.bf16.msra.mxu0 %v2264
        %2452 = vmatprep.subr.bf16.mxu0 %v2263
        %2453 = vmatpush1.bf16.msra.mxu0 %v2262
        %2454 = vmatprep.subr.bf16.mxu0 %v2261
        %2455 = vmatpush1.bf16.msra.mxu0 %v2260
        %2456 = vmatprep.subr.bf16.mxu0 %v2259
        %2457 = vmatpush1.bf16.msra.mxu0 %v2258
        %2458 = vmatprep.subr.bf16.mxu0 %v2257
        %2459 = vmatpush1.bf16.msra.mxu0 %v2256
        %2460 = vmatprep.subr.bf16.mxu0 %v2255
        %2461 = vmatpush1.bf16.msra.mxu0 %v2254
        %2462 = vmatprep.subr.bf16.mxu0 %v2285
        %2463 = vmatpush2.bf16.msra.mxu0 %v2284
        %2464 = vmatprep.subr.bf16.mxu0 %v2283
        %2465 = vmatpush2.bf16.msra.mxu0 %v2282
        %2466 = vmatprep.subr.bf16.mxu0 %v2281
        %2467 = vmatpush2.bf16.msra.mxu0 %v2280
        %2468 = vmatprep.subr.bf16.mxu0 %v2279
        %2469 = vmatpush2.bf16.msra.mxu0 %v2278
        %2470 = vmatprep.subr.bf16.mxu0 %v2277
        %2471 = vmatpush2.bf16.msra.mxu0 %v2276
        %2472 = vmatprep.subr.bf16.mxu0 %v2275
        %2473 = vmatpush2.bf16.msra.mxu0 %v2274
        %2474 = vmatprep.subr.bf16.mxu0 %v2273
        %2475 = vmatpush2.bf16.msra.mxu0 %v2272
        %2476 = vmatprep.subr.bf16.mxu0 %v2271
        %2477 = vmatpush2.bf16.msra.mxu0 %v2270
        %2478 = vmatprep.mubr.bf16.mxu0 %v1822
        %2479 = vmatmul.mubr.bf16.gmra.mxu0 %v1821
        %v2480 = vpop.f32.mrf.mxu0
        %v2481 = vadd.f32 0.0, %v2480
        %v2482 = vpop.f32.mrf.mxu0
        %v2483 = vadd.f32 0.0, %v2482
        %v2484 = vpop.f32.mrf.mxu0
        %v2485 = vadd.f32 0.0, %v2484
        %v2486 = vpop.f32.mrf.mxu0
        %v2487 = vadd.f32 0.0, %v2486
        %2488 = vmatprep.mubr.bf16.mxu0 %v1828
        %2489 = vmatmul.mubr.bf16.gmra.mxu0 %v1827
        %v2490 = vpop.f32.mrf.mxu0
        %v2491 = vadd.f32 0.0, %v2490
        %v2492 = vpop.f32.mrf.mxu0
        %v2493 = vadd.f32 0.0, %v2492
        %v2494 = vpop.f32.mrf.mxu0
        %v2495 = vadd.f32 0.0, %v2494
        %v2496 = vpop.f32.mrf.mxu0
        %v2497 = vadd.f32 0.0, %v2496
        %2498 = vmatprep.mubr.bf16.mxu0 %v1834
        %2499 = vmatmul.mubr.bf16.gmra.mxu0 %v1833
        %v2500 = vpop.f32.mrf.mxu0
        %v2501 = vadd.f32 0.0, %v2500
        %v2502 = vpop.f32.mrf.mxu0
        %v2503 = vadd.f32 0.0, %v2502
        %v2504 = vpop.f32.mrf.mxu0
        %v2505 = vadd.f32 0.0, %v2504
        %v2506 = vpop.f32.mrf.mxu0
        %v2507 = vadd.f32 0.0, %v2506
        %2508 = vmatprep.mubr.bf16.mxu0 %v1840
        %2509 = vmatmul.mubr.bf16.gmra.mxu0 %v1839
        %v2510 = vpop.f32.mrf.mxu0
        %v2511 = vadd.f32 0.0, %v2510
        %v2512 = vpop.f32.mrf.mxu0
        %v2513 = vadd.f32 0.0, %v2512
        %v2514 = vpop.f32.mrf.mxu0
        %v2515 = vadd.f32 0.0, %v2514
        %v2516 = vpop.f32.mrf.mxu0
        %v2517 = vadd.f32 0.0, %v2516
        %2518 = vmatprep.mubr.bf16.mxu0 %v1846
        %2519 = vmatmul.mubr.bf16.gmra.mxu0 %v1845
        %v2520 = vpop.f32.mrf.mxu0
        %v2521 = vadd.f32 0.0, %v2520
        %v2522 = vpop.f32.mrf.mxu0
        %v2523 = vadd.f32 0.0, %v2522
        %v2524 = vpop.f32.mrf.mxu0
        %v2525 = vadd.f32 0.0, %v2524
        %v2526 = vpop.f32.mrf.mxu0
        %v2527 = vadd.f32 0.0, %v2526
        %2528 = vmatprep.mubr.bf16.mxu0 %v1852
        %2529 = vmatmul.mubr.bf16.gmra.mxu0 %v1851
        %v2530 = vpop.f32.mrf.mxu0
        %v2531 = vadd.f32 0.0, %v2530
        %v2532 = vpop.f32.mrf.mxu0
        %v2533 = vadd.f32 0.0, %v2532
        %v2534 = vpop.f32.mrf.mxu0
        %v2535 = vadd.f32 0.0, %v2534
        %v2536 = vpop.f32.mrf.mxu0
        %v2537 = vadd.f32 0.0, %v2536
        %2538 = vmatprep.mubr.bf16.mxu0 %v1858
        %2539 = vmatmul.mubr.bf16.gmra.mxu0 %v1857
        %v2540 = vpop.f32.mrf.mxu0
        %v2541 = vadd.f32 0.0, %v2540
        %v2542 = vpop.f32.mrf.mxu0
        %v2543 = vadd.f32 0.0, %v2542
        %v2544 = vpop.f32.mrf.mxu0
        %v2545 = vadd.f32 0.0, %v2544
        %v2546 = vpop.f32.mrf.mxu0
        %v2547 = vadd.f32 0.0, %v2546
        %2548 = vmatprep.mubr.bf16.mxu0 %v1864
        %2549 = vmatmul.mubr.bf16.gmra.mxu0 %v1863
        %v2550 = vpop.f32.mrf.mxu0
        %v2551 = vadd.f32 0.0, %v2550
        %v2552 = vpop.f32.mrf.mxu0
        %v2553 = vadd.f32 0.0, %v2552
        %v2554 = vpop.f32.mrf.mxu0
        %v2555 = vadd.f32 0.0, %v2554
        %v2556 = vpop.f32.mrf.mxu0
        %v2557 = vadd.f32 0.0, %v2556
        %2558 = vdwg.mxu0
        %2559 = vmatprep.subr.bf16.mxu0 %v2301
        %2560 = vmatpush1.bf16.msra.mxu0 %v2300
        %2561 = vmatprep.subr.bf16.mxu0 %v2299
        %2562 = vmatpush1.bf16.msra.mxu0 %v2298
        %2563 = vmatprep.subr.bf16.mxu0 %v2297
        %2564 = vmatpush1.bf16.msra.mxu0 %v2296
        %2565 = vmatprep.subr.bf16.mxu0 %v2295
        %2566 = vmatpush1.bf16.msra.mxu0 %v2294
        %2567 = vmatprep.subr.bf16.mxu0 %v2293
        %2568 = vmatpush1.bf16.msra.mxu0 %v2292
        %2569 = vmatprep.subr.bf16.mxu0 %v2291
        %2570 = vmatpush1.bf16.msra.mxu0 %v2290
        %2571 = vmatprep.subr.bf16.mxu0 %v2289
        %2572 = vmatpush1.bf16.msra.mxu0 %v2288
        %2573 = vmatprep.subr.bf16.mxu0 %v2287
        %2574 = vmatpush1.bf16.msra.mxu0 %v2286
        %2575 = vmatprep.subr.bf16.mxu0 %v2317
        %2576 = vmatpush2.bf16.msra.mxu0 %v2316
        %2577 = vmatprep.subr.bf16.mxu0 %v2315
        %2578 = vmatpush2.bf16.msra.mxu0 %v2314
        %2579 = vmatprep.subr.bf16.mxu0 %v2313
        %2580 = vmatpush2.bf16.msra.mxu0 %v2312
        %2581 = vmatprep.subr.bf16.mxu0 %v2311
        %2582 = vmatpush2.bf16.msra.mxu0 %v2310
        %2583 = vmatprep.subr.bf16.mxu0 %v2309
        %2584 = vmatpush2.bf16.msra.mxu0 %v2308
        %2585 = vmatprep.subr.bf16.mxu0 %v2307
        %2586 = vmatpush2.bf16.msra.mxu0 %v2306
        %2587 = vmatprep.subr.bf16.mxu0 %v2305
        %2588 = vmatpush2.bf16.msra.mxu0 %v2304
        %2589 = vmatprep.subr.bf16.mxu0 %v2303
        %2590 = vmatpush2.bf16.msra.mxu0 %v2302
        %2591 = vmatprep.mubr.bf16.mxu0 %v1824
        %2592 = vmatmul.mubr.bf16.gmra.mxu0 %v1823
        %v2593 = vpop.f32.mrf.mxu0
        %v2594 = vadd.f32 %v2481, %v2593
        %v2595 = vpop.f32.mrf.mxu0
        %v2596 = vadd.f32 %v2483, %v2595
        %v2597 = vpop.f32.mrf.mxu0
        %v2598 = vadd.f32 %v2485, %v2597
        %v2599 = vpop.f32.mrf.mxu0
        %v2600 = vadd.f32 %v2487, %v2599
        %2601 = vmatprep.mubr.bf16.mxu0 %v1830
        %2602 = vmatmul.mubr.bf16.gmra.mxu0 %v1829
        %v2603 = vpop.f32.mrf.mxu0
        %v2604 = vadd.f32 %v2491, %v2603
        %v2605 = vpop.f32.mrf.mxu0
        %v2606 = vadd.f32 %v2493, %v2605
        %v2607 = vpop.f32.mrf.mxu0
        %v2608 = vadd.f32 %v2495, %v2607
        %v2609 = vpop.f32.mrf.mxu0
        %v2610 = vadd.f32 %v2497, %v2609
        %2611 = vmatprep.mubr.bf16.mxu0 %v1836
        %2612 = vmatmul.mubr.bf16.gmra.mxu0 %v1835
        %v2613 = vpop.f32.mrf.mxu0
        %v2614 = vadd.f32 %v2501, %v2613
        %v2615 = vpop.f32.mrf.mxu0
        %v2616 = vadd.f32 %v2503, %v2615
        %v2617 = vpop.f32.mrf.mxu0
        %v2618 = vadd.f32 %v2505, %v2617
        %v2619 = vpop.f32.mrf.mxu0
        %v2620 = vadd.f32 %v2507, %v2619
        %2621 = vmatprep.mubr.bf16.mxu0 %v1842
        %2622 = vmatmul.mubr.bf16.gmra.mxu0 %v1841
        %v2623 = vpop.f32.mrf.mxu0
        %v2624 = vadd.f32 %v2511, %v2623
        %v2625 = vpop.f32.mrf.mxu0
        %v2626 = vadd.f32 %v2513, %v2625
        %v2627 = vpop.f32.mrf.mxu0
        %v2628 = vadd.f32 %v2515, %v2627
        %v2629 = vpop.f32.mrf.mxu0
        %v2630 = vadd.f32 %v2517, %v2629
        %2631 = vmatprep.mubr.bf16.mxu0 %v1848
        %2632 = vmatmul.mubr.bf16.gmra.mxu0 %v1847
        %v2633 = vpop.f32.mrf.mxu0
        %v2634 = vadd.f32 %v2521, %v2633
        %v2635 = vpop.f32.mrf.mxu0
        %v2636 = vadd.f32 %v2523, %v2635
        %v2637 = vpop.f32.mrf.mxu0
        %v2638 = vadd.f32 %v2525, %v2637
        %v2639 = vpop.f32.mrf.mxu0
        %v2640 = vadd.f32 %v2527, %v2639
        %2641 = vmatprep.mubr.bf16.mxu0 %v1854
        %2642 = vmatmul.mubr.bf16.gmra.mxu0 %v1853
        %v2643 = vpop.f32.mrf.mxu0
        %v2644 = vadd.f32 %v2531, %v2643
        %v2645 = vpop.f32.mrf.mxu0
        %v2646 = vadd.f32 %v2533, %v2645
        %v2647 = vpop.f32.mrf.mxu0
        %v2648 = vadd.f32 %v2535, %v2647
        %v2649 = vpop.f32.mrf.mxu0
        %v2650 = vadd.f32 %v2537, %v2649
        %2651 = vmatprep.mubr.bf16.mxu0 %v1860
        %2652 = vmatmul.mubr.bf16.gmra.mxu0 %v1859
        %v2653 = vpop.f32.mrf.mxu0
        %v2654 = vadd.f32 %v2541, %v2653
        %v2655 = vpop.f32.mrf.mxu0
        %v2656 = vadd.f32 %v2543, %v2655
        %v2657 = vpop.f32.mrf.mxu0
        %v2658 = vadd.f32 %v2545, %v2657
        %v2659 = vpop.f32.mrf.mxu0
        %v2660 = vadd.f32 %v2547, %v2659
        %2661 = vmatprep.mubr.bf16.mxu0 %v1866
        %2662 = vmatmul.mubr.bf16.gmra.mxu0 %v1865
        %v2663 = vpop.f32.mrf.mxu0
        %v2664 = vadd.f32 %v2551, %v2663
        %v2665 = vpop.f32.mrf.mxu0
        %v2666 = vadd.f32 %v2553, %v2665
        %v2667 = vpop.f32.mrf.mxu0
        %v2668 = vadd.f32 %v2555, %v2667
        %v2669 = vpop.f32.mrf.mxu0
        %v2670 = vadd.f32 %v2557, %v2669
        %2671 = vdwg.mxu0
        %2672 = vmatprep.subr.bf16.mxu0 %v2333
        %2673 = vmatpush1.bf16.msra.mxu0 %v2332
        %2674 = vmatprep.subr.bf16.mxu0 %v2331
        %2675 = vmatpush1.bf16.msra.mxu0 %v2330
        %2676 = vmatprep.subr.bf16.mxu0 %v2329
        %2677 = vmatpush1.bf16.msra.mxu0 %v2328
        %2678 = vmatprep.subr.bf16.mxu0 %v2327
        %2679 = vmatpush1.bf16.msra.mxu0 %v2326
        %2680 = vmatprep.subr.bf16.mxu0 %v2325
        %2681 = vmatpush1.bf16.msra.mxu0 %v2324
        %2682 = vmatprep.subr.bf16.mxu0 %v2323
        %2683 = vmatpush1.bf16.msra.mxu0 %v2322
        %2684 = vmatprep.subr.bf16.mxu0 %v2321
        %2685 = vmatpush1.bf16.msra.mxu0 %v2320
        %2686 = vmatprep.subr.bf16.mxu0 %v2319
        %2687 = vmatpush1.bf16.msra.mxu0 %v2318
        %2688 = vmatprep.subr.bf16.mxu0 %v2349
        %2689 = vmatpush2.bf16.msra.mxu0 %v2348
        %2690 = vmatprep.subr.bf16.mxu0 %v2347
        %2691 = vmatpush2.bf16.msra.mxu0 %v2346
        %2692 = vmatprep.subr.bf16.mxu0 %v2345
        %2693 = vmatpush2.bf16.msra.mxu0 %v2344
        %2694 = vmatprep.subr.bf16.mxu0 %v2343
        %2695 = vmatpush2.bf16.msra.mxu0 %v2342
        %2696 = vmatprep.subr.bf16.mxu0 %v2341
        %2697 = vmatpush2.bf16.msra.mxu0 %v2340
        %2698 = vmatprep.subr.bf16.mxu0 %v2339
        %2699 = vmatpush2.bf16.msra.mxu0 %v2338
        %2700 = vmatprep.subr.bf16.mxu0 %v2337
        %2701 = vmatpush2.bf16.msra.mxu0 %v2336
        %2702 = vmatprep.subr.bf16.mxu0 %v2335
        %2703 = vmatpush2.bf16.msra.mxu0 %v2334
        %2704 = vmatprep.mubr.bf16.mxu0 %v1826
        %2705 = vmatmul.mubr.bf16.gmra.mxu0 %v1825
        %v2706 = vpop.f32.mrf.mxu0
        %v2707 = vadd.f32 %v2594, %v2706
        %v2708 = vpop.f32.mrf.mxu0
        %v2709 = vadd.f32 %v2596, %v2708
        %v2710 = vpop.f32.mrf.mxu0
        %v2711 = vadd.f32 %v2598, %v2710
        %v2712 = vpop.f32.mrf.mxu0
        %v2713 = vadd.f32 %v2600, %v2712
        %2714 = vmatprep.mubr.bf16.mxu0 %v1832
        %2715 = vmatmul.mubr.bf16.gmra.mxu0 %v1831
        %v2716 = vpop.f32.mrf.mxu0
        %v2717 = vadd.f32 %v2604, %v2716
        %v2718 = vpop.f32.mrf.mxu0
        %v2719 = vadd.f32 %v2606, %v2718
        %v2720 = vpop.f32.mrf.mxu0
        %v2721 = vadd.f32 %v2608, %v2720
        %v2722 = vpop.f32.mrf.mxu0
        %v2723 = vadd.f32 %v2610, %v2722
        %2724 = vmatprep.mubr.bf16.mxu0 %v1838
        %2725 = vmatmul.mubr.bf16.gmra.mxu0 %v1837
        %v2726 = vpop.f32.mrf.mxu0
        %v2727 = vadd.f32 %v2614, %v2726
        %v2728 = vpop.f32.mrf.mxu0
        %v2729 = vadd.f32 %v2616, %v2728
        %v2730 = vpop.f32.mrf.mxu0
        %v2731 = vadd.f32 %v2618, %v2730
        %v2732 = vpop.f32.mrf.mxu0
        %v2733 = vadd.f32 %v2620, %v2732
        %2734 = vmatprep.mubr.bf16.mxu0 %v1844
        %2735 = vmatmul.mubr.bf16.gmra.mxu0 %v1843
        %v2736 = vpop.f32.mrf.mxu0
        %v2737 = vadd.f32 %v2624, %v2736
        %v2738 = vpop.f32.mrf.mxu0
        %v2739 = vadd.f32 %v2626, %v2738
        %v2740 = vpop.f32.mrf.mxu0
        %v2741 = vadd.f32 %v2628, %v2740
        %v2742 = vpop.f32.mrf.mxu0
        %v2743 = vadd.f32 %v2630, %v2742
        %2744 = vmatprep.mubr.bf16.mxu0 %v1850
        %2745 = vmatmul.mubr.bf16.gmra.mxu0 %v1849
        %v2746 = vpop.f32.mrf.mxu0
        %v2747 = vadd.f32 %v2634, %v2746
        %v2748 = vpop.f32.mrf.mxu0
        %v2749 = vadd.f32 %v2636, %v2748
        %v2750 = vpop.f32.mrf.mxu0
        %v2751 = vadd.f32 %v2638, %v2750
        %v2752 = vpop.f32.mrf.mxu0
        %v2753 = vadd.f32 %v2640, %v2752
        %2754 = vmatprep.mubr.bf16.mxu0 %v1856
        %2755 = vmatmul.mubr.bf16.gmra.mxu0 %v1855
        %v2756 = vpop.f32.mrf.mxu0
        %v2757 = vadd.f32 %v2644, %v2756
        %v2758 = vpop.f32.mrf.mxu0
        %v2759 = vadd.f32 %v2646, %v2758
        %v2760 = vpop.f32.mrf.mxu0
        %v2761 = vadd.f32 %v2648, %v2760
        %v2762 = vpop.f32.mrf.mxu0
        %v2763 = vadd.f32 %v2650, %v2762
        %2764 = vmatprep.mubr.bf16.mxu0 %v1862
        %2765 = vmatmul.mubr.bf16.gmra.mxu0 %v1861
        %v2766 = vpop.f32.mrf.mxu0
        %v2767 = vadd.f32 %v2654, %v2766
        %v2768 = vpop.f32.mrf.mxu0
        %v2769 = vadd.f32 %v2656, %v2768
        %v2770 = vpop.f32.mrf.mxu0
        %v2771 = vadd.f32 %v2658, %v2770
        %v2772 = vpop.f32.mrf.mxu0
        %v2773 = vadd.f32 %v2660, %v2772
        %2774 = vmatprep.mubr.bf16.mxu0 %v1868
        %2775 = vmatmul.mubr.bf16.gmra.mxu0 %v1867
        %v2776 = vpop.f32.mrf.mxu0
        %v2777 = vadd.f32 %v2664, %v2776
        %v2778 = vpop.f32.mrf.mxu0
        %v2779 = vadd.f32 %v2666, %v2778
        %v2780 = vpop.f32.mrf.mxu0
        %v2781 = vadd.f32 %v2668, %v2780
        %v2782 = vpop.f32.mrf.mxu0
        %v2783 = vadd.f32 %v2670, %v2782
        %2784 = vdwg.mxu0
        %v2785 = vld [vmem:[#allocation3] sm:$0xff]
        %v2786 = vld [vmem:[#allocation3 + $0x8] sm:$0xff]
        %v2787 = vld [vmem:[#allocation3 + $0x10] sm:$0xff]
        %v2788 = vld [vmem:[#allocation3 + $0x18] sm:$0xff]
        %v2789 = vld [vmem:[#allocation3 + $0x20] sm:$0xff]
        %v2790 = vld [vmem:[#allocation3 + $0x28] sm:$0xff]
        %v2791 = vld [vmem:[#allocation3 + $0x30] sm:$0xff]
        %v2792 = vld [vmem:[#allocation3 + $0x38] sm:$0xff]
        %v2793 = vld [vmem:[#allocation3 + $0x40] sm:$0xff]
        %v2794 = vld [vmem:[#allocation3 + $0x48] sm:$0xff]
        %v2795 = vld [vmem:[#allocation3 + $0x50] sm:$0xff]
        %v2796 = vld [vmem:[#allocation3 + $0x58] sm:$0xff]
        %v2797 = vld [vmem:[#allocation3 + $0x60] sm:$0xff]
        %v2798 = vld [vmem:[#allocation3 + $0x68] sm:$0xff]
        %v2799 = vld [vmem:[#allocation3 + $0x70] sm:$0xff]
        %v2800 = vld [vmem:[#allocation3 + $0x78] sm:$0xff]
        %v2801 = vld [vmem:[#allocation3 + $0x80] sm:$0xff]
        %v2802 = vld [vmem:[#allocation3 + $0x88] sm:$0xff]
        %v2803 = vld [vmem:[#allocation3 + $0x90] sm:$0xff]
        %v2804 = vld [vmem:[#allocation3 + $0x98] sm:$0xff]
        %v2805 = vld [vmem:[#allocation3 + $0xa0] sm:$0xff]
        %v2806 = vld [vmem:[#allocation3 + $0xa8] sm:$0xff]
        %v2807 = vld [vmem:[#allocation3 + $0xb0] sm:$0xff]
        %v2808 = vld [vmem:[#allocation3 + $0xb8] sm:$0xff]
        %v2809 = vld [vmem:[#allocation3 + $0xc0] sm:$0xff]
        %v2810 = vld [vmem:[#allocation3 + $0xc8] sm:$0xff]
        %v2811 = vld [vmem:[#allocation3 + $0xd0] sm:$0xff]
        %v2812 = vld [vmem:[#allocation3 + $0xd8] sm:$0xff]
        %v2813 = vld [vmem:[#allocation3 + $0xe0] sm:$0xff]
        %v2814 = vld [vmem:[#allocation3 + $0xe8] sm:$0xff]
        %v2815 = vld [vmem:[#allocation3 + $0xf0] sm:$0xff]
        %v2816 = vld [vmem:[#allocation3 + $0xf8] sm:$0xff]
        %v2817 = vadd.f32 %v2785, %v2707
        %v2818 = vadd.f32 %v2786, %v2709
        %v2819 = vadd.f32 %v2787, %v2711
        %v2820 = vadd.f32 %v2788, %v2713
        %v2821 = vadd.f32 %v2789, %v2717
        %v2822 = vadd.f32 %v2790, %v2719
        %v2823 = vadd.f32 %v2791, %v2721
        %v2824 = vadd.f32 %v2792, %v2723
        %v2825 = vadd.f32 %v2793, %v2727
        %v2826 = vadd.f32 %v2794, %v2729
        %v2827 = vadd.f32 %v2795, %v2731
        %v2828 = vadd.f32 %v2796, %v2733
        %v2829 = vadd.f32 %v2797, %v2737
        %v2830 = vadd.f32 %v2798, %v2739
        %v2831 = vadd.f32 %v2799, %v2741
        %v2832 = vadd.f32 %v2800, %v2743
        %v2833 = vadd.f32 %v2801, %v2747
        %v2834 = vadd.f32 %v2802, %v2749
        %v2835 = vadd.f32 %v2803, %v2751
        %v2836 = vadd.f32 %v2804, %v2753
        %v2837 = vadd.f32 %v2805, %v2757
        %v2838 = vadd.f32 %v2806, %v2759
        %v2839 = vadd.f32 %v2807, %v2761
        %v2840 = vadd.f32 %v2808, %v2763
        %v2841 = vadd.f32 %v2809, %v2767
        %v2842 = vadd.f32 %v2810, %v2769
        %v2843 = vadd.f32 %v2811, %v2771
        %v2844 = vadd.f32 %v2812, %v2773
        %v2845 = vadd.f32 %v2813, %v2777
        %v2846 = vadd.f32 %v2814, %v2779
        %v2847 = vadd.f32 %v2815, %v2781
        %v2848 = vadd.f32 %v2816, %v2783
        %2849 = vst [vmem:[#allocation3] sm:$0xff] %v2817
        %2850 = vst [vmem:[#allocation3 + $0x8] sm:$0xff] %v2818
        %2851 = vst [vmem:[#allocation3 + $0x10] sm:$0xff] %v2819
        %2852 = vst [vmem:[#allocation3 + $0x18] sm:$0xff] %v2820
        %2853 = vst [vmem:[#allocation3 + $0x20] sm:$0xff] %v2821
        %2854 = vst [vmem:[#allocation3 + $0x28] sm:$0xff] %v2822
        %2855 = vst [vmem:[#allocation3 + $0x30] sm:$0xff] %v2823
        %2856 = vst [vmem:[#allocation3 + $0x38] sm:$0xff] %v2824
        %2857 = vst [vmem:[#allocation3 + $0x40] sm:$0xff] %v2825
        %2858 = vst [vmem:[#allocation3 + $0x48] sm:$0xff] %v2826
        %2859 = vst [vmem:[#allocation3 + $0x50] sm:$0xff] %v2827
        %2860 = vst [vmem:[#allocation3 + $0x58] sm:$0xff] %v2828
        %2861 = vst [vmem:[#allocation3 + $0x60] sm:$0xff] %v2829
        %2862 = vst [vmem:[#allocation3 + $0x68] sm:$0xff] %v2830
        %2863 = vst [vmem:[#allocation3 + $0x70] sm:$0xff] %v2831
        %2864 = vst [vmem:[#allocation3 + $0x78] sm:$0xff] %v2832
        %2865 = vst [vmem:[#allocation3 + $0x80] sm:$0xff] %v2833
        %2866 = vst [vmem:[#allocation3 + $0x88] sm:$0xff] %v2834
        %2867 = vst [vmem:[#allocation3 + $0x90] sm:$0xff] %v2835
        %2868 = vst [vmem:[#allocation3 + $0x98] sm:$0xff] %v2836
        %2869 = vst [vmem:[#allocation3 + $0xa0] sm:$0xff] %v2837
        %2870 = vst [vmem:[#allocation3 + $0xa8] sm:$0xff] %v2838
        %2871 = vst [vmem:[#allocation3 + $0xb0] sm:$0xff] %v2839
        %2872 = vst [vmem:[#allocation3 + $0xb8] sm:$0xff] %v2840
        %2873 = vst [vmem:[#allocation3 + $0xc0] sm:$0xff] %v2841
        %2874 = vst [vmem:[#allocation3 + $0xc8] sm:$0xff] %v2842
        %2875 = vst [vmem:[#allocation3 + $0xd0] sm:$0xff] %v2843
        %2876 = vst [vmem:[#allocation3 + $0xd8] sm:$0xff] %v2844
        %2877 = vst [vmem:[#allocation3 + $0xe0] sm:$0xff] %v2845
        %2878 = vst [vmem:[#allocation3 + $0xe8] sm:$0xff] %v2846
        %2879 = vst [vmem:[#allocation3 + $0xf0] sm:$0xff] %v2847
        %2880 = vst [vmem:[#allocation3 + $0xf8] sm:$0xff] %v2848
        %s2881 = scalar_lea.vmem [#allocation2], 96
        %v2882 = vld [vmem:[%s2881] sm:$0xff]
        %v2883 = vld [vmem:[%s2881 + $0x8] sm:$0xff]
        %v2884 = vld [vmem:[%s2881 + $0x10] sm:$0xff]
        %v2885 = vld [vmem:[%s2881 + $0x18] sm:$0xff]
        %v2886 = vld [vmem:[%s2881 + $0x20] sm:$0xff]
        %v2887 = vld [vmem:[%s2881 + $0x28] sm:$0xff]
        %v2888 = vld [vmem:[%s2881 + $0x30] sm:$0xff]
        %v2889 = vld [vmem:[%s2881 + $0x38] sm:$0xff]
        %v2890 = vld [vmem:[%s2881 + $0x40] sm:$0xff]
        %v2891 = vld [vmem:[%s2881 + $0x48] sm:$0xff]
        %v2892 = vld [vmem:[%s2881 + $0x50] sm:$0xff]
        %v2893 = vld [vmem:[%s2881 + $0x58] sm:$0xff]
        %v2894 = vld [vmem:[%s2881 + $0x60] sm:$0xff]
        %v2895 = vld [vmem:[%s2881 + $0x68] sm:$0xff]
        %v2896 = vld [vmem:[%s2881 + $0x70] sm:$0xff]
        %v2897 = vld [vmem:[%s2881 + $0x78] sm:$0xff]
        %v2898 = vld [vmem:[%s2881 + $0x80] sm:$0xff]
        %v2899 = vld [vmem:[%s2881 + $0x88] sm:$0xff]
        %v2900 = vld [vmem:[%s2881 + $0x90] sm:$0xff]
        %v2901 = vld [vmem:[%s2881 + $0x98] sm:$0xff]
        %v2902 = vld [vmem:[%s2881 + $0xa0] sm:$0xff]
        %v2903 = vld [vmem:[%s2881 + $0xa8] sm:$0xff]
        %v2904 = vld [vmem:[%s2881 + $0xb0] sm:$0xff]
        %v2905 = vld [vmem:[%s2881 + $0xb8] sm:$0xff]
        %v2906 = vld [vmem:[%s2881 + $0xc0] sm:$0xff]
        %v2907 = vld [vmem:[%s2881 + $0xc8] sm:$0xff]
        %v2908 = vld [vmem:[%s2881 + $0xd0] sm:$0xff]
        %v2909 = vld [vmem:[%s2881 + $0xd8] sm:$0xff]
        %v2910 = vld [vmem:[%s2881 + $0xe0] sm:$0xff]
        %v2911 = vld [vmem:[%s2881 + $0xe8] sm:$0xff]
        %v2912 = vld [vmem:[%s2881 + $0xf0] sm:$0xff]
        %v2913 = vld [vmem:[%s2881 + $0xf8] sm:$0xff]
        %v2914 = vld [vmem:[%s2881 + $0x100] sm:$0xff]
        %v2915 = vld [vmem:[%s2881 + $0x108] sm:$0xff]
        %v2916 = vld [vmem:[%s2881 + $0x110] sm:$0xff]
        %v2917 = vld [vmem:[%s2881 + $0x118] sm:$0xff]
        %v2918 = vld [vmem:[%s2881 + $0x120] sm:$0xff]
        %v2919 = vld [vmem:[%s2881 + $0x128] sm:$0xff]
        %v2920 = vld [vmem:[%s2881 + $0x130] sm:$0xff]
        %v2921 = vld [vmem:[%s2881 + $0x138] sm:$0xff]
        %v2922 = vld [vmem:[%s2881 + $0x140] sm:$0xff]
        %v2923 = vld [vmem:[%s2881 + $0x148] sm:$0xff]
        %v2924 = vld [vmem:[%s2881 + $0x150] sm:$0xff]
        %v2925 = vld [vmem:[%s2881 + $0x158] sm:$0xff]
        %v2926 = vld [vmem:[%s2881 + $0x160] sm:$0xff]
        %v2927 = vld [vmem:[%s2881 + $0x168] sm:$0xff]
        %v2928 = vld [vmem:[%s2881 + $0x170] sm:$0xff]
        %v2929 = vld [vmem:[%s2881 + $0x178] sm:$0xff]
        %v2930 = vld [vmem:[%s2881 + $0x1e0] sm:$0xff]
        %v2931 = vld [vmem:[%s2881 + $0x1e8] sm:$0xff]
        %v2932 = vld [vmem:[%s2881 + $0x1f0] sm:$0xff]
        %v2933 = vld [vmem:[%s2881 + $0x1f8] sm:$0xff]
        %v2934 = vld [vmem:[%s2881 + $0x200] sm:$0xff]
        %v2935 = vld [vmem:[%s2881 + $0x208] sm:$0xff]
        %v2936 = vld [vmem:[%s2881 + $0x210] sm:$0xff]
        %v2937 = vld [vmem:[%s2881 + $0x218] sm:$0xff]
        %v2938 = vld [vmem:[%s2881 + $0x220] sm:$0xff]
        %v2939 = vld [vmem:[%s2881 + $0x228] sm:$0xff]
        %v2940 = vld [vmem:[%s2881 + $0x230] sm:$0xff]
        %v2941 = vld [vmem:[%s2881 + $0x238] sm:$0xff]
        %v2942 = vld [vmem:[%s2881 + $0x240] sm:$0xff]
        %v2943 = vld [vmem:[%s2881 + $0x248] sm:$0xff]
        %v2944 = vld [vmem:[%s2881 + $0x250] sm:$0xff]
        %v2945 = vld [vmem:[%s2881 + $0x258] sm:$0xff]
        %v2946 = vld [vmem:[%s2881 + $0x260] sm:$0xff]
        %v2947 = vld [vmem:[%s2881 + $0x268] sm:$0xff]
        %v2948 = vld [vmem:[%s2881 + $0x270] sm:$0xff]
        %v2949 = vld [vmem:[%s2881 + $0x278] sm:$0xff]
        %v2950 = vld [vmem:[%s2881 + $0x280] sm:$0xff]
        %v2951 = vld [vmem:[%s2881 + $0x288] sm:$0xff]
        %v2952 = vld [vmem:[%s2881 + $0x290] sm:$0xff]
        %v2953 = vld [vmem:[%s2881 + $0x298] sm:$0xff]
        %v2954 = vld [vmem:[%s2881 + $0x2a0] sm:$0xff]
        %v2955 = vld [vmem:[%s2881 + $0x2a8] sm:$0xff]
        %v2956 = vld [vmem:[%s2881 + $0x2b0] sm:$0xff]
        %v2957 = vld [vmem:[%s2881 + $0x2b8] sm:$0xff]
        %v2958 = vld [vmem:[%s2881 + $0x2c0] sm:$0xff]
        %v2959 = vld [vmem:[%s2881 + $0x2c8] sm:$0xff]
        %v2960 = vld [vmem:[%s2881 + $0x2d0] sm:$0xff]
        %v2961 = vld [vmem:[%s2881 + $0x2d8] sm:$0xff]
        %v2962 = vld [vmem:[%s2881 + $0x2e0] sm:$0xff]
        %v2963 = vld [vmem:[%s2881 + $0x2e8] sm:$0xff]
        %v2964 = vld [vmem:[%s2881 + $0x2f0] sm:$0xff]
        %v2965 = vld [vmem:[%s2881 + $0x2f8] sm:$0xff]
        %v2966 = vld [vmem:[%s2881 + $0x300] sm:$0xff]
        %v2967 = vld [vmem:[%s2881 + $0x308] sm:$0xff]
        %v2968 = vld [vmem:[%s2881 + $0x310] sm:$0xff]
        %v2969 = vld [vmem:[%s2881 + $0x318] sm:$0xff]
        %v2970 = vld [vmem:[%s2881 + $0x320] sm:$0xff]
        %v2971 = vld [vmem:[%s2881 + $0x328] sm:$0xff]
        %v2972 = vld [vmem:[%s2881 + $0x330] sm:$0xff]
        %v2973 = vld [vmem:[%s2881 + $0x338] sm:$0xff]
        %v2974 = vld [vmem:[%s2881 + $0x340] sm:$0xff]
        %v2975 = vld [vmem:[%s2881 + $0x348] sm:$0xff]
        %v2976 = vld [vmem:[%s2881 + $0x350] sm:$0xff]
        %v2977 = vld [vmem:[%s2881 + $0x358] sm:$0xff]
        %v2978 = vpack.c.bf16 %v2888, %v2882
        %v2979 = vpack.c.bf16 %v2889, %v2883
        %v2980 = vpack.c.bf16 %v2890, %v2884
        %v2981 = vpack.c.bf16 %v2891, %v2885
        %v2982 = vpack.c.bf16 %v2892, %v2886
        %v2983 = vpack.c.bf16 %v2893, %v2887
        %v2984 = vpack.c.bf16 %v2900, %v2894
        %v2985 = vpack.c.bf16 %v2901, %v2895
        %v2986 = vpack.c.bf16 %v2902, %v2896
        %v2987 = vpack.c.bf16 %v2903, %v2897
        %v2988 = vpack.c.bf16 %v2904, %v2898
        %v2989 = vpack.c.bf16 %v2905, %v2899
        %v2990 = vpack.c.bf16 %v2912, %v2906
        %v2991 = vpack.c.bf16 %v2913, %v2907
        %v2992 = vpack.c.bf16 %v2914, %v2908
        %v2993 = vpack.c.bf16 %v2915, %v2909
        %v2994 = vpack.c.bf16 %v2916, %v2910
        %v2995 = vpack.c.bf16 %v2917, %v2911
        %v2996 = vpack.c.bf16 %v2924, %v2918
        %v2997 = vpack.c.bf16 %v2925, %v2919
        %v2998 = vpack.c.bf16 %v2926, %v2920
        %v2999 = vpack.c.bf16 %v2927, %v2921
        %v3000 = vpack.c.bf16 %v2928, %v2922
        %v3001 = vpack.c.bf16 %v2929, %v2923
        %v3002 = vpack.c.bf16 %v2936, %v2930
        %v3003 = vpack.c.bf16 %v2937, %v2931
        %v3004 = vpack.c.bf16 %v2938, %v2932
        %v3005 = vpack.c.bf16 %v2939, %v2933
        %v3006 = vpack.c.bf16 %v2940, %v2934
        %v3007 = vpack.c.bf16 %v2941, %v2935
        %v3008 = vpack.c.bf16 %v2948, %v2942
        %v3009 = vpack.c.bf16 %v2949, %v2943
        %v3010 = vpack.c.bf16 %v2950, %v2944
        %v3011 = vpack.c.bf16 %v2951, %v2945
        %v3012 = vpack.c.bf16 %v2952, %v2946
        %v3013 = vpack.c.bf16 %v2953, %v2947
        %v3014 = vpack.c.bf16 %v2960, %v2954
        %v3015 = vpack.c.bf16 %v2961, %v2955
        %v3016 = vpack.c.bf16 %v2962, %v2956
        %v3017 = vpack.c.bf16 %v2963, %v2957
        %v3018 = vpack.c.bf16 %v2964, %v2958
        %v3019 = vpack.c.bf16 %v2965, %v2959
        %v3020 = vpack.c.bf16 %v2972, %v2966
        %v3021 = vpack.c.bf16 %v2973, %v2967
        %v3022 = vpack.c.bf16 %v2974, %v2968
        %v3023 = vpack.c.bf16 %v2975, %v2969
        %v3024 = vpack.c.bf16 %v2976, %v2970
        %v3025 = vpack.c.bf16 %v2977, %v2971
        %s3026 = scalar_lea.vmem [#allocation7], 1536
        %v3027 = vld [vmem:[%s3026] sm:$0xff]
        %v3028 = vld [vmem:[%s3026 + $0x8] sm:$0xff]
        %v3029 = vld [vmem:[%s3026 + $0x10] sm:$0xff]
        %v3030 = vld [vmem:[%s3026 + $0x18] sm:$0xff]
        %v3031 = vld [vmem:[%s3026 + $0x20] sm:$0xff]
        %v3032 = vld [vmem:[%s3026 + $0x28] sm:$0xff]
        %v3033 = vld [vmem:[%s3026 + $0x30] sm:$0xff]
        %v3034 = vld [vmem:[%s3026 + $0x38] sm:$0xff]
        %v3035 = vld [vmem:[%s3026 + $0x40] sm:$0xff]
        %v3036 = vld [vmem:[%s3026 + $0x48] sm:$0xff]
        %v3037 = vld [vmem:[%s3026 + $0x50] sm:$0xff]
        %v3038 = vld [vmem:[%s3026 + $0x58] sm:$0xff]
        %v3039 = vld [vmem:[%s3026 + $0x60] sm:$0xff]
        %v3040 = vld [vmem:[%s3026 + $0x68] sm:$0xff]
        %v3041 = vld [vmem:[%s3026 + $0x70] sm:$0xff]
        %v3042 = vld [vmem:[%s3026 + $0x78] sm:$0xff]
        %v3043 = vld [vmem:[%s3026 + $0x80] sm:$0xff]
        %v3044 = vld [vmem:[%s3026 + $0x88] sm:$0xff]
        %v3045 = vld [vmem:[%s3026 + $0x90] sm:$0xff]
        %v3046 = vld [vmem:[%s3026 + $0x98] sm:$0xff]
        %v3047 = vld [vmem:[%s3026 + $0xa0] sm:$0xff]
        %v3048 = vld [vmem:[%s3026 + $0xa8] sm:$0xff]
        %v3049 = vld [vmem:[%s3026 + $0xb0] sm:$0xff]
        %v3050 = vld [vmem:[%s3026 + $0xb8] sm:$0xff]
        %v3051 = vld [vmem:[%s3026 + $0xc0] sm:$0xff]
        %v3052 = vld [vmem:[%s3026 + $0xc8] sm:$0xff]
        %v3053 = vld [vmem:[%s3026 + $0xd0] sm:$0xff]
        %v3054 = vld [vmem:[%s3026 + $0xd8] sm:$0xff]
        %v3055 = vld [vmem:[%s3026 + $0xe0] sm:$0xff]
        %v3056 = vld [vmem:[%s3026 + $0xe8] sm:$0xff]
        %v3057 = vld [vmem:[%s3026 + $0xf0] sm:$0xff]
        %v3058 = vld [vmem:[%s3026 + $0xf8] sm:$0xff]
        %v3059 = vld [vmem:[%s3026 + $0x100] sm:$0xff]
        %v3060 = vld [vmem:[%s3026 + $0x108] sm:$0xff]
        %v3061 = vld [vmem:[%s3026 + $0x110] sm:$0xff]
        %v3062 = vld [vmem:[%s3026 + $0x118] sm:$0xff]
        %v3063 = vld [vmem:[%s3026 + $0x120] sm:$0xff]
        %v3064 = vld [vmem:[%s3026 + $0x128] sm:$0xff]
        %v3065 = vld [vmem:[%s3026 + $0x130] sm:$0xff]
        %v3066 = vld [vmem:[%s3026 + $0x138] sm:$0xff]
        %v3067 = vld [vmem:[%s3026 + $0x140] sm:$0xff]
        %v3068 = vld [vmem:[%s3026 + $0x148] sm:$0xff]
        %v3069 = vld [vmem:[%s3026 + $0x150] sm:$0xff]
        %v3070 = vld [vmem:[%s3026 + $0x158] sm:$0xff]
        %v3071 = vld [vmem:[%s3026 + $0x160] sm:$0xff]
        %v3072 = vld [vmem:[%s3026 + $0x168] sm:$0xff]
        %v3073 = vld [vmem:[%s3026 + $0x170] sm:$0xff]
        %v3074 = vld [vmem:[%s3026 + $0x178] sm:$0xff]
        %v3075 = vld [vmem:[%s3026 + $0x180] sm:$0xff]
        %v3076 = vld [vmem:[%s3026 + $0x188] sm:$0xff]
        %v3077 = vld [vmem:[%s3026 + $0x190] sm:$0xff]
        %v3078 = vld [vmem:[%s3026 + $0x198] sm:$0xff]
        %v3079 = vld [vmem:[%s3026 + $0x1a0] sm:$0xff]
        %v3080 = vld [vmem:[%s3026 + $0x1a8] sm:$0xff]
        %v3081 = vld [vmem:[%s3026 + $0x1b0] sm:$0xff]
        %v3082 = vld [vmem:[%s3026 + $0x1b8] sm:$0xff]
        %v3083 = vld [vmem:[%s3026 + $0x1c0] sm:$0xff]
        %v3084 = vld [vmem:[%s3026 + $0x1c8] sm:$0xff]
        %v3085 = vld [vmem:[%s3026 + $0x1d0] sm:$0xff]
        %v3086 = vld [vmem:[%s3026 + $0x1d8] sm:$0xff]
        %v3087 = vld [vmem:[%s3026 + $0x1e0] sm:$0xff]
        %v3088 = vld [vmem:[%s3026 + $0x1e8] sm:$0xff]
        %v3089 = vld [vmem:[%s3026 + $0x1f0] sm:$0xff]
        %v3090 = vld [vmem:[%s3026 + $0x1f8] sm:$0xff]
        %v3091 = vld [vmem:[%s3026 + $0x200] sm:$0xff]
        %v3092 = vld [vmem:[%s3026 + $0x208] sm:$0xff]
        %v3093 = vld [vmem:[%s3026 + $0x210] sm:$0xff]
        %v3094 = vld [vmem:[%s3026 + $0x218] sm:$0xff]
        %v3095 = vld [vmem:[%s3026 + $0x220] sm:$0xff]
        %v3096 = vld [vmem:[%s3026 + $0x228] sm:$0xff]
        %v3097 = vld [vmem:[%s3026 + $0x230] sm:$0xff]
        %v3098 = vld [vmem:[%s3026 + $0x238] sm:$0xff]
        %v3099 = vld [vmem:[%s3026 + $0x240] sm:$0xff]
        %v3100 = vld [vmem:[%s3026 + $0x248] sm:$0xff]
        %v3101 = vld [vmem:[%s3026 + $0x250] sm:$0xff]
        %v3102 = vld [vmem:[%s3026 + $0x258] sm:$0xff]
        %v3103 = vld [vmem:[%s3026 + $0x260] sm:$0xff]
        %v3104 = vld [vmem:[%s3026 + $0x268] sm:$0xff]
        %v3105 = vld [vmem:[%s3026 + $0x270] sm:$0xff]
        %v3106 = vld [vmem:[%s3026 + $0x278] sm:$0xff]
        %v3107 = vld [vmem:[%s3026 + $0x280] sm:$0xff]
        %v3108 = vld [vmem:[%s3026 + $0x288] sm:$0xff]
        %v3109 = vld [vmem:[%s3026 + $0x290] sm:$0xff]
        %v3110 = vld [vmem:[%s3026 + $0x298] sm:$0xff]
        %v3111 = vld [vmem:[%s3026 + $0x2a0] sm:$0xff]
        %v3112 = vld [vmem:[%s3026 + $0x2a8] sm:$0xff]
        %v3113 = vld [vmem:[%s3026 + $0x2b0] sm:$0xff]
        %v3114 = vld [vmem:[%s3026 + $0x2b8] sm:$0xff]
        %v3115 = vld [vmem:[%s3026 + $0x2c0] sm:$0xff]
        %v3116 = vld [vmem:[%s3026 + $0x2c8] sm:$0xff]
        %v3117 = vld [vmem:[%s3026 + $0x2d0] sm:$0xff]
        %v3118 = vld [vmem:[%s3026 + $0x2d8] sm:$0xff]
        %v3119 = vld [vmem:[%s3026 + $0x2e0] sm:$0xff]
        %v3120 = vld [vmem:[%s3026 + $0x2e8] sm:$0xff]
        %v3121 = vld [vmem:[%s3026 + $0x2f0] sm:$0xff]
        %v3122 = vld [vmem:[%s3026 + $0x2f8] sm:$0xff]
        %v3219 = vunpack.c.l.b16 %v3027
        %v3220 = vunpack.c.h.b16 %v3027
        %v3221 = vunpack.c.l.b16 %v3028
        %v3222 = vunpack.c.h.b16 %v3028
        %v3223 = vunpack.c.l.b16 %v3029
        %v3224 = vunpack.c.h.b16 %v3029
        %v3225 = vunpack.c.l.b16 %v3030
        %v3226 = vunpack.c.h.b16 %v3030
        %v3227 = vunpack.c.l.b16 %v3031
        %v3228 = vunpack.c.h.b16 %v3031
        %v3229 = vunpack.c.l.b16 %v3032
        %v3230 = vunpack.c.h.b16 %v3032
        %v3231 = vunpack.c.l.b16 %v3033
        %v3232 = vunpack.c.h.b16 %v3033
        %v3233 = vunpack.c.l.b16 %v3034
        %v3234 = vunpack.c.h.b16 %v3034
        %v3235 = vunpack.c.l.b16 %v3035
        %v3236 = vunpack.c.h.b16 %v3035
        %v3237 = vunpack.c.l.b16 %v3036
        %v3238 = vunpack.c.h.b16 %v3036
        %v3239 = vunpack.c.l.b16 %v3037
        %v3240 = vunpack.c.h.b16 %v3037
        %v3241 = vunpack.c.l.b16 %v3038
        %v3242 = vunpack.c.h.b16 %v3038
        %v3243 = vunpack.c.l.b16 %v3039
        %v3244 = vunpack.c.h.b16 %v3039
        %v3245 = vunpack.c.l.b16 %v3040
        %v3246 = vunpack.c.h.b16 %v3040
        %v3247 = vunpack.c.l.b16 %v3041
        %v3248 = vunpack.c.h.b16 %v3041
        %v3249 = vunpack.c.l.b16 %v3042
        %v3250 = vunpack.c.h.b16 %v3042
        %v3251 = vunpack.c.l.b16 %v3043
        %v3252 = vunpack.c.h.b16 %v3043
        %v3253 = vunpack.c.l.b16 %v3044
        %v3254 = vunpack.c.h.b16 %v3044
        %v3255 = vunpack.c.l.b16 %v3045
        %v3256 = vunpack.c.h.b16 %v3045
        %v3257 = vunpack.c.l.b16 %v3046
        %v3258 = vunpack.c.h.b16 %v3046
        %v3259 = vunpack.c.l.b16 %v3047
        %v3260 = vunpack.c.h.b16 %v3047
        %v3261 = vunpack.c.l.b16 %v3048
        %v3262 = vunpack.c.h.b16 %v3048
        %v3263 = vunpack.c.l.b16 %v3049
        %v3264 = vunpack.c.h.b16 %v3049
        %v3265 = vunpack.c.l.b16 %v3050
        %v3266 = vunpack.c.h.b16 %v3050
        %v3267 = vunpack.c.l.b16 %v3051
        %v3268 = vunpack.c.h.b16 %v3051
        %v3269 = vunpack.c.l.b16 %v3052
        %v3270 = vunpack.c.h.b16 %v3052
        %v3271 = vunpack.c.l.b16 %v3053
        %v3272 = vunpack.c.h.b16 %v3053
        %v3273 = vunpack.c.l.b16 %v3054
        %v3274 = vunpack.c.h.b16 %v3054
        %v3275 = vunpack.c.l.b16 %v3055
        %v3276 = vunpack.c.h.b16 %v3055
        %v3277 = vunpack.c.l.b16 %v3056
        %v3278 = vunpack.c.h.b16 %v3056
        %v3279 = vunpack.c.l.b16 %v3057
        %v3280 = vunpack.c.h.b16 %v3057
        %v3281 = vunpack.c.l.b16 %v3058
        %v3282 = vunpack.c.h.b16 %v3058
        %v3283 = vunpack.c.l.b16 %v3059
        %v3284 = vunpack.c.h.b16 %v3059
        %v3285 = vunpack.c.l.b16 %v3060
        %v3286 = vunpack.c.h.b16 %v3060
        %v3287 = vunpack.c.l.b16 %v3061
        %v3288 = vunpack.c.h.b16 %v3061
        %v3289 = vunpack.c.l.b16 %v3062
        %v3290 = vunpack.c.h.b16 %v3062
        %v3291 = vunpack.c.l.b16 %v3063
        %v3292 = vunpack.c.h.b16 %v3063
        %v3293 = vunpack.c.l.b16 %v3064
        %v3294 = vunpack.c.h.b16 %v3064
        %v3295 = vunpack.c.l.b16 %v3065
        %v3296 = vunpack.c.h.b16 %v3065
        %v3297 = vunpack.c.l.b16 %v3066
        %v3298 = vunpack.c.h.b16 %v3066
        %v3299 = vunpack.c.l.b16 %v3067
        %v3300 = vunpack.c.h.b16 %v3067
        %v3301 = vunpack.c.l.b16 %v3068
        %v3302 = vunpack.c.h.b16 %v3068
        %v3303 = vunpack.c.l.b16 %v3069
        %v3304 = vunpack.c.h.b16 %v3069
        %v3305 = vunpack.c.l.b16 %v3070
        %v3306 = vunpack.c.h.b16 %v3070
        %v3307 = vunpack.c.l.b16 %v3071
        %v3308 = vunpack.c.h.b16 %v3071
        %v3309 = vunpack.c.l.b16 %v3072
        %v3310 = vunpack.c.h.b16 %v3072
        %v3311 = vunpack.c.l.b16 %v3073
        %v3312 = vunpack.c.h.b16 %v3073
        %v3313 = vunpack.c.l.b16 %v3074
        %v3314 = vunpack.c.h.b16 %v3074
        %v3315 = vunpack.c.l.b16 %v3075
        %v3316 = vunpack.c.h.b16 %v3075
        %v3317 = vunpack.c.l.b16 %v3076
        %v3318 = vunpack.c.h.b16 %v3076
        %v3319 = vunpack.c.l.b16 %v3077
        %v3320 = vunpack.c.h.b16 %v3077
        %v3321 = vunpack.c.l.b16 %v3078
        %v3322 = vunpack.c.h.b16 %v3078
        %v3323 = vunpack.c.l.b16 %v3079
        %v3324 = vunpack.c.h.b16 %v3079
        %v3325 = vunpack.c.l.b16 %v3080
        %v3326 = vunpack.c.h.b16 %v3080
        %v3327 = vunpack.c.l.b16 %v3081
        %v3328 = vunpack.c.h.b16 %v3081
        %v3329 = vunpack.c.l.b16 %v3082
        %v3330 = vunpack.c.h.b16 %v3082
        %v3331 = vunpack.c.l.b16 %v3083
        %v3332 = vunpack.c.h.b16 %v3083
        %v3333 = vunpack.c.l.b16 %v3084
        %v3334 = vunpack.c.h.b16 %v3084
        %v3335 = vunpack.c.l.b16 %v3085
        %v3336 = vunpack.c.h.b16 %v3085
        %v3337 = vunpack.c.l.b16 %v3086
        %v3338 = vunpack.c.h.b16 %v3086
        %v3339 = vunpack.c.l.b16 %v3087
        %v3340 = vunpack.c.h.b16 %v3087
        %v3341 = vunpack.c.l.b16 %v3088
        %v3342 = vunpack.c.h.b16 %v3088
        %v3343 = vunpack.c.l.b16 %v3089
        %v3344 = vunpack.c.h.b16 %v3089
        %v3345 = vunpack.c.l.b16 %v3090
        %v3346 = vunpack.c.h.b16 %v3090
        %v3347 = vunpack.c.l.b16 %v3091
        %v3348 = vunpack.c.h.b16 %v3091
        %v3349 = vunpack.c.l.b16 %v3092
        %v3350 = vunpack.c.h.b16 %v3092
        %v3351 = vunpack.c.l.b16 %v3093
        %v3352 = vunpack.c.h.b16 %v3093
        %v3353 = vunpack.c.l.b16 %v3094
        %v3354 = vunpack.c.h.b16 %v3094
        %v3355 = vunpack.c.l.b16 %v3095
        %v3356 = vunpack.c.h.b16 %v3095
        %v3357 = vunpack.c.l.b16 %v3096
        %v3358 = vunpack.c.h.b16 %v3096
        %v3359 = vunpack.c.l.b16 %v3097
        %v3360 = vunpack.c.h.b16 %v3097
        %v3361 = vunpack.c.l.b16 %v3098
        %v3362 = vunpack.c.h.b16 %v3098
        %v3363 = vunpack.c.l.b16 %v3099
        %v3364 = vunpack.c.h.b16 %v3099
        %v3365 = vunpack.c.l.b16 %v3100
        %v3366 = vunpack.c.h.b16 %v3100
        %v3367 = vunpack.c.l.b16 %v3101
        %v3368 = vunpack.c.h.b16 %v3101
        %v3369 = vunpack.c.l.b16 %v3102
        %v3370 = vunpack.c.h.b16 %v3102
        %v3371 = vunpack.c.l.b16 %v3103
        %v3372 = vunpack.c.h.b16 %v3103
        %v3373 = vunpack.c.l.b16 %v3104
        %v3374 = vunpack.c.h.b16 %v3104
        %v3375 = vunpack.c.l.b16 %v3105
        %v3376 = vunpack.c.h.b16 %v3105
        %v3377 = vunpack.c.l.b16 %v3106
        %v3378 = vunpack.c.h.b16 %v3106
        %v3379 = vunpack.c.l.b16 %v3107
        %v3380 = vunpack.c.h.b16 %v3107
        %v3381 = vunpack.c.l.b16 %v3108
        %v3382 = vunpack.c.h.b16 %v3108
        %v3383 = vunpack.c.l.b16 %v3109
        %v3384 = vunpack.c.h.b16 %v3109
        %v3385 = vunpack.c.l.b16 %v3110
        %v3386 = vunpack.c.h.b16 %v3110
        %v3387 = vunpack.c.l.b16 %v3111
        %v3388 = vunpack.c.h.b16 %v3111
        %v3389 = vunpack.c.l.b16 %v3112
        %v3390 = vunpack.c.h.b16 %v3112
        %v3391 = vunpack.c.l.b16 %v3113
        %v3392 = vunpack.c.h.b16 %v3113
        %v3393 = vunpack.c.l.b16 %v3114
        %v3394 = vunpack.c.h.b16 %v3114
        %v3395 = vunpack.c.l.b16 %v3115
        %v3396 = vunpack.c.h.b16 %v3115
        %v3397 = vunpack.c.l.b16 %v3116
        %v3398 = vunpack.c.h.b16 %v3116
        %v3399 = vunpack.c.l.b16 %v3117
        %v3400 = vunpack.c.h.b16 %v3117
        %v3401 = vunpack.c.l.b16 %v3118
        %v3402 = vunpack.c.h.b16 %v3118
        %v3403 = vunpack.c.l.b16 %v3119
        %v3404 = vunpack.c.h.b16 %v3119
        %v3405 = vunpack.c.l.b16 %v3120
        %v3406 = vunpack.c.h.b16 %v3120
        %v3407 = vunpack.c.l.b16 %v3121
        %v3408 = vunpack.c.h.b16 %v3121
        %v3409 = vunpack.c.l.b16 %v3122
        %v3410 = vunpack.c.h.b16 %v3122
        %v3411 = vpack.c.b16 %v3221, %v3219
        %v3412 = vpack.c.b16 %v3222, %v3220
        %v3413 = vpack.c.b16 %v3225, %v3223
        %v3414 = vpack.c.b16 %v3226, %v3224
        %v3415 = vpack.c.b16 %v3229, %v3227
        %v3416 = vpack.c.b16 %v3230, %v3228
        %v3417 = vpack.c.b16 %v3233, %v3231
        %v3418 = vpack.c.b16 %v3234, %v3232
        %v3419 = vpack.c.b16 %v3237, %v3235
        %v3420 = vpack.c.b16 %v3238, %v3236
        %v3421 = vpack.c.b16 %v3241, %v3239
        %v3422 = vpack.c.b16 %v3242, %v3240
        %v3423 = vpack.c.b16 %v3245, %v3243
        %v3424 = vpack.c.b16 %v3246, %v3244
        %v3425 = vpack.c.b16 %v3249, %v3247
        %v3426 = vpack.c.b16 %v3250, %v3248
        %v3427 = vpack.c.b16 %v3253, %v3251
        %v3428 = vpack.c.b16 %v3254, %v3252
        %v3429 = vpack.c.b16 %v3257, %v3255
        %v3430 = vpack.c.b16 %v3258, %v3256
        %v3431 = vpack.c.b16 %v3261, %v3259
        %v3432 = vpack.c.b16 %v3262, %v3260
        %v3433 = vpack.c.b16 %v3265, %v3263
        %v3434 = vpack.c.b16 %v3266, %v3264
        %v3435 = vpack.c.b16 %v3269, %v3267
        %v3436 = vpack.c.b16 %v3270, %v3268
        %v3437 = vpack.c.b16 %v3273, %v3271
        %v3438 = vpack.c.b16 %v3274, %v3272
        %v3439 = vpack.c.b16 %v3277, %v3275
        %v3440 = vpack.c.b16 %v3278, %v3276
        %v3441 = vpack.c.b16 %v3281, %v3279
        %v3442 = vpack.c.b16 %v3282, %v3280
        %v3443 = vpack.c.b16 %v3285, %v3283
        %v3444 = vpack.c.b16 %v3286, %v3284
        %v3445 = vpack.c.b16 %v3289, %v3287
        %v3446 = vpack.c.b16 %v3290, %v3288
        %v3447 = vpack.c.b16 %v3293, %v3291
        %v3448 = vpack.c.b16 %v3294, %v3292
        %v3449 = vpack.c.b16 %v3297, %v3295
        %v3450 = vpack.c.b16 %v3298, %v3296
        %v3451 = vpack.c.b16 %v3301, %v3299
        %v3452 = vpack.c.b16 %v3302, %v3300
        %v3453 = vpack.c.b16 %v3305, %v3303
        %v3454 = vpack.c.b16 %v3306, %v3304
        %v3455 = vpack.c.b16 %v3309, %v3307
        %v3456 = vpack.c.b16 %v3310, %v3308
        %v3457 = vpack.c.b16 %v3313, %v3311
        %v3458 = vpack.c.b16 %v3314, %v3312
        %v3459 = vpack.c.b16 %v3317, %v3315
        %v3460 = vpack.c.b16 %v3318, %v3316
        %v3461 = vpack.c.b16 %v3321, %v3319
        %v3462 = vpack.c.b16 %v3322, %v3320
        %v3463 = vpack.c.b16 %v3325, %v3323
        %v3464 = vpack.c.b16 %v3326, %v3324
        %v3465 = vpack.c.b16 %v3329, %v3327
        %v3466 = vpack.c.b16 %v3330, %v3328
        %v3467 = vpack.c.b16 %v3333, %v3331
        %v3468 = vpack.c.b16 %v3334, %v3332
        %v3469 = vpack.c.b16 %v3337, %v3335
        %v3470 = vpack.c.b16 %v3338, %v3336
        %v3471 = vpack.c.b16 %v3341, %v3339
        %v3472 = vpack.c.b16 %v3342, %v3340
        %v3473 = vpack.c.b16 %v3345, %v3343
        %v3474 = vpack.c.b16 %v3346, %v3344
        %v3475 = vpack.c.b16 %v3349, %v3347
        %v3476 = vpack.c.b16 %v3350, %v3348
        %v3477 = vpack.c.b16 %v3353, %v3351
        %v3478 = vpack.c.b16 %v3354, %v3352
        %v3479 = vpack.c.b16 %v3357, %v3355
        %v3480 = vpack.c.b16 %v3358, %v3356
        %v3481 = vpack.c.b16 %v3361, %v3359
        %v3482 = vpack.c.b16 %v3362, %v3360
        %v3483 = vpack.c.b16 %v3365, %v3363
        %v3484 = vpack.c.b16 %v3366, %v3364
        %v3485 = vpack.c.b16 %v3369, %v3367
        %v3486 = vpack.c.b16 %v3370, %v3368
        %v3487 = vpack.c.b16 %v3373, %v3371
        %v3488 = vpack.c.b16 %v3374, %v3372
        %v3489 = vpack.c.b16 %v3377, %v3375
        %v3490 = vpack.c.b16 %v3378, %v3376
        %v3491 = vpack.c.b16 %v3381, %v3379
        %v3492 = vpack.c.b16 %v3382, %v3380
        %v3493 = vpack.c.b16 %v3385, %v3383
        %v3494 = vpack.c.b16 %v3386, %v3384
        %v3495 = vpack.c.b16 %v3389, %v3387
        %v3496 = vpack.c.b16 %v3390, %v3388
        %v3497 = vpack.c.b16 %v3393, %v3391
        %v3498 = vpack.c.b16 %v3394, %v3392
        %v3499 = vpack.c.b16 %v3397, %v3395
        %v3500 = vpack.c.b16 %v3398, %v3396
        %v3501 = vpack.c.b16 %v3401, %v3399
        %v3502 = vpack.c.b16 %v3402, %v3400
        %v3503 = vpack.c.b16 %v3405, %v3403
        %v3504 = vpack.c.b16 %v3406, %v3404
        %v3505 = vpack.c.b16 %v3409, %v3407
        %v3506 = vpack.c.b16 %v3410, %v3408
        %3603 = vmatprep.subr.bf16.mxu0 %v3426
        %3604 = vmatpush1.bf16.msra.mxu0 %v3425
        %3605 = vmatprep.subr.bf16.mxu0 %v3424
        %3606 = vmatpush1.bf16.msra.mxu0 %v3423
        %3607 = vmatprep.subr.bf16.mxu0 %v3422
        %3608 = vmatpush1.bf16.msra.mxu0 %v3421
        %3609 = vmatprep.subr.bf16.mxu0 %v3420
        %3610 = vmatpush1.bf16.msra.mxu0 %v3419
        %3611 = vmatprep.subr.bf16.mxu0 %v3418
        %3612 = vmatpush1.bf16.msra.mxu0 %v3417
        %3613 = vmatprep.subr.bf16.mxu0 %v3416
        %3614 = vmatpush1.bf16.msra.mxu0 %v3415
        %3615 = vmatprep.subr.bf16.mxu0 %v3414
        %3616 = vmatpush1.bf16.msra.mxu0 %v3413
        %3617 = vmatprep.subr.bf16.mxu0 %v3412
        %3618 = vmatpush1.bf16.msra.mxu0 %v3411
        %3619 = vmatprep.subr.bf16.mxu0 %v3442
        %3620 = vmatpush2.bf16.msra.mxu0 %v3441
        %3621 = vmatprep.subr.bf16.mxu0 %v3440
        %3622 = vmatpush2.bf16.msra.mxu0 %v3439
        %3623 = vmatprep.subr.bf16.mxu0 %v3438
        %3624 = vmatpush2.bf16.msra.mxu0 %v3437
        %3625 = vmatprep.subr.bf16.mxu0 %v3436
        %3626 = vmatpush2.bf16.msra.mxu0 %v3435
        %3627 = vmatprep.subr.bf16.mxu0 %v3434
        %3628 = vmatpush2.bf16.msra.mxu0 %v3433
        %3629 = vmatprep.subr.bf16.mxu0 %v3432
        %3630 = vmatpush2.bf16.msra.mxu0 %v3431
        %3631 = vmatprep.subr.bf16.mxu0 %v3430
        %3632 = vmatpush2.bf16.msra.mxu0 %v3429
        %3633 = vmatprep.subr.bf16.mxu0 %v3428
        %3634 = vmatpush2.bf16.msra.mxu0 %v3427
        %3635 = vmatprep.mubr.bf16.mxu0 %v2979
        %3636 = vmatmul.mubr.bf16.gmra.mxu0 %v2978
        %v3637 = vpop.f32.mrf.mxu0
        %v3638 = vadd.f32 0.0, %v3637
        %v3639 = vpop.f32.mrf.mxu0
        %v3640 = vadd.f32 0.0, %v3639
        %v3641 = vpop.f32.mrf.mxu0
        %v3642 = vadd.f32 0.0, %v3641
        %v3643 = vpop.f32.mrf.mxu0
        %v3644 = vadd.f32 0.0, %v3643
        %3645 = vmatprep.mubr.bf16.mxu0 %v2985
        %3646 = vmatmul.mubr.bf16.gmra.mxu0 %v2984
        %v3647 = vpop.f32.mrf.mxu0
        %v3648 = vadd.f32 0.0, %v3647
        %v3649 = vpop.f32.mrf.mxu0
        %v3650 = vadd.f32 0.0, %v3649
        %v3651 = vpop.f32.mrf.mxu0
        %v3652 = vadd.f32 0.0, %v3651
        %v3653 = vpop.f32.mrf.mxu0
        %v3654 = vadd.f32 0.0, %v3653
        %3655 = vmatprep.mubr.bf16.mxu0 %v2991
        %3656 = vmatmul.mubr.bf16.gmra.mxu0 %v2990
        %v3657 = vpop.f32.mrf.mxu0
        %v3658 = vadd.f32 0.0, %v3657
        %v3659 = vpop.f32.mrf.mxu0
        %v3660 = vadd.f32 0.0, %v3659
        %v3661 = vpop.f32.mrf.mxu0
        %v3662 = vadd.f32 0.0, %v3661
        %v3663 = vpop.f32.mrf.mxu0
        %v3664 = vadd.f32 0.0, %v3663
        %3665 = vmatprep.mubr.bf16.mxu0 %v2997
        %3666 = vmatmul.mubr.bf16.gmra.mxu0 %v2996
        %v3667 = vpop.f32.mrf.mxu0
        %v3668 = vadd.f32 0.0, %v3667
        %v3669 = vpop.f32.mrf.mxu0
        %v3670 = vadd.f32 0.0, %v3669
        %v3671 = vpop.f32.mrf.mxu0
        %v3672 = vadd.f32 0.0, %v3671
        %v3673 = vpop.f32.mrf.mxu0
        %v3674 = vadd.f32 0.0, %v3673
        %3675 = vmatprep.mubr.bf16.mxu0 %v3003
        %3676 = vmatmul.mubr.bf16.gmra.mxu0 %v3002
        %v3677 = vpop.f32.mrf.mxu0
        %v3678 = vadd.f32 0.0, %v3677
        %v3679 = vpop.f32.mrf.mxu0
        %v3680 = vadd.f32 0.0, %v3679
        %v3681 = vpop.f32.mrf.mxu0
        %v3682 = vadd.f32 0.0, %v3681
        %v3683 = vpop.f32.mrf.mxu0
        %v3684 = vadd.f32 0.0, %v3683
        %3685 = vmatprep.mubr.bf16.mxu0 %v3009
        %3686 = vmatmul.mubr.bf16.gmra.mxu0 %v3008
        %v3687 = vpop.f32.mrf.mxu0
        %v3688 = vadd.f32 0.0, %v3687
        %v3689 = vpop.f32.mrf.mxu0
        %v3690 = vadd.f32 0.0, %v3689
        %v3691 = vpop.f32.mrf.mxu0
        %v3692 = vadd.f32 0.0, %v3691
        %v3693 = vpop.f32.mrf.mxu0
        %v3694 = vadd.f32 0.0, %v3693
        %3695 = vmatprep.mubr.bf16.mxu0 %v3015
        %3696 = vmatmul.mubr.bf16.gmra.mxu0 %v3014
        %v3697 = vpop.f32.mrf.mxu0
        %v3698 = vadd.f32 0.0, %v3697
        %v3699 = vpop.f32.mrf.mxu0
        %v3700 = vadd.f32 0.0, %v3699
        %v3701 = vpop.f32.mrf.mxu0
        %v3702 = vadd.f32 0.0, %v3701
        %v3703 = vpop.f32.mrf.mxu0
        %v3704 = vadd.f32 0.0, %v3703
        %3705 = vmatprep.mubr.bf16.mxu0 %v3021
        %3706 = vmatmul.mubr.bf16.gmra.mxu0 %v3020
        %v3707 = vpop.f32.mrf.mxu0
        %v3708 = vadd.f32 0.0, %v3707
        %v3709 = vpop.f32.mrf.mxu0
        %v3710 = vadd.f32 0.0, %v3709
        %v3711 = vpop.f32.mrf.mxu0
        %v3712 = vadd.f32 0.0, %v3711
        %v3713 = vpop.f32.mrf.mxu0
        %v3714 = vadd.f32 0.0, %v3713
        %3715 = vdwg.mxu0
        %3716 = vmatprep.subr.bf16.mxu0 %v3458
        %3717 = vmatpush1.bf16.msra.mxu0 %v3457
        %3718 = vmatprep.subr.bf16.mxu0 %v3456
        %3719 = vmatpush1.bf16.msra.mxu0 %v3455
        %3720 = vmatprep.subr.bf16.mxu0 %v3454
        %3721 = vmatpush1.bf16.msra.mxu0 %v3453
        %3722 = vmatprep.subr.bf16.mxu0 %v3452
        %3723 = vmatpush1.bf16.msra.mxu0 %v3451
        %3724 = vmatprep.subr.bf16.mxu0 %v3450
        %3725 = vmatpush1.bf16.msra.mxu0 %v3449
        %3726 = vmatprep.subr.bf16.mxu0 %v3448
        %3727 = vmatpush1.bf16.msra.mxu0 %v3447
        %3728 = vmatprep.subr.bf16.mxu0 %v3446
        %3729 = vmatpush1.bf16.msra.mxu0 %v3445
        %3730 = vmatprep.subr.bf16.mxu0 %v3444
        %3731 = vmatpush1.bf16.msra.mxu0 %v3443
        %3732 = vmatprep.subr.bf16.mxu0 %v3474
        %3733 = vmatpush2.bf16.msra.mxu0 %v3473
        %3734 = vmatprep.subr.bf16.mxu0 %v3472
        %3735 = vmatpush2.bf16.msra.mxu0 %v3471
        %3736 = vmatprep.subr.bf16.mxu0 %v3470
        %3737 = vmatpush2.bf16.msra.mxu0 %v3469
        %3738 = vmatprep.subr.bf16.mxu0 %v3468
        %3739 = vmatpush2.bf16.msra.mxu0 %v3467
        %3740 = vmatprep.subr.bf16.mxu0 %v3466
        %3741 = vmatpush2.bf16.msra.mxu0 %v3465
        %3742 = vmatprep.subr.bf16.mxu0 %v3464
        %3743 = vmatpush2.bf16.msra.mxu0 %v3463
        %3744 = vmatprep.subr.bf16.mxu0 %v3462
        %3745 = vmatpush2.bf16.msra.mxu0 %v3461
        %3746 = vmatprep.subr.bf16.mxu0 %v3460
        %3747 = vmatpush2.bf16.msra.mxu0 %v3459
        %3748 = vmatprep.mubr.bf16.mxu0 %v2981
        %3749 = vmatmul.mubr.bf16.gmra.mxu0 %v2980
        %v3750 = vpop.f32.mrf.mxu0
        %v3751 = vadd.f32 %v3638, %v3750
        %v3752 = vpop.f32.mrf.mxu0
        %v3753 = vadd.f32 %v3640, %v3752
        %v3754 = vpop.f32.mrf.mxu0
        %v3755 = vadd.f32 %v3642, %v3754
        %v3756 = vpop.f32.mrf.mxu0
        %v3757 = vadd.f32 %v3644, %v3756
        %3758 = vmatprep.mubr.bf16.mxu0 %v2987
        %3759 = vmatmul.mubr.bf16.gmra.mxu0 %v2986
        %v3760 = vpop.f32.mrf.mxu0
        %v3761 = vadd.f32 %v3648, %v3760
        %v3762 = vpop.f32.mrf.mxu0
        %v3763 = vadd.f32 %v3650, %v3762
        %v3764 = vpop.f32.mrf.mxu0
        %v3765 = vadd.f32 %v3652, %v3764
        %v3766 = vpop.f32.mrf.mxu0
        %v3767 = vadd.f32 %v3654, %v3766
        %3768 = vmatprep.mubr.bf16.mxu0 %v2993
        %3769 = vmatmul.mubr.bf16.gmra.mxu0 %v2992
        %v3770 = vpop.f32.mrf.mxu0
        %v3771 = vadd.f32 %v3658, %v3770
        %v3772 = vpop.f32.mrf.mxu0
        %v3773 = vadd.f32 %v3660, %v3772
        %v3774 = vpop.f32.mrf.mxu0
        %v3775 = vadd.f32 %v3662, %v3774
        %v3776 = vpop.f32.mrf.mxu0
        %v3777 = vadd.f32 %v3664, %v3776
        %3778 = vmatprep.mubr.bf16.mxu0 %v2999
        %3779 = vmatmul.mubr.bf16.gmra.mxu0 %v2998
        %v3780 = vpop.f32.mrf.mxu0
        %v3781 = vadd.f32 %v3668, %v3780
        %v3782 = vpop.f32.mrf.mxu0
        %v3783 = vadd.f32 %v3670, %v3782
        %v3784 = vpop.f32.mrf.mxu0
        %v3785 = vadd.f32 %v3672, %v3784
        %v3786 = vpop.f32.mrf.mxu0
        %v3787 = vadd.f32 %v3674, %v3786
        %3788 = vmatprep.mubr.bf16.mxu0 %v3005
        %3789 = vmatmul.mubr.bf16.gmra.mxu0 %v3004
        %v3790 = vpop.f32.mrf.mxu0
        %v3791 = vadd.f32 %v3678, %v3790
        %v3792 = vpop.f32.mrf.mxu0
        %v3793 = vadd.f32 %v3680, %v3792
        %v3794 = vpop.f32.mrf.mxu0
        %v3795 = vadd.f32 %v3682, %v3794
        %v3796 = vpop.f32.mrf.mxu0
        %v3797 = vadd.f32 %v3684, %v3796
        %3798 = vmatprep.mubr.bf16.mxu0 %v3011
        %3799 = vmatmul.mubr.bf16.gmra.mxu0 %v3010
        %v3800 = vpop.f32.mrf.mxu0
        %v3801 = vadd.f32 %v3688, %v3800
        %v3802 = vpop.f32.mrf.mxu0
        %v3803 = vadd.f32 %v3690, %v3802
        %v3804 = vpop.f32.mrf.mxu0
        %v3805 = vadd.f32 %v3692, %v3804
        %v3806 = vpop.f32.mrf.mxu0
        %v3807 = vadd.f32 %v3694, %v3806
        %3808 = vmatprep.mubr.bf16.mxu0 %v3017
        %3809 = vmatmul.mubr.bf16.gmra.mxu0 %v3016
        %v3810 = vpop.f32.mrf.mxu0
        %v3811 = vadd.f32 %v3698, %v3810
        %v3812 = vpop.f32.mrf.mxu0
        %v3813 = vadd.f32 %v3700, %v3812
        %v3814 = vpop.f32.mrf.mxu0
        %v3815 = vadd.f32 %v3702, %v3814
        %v3816 = vpop.f32.mrf.mxu0
        %v3817 = vadd.f32 %v3704, %v3816
        %3818 = vmatprep.mubr.bf16.mxu0 %v3023
        %3819 = vmatmul.mubr.bf16.gmra.mxu0 %v3022
        %v3820 = vpop.f32.mrf.mxu0
        %v3821 = vadd.f32 %v3708, %v3820
        %v3822 = vpop.f32.mrf.mxu0
        %v3823 = vadd.f32 %v3710, %v3822
        %v3824 = vpop.f32.mrf.mxu0
        %v3825 = vadd.f32 %v3712, %v3824
        %v3826 = vpop.f32.mrf.mxu0
        %v3827 = vadd.f32 %v3714, %v3826
        %3828 = vdwg.mxu0
        %3829 = vmatprep.subr.bf16.mxu0 %v3490
        %3830 = vmatpush1.bf16.msra.mxu0 %v3489
        %3831 = vmatprep.subr.bf16.mxu0 %v3488
        %3832 = vmatpush1.bf16.msra.mxu0 %v3487
        %3833 = vmatprep.subr.bf16.mxu0 %v3486
        %3834 = vmatpush1.bf16.msra.mxu0 %v3485
        %3835 = vmatprep.subr.bf16.mxu0 %v3484
        %3836 = vmatpush1.bf16.msra.mxu0 %v3483
        %3837 = vmatprep.subr.bf16.mxu0 %v3482
        %3838 = vmatpush1.bf16.msra.mxu0 %v3481
        %3839 = vmatprep.subr.bf16.mxu0 %v3480
        %3840 = vmatpush1.bf16.msra.mxu0 %v3479
        %3841 = vmatprep.subr.bf16.mxu0 %v3478
        %3842 = vmatpush1.bf16.msra.mxu0 %v3477
        %3843 = vmatprep.subr.bf16.mxu0 %v3476
        %3844 = vmatpush1.bf16.msra.mxu0 %v3475
        %3845 = vmatprep.subr.bf16.mxu0 %v3506
        %3846 = vmatpush2.bf16.msra.mxu0 %v3505
        %3847 = vmatprep.subr.bf16.mxu0 %v3504
        %3848 = vmatpush2.bf16.msra.mxu0 %v3503
        %3849 = vmatprep.subr.bf16.mxu0 %v3502
        %3850 = vmatpush2.bf16.msra.mxu0 %v3501
        %3851 = vmatprep.subr.bf16.mxu0 %v3500
        %3852 = vmatpush2.bf16.msra.mxu0 %v3499
        %3853 = vmatprep.subr.bf16.mxu0 %v3498
        %3854 = vmatpush2.bf16.msra.mxu0 %v3497
        %3855 = vmatprep.subr.bf16.mxu0 %v3496
        %3856 = vmatpush2.bf16.msra.mxu0 %v3495
        %3857 = vmatprep.subr.bf16.mxu0 %v3494
        %3858 = vmatpush2.bf16.msra.mxu0 %v3493
        %3859 = vmatprep.subr.bf16.mxu0 %v3492
        %3860 = vmatpush2.bf16.msra.mxu0 %v3491
        %3861 = vmatprep.mubr.bf16.mxu0 %v2983
        %3862 = vmatmul.mubr.bf16.gmra.mxu0 %v2982
        %v3863 = vpop.f32.mrf.mxu0
        %v3864 = vadd.f32 %v3751, %v3863
        %v3865 = vpop.f32.mrf.mxu0
        %v3866 = vadd.f32 %v3753, %v3865
        %v3867 = vpop.f32.mrf.mxu0
        %v3868 = vadd.f32 %v3755, %v3867
        %v3869 = vpop.f32.mrf.mxu0
        %v3870 = vadd.f32 %v3757, %v3869
        %3871 = vmatprep.mubr.bf16.mxu0 %v2989
        %3872 = vmatmul.mubr.bf16.gmra.mxu0 %v2988
        %v3873 = vpop.f32.mrf.mxu0
        %v3874 = vadd.f32 %v3761, %v3873
        %v3875 = vpop.f32.mrf.mxu0
        %v3876 = vadd.f32 %v3763, %v3875
        %v3877 = vpop.f32.mrf.mxu0
        %v3878 = vadd.f32 %v3765, %v3877
        %v3879 = vpop.f32.mrf.mxu0
        %v3880 = vadd.f32 %v3767, %v3879
        %3881 = vmatprep.mubr.bf16.mxu0 %v2995
        %3882 = vmatmul.mubr.bf16.gmra.mxu0 %v2994
        %v3883 = vpop.f32.mrf.mxu0
        %v3884 = vadd.f32 %v3771, %v3883
        %v3885 = vpop.f32.mrf.mxu0
        %v3886 = vadd.f32 %v3773, %v3885
        %v3887 = vpop.f32.mrf.mxu0
        %v3888 = vadd.f32 %v3775, %v3887
        %v3889 = vpop.f32.mrf.mxu0
        %v3890 = vadd.f32 %v3777, %v3889
        %3891 = vmatprep.mubr.bf16.mxu0 %v3001
        %3892 = vmatmul.mubr.bf16.gmra.mxu0 %v3000
        %v3893 = vpop.f32.mrf.mxu0
        %v3894 = vadd.f32 %v3781, %v3893
        %v3895 = vpop.f32.mrf.mxu0
        %v3896 = vadd.f32 %v3783, %v3895
        %v3897 = vpop.f32.mrf.mxu0
        %v3898 = vadd.f32 %v3785, %v3897
        %v3899 = vpop.f32.mrf.mxu0
        %v3900 = vadd.f32 %v3787, %v3899
        %3901 = vmatprep.mubr.bf16.mxu0 %v3007
        %3902 = vmatmul.mubr.bf16.gmra.mxu0 %v3006
        %v3903 = vpop.f32.mrf.mxu0
        %v3904 = vadd.f32 %v3791, %v3903
        %v3905 = vpop.f32.mrf.mxu0
        %v3906 = vadd.f32 %v3793, %v3905
        %v3907 = vpop.f32.mrf.mxu0
        %v3908 = vadd.f32 %v3795, %v3907
        %v3909 = vpop.f32.mrf.mxu0
        %v3910 = vadd.f32 %v3797, %v3909
        %3911 = vmatprep.mubr.bf16.mxu0 %v3013
        %3912 = vmatmul.mubr.bf16.gmra.mxu0 %v3012
        %v3913 = vpop.f32.mrf.mxu0
        %v3914 = vadd.f32 %v3801, %v3913
        %v3915 = vpop.f32.mrf.mxu0
        %v3916 = vadd.f32 %v3803, %v3915
        %v3917 = vpop.f32.mrf.mxu0
        %v3918 = vadd.f32 %v3805, %v3917
        %v3919 = vpop.f32.mrf.mxu0
        %v3920 = vadd.f32 %v3807, %v3919
        %3921 = vmatprep.mubr.bf16.mxu0 %v3019
        %3922 = vmatmul.mubr.bf16.gmra.mxu0 %v3018
        %v3923 = vpop.f32.mrf.mxu0
        %v3924 = vadd.f32 %v3811, %v3923
        %v3925 = vpop.f32.mrf.mxu0
        %v3926 = vadd.f32 %v3813, %v3925
        %v3927 = vpop.f32.mrf.mxu0
        %v3928 = vadd.f32 %v3815, %v3927
        %v3929 = vpop.f32.mrf.mxu0
        %v3930 = vadd.f32 %v3817, %v3929
        %3931 = vmatprep.mubr.bf16.mxu0 %v3025
        %3932 = vmatmul.mubr.bf16.gmra.mxu0 %v3024
        %v3933 = vpop.f32.mrf.mxu0
        %v3934 = vadd.f32 %v3821, %v3933
        %v3935 = vpop.f32.mrf.mxu0
        %v3936 = vadd.f32 %v3823, %v3935
        %v3937 = vpop.f32.mrf.mxu0
        %v3938 = vadd.f32 %v3825, %v3937
        %v3939 = vpop.f32.mrf.mxu0
        %v3940 = vadd.f32 %v3827, %v3939
        %3941 = vdwg.mxu0
        %v3942 = vld [vmem:[#allocation3] sm:$0xff]
        %v3943 = vld [vmem:[#allocation3 + $0x8] sm:$0xff]
        %v3944 = vld [vmem:[#allocation3 + $0x10] sm:$0xff]
        %v3945 = vld [vmem:[#allocation3 + $0x18] sm:$0xff]
        %v3946 = vld [vmem:[#allocation3 + $0x20] sm:$0xff]
        %v3947 = vld [vmem:[#allocation3 + $0x28] sm:$0xff]
        %v3948 = vld [vmem:[#allocation3 + $0x30] sm:$0xff]
        %v3949 = vld [vmem:[#allocation3 + $0x38] sm:$0xff]
        %v3950 = vld [vmem:[#allocation3 + $0x40] sm:$0xff]
        %v3951 = vld [vmem:[#allocation3 + $0x48] sm:$0xff]
        %v3952 = vld [vmem:[#allocation3 + $0x50] sm:$0xff]
        %v3953 = vld [vmem:[#allocation3 + $0x58] sm:$0xff]
        %v3954 = vld [vmem:[#allocation3 + $0x60] sm:$0xff]
        %v3955 = vld [vmem:[#allocation3 + $0x68] sm:$0xff]
        %v3956 = vld [vmem:[#allocation3 + $0x70] sm:$0xff]
        %v3957 = vld [vmem:[#allocation3 + $0x78] sm:$0xff]
        %v3958 = vld [vmem:[#allocation3 + $0x80] sm:$0xff]
        %v3959 = vld [vmem:[#allocation3 + $0x88] sm:$0xff]
        %v3960 = vld [vmem:[#allocation3 + $0x90] sm:$0xff]
        %v3961 = vld [vmem:[#allocation3 + $0x98] sm:$0xff]
        %v3962 = vld [vmem:[#allocation3 + $0xa0] sm:$0xff]
        %v3963 = vld [vmem:[#allocation3 + $0xa8] sm:$0xff]
        %v3964 = vld [vmem:[#allocation3 + $0xb0] sm:$0xff]
        %v3965 = vld [vmem:[#allocation3 + $0xb8] sm:$0xff]
        %v3966 = vld [vmem:[#allocation3 + $0xc0] sm:$0xff]
        %v3967 = vld [vmem:[#allocation3 + $0xc8] sm:$0xff]
        %v3968 = vld [vmem:[#allocation3 + $0xd0] sm:$0xff]
        %v3969 = vld [vmem:[#allocation3 + $0xd8] sm:$0xff]
        %v3970 = vld [vmem:[#allocation3 + $0xe0] sm:$0xff]
        %v3971 = vld [vmem:[#allocation3 + $0xe8] sm:$0xff]
        %v3972 = vld [vmem:[#allocation3 + $0xf0] sm:$0xff]
        %v3973 = vld [vmem:[#allocation3 + $0xf8] sm:$0xff]
        %v3974 = vadd.f32 %v3942, %v3864
        %v3975 = vadd.f32 %v3943, %v3866
        %v3976 = vadd.f32 %v3944, %v3868
        %v3977 = vadd.f32 %v3945, %v3870
        %v3978 = vadd.f32 %v3946, %v3874
        %v3979 = vadd.f32 %v3947, %v3876
        %v3980 = vadd.f32 %v3948, %v3878
        %v3981 = vadd.f32 %v3949, %v3880
        %v3982 = vadd.f32 %v3950, %v3884
        %v3983 = vadd.f32 %v3951, %v3886
        %v3984 = vadd.f32 %v3952, %v3888
        %v3985 = vadd.f32 %v3953, %v3890
        %v3986 = vadd.f32 %v3954, %v3894
        %v3987 = vadd.f32 %v3955, %v3896
        %v3988 = vadd.f32 %v3956, %v3898
        %v3989 = vadd.f32 %v3957, %v3900
        %v3990 = vadd.f32 %v3958, %v3904
        %v3991 = vadd.f32 %v3959, %v3906
        %v3992 = vadd.f32 %v3960, %v3908
        %v3993 = vadd.f32 %v3961, %v3910
        %v3994 = vadd.f32 %v3962, %v3914
        %v3995 = vadd.f32 %v3963, %v3916
        %v3996 = vadd.f32 %v3964, %v3918
        %v3997 = vadd.f32 %v3965, %v3920
        %v3998 = vadd.f32 %v3966, %v3924
        %v3999 = vadd.f32 %v3967, %v3926
        %v4000 = vadd.f32 %v3968, %v3928
        %v4001 = vadd.f32 %v3969, %v3930
        %v4002 = vadd.f32 %v3970, %v3934
        %v4003 = vadd.f32 %v3971, %v3936
        %v4004 = vadd.f32 %v3972, %v3938
        %v4005 = vadd.f32 %v3973, %v3940
        %4006 = vst [vmem:[#allocation3] sm:$0xff] %v3974
        %4007 = vst [vmem:[#allocation3 + $0x8] sm:$0xff] %v3975
        %4008 = vst [vmem:[#allocation3 + $0x10] sm:$0xff] %v3976
        %4009 = vst [vmem:[#allocation3 + $0x18] sm:$0xff] %v3977
        %4010 = vst [vmem:[#allocation3 + $0x20] sm:$0xff] %v3978
        %4011 = vst [vmem:[#allocation3 + $0x28] sm:$0xff] %v3979
        %4012 = vst [vmem:[#allocation3 + $0x30] sm:$0xff] %v3980
        %4013 = vst [vmem:[#allocation3 + $0x38] sm:$0xff] %v3981
        %4014 = vst [vmem:[#allocation3 + $0x40] sm:$0xff] %v3982
        %4015 = vst [vmem:[#allocation3 + $0x48] sm:$0xff] %v3983
        %4016 = vst [vmem:[#allocation3 + $0x50] sm:$0xff] %v3984
        %4017 = vst [vmem:[#allocation3 + $0x58] sm:$0xff] %v3985
        %4018 = vst [vmem:[#allocation3 + $0x60] sm:$0xff] %v3986
        %4019 = vst [vmem:[#allocation3 + $0x68] sm:$0xff] %v3987
        %4020 = vst [vmem:[#allocation3 + $0x70] sm:$0xff] %v3988
        %4021 = vst [vmem:[#allocation3 + $0x78] sm:$0xff] %v3989
        %4022 = vst [vmem:[#allocation3 + $0x80] sm:$0xff] %v3990
        %4023 = vst [vmem:[#allocation3 + $0x88] sm:$0xff] %v3991
        %4024 = vst [vmem:[#allocation3 + $0x90] sm:$0xff] %v3992
        %4025 = vst [vmem:[#allocation3 + $0x98] sm:$0xff] %v3993
        %4026 = vst [vmem:[#allocation3 + $0xa0] sm:$0xff] %v3994
        %4027 = vst [vmem:[#allocation3 + $0xa8] sm:$0xff] %v3995
        %4028 = vst [vmem:[#allocation3 + $0xb0] sm:$0xff] %v3996
        %4029 = vst [vmem:[#allocation3 + $0xb8] sm:$0xff] %v3997
        %4030 = vst [vmem:[#allocation3 + $0xc0] sm:$0xff] %v3998
        %4031 = vst [vmem:[#allocation3 + $0xc8] sm:$0xff] %v3999
        %4032 = vst [vmem:[#allocation3 + $0xd0] sm:$0xff] %v4000
        %4033 = vst [vmem:[#allocation3 + $0xd8] sm:$0xff] %v4001
        %4034 = vst [vmem:[#allocation3 + $0xe0] sm:$0xff] %v4002
        %4035 = vst [vmem:[#allocation3 + $0xe8] sm:$0xff] %v4003
        %4036 = vst [vmem:[#allocation3 + $0xf0] sm:$0xff] %v4004
        %4037 = vst [vmem:[#allocation3 + $0xf8] sm:$0xff] %v4005
        %v4038 = vld [vmem:[#allocation3] sm:$0xff]
        %v4039 = vld [vmem:[#allocation3 + $0x8] sm:$0xff]
        %v4040 = vld [vmem:[#allocation3 + $0x10] sm:$0xff]
        %v4041 = vld [vmem:[#allocation3 + $0x18] sm:$0xff]
        %v4042 = vld [vmem:[#allocation3 + $0x20] sm:$0xff]
        %v4043 = vld [vmem:[#allocation3 + $0x28] sm:$0xff]
        %v4044 = vld [vmem:[#allocation3 + $0x30] sm:$0xff]
        %v4045 = vld [vmem:[#allocation3 + $0x38] sm:$0xff]
        %v4046 = vld [vmem:[#allocation3 + $0x40] sm:$0xff]
        %v4047 = vld [vmem:[#allocation3 + $0x48] sm:$0xff]
        %v4048 = vld [vmem:[#allocation3 + $0x50] sm:$0xff]
        %v4049 = vld [vmem:[#allocation3 + $0x58] sm:$0xff]
        %v4050 = vld [vmem:[#allocation3 + $0x60] sm:$0xff]
        %v4051 = vld [vmem:[#allocation3 + $0x68] sm:$0xff]
        %v4052 = vld [vmem:[#allocation3 + $0x70] sm:$0xff]
        %v4053 = vld [vmem:[#allocation3 + $0x78] sm:$0xff]
        %v4054 = vld [vmem:[#allocation3 + $0x80] sm:$0xff]
        %v4055 = vld [vmem:[#allocation3 + $0x88] sm:$0xff]
        %v4056 = vld [vmem:[#allocation3 + $0x90] sm:$0xff]
        %v4057 = vld [vmem:[#allocation3 + $0x98] sm:$0xff]
        %v4058 = vld [vmem:[#allocation3 + $0xa0] sm:$0xff]
        %v4059 = vld [vmem:[#allocation3 + $0xa8] sm:$0xff]
        %v4060 = vld [vmem:[#allocation3 + $0xb0] sm:$0xff]
        %v4061 = vld [vmem:[#allocation3 + $0xb8] sm:$0xff]
        %v4062 = vld [vmem:[#allocation3 + $0xc0] sm:$0xff]
        %v4063 = vld [vmem:[#allocation3 + $0xc8] sm:$0xff]
        %v4064 = vld [vmem:[#allocation3 + $0xd0] sm:$0xff]
        %v4065 = vld [vmem:[#allocation3 + $0xd8] sm:$0xff]
        %v4066 = vld [vmem:[#allocation3 + $0xe0] sm:$0xff]
        %v4067 = vld [vmem:[#allocation3 + $0xe8] sm:$0xff]
        %v4068 = vld [vmem:[#allocation3 + $0xf0] sm:$0xff]
        %v4069 = vld [vmem:[#allocation3 + $0xf8] sm:$0xff]
        %v4070 = vmax.f32 %v4038, 0.0
        %v4071 = vmax.f32 %v4039, 0.0
        %v4072 = vmax.f32 %v4040, 0.0
        %v4073 = vmax.f32 %v4041, 0.0
        %v4074 = vmax.f32 %v4042, 0.0
        %v4075 = vmax.f32 %v4043, 0.0
        %v4076 = vmax.f32 %v4044, 0.0
        %v4077 = vmax.f32 %v4045, 0.0
        %v4078 = vmax.f32 %v4046, 0.0
        %v4079 = vmax.f32 %v4047, 0.0
        %v4080 = vmax.f32 %v4048, 0.0
        %v4081 = vmax.f32 %v4049, 0.0
        %v4082 = vmax.f32 %v4050, 0.0
        %v4083 = vmax.f32 %v4051, 0.0
        %v4084 = vmax.f32 %v4052, 0.0
        %v4085 = vmax.f32 %v4053, 0.0
        %v4086 = vmax.f32 %v4054, 0.0
        %v4087 = vmax.f32 %v4055, 0.0
        %v4088 = vmax.f32 %v4056, 0.0
        %v4089 = vmax.f32 %v4057, 0.0
        %v4090 = vmax.f32 %v4058, 0.0
        %v4091 = vmax.f32 %v4059, 0.0
        %v4092 = vmax.f32 %v4060, 0.0
        %v4093 = vmax.f32 %v4061, 0.0
        %v4094 = vmax.f32 %v4062, 0.0
        %v4095 = vmax.f32 %v4063, 0.0
        %v4096 = vmax.f32 %v4064, 0.0
        %v4097 = vmax.f32 %v4065, 0.0
        %v4098 = vmax.f32 %v4066, 0.0
        %v4099 = vmax.f32 %v4067, 0.0
        %v4100 = vmax.f32 %v4068, 0.0
        %v4101 = vmax.f32 %v4069, 0.0
        %4102 = vst [vmem:[%s246 + $0x10] sm:$0xff] %v4070
        %4103 = vst [vmem:[%s246 + $0x18] sm:$0xff] %v4071
        %4104 = vst [vmem:[%s246 + $0x40] sm:$0xff] %v4072
        %4105 = vst [vmem:[%s246 + $0x48] sm:$0xff] %v4073
        %4106 = vst [vmem:[%s246 + $0x70] sm:$0xff] %v4074
        %4107 = vst [vmem:[%s246 + $0x78] sm:$0xff] %v4075
        %4108 = vst [vmem:[%s246 + $0xa0] sm:$0xff] %v4076
        %4109 = vst [vmem:[%s246 + $0xa8] sm:$0xff] %v4077
        %4110 = vst [vmem:[%s246 + $0xd0] sm:$0xff] %v4078
        %4111 = vst [vmem:[%s246 + $0xd8] sm:$0xff] %v4079
        %4112 = vst [vmem:[%s246 + $0x100] sm:$0xff] %v4080
        %4113 = vst [vmem:[%s246 + $0x108] sm:$0xff] %v4081
        %4114 = vst [vmem:[%s246 + $0x130] sm:$0xff] %v4082
        %4115 = vst [vmem:[%s246 + $0x138] sm:$0xff] %v4083
        %4116 = vst [vmem:[%s246 + $0x160] sm:$0xff] %v4084
        %4117 = vst [vmem:[%s246 + $0x168] sm:$0xff] %v4085
        %4118 = vst [vmem:[%s246 + $0x1f0] sm:$0xff] %v4086
        %4119 = vst [vmem:[%s246 + $0x1f8] sm:$0xff] %v4087
        %4120 = vst [vmem:[%s246 + $0x220] sm:$0xff] %v4088
        %4121 = vst [vmem:[%s246 + $0x228] sm:$0xff] %v4089
        %4122 = vst [vmem:[%s246 + $0x250] sm:$0xff] %v4090
        %4123 = vst [vmem:[%s246 + $0x258] sm:$0xff] %v4091
        %4124 = vst [vmem:[%s246 + $0x280] sm:$0xff] %v4092
        %4125 = vst [vmem:[%s246 + $0x288] sm:$0xff] %v4093
        %4126 = vst [vmem:[%s246 + $0x2b0] sm:$0xff] %v4094
        %4127 = vst [vmem:[%s246 + $0x2b8] sm:$0xff] %v4095
        %4128 = vst [vmem:[%s246 + $0x2e0] sm:$0xff] %v4096
        %4129 = vst [vmem:[%s246 + $0x2e8] sm:$0xff] %v4097
        %4130 = vst [vmem:[%s246 + $0x310] sm:$0xff] %v4098
        %4131 = vst [vmem:[%s246 + $0x318] sm:$0xff] %v4099
        %4132 = vst [vmem:[%s246 + $0x340] sm:$0xff] %v4100
        %4133 = vst [vmem:[%s246 + $0x348] sm:$0xff] %v4101
        %v4166 = vrot.slane %v4070, 7
        %v4167 = vrot.slane %v4071, 7
        %v4168 = vrot.slane %v4072, 7
        %v4169 = vrot.slane %v4073, 7
        %v4170 = vrot.slane %v4074, 7
        %v4171 = vrot.slane %v4075, 7
        %v4172 = vrot.slane %v4076, 7
        %v4173 = vrot.slane %v4077, 7
        %v4174 = vrot.slane %v4078, 7
        %v4175 = vrot.slane %v4079, 7
        %v4176 = vrot.slane %v4080, 7
        %v4177 = vrot.slane %v4081, 7
        %v4178 = vrot.slane %v4082, 7
        %v4179 = vrot.slane %v4083, 7
        %v4180 = vrot.slane %v4084, 7
        %v4181 = vrot.slane %v4085, 7
        %v4182 = vrot.slane %v4086, 7
        %v4183 = vrot.slane %v4087, 7
        %v4184 = vrot.slane %v4088, 7
        %v4185 = vrot.slane %v4089, 7
        %v4186 = vrot.slane %v4090, 7
        %v4187 = vrot.slane %v4091, 7
        %v4188 = vrot.slane %v4092, 7
        %v4189 = vrot.slane %v4093, 7
        %v4190 = vrot.slane %v4094, 7
        %v4191 = vrot.slane %v4095, 7
        %v4192 = vrot.slane %v4096, 7
        %v4193 = vrot.slane %v4097, 7
        %v4194 = vrot.slane %v4098, 7
        %v4195 = vrot.slane %v4099, 7
        %v4196 = vrot.slane %v4100, 7
        %v4197 = vrot.slane %v4101, 7
        %4230 = vst [vmem:[%s246] sm:$0xfe] %v4166
        %4231 = vst [vmem:[%s246 + $0x8] sm:$0xfe] %v4167
        %4232 = vst [vmem:[%s246 + $0x30] sm:$0xfe] %v4168
        %4233 = vst [vmem:[%s246 + $0x38] sm:$0xfe] %v4169
        %4234 = vst [vmem:[%s246 + $0x60] sm:$0xfe] %v4170
        %4235 = vst [vmem:[%s246 + $0x68] sm:$0xfe] %v4171
        %4236 = vst [vmem:[%s246 + $0x90] sm:$0xfe] %v4172
        %4237 = vst [vmem:[%s246 + $0x98] sm:$0xfe] %v4173
        %4238 = vst [vmem:[%s246 + $0xc0] sm:$0xfe] %v4174
        %4239 = vst [vmem:[%s246 + $0xc8] sm:$0xfe] %v4175
        %4240 = vst [vmem:[%s246 + $0xf0] sm:$0xfe] %v4176
        %4241 = vst [vmem:[%s246 + $0xf8] sm:$0xfe] %v4177
        %4242 = vst [vmem:[%s246 + $0x120] sm:$0xfe] %v4178
        %4243 = vst [vmem:[%s246 + $0x128] sm:$0xfe] %v4179
        %4244 = vst [vmem:[%s246 + $0x150] sm:$0xfe] %v4180
        %4245 = vst [vmem:[%s246 + $0x158] sm:$0xfe] %v4181
        %4246 = vst [vmem:[%s246 + $0x1e0] sm:$0xfe] %v4182
        %4247 = vst [vmem:[%s246 + $0x1e8] sm:$0xfe] %v4183
        %4248 = vst [vmem:[%s246 + $0x210] sm:$0xfe] %v4184
        %4249 = vst [vmem:[%s246 + $0x218] sm:$0xfe] %v4185
        %4250 = vst [vmem:[%s246 + $0x240] sm:$0xfe] %v4186
        %4251 = vst [vmem:[%s246 + $0x248] sm:$0xfe] %v4187
        %4252 = vst [vmem:[%s246 + $0x270] sm:$0xfe] %v4188
        %4253 = vst [vmem:[%s246 + $0x278] sm:$0xfe] %v4189
        %4254 = vst [vmem:[%s246 + $0x2a0] sm:$0xfe] %v4190
        %4255 = vst [vmem:[%s246 + $0x2a8] sm:$0xfe] %v4191
        %4256 = vst [vmem:[%s246 + $0x2d0] sm:$0xfe] %v4192
        %4257 = vst [vmem:[%s246 + $0x2d8] sm:$0xfe] %v4193
        %4258 = vst [vmem:[%s246 + $0x300] sm:$0xfe] %v4194
        %4259 = vst [vmem:[%s246 + $0x308] sm:$0xfe] %v4195
        %4260 = vst [vmem:[%s246 + $0x330] sm:$0xfe] %v4196
        %4261 = vst [vmem:[%s246 + $0x338] sm:$0xfe] %v4197
        %v4262 = vrot.slane %v4070, 1
        %v4263 = vrot.slane %v4071, 1
        %v4264 = vrot.slane %v4072, 1
        %v4265 = vrot.slane %v4073, 1
        %v4266 = vrot.slane %v4074, 1
        %v4267 = vrot.slane %v4075, 1
        %v4268 = vrot.slane %v4076, 1
        %v4269 = vrot.slane %v4077, 1
        %v4270 = vrot.slane %v4078, 1
        %v4271 = vrot.slane %v4079, 1
        %v4272 = vrot.slane %v4080, 1
        %v4273 = vrot.slane %v4081, 1
        %v4274 = vrot.slane %v4082, 1
        %v4275 = vrot.slane %v4083, 1
        %v4276 = vrot.slane %v4084, 1
        %v4277 = vrot.slane %v4085, 1
        %v4278 = vrot.slane %v4086, 1
        %v4279 = vrot.slane %v4087, 1
        %v4280 = vrot.slane %v4088, 1
        %v4281 = vrot.slane %v4089, 1
        %v4282 = vrot.slane %v4090, 1
        %v4283 = vrot.slane %v4091, 1
        %v4284 = vrot.slane %v4092, 1
        %v4285 = vrot.slane %v4093, 1
        %v4286 = vrot.slane %v4094, 1
        %v4287 = vrot.slane %v4095, 1
        %v4288 = vrot.slane %v4096, 1
        %v4289 = vrot.slane %v4097, 1
        %v4290 = vrot.slane %v4098, 1
        %v4291 = vrot.slane %v4099, 1
        %v4292 = vrot.slane %v4100, 1
        %v4293 = vrot.slane %v4101, 1
        %4326 = vst [vmem:[%s246 + $0x20] sm:$0x7f] %v4262
        %4327 = vst [vmem:[%s246 + $0x28] sm:$0x7f] %v4263
        %4328 = vst [vmem:[%s246 + $0x50] sm:$0x7f] %v4264
        %4329 = vst [vmem:[%s246 + $0x58] sm:$0x7f] %v4265
        %4330 = vst [vmem:[%s246 + $0x80] sm:$0x7f] %v4266
        %4331 = vst [vmem:[%s246 + $0x88] sm:$0x7f] %v4267
        %4332 = vst [vmem:[%s246 + $0xb0] sm:$0x7f] %v4268
        %4333 = vst [vmem:[%s246 + $0xb8] sm:$0x7f] %v4269
        %4334 = vst [vmem:[%s246 + $0xe0] sm:$0x7f] %v4270
        %4335 = vst [vmem:[%s246 + $0xe8] sm:$0x7f] %v4271
        %4336 = vst [vmem:[%s246 + $0x110] sm:$0x7f] %v4272
        %4337 = vst [vmem:[%s246 + $0x118] sm:$0x7f] %v4273
        %4338 = vst [vmem:[%s246 + $0x140] sm:$0x7f] %v4274
        %4339 = vst [vmem:[%s246 + $0x148] sm:$0x7f] %v4275
        %4340 = vst [vmem:[%s246 + $0x170] sm:$0x7f] %v4276
        %4341 = vst [vmem:[%s246 + $0x178] sm:$0x7f] %v4277
        %4342 = vst [vmem:[%s246 + $0x200] sm:$0x7f] %v4278
        %4343 = vst [vmem:[%s246 + $0x208] sm:$0x7f] %v4279
        %4344 = vst [vmem:[%s246 + $0x230] sm:$0x7f] %v4280
        %4345 = vst [vmem:[%s246 + $0x238] sm:$0x7f] %v4281
        %4346 = vst [vmem:[%s246 + $0x260] sm:$0x7f] %v4282
        %4347 = vst [vmem:[%s246 + $0x268] sm:$0x7f] %v4283
        %4348 = vst [vmem:[%s246 + $0x290] sm:$0x7f] %v4284
        %4349 = vst [vmem:[%s246 + $0x298] sm:$0x7f] %v4285
        %4350 = vst [vmem:[%s246 + $0x2c0] sm:$0x7f] %v4286
        %4351 = vst [vmem:[%s246 + $0x2c8] sm:$0x7f] %v4287
        %4352 = vst [vmem:[%s246 + $0x2f0] sm:$0x7f] %v4288
        %4353 = vst [vmem:[%s246 + $0x2f8] sm:$0x7f] %v4289
        %4354 = vst [vmem:[%s246 + $0x320] sm:$0x7f] %v4290
        %4355 = vst [vmem:[%s246 + $0x328] sm:$0x7f] %v4291
        %4356 = vst [vmem:[%s246 + $0x350] sm:$0x7f] %v4292
        %4357 = vst [vmem:[%s246 + $0x358] sm:$0x7f] %v4293
        %v4358 = vld [vmem:[#allocation2] sm:$0xff]
        %v4359 = vld [vmem:[#allocation2 + $0x8] sm:$0xff]
        %v4360 = vld [vmem:[#allocation2 + $0x10] sm:$0xff]
        %v4361 = vld [vmem:[#allocation2 + $0x18] sm:$0xff]
        %v4362 = vld [vmem:[#allocation2 + $0x20] sm:$0xff]
        %v4363 = vld [vmem:[#allocation2 + $0x28] sm:$0xff]
        %v4364 = vld [vmem:[#allocation2 + $0x30] sm:$0xff]
        %v4365 = vld [vmem:[#allocation2 + $0x38] sm:$0xff]
        %v4366 = vld [vmem:[#allocation2 + $0x40] sm:$0xff]
        %v4367 = vld [vmem:[#allocation2 + $0x48] sm:$0xff]
        %v4368 = vld [vmem:[#allocation2 + $0x50] sm:$0xff]
        %v4369 = vld [vmem:[#allocation2 + $0x58] sm:$0xff]
        %v4370 = vld [vmem:[#allocation2 + $0x60] sm:$0xff]
        %v4371 = vld [vmem:[#allocation2 + $0x68] sm:$0xff]
        %v4372 = vld [vmem:[#allocation2 + $0x70] sm:$0xff]
        %v4373 = vld [vmem:[#allocation2 + $0x78] sm:$0xff]
        %v4374 = vld [vmem:[#allocation2 + $0x80] sm:$0xff]
        %v4375 = vld [vmem:[#allocation2 + $0x88] sm:$0xff]
        %v4376 = vld [vmem:[#allocation2 + $0x90] sm:$0xff]
        %v4377 = vld [vmem:[#allocation2 + $0x98] sm:$0xff]
        %v4378 = vld [vmem:[#allocation2 + $0xa0] sm:$0xff]
        %v4379 = vld [vmem:[#allocation2 + $0xa8] sm:$0xff]
        %v4380 = vld [vmem:[#allocation2 + $0xb0] sm:$0xff]
        %v4381 = vld [vmem:[#allocation2 + $0xb8] sm:$0xff]
        %v4382 = vld [vmem:[#allocation2 + $0xc0] sm:$0xff]
        %v4383 = vld [vmem:[#allocation2 + $0xc8] sm:$0xff]
        %v4384 = vld [vmem:[#allocation2 + $0xd0] sm:$0xff]
        %v4385 = vld [vmem:[#allocation2 + $0xd8] sm:$0xff]
        %v4386 = vld [vmem:[#allocation2 + $0xe0] sm:$0xff]
        %v4387 = vld [vmem:[#allocation2 + $0xe8] sm:$0xff]
        %v4388 = vld [vmem:[#allocation2 + $0xf0] sm:$0xff]
        %v4389 = vld [vmem:[#allocation2 + $0xf8] sm:$0xff]
        %v4390 = vld [vmem:[#allocation2 + $0x100] sm:$0xff]
        %v4391 = vld [vmem:[#allocation2 + $0x108] sm:$0xff]
        %v4392 = vld [vmem:[#allocation2 + $0x110] sm:$0xff]
        %v4393 = vld [vmem:[#allocation2 + $0x118] sm:$0xff]
        %v4394 = vld [vmem:[#allocation2 + $0x120] sm:$0xff]
        %v4395 = vld [vmem:[#allocation2 + $0x128] sm:$0xff]
        %v4396 = vld [vmem:[#allocation2 + $0x130] sm:$0xff]
        %v4397 = vld [vmem:[#allocation2 + $0x138] sm:$0xff]
        %v4398 = vld [vmem:[#allocation2 + $0x140] sm:$0xff]
        %v4399 = vld [vmem:[#allocation2 + $0x148] sm:$0xff]
        %v4400 = vld [vmem:[#allocation2 + $0x150] sm:$0xff]
        %v4401 = vld [vmem:[#allocation2 + $0x158] sm:$0xff]
        %v4402 = vld [vmem:[#allocation2 + $0x160] sm:$0xff]
        %v4403 = vld [vmem:[#allocation2 + $0x168] sm:$0xff]
        %v4404 = vld [vmem:[#allocation2 + $0x170] sm:$0xff]
        %v4405 = vld [vmem:[#allocation2 + $0x178] sm:$0xff]
        %v4406 = vld [vmem:[#allocation2 + $0x1e0] sm:$0xff]
        %v4407 = vld [vmem:[#allocation2 + $0x1e8] sm:$0xff]
        %v4408 = vld [vmem:[#allocation2 + $0x1f0] sm:$0xff]
        %v4409 = vld [vmem:[#allocation2 + $0x1f8] sm:$0xff]
        %v4410 = vld [vmem:[#allocation2 + $0x200] sm:$0xff]
        %v4411 = vld [vmem:[#allocation2 + $0x208] sm:$0xff]
        %v4412 = vld [vmem:[#allocation2 + $0x210] sm:$0xff]
        %v4413 = vld [vmem:[#allocation2 + $0x218] sm:$0xff]
        %v4414 = vld [vmem:[#allocation2 + $0x220] sm:$0xff]
        %v4415 = vld [vmem:[#allocation2 + $0x228] sm:$0xff]
        %v4416 = vld [vmem:[#allocation2 + $0x230] sm:$0xff]
        %v4417 = vld [vmem:[#allocation2 + $0x238] sm:$0xff]
        %v4418 = vld [vmem:[#allocation2 + $0x240] sm:$0xff]
        %v4419 = vld [vmem:[#allocation2 + $0x248] sm:$0xff]
        %v4420 = vld [vmem:[#allocation2 + $0x250] sm:$0xff]
        %v4421 = vld [vmem:[#allocation2 + $0x258] sm:$0xff]
        %v4422 = vld [vmem:[#allocation2 + $0x260] sm:$0xff]
        %v4423 = vld [vmem:[#allocation2 + $0x268] sm:$0xff]
        %v4424 = vld [vmem:[#allocation2 + $0x270] sm:$0xff]
        %v4425 = vld [vmem:[#allocation2 + $0x278] sm:$0xff]
        %v4426 = vld [vmem:[#allocation2 + $0x280] sm:$0xff]
        %v4427 = vld [vmem:[#allocation2 + $0x288] sm:$0xff]
        %v4428 = vld [vmem:[#allocation2 + $0x290] sm:$0xff]
        %v4429 = vld [vmem:[#allocation2 + $0x298] sm:$0xff]
        %v4430 = vld [vmem:[#allocation2 + $0x2a0] sm:$0xff]
        %v4431 = vld [vmem:[#allocation2 + $0x2a8] sm:$0xff]
        %v4432 = vld [vmem:[#allocation2 + $0x2b0] sm:$0xff]
        %v4433 = vld [vmem:[#allocation2 + $0x2b8] sm:$0xff]
        %v4434 = vld [vmem:[#allocation2 + $0x2c0] sm:$0xff]
        %v4435 = vld [vmem:[#allocation2 + $0x2c8] sm:$0xff]
        %v4436 = vld [vmem:[#allocation2 + $0x2d0] sm:$0xff]
        %v4437 = vld [vmem:[#allocation2 + $0x2d8] sm:$0xff]
        %v4438 = vld [vmem:[#allocation2 + $0x2e0] sm:$0xff]
        %v4439 = vld [vmem:[#allocation2 + $0x2e8] sm:$0xff]
        %v4440 = vld [vmem:[#allocation2 + $0x2f0] sm:$0xff]
        %v4441 = vld [vmem:[#allocation2 + $0x2f8] sm:$0xff]
        %v4442 = vld [vmem:[#allocation2 + $0x300] sm:$0xff]
        %v4443 = vld [vmem:[#allocation2 + $0x308] sm:$0xff]
        %v4444 = vld [vmem:[#allocation2 + $0x310] sm:$0xff]
        %v4445 = vld [vmem:[#allocation2 + $0x318] sm:$0xff]
        %v4446 = vld [vmem:[#allocation2 + $0x320] sm:$0xff]
        %v4447 = vld [vmem:[#allocation2 + $0x328] sm:$0xff]
        %v4448 = vld [vmem:[#allocation2 + $0x330] sm:$0xff]
        %v4449 = vld [vmem:[#allocation2 + $0x338] sm:$0xff]
        %v4450 = vld [vmem:[#allocation2 + $0x340] sm:$0xff]
        %v4451 = vld [vmem:[#allocation2 + $0x348] sm:$0xff]
        %v4452 = vld [vmem:[#allocation2 + $0x350] sm:$0xff]
        %v4453 = vld [vmem:[#allocation2 + $0x358] sm:$0xff]
        %v4454 = vpack.c.bf16 %v4364, %v4358
        %v4455 = vpack.c.bf16 %v4365, %v4359
        %v4456 = vpack.c.bf16 %v4366, %v4360
        %v4457 = vpack.c.bf16 %v4367, %v4361
        %v4458 = vpack.c.bf16 %v4368, %v4362
        %v4459 = vpack.c.bf16 %v4369, %v4363
        %v4460 = vpack.c.bf16 %v4376, %v4370
        %v4461 = vpack.c.bf16 %v4377, %v4371
        %v4462 = vpack.c.bf16 %v4378, %v4372
        %v4463 = vpack.c.bf16 %v4379, %v4373
        %v4464 = vpack.c.bf16 %v4380, %v4374
        %v4465 = vpack.c.bf16 %v4381, %v4375
        %v4466 = vpack.c.bf16 %v4388, %v4382
        %v4467 = vpack.c.bf16 %v4389, %v4383
        %v4468 = vpack.c.bf16 %v4390, %v4384
        %v4469 = vpack.c.bf16 %v4391, %v4385
        %v4470 = vpack.c.bf16 %v4392, %v4386
        %v4471 = vpack.c.bf16 %v4393, %v4387
        %v4472 = vpack.c.bf16 %v4400, %v4394
        %v4473 = vpack.c.bf16 %v4401, %v4395
        %v4474 = vpack.c.bf16 %v4402, %v4396
        %v4475 = vpack.c.bf16 %v4403, %v4397
        %v4476 = vpack.c.bf16 %v4404, %v4398
        %v4477 = vpack.c.bf16 %v4405, %v4399
        %v4478 = vpack.c.bf16 %v4412, %v4406
        %v4479 = vpack.c.bf16 %v4413, %v4407
        %v4480 = vpack.c.bf16 %v4414, %v4408
        %v4481 = vpack.c.bf16 %v4415, %v4409
        %v4482 = vpack.c.bf16 %v4416, %v4410
        %v4483 = vpack.c.bf16 %v4417, %v4411
        %v4484 = vpack.c.bf16 %v4424, %v4418
        %v4485 = vpack.c.bf16 %v4425, %v4419
        %v4486 = vpack.c.bf16 %v4426, %v4420
        %v4487 = vpack.c.bf16 %v4427, %v4421
        %v4488 = vpack.c.bf16 %v4428, %v4422
        %v4489 = vpack.c.bf16 %v4429, %v4423
        %v4490 = vpack.c.bf16 %v4436, %v4430
        %v4491 = vpack.c.bf16 %v4437, %v4431
        %v4492 = vpack.c.bf16 %v4438, %v4432
        %v4493 = vpack.c.bf16 %v4439, %v4433
        %v4494 = vpack.c.bf16 %v4440, %v4434
        %v4495 = vpack.c.bf16 %v4441, %v4435
        %v4496 = vpack.c.bf16 %v4448, %v4442
        %v4497 = vpack.c.bf16 %v4449, %v4443
        %v4498 = vpack.c.bf16 %v4450, %v4444
        %v4499 = vpack.c.bf16 %v4451, %v4445
        %v4500 = vpack.c.bf16 %v4452, %v4446
        %v4501 = vpack.c.bf16 %v4453, %v4447
        %v4502 = vld [vmem:[#allocation9] sm:$0xff]
        %v4503 = vld [vmem:[#allocation9 + $0x8] sm:$0xff]
        %v4504 = vld [vmem:[#allocation9 + $0x10] sm:$0xff]
        %v4505 = vld [vmem:[#allocation9 + $0x18] sm:$0xff]
        %v4506 = vld [vmem:[#allocation9 + $0x20] sm:$0xff]
        %v4507 = vld [vmem:[#allocation9 + $0x28] sm:$0xff]
        %v4508 = vld [vmem:[#allocation9 + $0x30] sm:$0xff]
        %v4509 = vld [vmem:[#allocation9 + $0x38] sm:$0xff]
        %v4510 = vld [vmem:[#allocation9 + $0x40] sm:$0xff]
        %v4511 = vld [vmem:[#allocation9 + $0x48] sm:$0xff]
        %v4512 = vld [vmem:[#allocation9 + $0x50] sm:$0xff]
        %v4513 = vld [vmem:[#allocation9 + $0x58] sm:$0xff]
        %v4514 = vld [vmem:[#allocation9 + $0x60] sm:$0xff]
        %v4515 = vld [vmem:[#allocation9 + $0x68] sm:$0xff]
        %v4516 = vld [vmem:[#allocation9 + $0x70] sm:$0xff]
        %v4517 = vld [vmem:[#allocation9 + $0x78] sm:$0xff]
        %v4518 = vld [vmem:[#allocation9 + $0x80] sm:$0xff]
        %v4519 = vld [vmem:[#allocation9 + $0x88] sm:$0xff]
        %v4520 = vld [vmem:[#allocation9 + $0x90] sm:$0xff]
        %v4521 = vld [vmem:[#allocation9 + $0x98] sm:$0xff]
        %v4522 = vld [vmem:[#allocation9 + $0xa0] sm:$0xff]
        %v4523 = vld [vmem:[#allocation9 + $0xa8] sm:$0xff]
        %v4524 = vld [vmem:[#allocation9 + $0xb0] sm:$0xff]
        %v4525 = vld [vmem:[#allocation9 + $0xb8] sm:$0xff]
        %v4526 = vld [vmem:[#allocation9 + $0xc0] sm:$0xff]
        %v4527 = vld [vmem:[#allocation9 + $0xc8] sm:$0xff]
        %v4528 = vld [vmem:[#allocation9 + $0xd0] sm:$0xff]
        %v4529 = vld [vmem:[#allocation9 + $0xd8] sm:$0xff]
        %v4530 = vld [vmem:[#allocation9 + $0xe0] sm:$0xff]
        %v4531 = vld [vmem:[#allocation9 + $0xe8] sm:$0xff]
        %v4532 = vld [vmem:[#allocation9 + $0xf0] sm:$0xff]
        %v4533 = vld [vmem:[#allocation9 + $0xf8] sm:$0xff]
        %v4534 = vld [vmem:[#allocation9 + $0x100] sm:$0xff]
        %v4535 = vld [vmem:[#allocation9 + $0x108] sm:$0xff]
        %v4536 = vld [vmem:[#allocation9 + $0x110] sm:$0xff]
        %v4537 = vld [vmem:[#allocation9 + $0x118] sm:$0xff]
        %v4538 = vld [vmem:[#allocation9 + $0x120] sm:$0xff]
        %v4539 = vld [vmem:[#allocation9 + $0x128] sm:$0xff]
        %v4540 = vld [vmem:[#allocation9 + $0x130] sm:$0xff]
        %v4541 = vld [vmem:[#allocation9 + $0x138] sm:$0xff]
        %v4542 = vld [vmem:[#allocation9 + $0x140] sm:$0xff]
        %v4543 = vld [vmem:[#allocation9 + $0x148] sm:$0xff]
        %v4544 = vld [vmem:[#allocation9 + $0x150] sm:$0xff]
        %v4545 = vld [vmem:[#allocation9 + $0x158] sm:$0xff]
        %v4546 = vld [vmem:[#allocation9 + $0x160] sm:$0xff]
        %v4547 = vld [vmem:[#allocation9 + $0x168] sm:$0xff]
        %v4548 = vld [vmem:[#allocation9 + $0x170] sm:$0xff]
        %v4549 = vld [vmem:[#allocation9 + $0x178] sm:$0xff]
        %v4550 = vld [vmem:[#allocation9 + $0x180] sm:$0xff]
        %v4551 = vld [vmem:[#allocation9 + $0x188] sm:$0xff]
        %v4552 = vld [vmem:[#allocation9 + $0x190] sm:$0xff]
        %v4553 = vld [vmem:[#allocation9 + $0x198] sm:$0xff]
        %v4554 = vld [vmem:[#allocation9 + $0x1a0] sm:$0xff]
        %v4555 = vld [vmem:[#allocation9 + $0x1a8] sm:$0xff]
        %v4556 = vld [vmem:[#allocation9 + $0x1b0] sm:$0xff]
        %v4557 = vld [vmem:[#allocation9 + $0x1b8] sm:$0xff]
        %v4558 = vld [vmem:[#allocation9 + $0x1c0] sm:$0xff]
        %v4559 = vld [vmem:[#allocation9 + $0x1c8] sm:$0xff]
        %v4560 = vld [vmem:[#allocation9 + $0x1d0] sm:$0xff]
        %v4561 = vld [vmem:[#allocation9 + $0x1d8] sm:$0xff]
        %v4562 = vld [vmem:[#allocation9 + $0x1e0] sm:$0xff]
        %v4563 = vld [vmem:[#allocation9 + $0x1e8] sm:$0xff]
        %v4564 = vld [vmem:[#allocation9 + $0x1f0] sm:$0xff]
        %v4565 = vld [vmem:[#allocation9 + $0x1f8] sm:$0xff]
        %v4566 = vld [vmem:[#allocation9 + $0x200] sm:$0xff]
        %v4567 = vld [vmem:[#allocation9 + $0x208] sm:$0xff]
        %v4568 = vld [vmem:[#allocation9 + $0x210] sm:$0xff]
        %v4569 = vld [vmem:[#allocation9 + $0x218] sm:$0xff]
        %v4570 = vld [vmem:[#allocation9 + $0x220] sm:$0xff]
        %v4571 = vld [vmem:[#allocation9 + $0x228] sm:$0xff]
        %v4572 = vld [vmem:[#allocation9 + $0x230] sm:$0xff]
        %v4573 = vld [vmem:[#allocation9 + $0x238] sm:$0xff]
        %v4574 = vld [vmem:[#allocation9 + $0x240] sm:$0xff]
        %v4575 = vld [vmem:[#allocation9 + $0x248] sm:$0xff]
        %v4576 = vld [vmem:[#allocation9 + $0x250] sm:$0xff]
        %v4577 = vld [vmem:[#allocation9 + $0x258] sm:$0xff]
        %v4578 = vld [vmem:[#allocation9 + $0x260] sm:$0xff]
        %v4579 = vld [vmem:[#allocation9 + $0x268] sm:$0xff]
        %v4580 = vld [vmem:[#allocation9 + $0x270] sm:$0xff]
        %v4581 = vld [vmem:[#allocation9 + $0x278] sm:$0xff]
        %v4582 = vld [vmem:[#allocation9 + $0x280] sm:$0xff]
        %v4583 = vld [vmem:[#allocation9 + $0x288] sm:$0xff]
        %v4584 = vld [vmem:[#allocation9 + $0x290] sm:$0xff]
        %v4585 = vld [vmem:[#allocation9 + $0x298] sm:$0xff]
        %v4586 = vld [vmem:[#allocation9 + $0x2a0] sm:$0xff]
        %v4587 = vld [vmem:[#allocation9 + $0x2a8] sm:$0xff]
        %v4588 = vld [vmem:[#allocation9 + $0x2b0] sm:$0xff]
        %v4589 = vld [vmem:[#allocation9 + $0x2b8] sm:$0xff]
        %v4590 = vld [vmem:[#allocation9 + $0x2c0] sm:$0xff]
        %v4591 = vld [vmem:[#allocation9 + $0x2c8] sm:$0xff]
        %v4592 = vld [vmem:[#allocation9 + $0x2d0] sm:$0xff]
        %v4593 = vld [vmem:[#allocation9 + $0x2d8] sm:$0xff]
        %v4594 = vld [vmem:[#allocation9 + $0x2e0] sm:$0xff]
        %v4595 = vld [vmem:[#allocation9 + $0x2e8] sm:$0xff]
        %v4596 = vld [vmem:[#allocation9 + $0x2f0] sm:$0xff]
        %v4597 = vld [vmem:[#allocation9 + $0x2f8] sm:$0xff]
        %v4694 = vunpack.c.l.b16 %v4502
        %v4695 = vunpack.c.h.b16 %v4502
        %v4696 = vunpack.c.l.b16 %v4503
        %v4697 = vunpack.c.h.b16 %v4503
        %v4698 = vunpack.c.l.b16 %v4504
        %v4699 = vunpack.c.h.b16 %v4504
        %v4700 = vunpack.c.l.b16 %v4505
        %v4701 = vunpack.c.h.b16 %v4505
        %v4702 = vunpack.c.l.b16 %v4506
        %v4703 = vunpack.c.h.b16 %v4506
        %v4704 = vunpack.c.l.b16 %v4507
        %v4705 = vunpack.c.h.b16 %v4507
        %v4706 = vunpack.c.l.b16 %v4508
        %v4707 = vunpack.c.h.b16 %v4508
        %v4708 = vunpack.c.l.b16 %v4509
        %v4709 = vunpack.c.h.b16 %v4509
        %v4710 = vunpack.c.l.b16 %v4510
        %v4711 = vunpack.c.h.b16 %v4510
        %v4712 = vunpack.c.l.b16 %v4511
        %v4713 = vunpack.c.h.b16 %v4511
        %v4714 = vunpack.c.l.b16 %v4512
        %v4715 = vunpack.c.h.b16 %v4512
        %v4716 = vunpack.c.l.b16 %v4513
        %v4717 = vunpack.c.h.b16 %v4513
        %v4718 = vunpack.c.l.b16 %v4514
        %v4719 = vunpack.c.h.b16 %v4514
        %v4720 = vunpack.c.l.b16 %v4515
        %v4721 = vunpack.c.h.b16 %v4515
        %v4722 = vunpack.c.l.b16 %v4516
        %v4723 = vunpack.c.h.b16 %v4516
        %v4724 = vunpack.c.l.b16 %v4517
        %v4725 = vunpack.c.h.b16 %v4517
        %v4726 = vunpack.c.l.b16 %v4518
        %v4727 = vunpack.c.h.b16 %v4518
        %v4728 = vunpack.c.l.b16 %v4519
        %v4729 = vunpack.c.h.b16 %v4519
        %v4730 = vunpack.c.l.b16 %v4520
        %v4731 = vunpack.c.h.b16 %v4520
        %v4732 = vunpack.c.l.b16 %v4521
        %v4733 = vunpack.c.h.b16 %v4521
        %v4734 = vunpack.c.l.b16 %v4522
        %v4735 = vunpack.c.h.b16 %v4522
        %v4736 = vunpack.c.l.b16 %v4523
        %v4737 = vunpack.c.h.b16 %v4523
        %v4738 = vunpack.c.l.b16 %v4524
        %v4739 = vunpack.c.h.b16 %v4524
        %v4740 = vunpack.c.l.b16 %v4525
        %v4741 = vunpack.c.h.b16 %v4525
        %v4742 = vunpack.c.l.b16 %v4526
        %v4743 = vunpack.c.h.b16 %v4526
        %v4744 = vunpack.c.l.b16 %v4527
        %v4745 = vunpack.c.h.b16 %v4527
        %v4746 = vunpack.c.l.b16 %v4528
        %v4747 = vunpack.c.h.b16 %v4528
        %v4748 = vunpack.c.l.b16 %v4529
        %v4749 = vunpack.c.h.b16 %v4529
        %v4750 = vunpack.c.l.b16 %v4530
        %v4751 = vunpack.c.h.b16 %v4530
        %v4752 = vunpack.c.l.b16 %v4531
        %v4753 = vunpack.c.h.b16 %v4531
        %v4754 = vunpack.c.l.b16 %v4532
        %v4755 = vunpack.c.h.b16 %v4532
        %v4756 = vunpack.c.l.b16 %v4533
        %v4757 = vunpack.c.h.b16 %v4533
        %v4758 = vunpack.c.l.b16 %v4534
        %v4759 = vunpack.c.h.b16 %v4534
        %v4760 = vunpack.c.l.b16 %v4535
        %v4761 = vunpack.c.h.b16 %v4535
        %v4762 = vunpack.c.l.b16 %v4536
        %v4763 = vunpack.c.h.b16 %v4536
        %v4764 = vunpack.c.l.b16 %v4537
        %v4765 = vunpack.c.h.b16 %v4537
        %v4766 = vunpack.c.l.b16 %v4538
        %v4767 = vunpack.c.h.b16 %v4538
        %v4768 = vunpack.c.l.b16 %v4539
        %v4769 = vunpack.c.h.b16 %v4539
        %v4770 = vunpack.c.l.b16 %v4540
        %v4771 = vunpack.c.h.b16 %v4540
        %v4772 = vunpack.c.l.b16 %v4541
        %v4773 = vunpack.c.h.b16 %v4541
        %v4774 = vunpack.c.l.b16 %v4542
        %v4775 = vunpack.c.h.b16 %v4542
        %v4776 = vunpack.c.l.b16 %v4543
        %v4777 = vunpack.c.h.b16 %v4543
        %v4778 = vunpack.c.l.b16 %v4544
        %v4779 = vunpack.c.h.b16 %v4544
        %v4780 = vunpack.c.l.b16 %v4545
        %v4781 = vunpack.c.h.b16 %v4545
        %v4782 = vunpack.c.l.b16 %v4546
        %v4783 = vunpack.c.h.b16 %v4546
        %v4784 = vunpack.c.l.b16 %v4547
        %v4785 = vunpack.c.h.b16 %v4547
        %v4786 = vunpack.c.l.b16 %v4548
        %v4787 = vunpack.c.h.b16 %v4548
        %v4788 = vunpack.c.l.b16 %v4549
        %v4789 = vunpack.c.h.b16 %v4549
        %v4790 = vunpack.c.l.b16 %v4550
        %v4791 = vunpack.c.h.b16 %v4550
        %v4792 = vunpack.c.l.b16 %v4551
        %v4793 = vunpack.c.h.b16 %v4551
        %v4794 = vunpack.c.l.b16 %v4552
        %v4795 = vunpack.c.h.b16 %v4552
        %v4796 = vunpack.c.l.b16 %v4553
        %v4797 = vunpack.c.h.b16 %v4553
        %v4798 = vunpack.c.l.b16 %v4554
        %v4799 = vunpack.c.h.b16 %v4554
        %v4800 = vunpack.c.l.b16 %v4555
        %v4801 = vunpack.c.h.b16 %v4555
        %v4802 = vunpack.c.l.b16 %v4556
        %v4803 = vunpack.c.h.b16 %v4556
        %v4804 = vunpack.c.l.b16 %v4557
        %v4805 = vunpack.c.h.b16 %v4557
        %v4806 = vunpack.c.l.b16 %v4558
        %v4807 = vunpack.c.h.b16 %v4558
        %v4808 = vunpack.c.l.b16 %v4559
        %v4809 = vunpack.c.h.b16 %v4559
        %v4810 = vunpack.c.l.b16 %v4560
        %v4811 = vunpack.c.h.b16 %v4560
        %v4812 = vunpack.c.l.b16 %v4561
        %v4813 = vunpack.c.h.b16 %v4561
        %v4814 = vunpack.c.l.b16 %v4562
        %v4815 = vunpack.c.h.b16 %v4562
        %v4816 = vunpack.c.l.b16 %v4563
        %v4817 = vunpack.c.h.b16 %v4563
        %v4818 = vunpack.c.l.b16 %v4564
        %v4819 = vunpack.c.h.b16 %v4564
        %v4820 = vunpack.c.l.b16 %v4565
        %v4821 = vunpack.c.h.b16 %v4565
        %v4822 = vunpack.c.l.b16 %v4566
        %v4823 = vunpack.c.h.b16 %v4566
        %v4824 = vunpack.c.l.b16 %v4567
        %v4825 = vunpack.c.h.b16 %v4567
        %v4826 = vunpack.c.l.b16 %v4568
        %v4827 = vunpack.c.h.b16 %v4568
        %v4828 = vunpack.c.l.b16 %v4569
        %v4829 = vunpack.c.h.b16 %v4569
        %v4830 = vunpack.c.l.b16 %v4570
        %v4831 = vunpack.c.h.b16 %v4570
        %v4832 = vunpack.c.l.b16 %v4571
        %v4833 = vunpack.c.h.b16 %v4571
        %v4834 = vunpack.c.l.b16 %v4572
        %v4835 = vunpack.c.h.b16 %v4572
        %v4836 = vunpack.c.l.b16 %v4573
        %v4837 = vunpack.c.h.b16 %v4573
        %v4838 = vunpack.c.l.b16 %v4574
        %v4839 = vunpack.c.h.b16 %v4574
        %v4840 = vunpack.c.l.b16 %v4575
        %v4841 = vunpack.c.h.b16 %v4575
        %v4842 = vunpack.c.l.b16 %v4576
        %v4843 = vunpack.c.h.b16 %v4576
        %v4844 = vunpack.c.l.b16 %v4577
        %v4845 = vunpack.c.h.b16 %v4577
        %v4846 = vunpack.c.l.b16 %v4578
        %v4847 = vunpack.c.h.b16 %v4578
        %v4848 = vunpack.c.l.b16 %v4579
        %v4849 = vunpack.c.h.b16 %v4579
        %v4850 = vunpack.c.l.b16 %v4580
        %v4851 = vunpack.c.h.b16 %v4580
        %v4852 = vunpack.c.l.b16 %v4581
        %v4853 = vunpack.c.h.b16 %v4581
        %v4854 = vunpack.c.l.b16 %v4582
        %v4855 = vunpack.c.h.b16 %v4582
        %v4856 = vunpack.c.l.b16 %v4583
        %v4857 = vunpack.c.h.b16 %v4583
        %v4858 = vunpack.c.l.b16 %v4584
        %v4859 = vunpack.c.h.b16 %v4584
        %v4860 = vunpack.c.l.b16 %v4585
        %v4861 = vunpack.c.h.b16 %v4585
        %v4862 = vunpack.c.l.b16 %v4586
        %v4863 = vunpack.c.h.b16 %v4586
        %v4864 = vunpack.c.l.b16 %v4587
        %v4865 = vunpack.c.h.b16 %v4587
        %v4866 = vunpack.c.l.b16 %v4588
        %v4867 = vunpack.c.h.b16 %v4588
        %v4868 = vunpack.c.l.b16 %v4589
        %v4869 = vunpack.c.h.b16 %v4589
        %v4870 = vunpack.c.l.b16 %v4590
        %v4871 = vunpack.c.h.b16 %v4590
        %v4872 = vunpack.c.l.b16 %v4591
        %v4873 = vunpack.c.h.b16 %v4591
        %v4874 = vunpack.c.l.b16 %v4592
        %v4875 = vunpack.c.h.b16 %v4592
        %v4876 = vunpack.c.l.b16 %v4593
        %v4877 = vunpack.c.h.b16 %v4593
        %v4878 = vunpack.c.l.b16 %v4594
        %v4879 = vunpack.c.h.b16 %v4594
        %v4880 = vunpack.c.l.b16 %v4595
        %v4881 = vunpack.c.h.b16 %v4595
        %v4882 = vunpack.c.l.b16 %v4596
        %v4883 = vunpack.c.h.b16 %v4596
        %v4884 = vunpack.c.l.b16 %v4597
        %v4885 = vunpack.c.h.b16 %v4597
        %v4886 = vpack.c.b16 %v4696, %v4694
        %v4887 = vpack.c.b16 %v4697, %v4695
        %v4888 = vpack.c.b16 %v4700, %v4698
        %v4889 = vpack.c.b16 %v4701, %v4699
        %v4890 = vpack.c.b16 %v4704, %v4702
        %v4891 = vpack.c.b16 %v4705, %v4703
        %v4892 = vpack.c.b16 %v4708, %v4706
        %v4893 = vpack.c.b16 %v4709, %v4707
        %v4894 = vpack.c.b16 %v4712, %v4710
        %v4895 = vpack.c.b16 %v4713, %v4711
        %v4896 = vpack.c.b16 %v4716, %v4714
        %v4897 = vpack.c.b16 %v4717, %v4715
        %v4898 = vpack.c.b16 %v4720, %v4718
        %v4899 = vpack.c.b16 %v4721, %v4719
        %v4900 = vpack.c.b16 %v4724, %v4722
        %v4901 = vpack.c.b16 %v4725, %v4723
        %v4902 = vpack.c.b16 %v4728, %v4726
        %v4903 = vpack.c.b16 %v4729, %v4727
        %v4904 = vpack.c.b16 %v4732, %v4730
        %v4905 = vpack.c.b16 %v4733, %v4731
        %v4906 = vpack.c.b16 %v4736, %v4734
        %v4907 = vpack.c.b16 %v4737, %v4735
        %v4908 = vpack.c.b16 %v4740, %v4738
        %v4909 = vpack.c.b16 %v4741, %v4739
        %v4910 = vpack.c.b16 %v4744, %v4742
        %v4911 = vpack.c.b16 %v4745, %v4743
        %v4912 = vpack.c.b16 %v4748, %v4746
        %v4913 = vpack.c.b16 %v4749, %v4747
        %v4914 = vpack.c.b16 %v4752, %v4750
        %v4915 = vpack.c.b16 %v4753, %v4751
        %v4916 = vpack.c.b16 %v4756, %v4754
        %v4917 = vpack.c.b16 %v4757, %v4755
        %v4918 = vpack.c.b16 %v4760, %v4758
        %v4919 = vpack.c.b16 %v4761, %v4759
        %v4920 = vpack.c.b16 %v4764, %v4762
        %v4921 = vpack.c.b16 %v4765, %v4763
        %v4922 = vpack.c.b16 %v4768, %v4766
        %v4923 = vpack.c.b16 %v4769, %v4767
        %v4924 = vpack.c.b16 %v4772, %v4770
        %v4925 = vpack.c.b16 %v4773, %v4771
        %v4926 = vpack.c.b16 %v4776, %v4774
        %v4927 = vpack.c.b16 %v4777, %v4775
        %v4928 = vpack.c.b16 %v4780, %v4778
        %v4929 = vpack.c.b16 %v4781, %v4779
        %v4930 = vpack.c.b16 %v4784, %v4782
        %v4931 = vpack.c.b16 %v4785, %v4783
        %v4932 = vpack.c.b16 %v4788, %v4786
        %v4933 = vpack.c.b16 %v4789, %v4787
        %v4934 = vpack.c.b16 %v4792, %v4790
        %v4935 = vpack.c.b16 %v4793, %v4791
        %v4936 = vpack.c.b16 %v4796, %v4794
        %v4937 = vpack.c.b16 %v4797, %v4795
        %v4938 = vpack.c.b16 %v4800, %v4798
        %v4939 = vpack.c.b16 %v4801, %v4799
        %v4940 = vpack.c.b16 %v4804, %v4802
        %v4941 = vpack.c.b16 %v4805, %v4803
        %v4942 = vpack.c.b16 %v4808, %v4806
        %v4943 = vpack.c.b16 %v4809, %v4807
        %v4944 = vpack.c.b16 %v4812, %v4810
        %v4945 = vpack.c.b16 %v4813, %v4811
        %v4946 = vpack.c.b16 %v4816, %v4814
        %v4947 = vpack.c.b16 %v4817, %v4815
        %v4948 = vpack.c.b16 %v4820, %v4818
        %v4949 = vpack.c.b16 %v4821, %v4819
        %v4950 = vpack.c.b16 %v4824, %v4822
        %v4951 = vpack.c.b16 %v4825, %v4823
        %v4952 = vpack.c.b16 %v4828, %v4826
        %v4953 = vpack.c.b16 %v4829, %v4827
        %v4954 = vpack.c.b16 %v4832, %v4830
        %v4955 = vpack.c.b16 %v4833, %v4831
        %v4956 = vpack.c.b16 %v4836, %v4834
        %v4957 = vpack.c.b16 %v4837, %v4835
        %v4958 = vpack.c.b16 %v4840, %v4838
        %v4959 = vpack.c.b16 %v4841, %v4839
        %v4960 = vpack.c.b16 %v4844, %v4842
        %v4961 = vpack.c.b16 %v4845, %v4843
        %v4962 = vpack.c.b16 %v4848, %v4846
        %v4963 = vpack.c.b16 %v4849, %v4847
        %v4964 = vpack.c.b16 %v4852, %v4850
        %v4965 = vpack.c.b16 %v4853, %v4851
        %v4966 = vpack.c.b16 %v4856, %v4854
        %v4967 = vpack.c.b16 %v4857, %v4855
        %v4968 = vpack.c.b16 %v4860, %v4858
        %v4969 = vpack.c.b16 %v4861, %v4859
        %v4970 = vpack.c.b16 %v4864, %v4862
        %v4971 = vpack.c.b16 %v4865, %v4863
        %v4972 = vpack.c.b16 %v4868, %v4866
        %v4973 = vpack.c.b16 %v4869, %v4867
        %v4974 = vpack.c.b16 %v4872, %v4870
        %v4975 = vpack.c.b16 %v4873, %v4871
        %v4976 = vpack.c.b16 %v4876, %v4874
        %v4977 = vpack.c.b16 %v4877, %v4875
        %v4978 = vpack.c.b16 %v4880, %v4878
        %v4979 = vpack.c.b16 %v4881, %v4879
        %v4980 = vpack.c.b16 %v4884, %v4882
        %v4981 = vpack.c.b16 %v4885, %v4883
        %5078 = vmatprep.subr.bf16.mxu0 %v4901
        %5079 = vmatpush1.bf16.msra.mxu0 %v4900
        %5080 = vmatprep.subr.bf16.mxu0 %v4899
        %5081 = vmatpush1.bf16.msra.mxu0 %v4898
        %5082 = vmatprep.subr.bf16.mxu0 %v4897
        %5083 = vmatpush1.bf16.msra.mxu0 %v4896
        %5084 = vmatprep.subr.bf16.mxu0 %v4895
        %5085 = vmatpush1.bf16.msra.mxu0 %v4894
        %5086 = vmatprep.subr.bf16.mxu0 %v4893
        %5087 = vmatpush1.bf16.msra.mxu0 %v4892
        %5088 = vmatprep.subr.bf16.mxu0 %v4891
        %5089 = vmatpush1.bf16.msra.mxu0 %v4890
        %5090 = vmatprep.subr.bf16.mxu0 %v4889
        %5091 = vmatpush1.bf16.msra.mxu0 %v4888
        %5092 = vmatprep.subr.bf16.mxu0 %v4887
        %5093 = vmatpush1.bf16.msra.mxu0 %v4886
        %5094 = vmatprep.subr.bf16.mxu0 %v4917
        %5095 = vmatpush2.bf16.msra.mxu0 %v4916
        %5096 = vmatprep.subr.bf16.mxu0 %v4915
        %5097 = vmatpush2.bf16.msra.mxu0 %v4914
        %5098 = vmatprep.subr.bf16.mxu0 %v4913
        %5099 = vmatpush2.bf16.msra.mxu0 %v4912
        %5100 = vmatprep.subr.bf16.mxu0 %v4911
        %5101 = vmatpush2.bf16.msra.mxu0 %v4910
        %5102 = vmatprep.subr.bf16.mxu0 %v4909
        %5103 = vmatpush2.bf16.msra.mxu0 %v4908
        %5104 = vmatprep.subr.bf16.mxu0 %v4907
        %5105 = vmatpush2.bf16.msra.mxu0 %v4906
        %5106 = vmatprep.subr.bf16.mxu0 %v4905
        %5107 = vmatpush2.bf16.msra.mxu0 %v4904
        %5108 = vmatprep.subr.bf16.mxu0 %v4903
        %5109 = vmatpush2.bf16.msra.mxu0 %v4902
        %5110 = vmatprep.mubr.bf16.mxu0 %v4455
        %5111 = vmatmul.mubr.bf16.gmra.mxu0 %v4454
        %v5112 = vpop.f32.mrf.mxu0
        %v5113 = vadd.f32 0.0, %v5112
        %v5114 = vpop.f32.mrf.mxu0
        %v5115 = vadd.f32 0.0, %v5114
        %v5116 = vpop.f32.mrf.mxu0
        %v5117 = vadd.f32 0.0, %v5116
        %v5118 = vpop.f32.mrf.mxu0
        %v5119 = vadd.f32 0.0, %v5118
        %5120 = vmatprep.mubr.bf16.mxu0 %v4461
        %5121 = vmatmul.mubr.bf16.gmra.mxu0 %v4460
        %v5122 = vpop.f32.mrf.mxu0
        %v5123 = vadd.f32 0.0, %v5122
        %v5124 = vpop.f32.mrf.mxu0
        %v5125 = vadd.f32 0.0, %v5124
        %v5126 = vpop.f32.mrf.mxu0
        %v5127 = vadd.f32 0.0, %v5126
        %v5128 = vpop.f32.mrf.mxu0
        %v5129 = vadd.f32 0.0, %v5128
        %5130 = vmatprep.mubr.bf16.mxu0 %v4467
        %5131 = vmatmul.mubr.bf16.gmra.mxu0 %v4466
        %v5132 = vpop.f32.mrf.mxu0
        %v5133 = vadd.f32 0.0, %v5132
        %v5134 = vpop.f32.mrf.mxu0
        %v5135 = vadd.f32 0.0, %v5134
        %v5136 = vpop.f32.mrf.mxu0
        %v5137 = vadd.f32 0.0, %v5136
        %v5138 = vpop.f32.mrf.mxu0
        %v5139 = vadd.f32 0.0, %v5138
        %5140 = vmatprep.mubr.bf16.mxu0 %v4473
        %5141 = vmatmul.mubr.bf16.gmra.mxu0 %v4472
        %v5142 = vpop.f32.mrf.mxu0
        %v5143 = vadd.f32 0.0, %v5142
        %v5144 = vpop.f32.mrf.mxu0
        %v5145 = vadd.f32 0.0, %v5144
        %v5146 = vpop.f32.mrf.mxu0
        %v5147 = vadd.f32 0.0, %v5146
        %v5148 = vpop.f32.mrf.mxu0
        %v5149 = vadd.f32 0.0, %v5148
        %5150 = vmatprep.mubr.bf16.mxu0 %v4479
        %5151 = vmatmul.mubr.bf16.gmra.mxu0 %v4478
        %v5152 = vpop.f32.mrf.mxu0
        %v5153 = vadd.f32 0.0, %v5152
        %v5154 = vpop.f32.mrf.mxu0
        %v5155 = vadd.f32 0.0, %v5154
        %v5156 = vpop.f32.mrf.mxu0
        %v5157 = vadd.f32 0.0, %v5156
        %v5158 = vpop.f32.mrf.mxu0
        %v5159 = vadd.f32 0.0, %v5158
        %5160 = vmatprep.mubr.bf16.mxu0 %v4485
        %5161 = vmatmul.mubr.bf16.gmra.mxu0 %v4484
        %v5162 = vpop.f32.mrf.mxu0
        %v5163 = vadd.f32 0.0, %v5162
        %v5164 = vpop.f32.mrf.mxu0
        %v5165 = vadd.f32 0.0, %v5164
        %v5166 = vpop.f32.mrf.mxu0
        %v5167 = vadd.f32 0.0, %v5166
        %v5168 = vpop.f32.mrf.mxu0
        %v5169 = vadd.f32 0.0, %v5168
        %5170 = vmatprep.mubr.bf16.mxu0 %v4491
        %5171 = vmatmul.mubr.bf16.gmra.mxu0 %v4490
        %v5172 = vpop.f32.mrf.mxu0
        %v5173 = vadd.f32 0.0, %v5172
        %v5174 = vpop.f32.mrf.mxu0
        %v5175 = vadd.f32 0.0, %v5174
        %v5176 = vpop.f32.mrf.mxu0
        %v5177 = vadd.f32 0.0, %v5176
        %v5178 = vpop.f32.mrf.mxu0
        %v5179 = vadd.f32 0.0, %v5178
        %5180 = vmatprep.mubr.bf16.mxu0 %v4497
        %5181 = vmatmul.mubr.bf16.gmra.mxu0 %v4496
        %v5182 = vpop.f32.mrf.mxu0
        %v5183 = vadd.f32 0.0, %v5182
        %v5184 = vpop.f32.mrf.mxu0
        %v5185 = vadd.f32 0.0, %v5184
        %v5186 = vpop.f32.mrf.mxu0
        %v5187 = vadd.f32 0.0, %v5186
        %v5188 = vpop.f32.mrf.mxu0
        %v5189 = vadd.f32 0.0, %v5188
        %5190 = vdwg.mxu0
        %5191 = vmatprep.subr.bf16.mxu0 %v4933
        %5192 = vmatpush1.bf16.msra.mxu0 %v4932
        %5193 = vmatprep.subr.bf16.mxu0 %v4931
        %5194 = vmatpush1.bf16.msra.mxu0 %v4930
        %5195 = vmatprep.subr.bf16.mxu0 %v4929
        %5196 = vmatpush1.bf16.msra.mxu0 %v4928
        %5197 = vmatprep.subr.bf16.mxu0 %v4927
        %5198 = vmatpush1.bf16.msra.mxu0 %v4926
        %5199 = vmatprep.subr.bf16.mxu0 %v4925
        %5200 = vmatpush1.bf16.msra.mxu0 %v4924
        %5201 = vmatprep.subr.bf16.mxu0 %v4923
        %5202 = vmatpush1.bf16.msra.mxu0 %v4922
        %5203 = vmatprep.subr.bf16.mxu0 %v4921
        %5204 = vmatpush1.bf16.msra.mxu0 %v4920
        %5205 = vmatprep.subr.bf16.mxu0 %v4919
        %5206 = vmatpush1.bf16.msra.mxu0 %v4918
        %5207 = vmatprep.subr.bf16.mxu0 %v4949
        %5208 = vmatpush2.bf16.msra.mxu0 %v4948
        %5209 = vmatprep.subr.bf16.mxu0 %v4947
        %5210 = vmatpush2.bf16.msra.mxu0 %v4946
        %5211 = vmatprep.subr.bf16.mxu0 %v4945
        %5212 = vmatpush2.bf16.msra.mxu0 %v4944
        %5213 = vmatprep.subr.bf16.mxu0 %v4943
        %5214 = vmatpush2.bf16.msra.mxu0 %v4942
        %5215 = vmatprep.subr.bf16.mxu0 %v4941
        %5216 = vmatpush2.bf16.msra.mxu0 %v4940
        %5217 = vmatprep.subr.bf16.mxu0 %v4939
        %5218 = vmatpush2.bf16.msra.mxu0 %v4938
        %5219 = vmatprep.subr.bf16.mxu0 %v4937
        %5220 = vmatpush2.bf16.msra.mxu0 %v4936
        %5221 = vmatprep.subr.bf16.mxu0 %v4935
        %5222 = vmatpush2.bf16.msra.mxu0 %v4934
        %5223 = vmatprep.mubr.bf16.mxu0 %v4457
        %5224 = vmatmul.mubr.bf16.gmra.mxu0 %v4456
        %v5225 = vpop.f32.mrf.mxu0
        %v5226 = vadd.f32 %v5113, %v5225
        %v5227 = vpop.f32.mrf.mxu0
        %v5228 = vadd.f32 %v5115, %v5227
        %v5229 = vpop.f32.mrf.mxu0
        %v5230 = vadd.f32 %v5117, %v5229
        %v5231 = vpop.f32.mrf.mxu0
        %v5232 = vadd.f32 %v5119, %v5231
        %5233 = vmatprep.mubr.bf16.mxu0 %v4463
        %5234 = vmatmul.mubr.bf16.gmra.mxu0 %v4462
        %v5235 = vpop.f32.mrf.mxu0
        %v5236 = vadd.f32 %v5123, %v5235
        %v5237 = vpop.f32.mrf.mxu0
        %v5238 = vadd.f32 %v5125, %v5237
        %v5239 = vpop.f32.mrf.mxu0
        %v5240 = vadd.f32 %v5127, %v5239
        %v5241 = vpop.f32.mrf.mxu0
        %v5242 = vadd.f32 %v5129, %v5241
        %5243 = vmatprep.mubr.bf16.mxu0 %v4469
        %5244 = vmatmul.mubr.bf16.gmra.mxu0 %v4468
        %v5245 = vpop.f32.mrf.mxu0
        %v5246 = vadd.f32 %v5133, %v5245
        %v5247 = vpop.f32.mrf.mxu0
        %v5248 = vadd.f32 %v5135, %v5247
        %v5249 = vpop.f32.mrf.mxu0
        %v5250 = vadd.f32 %v5137, %v5249
        %v5251 = vpop.f32.mrf.mxu0
        %v5252 = vadd.f32 %v5139, %v5251
        %5253 = vmatprep.mubr.bf16.mxu0 %v4475
        %5254 = vmatmul.mubr.bf16.gmra.mxu0 %v4474
        %v5255 = vpop.f32.mrf.mxu0
        %v5256 = vadd.f32 %v5143, %v5255
        %v5257 = vpop.f32.mrf.mxu0
        %v5258 = vadd.f32 %v5145, %v5257
        %v5259 = vpop.f32.mrf.mxu0
        %v5260 = vadd.f32 %v5147, %v5259
        %v5261 = vpop.f32.mrf.mxu0
        %v5262 = vadd.f32 %v5149, %v5261
        %5263 = vmatprep.mubr.bf16.mxu0 %v4481
        %5264 = vmatmul.mubr.bf16.gmra.mxu0 %v4480
        %v5265 = vpop.f32.mrf.mxu0
        %v5266 = vadd.f32 %v5153, %v5265
        %v5267 = vpop.f32.mrf.mxu0
        %v5268 = vadd.f32 %v5155, %v5267
        %v5269 = vpop.f32.mrf.mxu0
        %v5270 = vadd.f32 %v5157, %v5269
        %v5271 = vpop.f32.mrf.mxu0
        %v5272 = vadd.f32 %v5159, %v5271
        %5273 = vmatprep.mubr.bf16.mxu0 %v4487
        %5274 = vmatmul.mubr.bf16.gmra.mxu0 %v4486
        %v5275 = vpop.f32.mrf.mxu0
        %v5276 = vadd.f32 %v5163, %v5275
        %v5277 = vpop.f32.mrf.mxu0
        %v5278 = vadd.f32 %v5165, %v5277
        %v5279 = vpop.f32.mrf.mxu0
        %v5280 = vadd.f32 %v5167, %v5279
        %v5281 = vpop.f32.mrf.mxu0
        %v5282 = vadd.f32 %v5169, %v5281
        %5283 = vmatprep.mubr.bf16.mxu0 %v4493
        %5284 = vmatmul.mubr.bf16.gmra.mxu0 %v4492
        %v5285 = vpop.f32.mrf.mxu0
        %v5286 = vadd.f32 %v5173, %v5285
        %v5287 = vpop.f32.mrf.mxu0
        %v5288 = vadd.f32 %v5175, %v5287
        %v5289 = vpop.f32.mrf.mxu0
        %v5290 = vadd.f32 %v5177, %v5289
        %v5291 = vpop.f32.mrf.mxu0
        %v5292 = vadd.f32 %v5179, %v5291
        %5293 = vmatprep.mubr.bf16.mxu0 %v4499
        %5294 = vmatmul.mubr.bf16.gmra.mxu0 %v4498
        %v5295 = vpop.f32.mrf.mxu0
        %v5296 = vadd.f32 %v5183, %v5295
        %v5297 = vpop.f32.mrf.mxu0
        %v5298 = vadd.f32 %v5185, %v5297
        %v5299 = vpop.f32.mrf.mxu0
        %v5300 = vadd.f32 %v5187, %v5299
        %v5301 = vpop.f32.mrf.mxu0
        %v5302 = vadd.f32 %v5189, %v5301
        %5303 = vdwg.mxu0
        %5304 = vmatprep.subr.bf16.mxu0 %v4965
        %5305 = vmatpush1.bf16.msra.mxu0 %v4964
        %5306 = vmatprep.subr.bf16.mxu0 %v4963
        %5307 = vmatpush1.bf16.msra.mxu0 %v4962
        %5308 = vmatprep.subr.bf16.mxu0 %v4961
        %5309 = vmatpush1.bf16.msra.mxu0 %v4960
        %5310 = vmatprep.subr.bf16.mxu0 %v4959
        %5311 = vmatpush1.bf16.msra.mxu0 %v4958
        %5312 = vmatprep.subr.bf16.mxu0 %v4957
        %5313 = vmatpush1.bf16.msra.mxu0 %v4956
        %5314 = vmatprep.subr.bf16.mxu0 %v4955
        %5315 = vmatpush1.bf16.msra.mxu0 %v4954
        %5316 = vmatprep.subr.bf16.mxu0 %v4953
        %5317 = vmatpush1.bf16.msra.mxu0 %v4952
        %5318 = vmatprep.subr.bf16.mxu0 %v4951
        %5319 = vmatpush1.bf16.msra.mxu0 %v4950
        %5320 = vmatprep.subr.bf16.mxu0 %v4981
        %5321 = vmatpush2.bf16.msra.mxu0 %v4980
        %5322 = vmatprep.subr.bf16.mxu0 %v4979
        %5323 = vmatpush2.bf16.msra.mxu0 %v4978
        %5324 = vmatprep.subr.bf16.mxu0 %v4977
        %5325 = vmatpush2.bf16.msra.mxu0 %v4976
        %5326 = vmatprep.subr.bf16.mxu0 %v4975
        %5327 = vmatpush2.bf16.msra.mxu0 %v4974
        %5328 = vmatprep.subr.bf16.mxu0 %v4973
        %5329 = vmatpush2.bf16.msra.mxu0 %v4972
        %5330 = vmatprep.subr.bf16.mxu0 %v4971
        %5331 = vmatpush2.bf16.msra.mxu0 %v4970
        %5332 = vmatprep.subr.bf16.mxu0 %v4969
        %5333 = vmatpush2.bf16.msra.mxu0 %v4968
        %5334 = vmatprep.subr.bf16.mxu0 %v4967
        %5335 = vmatpush2.bf16.msra.mxu0 %v4966
        %5336 = vmatprep.mubr.bf16.mxu0 %v4459
        %5337 = vmatmul.mubr.bf16.gmra.mxu0 %v4458
        %v5338 = vpop.f32.mrf.mxu0
        %v5339 = vadd.f32 %v5226, %v5338
        %v5340 = vpop.f32.mrf.mxu0
        %v5341 = vadd.f32 %v5228, %v5340
        %v5342 = vpop.f32.mrf.mxu0
        %v5343 = vadd.f32 %v5230, %v5342
        %v5344 = vpop.f32.mrf.mxu0
        %v5345 = vadd.f32 %v5232, %v5344
        %5346 = vmatprep.mubr.bf16.mxu0 %v4465
        %5347 = vmatmul.mubr.bf16.gmra.mxu0 %v4464
        %v5348 = vpop.f32.mrf.mxu0
        %v5349 = vadd.f32 %v5236, %v5348
        %v5350 = vpop.f32.mrf.mxu0
        %v5351 = vadd.f32 %v5238, %v5350
        %v5352 = vpop.f32.mrf.mxu0
        %v5353 = vadd.f32 %v5240, %v5352
        %v5354 = vpop.f32.mrf.mxu0
        %v5355 = vadd.f32 %v5242, %v5354
        %5356 = vmatprep.mubr.bf16.mxu0 %v4471
        %5357 = vmatmul.mubr.bf16.gmra.mxu0 %v4470
        %v5358 = vpop.f32.mrf.mxu0
        %v5359 = vadd.f32 %v5246, %v5358
        %v5360 = vpop.f32.mrf.mxu0
        %v5361 = vadd.f32 %v5248, %v5360
        %v5362 = vpop.f32.mrf.mxu0
        %v5363 = vadd.f32 %v5250, %v5362
        %v5364 = vpop.f32.mrf.mxu0
        %v5365 = vadd.f32 %v5252, %v5364
        %5366 = vmatprep.mubr.bf16.mxu0 %v4477
        %5367 = vmatmul.mubr.bf16.gmra.mxu0 %v4476
        %v5368 = vpop.f32.mrf.mxu0
        %v5369 = vadd.f32 %v5256, %v5368
        %v5370 = vpop.f32.mrf.mxu0
        %v5371 = vadd.f32 %v5258, %v5370
        %v5372 = vpop.f32.mrf.mxu0
        %v5373 = vadd.f32 %v5260, %v5372
        %v5374 = vpop.f32.mrf.mxu0
        %v5375 = vadd.f32 %v5262, %v5374
        %5376 = vmatprep.mubr.bf16.mxu0 %v4483
        %5377 = vmatmul.mubr.bf16.gmra.mxu0 %v4482
        %v5378 = vpop.f32.mrf.mxu0
        %v5379 = vadd.f32 %v5266, %v5378
        %v5380 = vpop.f32.mrf.mxu0
        %v5381 = vadd.f32 %v5268, %v5380
        %v5382 = vpop.f32.mrf.mxu0
        %v5383 = vadd.f32 %v5270, %v5382
        %v5384 = vpop.f32.mrf.mxu0
        %v5385 = vadd.f32 %v5272, %v5384
        %5386 = vmatprep.mubr.bf16.mxu0 %v4489
        %5387 = vmatmul.mubr.bf16.gmra.mxu0 %v4488
        %v5388 = vpop.f32.mrf.mxu0
        %v5389 = vadd.f32 %v5276, %v5388
        %v5390 = vpop.f32.mrf.mxu0
        %v5391 = vadd.f32 %v5278, %v5390
        %v5392 = vpop.f32.mrf.mxu0
        %v5393 = vadd.f32 %v5280, %v5392
        %v5394 = vpop.f32.mrf.mxu0
        %v5395 = vadd.f32 %v5282, %v5394
        %5396 = vmatprep.mubr.bf16.mxu0 %v4495
        %5397 = vmatmul.mubr.bf16.gmra.mxu0 %v4494
        %v5398 = vpop.f32.mrf.mxu0
        %v5399 = vadd.f32 %v5286, %v5398
        %v5400 = vpop.f32.mrf.mxu0
        %v5401 = vadd.f32 %v5288, %v5400
        %v5402 = vpop.f32.mrf.mxu0
        %v5403 = vadd.f32 %v5290, %v5402
        %v5404 = vpop.f32.mrf.mxu0
        %v5405 = vadd.f32 %v5292, %v5404
        %5406 = vmatprep.mubr.bf16.mxu0 %v4501
        %5407 = vmatmul.mubr.bf16.gmra.mxu0 %v4500
        %v5408 = vpop.f32.mrf.mxu0
        %v5409 = vadd.f32 %v5296, %v5408
        %v5410 = vpop.f32.mrf.mxu0
        %v5411 = vadd.f32 %v5298, %v5410
        %v5412 = vpop.f32.mrf.mxu0
        %v5413 = vadd.f32 %v5300, %v5412
        %v5414 = vpop.f32.mrf.mxu0
        %v5415 = vadd.f32 %v5302, %v5414
        %5416 = vdwg.mxu0
        %5417 = vst [vmem:[#allocation3] sm:$0xff] %v5339
        %5418 = vst [vmem:[#allocation3 + $0x8] sm:$0xff] %v5341
        %5419 = vst [vmem:[#allocation3 + $0x10] sm:$0xff] %v5343
        %5420 = vst [vmem:[#allocation3 + $0x18] sm:$0xff] %v5345
        %5421 = vst [vmem:[#allocation3 + $0x20] sm:$0xff] %v5349
        %5422 = vst [vmem:[#allocation3 + $0x28] sm:$0xff] %v5351
        %5423 = vst [vmem:[#allocation3 + $0x30] sm:$0xff] %v5353
        %5424 = vst [vmem:[#allocation3 + $0x38] sm:$0xff] %v5355
        %5425 = vst [vmem:[#allocation3 + $0x40] sm:$0xff] %v5359
        %5426 = vst [vmem:[#allocation3 + $0x48] sm:$0xff] %v5361
        %5427 = vst [vmem:[#allocation3 + $0x50] sm:$0xff] %v5363
        %5428 = vst [vmem:[#allocation3 + $0x58] sm:$0xff] %v5365
        %5429 = vst [vmem:[#allocation3 + $0x60] sm:$0xff] %v5369
        %5430 = vst [vmem:[#allocation3 + $0x68] sm:$0xff] %v5371
        %5431 = vst [vmem:[#allocation3 + $0x70] sm:$0xff] %v5373
        %5432 = vst [vmem:[#allocation3 + $0x78] sm:$0xff] %v5375
        %5433 = vst [vmem:[#allocation3 + $0x80] sm:$0xff] %v5379
        %5434 = vst [vmem:[#allocation3 + $0x88] sm:$0xff] %v5381
        %5435 = vst [vmem:[#allocation3 + $0x90] sm:$0xff] %v5383
        %5436 = vst [vmem:[#allocation3 + $0x98] sm:$0xff] %v5385
        %5437 = vst [vmem:[#allocation3 + $0xa0] sm:$0xff] %v5389
        %5438 = vst [vmem:[#allocation3 + $0xa8] sm:$0xff] %v5391
        %5439 = vst [vmem:[#allocation3 + $0xb0] sm:$0xff] %v5393
        %5440 = vst [vmem:[#allocation3 + $0xb8] sm:$0xff] %v5395
        %5441 = vst [vmem:[#allocation3 + $0xc0] sm:$0xff] %v5399
        %5442 = vst [vmem:[#allocation3 + $0xc8] sm:$0xff] %v5401
        %5443 = vst [vmem:[#allocation3 + $0xd0] sm:$0xff] %v5403
        %5444 = vst [vmem:[#allocation3 + $0xd8] sm:$0xff] %v5405
        %5445 = vst [vmem:[#allocation3 + $0xe0] sm:$0xff] %v5409
        %5446 = vst [vmem:[#allocation3 + $0xe8] sm:$0xff] %v5411
        %5447 = vst [vmem:[#allocation3 + $0xf0] sm:$0xff] %v5413
        %5448 = vst [vmem:[#allocation3 + $0xf8] sm:$0xff] %v5415
        %v5449 = vld [vmem:[%s246] sm:$0xff]
        %v5450 = vld [vmem:[%s246 + $0x8] sm:$0xff]
        %v5451 = vld [vmem:[%s246 + $0x10] sm:$0xff]
        %v5452 = vld [vmem:[%s246 + $0x18] sm:$0xff]
        %v5453 = vld [vmem:[%s246 + $0x20] sm:$0xff]
        %v5454 = vld [vmem:[%s246 + $0x28] sm:$0xff]
        %v5455 = vld [vmem:[%s246 + $0x30] sm:$0xff]
        %v5456 = vld [vmem:[%s246 + $0x38] sm:$0xff]
        %v5457 = vld [vmem:[%s246 + $0x40] sm:$0xff]
        %v5458 = vld [vmem:[%s246 + $0x48] sm:$0xff]
        %v5459 = vld [vmem:[%s246 + $0x50] sm:$0xff]
        %v5460 = vld [vmem:[%s246 + $0x58] sm:$0xff]
        %v5461 = vld [vmem:[%s246 + $0x60] sm:$0xff]
        %v5462 = vld [vmem:[%s246 + $0x68] sm:$0xff]
        %v5463 = vld [vmem:[%s246 + $0x70] sm:$0xff]
        %v5464 = vld [vmem:[%s246 + $0x78] sm:$0xff]
        %v5465 = vld [vmem:[%s246 + $0x80] sm:$0xff]
        %v5466 = vld [vmem:[%s246 + $0x88] sm:$0xff]
        %v5467 = vld [vmem:[%s246 + $0x90] sm:$0xff]
        %v5468 = vld [vmem:[%s246 + $0x98] sm:$0xff]
        %v5469 = vld [vmem:[%s246 + $0xa0] sm:$0xff]
        %v5470 = vld [vmem:[%s246 + $0xa8] sm:$0xff]
        %v5471 = vld [vmem:[%s246 + $0xb0] sm:$0xff]
        %v5472 = vld [vmem:[%s246 + $0xb8] sm:$0xff]
        %v5473 = vld [vmem:[%s246 + $0xc0] sm:$0xff]
        %v5474 = vld [vmem:[%s246 + $0xc8] sm:$0xff]
        %v5475 = vld [vmem:[%s246 + $0xd0] sm:$0xff]
        %v5476 = vld [vmem:[%s246 + $0xd8] sm:$0xff]
        %v5477 = vld [vmem:[%s246 + $0xe0] sm:$0xff]
        %v5478 = vld [vmem:[%s246 + $0xe8] sm:$0xff]
        %v5479 = vld [vmem:[%s246 + $0xf0] sm:$0xff]
        %v5480 = vld [vmem:[%s246 + $0xf8] sm:$0xff]
        %v5481 = vld [vmem:[%s246 + $0x100] sm:$0xff]
        %v5482 = vld [vmem:[%s246 + $0x108] sm:$0xff]
        %v5483 = vld [vmem:[%s246 + $0x110] sm:$0xff]
        %v5484 = vld [vmem:[%s246 + $0x118] sm:$0xff]
        %v5485 = vld [vmem:[%s246 + $0x120] sm:$0xff]
        %v5486 = vld [vmem:[%s246 + $0x128] sm:$0xff]
        %v5487 = vld [vmem:[%s246 + $0x130] sm:$0xff]
        %v5488 = vld [vmem:[%s246 + $0x138] sm:$0xff]
        %v5489 = vld [vmem:[%s246 + $0x140] sm:$0xff]
        %v5490 = vld [vmem:[%s246 + $0x148] sm:$0xff]
        %v5491 = vld [vmem:[%s246 + $0x150] sm:$0xff]
        %v5492 = vld [vmem:[%s246 + $0x158] sm:$0xff]
        %v5493 = vld [vmem:[%s246 + $0x160] sm:$0xff]
        %v5494 = vld [vmem:[%s246 + $0x168] sm:$0xff]
        %v5495 = vld [vmem:[%s246 + $0x170] sm:$0xff]
        %v5496 = vld [vmem:[%s246 + $0x178] sm:$0xff]
        %v5497 = vld [vmem:[%s246 + $0x1e0] sm:$0xff]
        %v5498 = vld [vmem:[%s246 + $0x1e8] sm:$0xff]
        %v5499 = vld [vmem:[%s246 + $0x1f0] sm:$0xff]
        %v5500 = vld [vmem:[%s246 + $0x1f8] sm:$0xff]
        %v5501 = vld [vmem:[%s246 + $0x200] sm:$0xff]
        %v5502 = vld [vmem:[%s246 + $0x208] sm:$0xff]
        %v5503 = vld [vmem:[%s246 + $0x210] sm:$0xff]
        %v5504 = vld [vmem:[%s246 + $0x218] sm:$0xff]
        %v5505 = vld [vmem:[%s246 + $0x220] sm:$0xff]
        %v5506 = vld [vmem:[%s246 + $0x228] sm:$0xff]
        %v5507 = vld [vmem:[%s246 + $0x230] sm:$0xff]
        %v5508 = vld [vmem:[%s246 + $0x238] sm:$0xff]
        %v5509 = vld [vmem:[%s246 + $0x240] sm:$0xff]
        %v5510 = vld [vmem:[%s246 + $0x248] sm:$0xff]
        %v5511 = vld [vmem:[%s246 + $0x250] sm:$0xff]
        %v5512 = vld [vmem:[%s246 + $0x258] sm:$0xff]
        %v5513 = vld [vmem:[%s246 + $0x260] sm:$0xff]
        %v5514 = vld [vmem:[%s246 + $0x268] sm:$0xff]
        %v5515 = vld [vmem:[%s246 + $0x270] sm:$0xff]
        %v5516 = vld [vmem:[%s246 + $0x278] sm:$0xff]
        %v5517 = vld [vmem:[%s246 + $0x280] sm:$0xff]
        %v5518 = vld [vmem:[%s246 + $0x288] sm:$0xff]
        %v5519 = vld [vmem:[%s246 + $0x290] sm:$0xff]
        %v5520 = vld [vmem:[%s246 + $0x298] sm:$0xff]
        %v5521 = vld [vmem:[%s246 + $0x2a0] sm:$0xff]
        %v5522 = vld [vmem:[%s246 + $0x2a8] sm:$0xff]
        %v5523 = vld [vmem:[%s246 + $0x2b0] sm:$0xff]
        %v5524 = vld [vmem:[%s246 + $0x2b8] sm:$0xff]
        %v5525 = vld [vmem:[%s246 + $0x2c0] sm:$0xff]
        %v5526 = vld [vmem:[%s246 + $0x2c8] sm:$0xff]
        %v5527 = vld [vmem:[%s246 + $0x2d0] sm:$0xff]
        %v5528 = vld [vmem:[%s246 + $0x2d8] sm:$0xff]
        %v5529 = vld [vmem:[%s246 + $0x2e0] sm:$0xff]
        %v5530 = vld [vmem:[%s246 + $0x2e8] sm:$0xff]
        %v5531 = vld [vmem:[%s246 + $0x2f0] sm:$0xff]
        %v5532 = vld [vmem:[%s246 + $0x2f8] sm:$0xff]
        %v5533 = vld [vmem:[%s246 + $0x300] sm:$0xff]
        %v5534 = vld [vmem:[%s246 + $0x308] sm:$0xff]
        %v5535 = vld [vmem:[%s246 + $0x310] sm:$0xff]
        %v5536 = vld [vmem:[%s246 + $0x318] sm:$0xff]
        %v5537 = vld [vmem:[%s246 + $0x320] sm:$0xff]
        %v5538 = vld [vmem:[%s246 + $0x328] sm:$0xff]
        %v5539 = vld [vmem:[%s246 + $0x330] sm:$0xff]
        %v5540 = vld [vmem:[%s246 + $0x338] sm:$0xff]
        %v5541 = vld [vmem:[%s246 + $0x340] sm:$0xff]
        %v5542 = vld [vmem:[%s246 + $0x348] sm:$0xff]
        %v5543 = vld [vmem:[%s246 + $0x350] sm:$0xff]
        %v5544 = vld [vmem:[%s246 + $0x358] sm:$0xff]
        %v5545 = vpack.c.bf16 %v5455, %v5449
        %v5546 = vpack.c.bf16 %v5456, %v5450
        %v5547 = vpack.c.bf16 %v5457, %v5451
        %v5548 = vpack.c.bf16 %v5458, %v5452
        %v5549 = vpack.c.bf16 %v5459, %v5453
        %v5550 = vpack.c.bf16 %v5460, %v5454
        %v5551 = vpack.c.bf16 %v5467, %v5461
        %v5552 = vpack.c.bf16 %v5468, %v5462
        %v5553 = vpack.c.bf16 %v5469, %v5463
        %v5554 = vpack.c.bf16 %v5470, %v5464
        %v5555 = vpack.c.bf16 %v5471, %v5465
        %v5556 = vpack.c.bf16 %v5472, %v5466
        %v5557 = vpack.c.bf16 %v5479, %v5473
        %v5558 = vpack.c.bf16 %v5480, %v5474
        %v5559 = vpack.c.bf16 %v5481, %v5475
        %v5560 = vpack.c.bf16 %v5482, %v5476
        %v5561 = vpack.c.bf16 %v5483, %v5477
        %v5562 = vpack.c.bf16 %v5484, %v5478
        %v5563 = vpack.c.bf16 %v5491, %v5485
        %v5564 = vpack.c.bf16 %v5492, %v5486
        %v5565 = vpack.c.bf16 %v5493, %v5487
        %v5566 = vpack.c.bf16 %v5494, %v5488
        %v5567 = vpack.c.bf16 %v5495, %v5489
        %v5568 = vpack.c.bf16 %v5496, %v5490
        %v5569 = vpack.c.bf16 %v5503, %v5497
        %v5570 = vpack.c.bf16 %v5504, %v5498
        %v5571 = vpack.c.bf16 %v5505, %v5499
        %v5572 = vpack.c.bf16 %v5506, %v5500
        %v5573 = vpack.c.bf16 %v5507, %v5501
        %v5574 = vpack.c.bf16 %v5508, %v5502
        %v5575 = vpack.c.bf16 %v5515, %v5509
        %v5576 = vpack.c.bf16 %v5516, %v5510
        %v5577 = vpack.c.bf16 %v5517, %v5511
        %v5578 = vpack.c.bf16 %v5518, %v5512
        %v5579 = vpack.c.bf16 %v5519, %v5513
        %v5580 = vpack.c.bf16 %v5520, %v5514
        %v5581 = vpack.c.bf16 %v5527, %v5521
        %v5582 = vpack.c.bf16 %v5528, %v5522
        %v5583 = vpack.c.bf16 %v5529, %v5523
        %v5584 = vpack.c.bf16 %v5530, %v5524
        %v5585 = vpack.c.bf16 %v5531, %v5525
        %v5586 = vpack.c.bf16 %v5532, %v5526
        %v5587 = vpack.c.bf16 %v5539, %v5533
        %v5588 = vpack.c.bf16 %v5540, %v5534
        %v5589 = vpack.c.bf16 %v5541, %v5535
        %v5590 = vpack.c.bf16 %v5542, %v5536
        %v5591 = vpack.c.bf16 %v5543, %v5537
        %v5592 = vpack.c.bf16 %v5544, %v5538
        %s5593 = scalar_lea.vmem [#allocation9], 768
        %v5594 = vld [vmem:[%s5593] sm:$0xff]
        %v5595 = vld [vmem:[%s5593 + $0x8] sm:$0xff]
        %v5596 = vld [vmem:[%s5593 + $0x10] sm:$0xff]
        %v5597 = vld [vmem:[%s5593 + $0x18] sm:$0xff]
        %v5598 = vld [vmem:[%s5593 + $0x20] sm:$0xff]
        %v5599 = vld [vmem:[%s5593 + $0x28] sm:$0xff]
        %v5600 = vld [vmem:[%s5593 + $0x30] sm:$0xff]
        %v5601 = vld [vmem:[%s5593 + $0x38] sm:$0xff]
        %v5602 = vld [vmem:[%s5593 + $0x40] sm:$0xff]
        %v5603 = vld [vmem:[%s5593 + $0x48] sm:$0xff]
        %v5604 = vld [vmem:[%s5593 + $0x50] sm:$0xff]
        %v5605 = vld [vmem:[%s5593 + $0x58] sm:$0xff]
        %v5606 = vld [vmem:[%s5593 + $0x60] sm:$0xff]
        %v5607 = vld [vmem:[%s5593 + $0x68] sm:$0xff]
        %v5608 = vld [vmem:[%s5593 + $0x70] sm:$0xff]
        %v5609 = vld [vmem:[%s5593 + $0x78] sm:$0xff]
        %v5610 = vld [vmem:[%s5593 + $0x80] sm:$0xff]
        %v5611 = vld [vmem:[%s5593 + $0x88] sm:$0xff]
        %v5612 = vld [vmem:[%s5593 + $0x90] sm:$0xff]
        %v5613 = vld [vmem:[%s5593 + $0x98] sm:$0xff]
        %v5614 = vld [vmem:[%s5593 + $0xa0] sm:$0xff]
        %v5615 = vld [vmem:[%s5593 + $0xa8] sm:$0xff]
        %v5616 = vld [vmem:[%s5593 + $0xb0] sm:$0xff]
        %v5617 = vld [vmem:[%s5593 + $0xb8] sm:$0xff]
        %v5618 = vld [vmem:[%s5593 + $0xc0] sm:$0xff]
        %v5619 = vld [vmem:[%s5593 + $0xc8] sm:$0xff]
        %v5620 = vld [vmem:[%s5593 + $0xd0] sm:$0xff]
        %v5621 = vld [vmem:[%s5593 + $0xd8] sm:$0xff]
        %v5622 = vld [vmem:[%s5593 + $0xe0] sm:$0xff]
        %v5623 = vld [vmem:[%s5593 + $0xe8] sm:$0xff]
        %v5624 = vld [vmem:[%s5593 + $0xf0] sm:$0xff]
        %v5625 = vld [vmem:[%s5593 + $0xf8] sm:$0xff]
        %v5626 = vld [vmem:[%s5593 + $0x100] sm:$0xff]
        %v5627 = vld [vmem:[%s5593 + $0x108] sm:$0xff]
        %v5628 = vld [vmem:[%s5593 + $0x110] sm:$0xff]
        %v5629 = vld [vmem:[%s5593 + $0x118] sm:$0xff]
        %v5630 = vld [vmem:[%s5593 + $0x120] sm:$0xff]
        %v5631 = vld [vmem:[%s5593 + $0x128] sm:$0xff]
        %v5632 = vld [vmem:[%s5593 + $0x130] sm:$0xff]
        %v5633 = vld [vmem:[%s5593 + $0x138] sm:$0xff]
        %v5634 = vld [vmem:[%s5593 + $0x140] sm:$0xff]
        %v5635 = vld [vmem:[%s5593 + $0x148] sm:$0xff]
        %v5636 = vld [vmem:[%s5593 + $0x150] sm:$0xff]
        %v5637 = vld [vmem:[%s5593 + $0x158] sm:$0xff]
        %v5638 = vld [vmem:[%s5593 + $0x160] sm:$0xff]
        %v5639 = vld [vmem:[%s5593 + $0x168] sm:$0xff]
        %v5640 = vld [vmem:[%s5593 + $0x170] sm:$0xff]
        %v5641 = vld [vmem:[%s5593 + $0x178] sm:$0xff]
        %v5642 = vld [vmem:[%s5593 + $0x180] sm:$0xff]
        %v5643 = vld [vmem:[%s5593 + $0x188] sm:$0xff]
        %v5644 = vld [vmem:[%s5593 + $0x190] sm:$0xff]
        %v5645 = vld [vmem:[%s5593 + $0x198] sm:$0xff]
        %v5646 = vld [vmem:[%s5593 + $0x1a0] sm:$0xff]
        %v5647 = vld [vmem:[%s5593 + $0x1a8] sm:$0xff]
        %v5648 = vld [vmem:[%s5593 + $0x1b0] sm:$0xff]
        %v5649 = vld [vmem:[%s5593 + $0x1b8] sm:$0xff]
        %v5650 = vld [vmem:[%s5593 + $0x1c0] sm:$0xff]
        %v5651 = vld [vmem:[%s5593 + $0x1c8] sm:$0xff]
        %v5652 = vld [vmem:[%s5593 + $0x1d0] sm:$0xff]
        %v5653 = vld [vmem:[%s5593 + $0x1d8] sm:$0xff]
        %v5654 = vld [vmem:[%s5593 + $0x1e0] sm:$0xff]
        %v5655 = vld [vmem:[%s5593 + $0x1e8] sm:$0xff]
        %v5656 = vld [vmem:[%s5593 + $0x1f0] sm:$0xff]
        %v5657 = vld [vmem:[%s5593 + $0x1f8] sm:$0xff]
        %v5658 = vld [vmem:[%s5593 + $0x200] sm:$0xff]
        %v5659 = vld [vmem:[%s5593 + $0x208] sm:$0xff]
        %v5660 = vld [vmem:[%s5593 + $0x210] sm:$0xff]
        %v5661 = vld [vmem:[%s5593 + $0x218] sm:$0xff]
        %v5662 = vld [vmem:[%s5593 + $0x220] sm:$0xff]
        %v5663 = vld [vmem:[%s5593 + $0x228] sm:$0xff]
        %v5664 = vld [vmem:[%s5593 + $0x230] sm:$0xff]
        %v5665 = vld [vmem:[%s5593 + $0x238] sm:$0xff]
        %v5666 = vld [vmem:[%s5593 + $0x240] sm:$0xff]
        %v5667 = vld [vmem:[%s5593 + $0x248] sm:$0xff]
        %v5668 = vld [vmem:[%s5593 + $0x250] sm:$0xff]
        %v5669 = vld [vmem:[%s5593 + $0x258] sm:$0xff]
        %v5670 = vld [vmem:[%s5593 + $0x260] sm:$0xff]
        %v5671 = vld [vmem:[%s5593 + $0x268] sm:$0xff]
        %v5672 = vld [vmem:[%s5593 + $0x270] sm:$0xff]
        %v5673 = vld [vmem:[%s5593 + $0x278] sm:$0xff]
        %v5674 = vld [vmem:[%s5593 + $0x280] sm:$0xff]
        %v5675 = vld [vmem:[%s5593 + $0x288] sm:$0xff]
        %v5676 = vld [vmem:[%s5593 + $0x290] sm:$0xff]
        %v5677 = vld [vmem:[%s5593 + $0x298] sm:$0xff]
        %v5678 = vld [vmem:[%s5593 + $0x2a0] sm:$0xff]
        %v5679 = vld [vmem:[%s5593 + $0x2a8] sm:$0xff]
        %v5680 = vld [vmem:[%s5593 + $0x2b0] sm:$0xff]
        %v5681 = vld [vmem:[%s5593 + $0x2b8] sm:$0xff]
        %v5682 = vld [vmem:[%s5593 + $0x2c0] sm:$0xff]
        %v5683 = vld [vmem:[%s5593 + $0x2c8] sm:$0xff]
        %v5684 = vld [vmem:[%s5593 + $0x2d0] sm:$0xff]
        %v5685 = vld [vmem:[%s5593 + $0x2d8] sm:$0xff]
        %v5686 = vld [vmem:[%s5593 + $0x2e0] sm:$0xff]
        %v5687 = vld [vmem:[%s5593 + $0x2e8] sm:$0xff]
        %v5688 = vld [vmem:[%s5593 + $0x2f0] sm:$0xff]
        %v5689 = vld [vmem:[%s5593 + $0x2f8] sm:$0xff]
        %v5786 = vunpack.c.l.b16 %v5594
        %v5787 = vunpack.c.h.b16 %v5594
        %v5788 = vunpack.c.l.b16 %v5595
        %v5789 = vunpack.c.h.b16 %v5595
        %v5790 = vunpack.c.l.b16 %v5596
        %v5791 = vunpack.c.h.b16 %v5596
        %v5792 = vunpack.c.l.b16 %v5597
        %v5793 = vunpack.c.h.b16 %v5597
        %v5794 = vunpack.c.l.b16 %v5598
        %v5795 = vunpack.c.h.b16 %v5598
        %v5796 = vunpack.c.l.b16 %v5599
        %v5797 = vunpack.c.h.b16 %v5599
        %v5798 = vunpack.c.l.b16 %v5600
        %v5799 = vunpack.c.h.b16 %v5600
        %v5800 = vunpack.c.l.b16 %v5601
        %v5801 = vunpack.c.h.b16 %v5601
        %v5802 = vunpack.c.l.b16 %v5602
        %v5803 = vunpack.c.h.b16 %v5602
        %v5804 = vunpack.c.l.b16 %v5603
        %v5805 = vunpack.c.h.b16 %v5603
        %v5806 = vunpack.c.l.b16 %v5604
        %v5807 = vunpack.c.h.b16 %v5604
        %v5808 = vunpack.c.l.b16 %v5605
        %v5809 = vunpack.c.h.b16 %v5605
        %v5810 = vunpack.c.l.b16 %v5606
        %v5811 = vunpack.c.h.b16 %v5606
        %v5812 = vunpack.c.l.b16 %v5607
        %v5813 = vunpack.c.h.b16 %v5607
        %v5814 = vunpack.c.l.b16 %v5608
        %v5815 = vunpack.c.h.b16 %v5608
        %v5816 = vunpack.c.l.b16 %v5609
        %v5817 = vunpack.c.h.b16 %v5609
        %v5818 = vunpack.c.l.b16 %v5610
        %v5819 = vunpack.c.h.b16 %v5610
        %v5820 = vunpack.c.l.b16 %v5611
        %v5821 = vunpack.c.h.b16 %v5611
        %v5822 = vunpack.c.l.b16 %v5612
        %v5823 = vunpack.c.h.b16 %v5612
        %v5824 = vunpack.c.l.b16 %v5613
        %v5825 = vunpack.c.h.b16 %v5613
        %v5826 = vunpack.c.l.b16 %v5614
        %v5827 = vunpack.c.h.b16 %v5614
        %v5828 = vunpack.c.l.b16 %v5615
        %v5829 = vunpack.c.h.b16 %v5615
        %v5830 = vunpack.c.l.b16 %v5616
        %v5831 = vunpack.c.h.b16 %v5616
        %v5832 = vunpack.c.l.b16 %v5617
        %v5833 = vunpack.c.h.b16 %v5617
        %v5834 = vunpack.c.l.b16 %v5618
        %v5835 = vunpack.c.h.b16 %v5618
        %v5836 = vunpack.c.l.b16 %v5619
        %v5837 = vunpack.c.h.b16 %v5619
        %v5838 = vunpack.c.l.b16 %v5620
        %v5839 = vunpack.c.h.b16 %v5620
        %v5840 = vunpack.c.l.b16 %v5621
        %v5841 = vunpack.c.h.b16 %v5621
        %v5842 = vunpack.c.l.b16 %v5622
        %v5843 = vunpack.c.h.b16 %v5622
        %v5844 = vunpack.c.l.b16 %v5623
        %v5845 = vunpack.c.h.b16 %v5623
        %v5846 = vunpack.c.l.b16 %v5624
        %v5847 = vunpack.c.h.b16 %v5624
        %v5848 = vunpack.c.l.b16 %v5625
        %v5849 = vunpack.c.h.b16 %v5625
        %v5850 = vunpack.c.l.b16 %v5626
        %v5851 = vunpack.c.h.b16 %v5626
        %v5852 = vunpack.c.l.b16 %v5627
        %v5853 = vunpack.c.h.b16 %v5627
        %v5854 = vunpack.c.l.b16 %v5628
        %v5855 = vunpack.c.h.b16 %v5628
        %v5856 = vunpack.c.l.b16 %v5629
        %v5857 = vunpack.c.h.b16 %v5629
        %v5858 = vunpack.c.l.b16 %v5630
        %v5859 = vunpack.c.h.b16 %v5630
        %v5860 = vunpack.c.l.b16 %v5631
        %v5861 = vunpack.c.h.b16 %v5631
        %v5862 = vunpack.c.l.b16 %v5632
        %v5863 = vunpack.c.h.b16 %v5632
        %v5864 = vunpack.c.l.b16 %v5633
        %v5865 = vunpack.c.h.b16 %v5633
        %v5866 = vunpack.c.l.b16 %v5634
        %v5867 = vunpack.c.h.b16 %v5634
        %v5868 = vunpack.c.l.b16 %v5635
        %v5869 = vunpack.c.h.b16 %v5635
        %v5870 = vunpack.c.l.b16 %v5636
        %v5871 = vunpack.c.h.b16 %v5636
        %v5872 = vunpack.c.l.b16 %v5637
        %v5873 = vunpack.c.h.b16 %v5637
        %v5874 = vunpack.c.l.b16 %v5638
        %v5875 = vunpack.c.h.b16 %v5638
        %v5876 = vunpack.c.l.b16 %v5639
        %v5877 = vunpack.c.h.b16 %v5639
        %v5878 = vunpack.c.l.b16 %v5640
        %v5879 = vunpack.c.h.b16 %v5640
        %v5880 = vunpack.c.l.b16 %v5641
        %v5881 = vunpack.c.h.b16 %v5641
        %v5882 = vunpack.c.l.b16 %v5642
        %v5883 = vunpack.c.h.b16 %v5642
        %v5884 = vunpack.c.l.b16 %v5643
        %v5885 = vunpack.c.h.b16 %v5643
        %v5886 = vunpack.c.l.b16 %v5644
        %v5887 = vunpack.c.h.b16 %v5644
        %v5888 = vunpack.c.l.b16 %v5645
        %v5889 = vunpack.c.h.b16 %v5645
        %v5890 = vunpack.c.l.b16 %v5646
        %v5891 = vunpack.c.h.b16 %v5646
        %v5892 = vunpack.c.l.b16 %v5647
        %v5893 = vunpack.c.h.b16 %v5647
        %v5894 = vunpack.c.l.b16 %v5648
        %v5895 = vunpack.c.h.b16 %v5648
        %v5896 = vunpack.c.l.b16 %v5649
        %v5897 = vunpack.c.h.b16 %v5649
        %v5898 = vunpack.c.l.b16 %v5650
        %v5899 = vunpack.c.h.b16 %v5650
        %v5900 = vunpack.c.l.b16 %v5651
        %v5901 = vunpack.c.h.b16 %v5651
        %v5902 = vunpack.c.l.b16 %v5652
        %v5903 = vunpack.c.h.b16 %v5652
        %v5904 = vunpack.c.l.b16 %v5653
        %v5905 = vunpack.c.h.b16 %v5653
        %v5906 = vunpack.c.l.b16 %v5654
        %v5907 = vunpack.c.h.b16 %v5654
        %v5908 = vunpack.c.l.b16 %v5655
        %v5909 = vunpack.c.h.b16 %v5655
        %v5910 = vunpack.c.l.b16 %v5656
        %v5911 = vunpack.c.h.b16 %v5656
        %v5912 = vunpack.c.l.b16 %v5657
        %v5913 = vunpack.c.h.b16 %v5657
        %v5914 = vunpack.c.l.b16 %v5658
        %v5915 = vunpack.c.h.b16 %v5658
        %v5916 = vunpack.c.l.b16 %v5659
        %v5917 = vunpack.c.h.b16 %v5659
        %v5918 = vunpack.c.l.b16 %v5660
        %v5919 = vunpack.c.h.b16 %v5660
        %v5920 = vunpack.c.l.b16 %v5661
        %v5921 = vunpack.c.h.b16 %v5661
        %v5922 = vunpack.c.l.b16 %v5662
        %v5923 = vunpack.c.h.b16 %v5662
        %v5924 = vunpack.c.l.b16 %v5663
        %v5925 = vunpack.c.h.b16 %v5663
        %v5926 = vunpack.c.l.b16 %v5664
        %v5927 = vunpack.c.h.b16 %v5664
        %v5928 = vunpack.c.l.b16 %v5665
        %v5929 = vunpack.c.h.b16 %v5665
        %v5930 = vunpack.c.l.b16 %v5666
        %v5931 = vunpack.c.h.b16 %v5666
        %v5932 = vunpack.c.l.b16 %v5667
        %v5933 = vunpack.c.h.b16 %v5667
        %v5934 = vunpack.c.l.b16 %v5668
        %v5935 = vunpack.c.h.b16 %v5668
        %v5936 = vunpack.c.l.b16 %v5669
        %v5937 = vunpack.c.h.b16 %v5669
        %v5938 = vunpack.c.l.b16 %v5670
        %v5939 = vunpack.c.h.b16 %v5670
        %v5940 = vunpack.c.l.b16 %v5671
        %v5941 = vunpack.c.h.b16 %v5671
        %v5942 = vunpack.c.l.b16 %v5672
        %v5943 = vunpack.c.h.b16 %v5672
        %v5944 = vunpack.c.l.b16 %v5673
        %v5945 = vunpack.c.h.b16 %v5673
        %v5946 = vunpack.c.l.b16 %v5674
        %v5947 = vunpack.c.h.b16 %v5674
        %v5948 = vunpack.c.l.b16 %v5675
        %v5949 = vunpack.c.h.b16 %v5675
        %v5950 = vunpack.c.l.b16 %v5676
        %v5951 = vunpack.c.h.b16 %v5676
        %v5952 = vunpack.c.l.b16 %v5677
        %v5953 = vunpack.c.h.b16 %v5677
        %v5954 = vunpack.c.l.b16 %v5678
        %v5955 = vunpack.c.h.b16 %v5678
        %v5956 = vunpack.c.l.b16 %v5679
        %v5957 = vunpack.c.h.b16 %v5679
        %v5958 = vunpack.c.l.b16 %v5680
        %v5959 = vunpack.c.h.b16 %v5680
        %v5960 = vunpack.c.l.b16 %v5681
        %v5961 = vunpack.c.h.b16 %v5681
        %v5962 = vunpack.c.l.b16 %v5682
        %v5963 = vunpack.c.h.b16 %v5682
        %v5964 = vunpack.c.l.b16 %v5683
        %v5965 = vunpack.c.h.b16 %v5683
        %v5966 = vunpack.c.l.b16 %v5684
        %v5967 = vunpack.c.h.b16 %v5684
        %v5968 = vunpack.c.l.b16 %v5685
        %v5969 = vunpack.c.h.b16 %v5685
        %v5970 = vunpack.c.l.b16 %v5686
        %v5971 = vunpack.c.h.b16 %v5686
        %v5972 = vunpack.c.l.b16 %v5687
        %v5973 = vunpack.c.h.b16 %v5687
        %v5974 = vunpack.c.l.b16 %v5688
        %v5975 = vunpack.c.h.b16 %v5688
        %v5976 = vunpack.c.l.b16 %v5689
        %v5977 = vunpack.c.h.b16 %v5689
        %v5978 = vpack.c.b16 %v5788, %v5786
        %v5979 = vpack.c.b16 %v5789, %v5787
        %v5980 = vpack.c.b16 %v5792, %v5790
        %v5981 = vpack.c.b16 %v5793, %v5791
        %v5982 = vpack.c.b16 %v5796, %v5794
        %v5983 = vpack.c.b16 %v5797, %v5795
        %v5984 = vpack.c.b16 %v5800, %v5798
        %v5985 = vpack.c.b16 %v5801, %v5799
        %v5986 = vpack.c.b16 %v5804, %v5802
        %v5987 = vpack.c.b16 %v5805, %v5803
        %v5988 = vpack.c.b16 %v5808, %v5806
        %v5989 = vpack.c.b16 %v5809, %v5807
        %v5990 = vpack.c.b16 %v5812, %v5810
        %v5991 = vpack.c.b16 %v5813, %v5811
        %v5992 = vpack.c.b16 %v5816, %v5814
        %v5993 = vpack.c.b16 %v5817, %v5815
        %v5994 = vpack.c.b16 %v5820, %v5818
        %v5995 = vpack.c.b16 %v5821, %v5819
        %v5996 = vpack.c.b16 %v5824, %v5822
        %v5997 = vpack.c.b16 %v5825, %v5823
        %v5998 = vpack.c.b16 %v5828, %v5826
        %v5999 = vpack.c.b16 %v5829, %v5827
        %v6000 = vpack.c.b16 %v5832, %v5830
        %v6001 = vpack.c.b16 %v5833, %v5831
        %v6002 = vpack.c.b16 %v5836, %v5834
        %v6003 = vpack.c.b16 %v5837, %v5835
        %v6004 = vpack.c.b16 %v5840, %v5838
        %v6005 = vpack.c.b16 %v5841, %v5839
        %v6006 = vpack.c.b16 %v5844, %v5842
        %v6007 = vpack.c.b16 %v5845, %v5843
        %v6008 = vpack.c.b16 %v5848, %v5846
        %v6009 = vpack.c.b16 %v5849, %v5847
        %v6010 = vpack.c.b16 %v5852, %v5850
        %v6011 = vpack.c.b16 %v5853, %v5851
        %v6012 = vpack.c.b16 %v5856, %v5854
        %v6013 = vpack.c.b16 %v5857, %v5855
        %v6014 = vpack.c.b16 %v5860, %v5858
        %v6015 = vpack.c.b16 %v5861, %v5859
        %v6016 = vpack.c.b16 %v5864, %v5862
        %v6017 = vpack.c.b16 %v5865, %v5863
        %v6018 = vpack.c.b16 %v5868, %v5866
        %v6019 = vpack.c.b16 %v5869, %v5867
        %v6020 = vpack.c.b16 %v5872, %v5870
        %v6021 = vpack.c.b16 %v5873, %v5871
        %v6022 = vpack.c.b16 %v5876, %v5874
        %v6023 = vpack.c.b16 %v5877, %v5875
        %v6024 = vpack.c.b16 %v5880, %v5878
        %v6025 = vpack.c.b16 %v5881, %v5879
        %v6026 = vpack.c.b16 %v5884, %v5882
        %v6027 = vpack.c.b16 %v5885, %v5883
        %v6028 = vpack.c.b16 %v5888, %v5886
        %v6029 = vpack.c.b16 %v5889, %v5887
        %v6030 = vpack.c.b16 %v5892, %v5890
        %v6031 = vpack.c.b16 %v5893, %v5891
        %v6032 = vpack.c.b16 %v5896, %v5894
        %v6033 = vpack.c.b16 %v5897, %v5895
        %v6034 = vpack.c.b16 %v5900, %v5898
        %v6035 = vpack.c.b16 %v5901, %v5899
        %v6036 = vpack.c.b16 %v5904, %v5902
        %v6037 = vpack.c.b16 %v5905, %v5903
        %v6038 = vpack.c.b16 %v5908, %v5906
        %v6039 = vpack.c.b16 %v5909, %v5907
        %v6040 = vpack.c.b16 %v5912, %v5910
        %v6041 = vpack.c.b16 %v5913, %v5911
        %v6042 = vpack.c.b16 %v5916, %v5914
        %v6043 = vpack.c.b16 %v5917, %v5915
        %v6044 = vpack.c.b16 %v5920, %v5918
        %v6045 = vpack.c.b16 %v5921, %v5919
        %v6046 = vpack.c.b16 %v5924, %v5922
        %v6047 = vpack.c.b16 %v5925, %v5923
        %v6048 = vpack.c.b16 %v5928, %v5926
        %v6049 = vpack.c.b16 %v5929, %v5927
        %v6050 = vpack.c.b16 %v5932, %v5930
        %v6051 = vpack.c.b16 %v5933, %v5931
        %v6052 = vpack.c.b16 %v5936, %v5934
        %v6053 = vpack.c.b16 %v5937, %v5935
        %v6054 = vpack.c.b16 %v5940, %v5938
        %v6055 = vpack.c.b16 %v5941, %v5939
        %v6056 = vpack.c.b16 %v5944, %v5942
        %v6057 = vpack.c.b16 %v5945, %v5943
        %v6058 = vpack.c.b16 %v5948, %v5946
        %v6059 = vpack.c.b16 %v5949, %v5947
        %v6060 = vpack.c.b16 %v5952, %v5950
        %v6061 = vpack.c.b16 %v5953, %v5951
        %v6062 = vpack.c.b16 %v5956, %v5954
        %v6063 = vpack.c.b16 %v5957, %v5955
        %v6064 = vpack.c.b16 %v5960, %v5958
        %v6065 = vpack.c.b16 %v5961, %v5959
        %v6066 = vpack.c.b16 %v5964, %v5962
        %v6067 = vpack.c.b16 %v5965, %v5963
        %v6068 = vpack.c.b16 %v5968, %v5966
        %v6069 = vpack.c.b16 %v5969, %v5967
        %v6070 = vpack.c.b16 %v5972, %v5970
        %v6071 = vpack.c.b16 %v5973, %v5971
        %v6072 = vpack.c.b16 %v5976, %v5974
        %v6073 = vpack.c.b16 %v5977, %v5975
        %6170 = vmatprep.subr.bf16.mxu0 %v5993
        %6171 = vmatpush1.bf16.msra.mxu0 %v5992
        %6172 = vmatprep.subr.bf16.mxu0 %v5991
        %6173 = vmatpush1.bf16.msra.mxu0 %v5990
        %6174 = vmatprep.subr.bf16.mxu0 %v5989
        %6175 = vmatpush1.bf16.msra.mxu0 %v5988
        %6176 = vmatprep.subr.bf16.mxu0 %v5987
        %6177 = vmatpush1.bf16.msra.mxu0 %v5986
        %6178 = vmatprep.subr.bf16.mxu0 %v5985
        %6179 = vmatpush1.bf16.msra.mxu0 %v5984
        %6180 = vmatprep.subr.bf16.mxu0 %v5983
        %6181 = vmatpush1.bf16.msra.mxu0 %v5982
        %6182 = vmatprep.subr.bf16.mxu0 %v5981
        %6183 = vmatpush1.bf16.msra.mxu0 %v5980
        %6184 = vmatprep.subr.bf16.mxu0 %v5979
        %6185 = vmatpush1.bf16.msra.mxu0 %v5978
        %6186 = vmatprep.subr.bf16.mxu0 %v6009
        %6187 = vmatpush2.bf16.msra.mxu0 %v6008
        %6188 = vmatprep.subr.bf16.mxu0 %v6007
        %6189 = vmatpush2.bf16.msra.mxu0 %v6006
        %6190 = vmatprep.subr.bf16.mxu0 %v6005
        %6191 = vmatpush2.bf16.msra.mxu0 %v6004
        %6192 = vmatprep.subr.bf16.mxu0 %v6003
        %6193 = vmatpush2.bf16.msra.mxu0 %v6002
        %6194 = vmatprep.subr.bf16.mxu0 %v6001
        %6195 = vmatpush2.bf16.msra.mxu0 %v6000
        %6196 = vmatprep.subr.bf16.mxu0 %v5999
        %6197 = vmatpush2.bf16.msra.mxu0 %v5998
        %6198 = vmatprep.subr.bf16.mxu0 %v5997
        %6199 = vmatpush2.bf16.msra.mxu0 %v5996
        %6200 = vmatprep.subr.bf16.mxu0 %v5995
        %6201 = vmatpush2.bf16.msra.mxu0 %v5994
        %6202 = vmatprep.mubr.bf16.mxu0 %v5546
        %6203 = vmatmul.mubr.bf16.gmra.mxu0 %v5545
        %v6204 = vpop.f32.mrf.mxu0
        %v6205 = vadd.f32 0.0, %v6204
        %v6206 = vpop.f32.mrf.mxu0
        %v6207 = vadd.f32 0.0, %v6206
        %v6208 = vpop.f32.mrf.mxu0
        %v6209 = vadd.f32 0.0, %v6208
        %v6210 = vpop.f32.mrf.mxu0
        %v6211 = vadd.f32 0.0, %v6210
        %6212 = vmatprep.mubr.bf16.mxu0 %v5552
        %6213 = vmatmul.mubr.bf16.gmra.mxu0 %v5551
        %v6214 = vpop.f32.mrf.mxu0
        %v6215 = vadd.f32 0.0, %v6214
        %v6216 = vpop.f32.mrf.mxu0
        %v6217 = vadd.f32 0.0, %v6216
        %v6218 = vpop.f32.mrf.mxu0
        %v6219 = vadd.f32 0.0, %v6218
        %v6220 = vpop.f32.mrf.mxu0
        %v6221 = vadd.f32 0.0, %v6220
        %6222 = vmatprep.mubr.bf16.mxu0 %v5558
        %6223 = vmatmul.mubr.bf16.gmra.mxu0 %v5557
        %v6224 = vpop.f32.mrf.mxu0
        %v6225 = vadd.f32 0.0, %v6224
        %v6226 = vpop.f32.mrf.mxu0
        %v6227 = vadd.f32 0.0, %v6226
        %v6228 = vpop.f32.mrf.mxu0
        %v6229 = vadd.f32 0.0, %v6228
        %v6230 = vpop.f32.mrf.mxu0
        %v6231 = vadd.f32 0.0, %v6230
        %6232 = vmatprep.mubr.bf16.mxu0 %v5564
        %6233 = vmatmul.mubr.bf16.gmra.mxu0 %v5563
        %v6234 = vpop.f32.mrf.mxu0
        %v6235 = vadd.f32 0.0, %v6234
        %v6236 = vpop.f32.mrf.mxu0
        %v6237 = vadd.f32 0.0, %v6236
        %v6238 = vpop.f32.mrf.mxu0
        %v6239 = vadd.f32 0.0, %v6238
        %v6240 = vpop.f32.mrf.mxu0
        %v6241 = vadd.f32 0.0, %v6240
        %6242 = vmatprep.mubr.bf16.mxu0 %v5570
        %6243 = vmatmul.mubr.bf16.gmra.mxu0 %v5569
        %v6244 = vpop.f32.mrf.mxu0
        %v6245 = vadd.f32 0.0, %v6244
        %v6246 = vpop.f32.mrf.mxu0
        %v6247 = vadd.f32 0.0, %v6246
        %v6248 = vpop.f32.mrf.mxu0
        %v6249 = vadd.f32 0.0, %v6248
        %v6250 = vpop.f32.mrf.mxu0
        %v6251 = vadd.f32 0.0, %v6250
        %6252 = vmatprep.mubr.bf16.mxu0 %v5576
        %6253 = vmatmul.mubr.bf16.gmra.mxu0 %v5575
        %v6254 = vpop.f32.mrf.mxu0
        %v6255 = vadd.f32 0.0, %v6254
        %v6256 = vpop.f32.mrf.mxu0
        %v6257 = vadd.f32 0.0, %v6256
        %v6258 = vpop.f32.mrf.mxu0
        %v6259 = vadd.f32 0.0, %v6258
        %v6260 = vpop.f32.mrf.mxu0
        %v6261 = vadd.f32 0.0, %v6260
        %6262 = vmatprep.mubr.bf16.mxu0 %v5582
        %6263 = vmatmul.mubr.bf16.gmra.mxu0 %v5581
        %v6264 = vpop.f32.mrf.mxu0
        %v6265 = vadd.f32 0.0, %v6264
        %v6266 = vpop.f32.mrf.mxu0
        %v6267 = vadd.f32 0.0, %v6266
        %v6268 = vpop.f32.mrf.mxu0
        %v6269 = vadd.f32 0.0, %v6268
        %v6270 = vpop.f32.mrf.mxu0
        %v6271 = vadd.f32 0.0, %v6270
        %6272 = vmatprep.mubr.bf16.mxu0 %v5588
        %6273 = vmatmul.mubr.bf16.gmra.mxu0 %v5587
        %v6274 = vpop.f32.mrf.mxu0
        %v6275 = vadd.f32 0.0, %v6274
        %v6276 = vpop.f32.mrf.mxu0
        %v6277 = vadd.f32 0.0, %v6276
        %v6278 = vpop.f32.mrf.mxu0
        %v6279 = vadd.f32 0.0, %v6278
        %v6280 = vpop.f32.mrf.mxu0
        %v6281 = vadd.f32 0.0, %v6280
        %6282 = vdwg.mxu0
        %6283 = vmatprep.subr.bf16.mxu0 %v6025
        %6284 = vmatpush1.bf16.msra.mxu0 %v6024
        %6285 = vmatprep.subr.bf16.mxu0 %v6023
        %6286 = vmatpush1.bf16.msra.mxu0 %v6022
        %6287 = vmatprep.subr.bf16.mxu0 %v6021
        %6288 = vmatpush1.bf16.msra.mxu0 %v6020
        %6289 = vmatprep.subr.bf16.mxu0 %v6019
        %6290 = vmatpush1.bf16.msra.mxu0 %v6018
        %6291 = vmatprep.subr.bf16.mxu0 %v6017
        %6292 = vmatpush1.bf16.msra.mxu0 %v6016
        %6293 = vmatprep.subr.bf16.mxu0 %v6015
        %6294 = vmatpush1.bf16.msra.mxu0 %v6014
        %6295 = vmatprep.subr.bf16.mxu0 %v6013
        %6296 = vmatpush1.bf16.msra.mxu0 %v6012
        %6297 = vmatprep.subr.bf16.mxu0 %v6011
        %6298 = vmatpush1.bf16.msra.mxu0 %v6010
        %6299 = vmatprep.subr.bf16.mxu0 %v6041
        %6300 = vmatpush2.bf16.msra.mxu0 %v6040
        %6301 = vmatprep.subr.bf16.mxu0 %v6039
        %6302 = vmatpush2.bf16.msra.mxu0 %v6038
        %6303 = vmatprep.subr.bf16.mxu0 %v6037
        %6304 = vmatpush2.bf16.msra.mxu0 %v6036
        %6305 = vmatprep.subr.bf16.mxu0 %v6035
        %6306 = vmatpush2.bf16.msra.mxu0 %v6034
        %6307 = vmatprep.subr.bf16.mxu0 %v6033
        %6308 = vmatpush2.bf16.msra.mxu0 %v6032
        %6309 = vmatprep.subr.bf16.mxu0 %v6031
        %6310 = vmatpush2.bf16.msra.mxu0 %v6030
        %6311 = vmatprep.subr.bf16.mxu0 %v6029
        %6312 = vmatpush2.bf16.msra.mxu0 %v6028
        %6313 = vmatprep.subr.bf16.mxu0 %v6027
        %6314 = vmatpush2.bf16.msra.mxu0 %v6026
        %6315 = vmatprep.mubr.bf16.mxu0 %v5548
        %6316 = vmatmul.mubr.bf16.gmra.mxu0 %v5547
        %v6317 = vpop.f32.mrf.mxu0
        %v6318 = vadd.f32 %v6205, %v6317
        %v6319 = vpop.f32.mrf.mxu0
        %v6320 = vadd.f32 %v6207, %v6319
        %v6321 = vpop.f32.mrf.mxu0
        %v6322 = vadd.f32 %v6209, %v6321
        %v6323 = vpop.f32.mrf.mxu0
        %v6324 = vadd.f32 %v6211, %v6323
        %6325 = vmatprep.mubr.bf16.mxu0 %v5554
        %6326 = vmatmul.mubr.bf16.gmra.mxu0 %v5553
        %v6327 = vpop.f32.mrf.mxu0
        %v6328 = vadd.f32 %v6215, %v6327
        %v6329 = vpop.f32.mrf.mxu0
        %v6330 = vadd.f32 %v6217, %v6329
        %v6331 = vpop.f32.mrf.mxu0
        %v6332 = vadd.f32 %v6219, %v6331
        %v6333 = vpop.f32.mrf.mxu0
        %v6334 = vadd.f32 %v6221, %v6333
        %6335 = vmatprep.mubr.bf16.mxu0 %v5560
        %6336 = vmatmul.mubr.bf16.gmra.mxu0 %v5559
        %v6337 = vpop.f32.mrf.mxu0
        %v6338 = vadd.f32 %v6225, %v6337
        %v6339 = vpop.f32.mrf.mxu0
        %v6340 = vadd.f32 %v6227, %v6339
        %v6341 = vpop.f32.mrf.mxu0
        %v6342 = vadd.f32 %v6229, %v6341
        %v6343 = vpop.f32.mrf.mxu0
        %v6344 = vadd.f32 %v6231, %v6343
        %6345 = vmatprep.mubr.bf16.mxu0 %v5566
        %6346 = vmatmul.mubr.bf16.gmra.mxu0 %v5565
        %v6347 = vpop.f32.mrf.mxu0
        %v6348 = vadd.f32 %v6235, %v6347
        %v6349 = vpop.f32.mrf.mxu0
        %v6350 = vadd.f32 %v6237, %v6349
        %v6351 = vpop.f32.mrf.mxu0
        %v6352 = vadd.f32 %v6239, %v6351
        %v6353 = vpop.f32.mrf.mxu0
        %v6354 = vadd.f32 %v6241, %v6353
        %6355 = vmatprep.mubr.bf16.mxu0 %v5572
        %6356 = vmatmul.mubr.bf16.gmra.mxu0 %v5571
        %v6357 = vpop.f32.mrf.mxu0
        %v6358 = vadd.f32 %v6245, %v6357
        %v6359 = vpop.f32.mrf.mxu0
        %v6360 = vadd.f32 %v6247, %v6359
        %v6361 = vpop.f32.mrf.mxu0
        %v6362 = vadd.f32 %v6249, %v6361
        %v6363 = vpop.f32.mrf.mxu0
        %v6364 = vadd.f32 %v6251, %v6363
        %6365 = vmatprep.mubr.bf16.mxu0 %v5578
        %6366 = vmatmul.mubr.bf16.gmra.mxu0 %v5577
        %v6367 = vpop.f32.mrf.mxu0
        %v6368 = vadd.f32 %v6255, %v6367
        %v6369 = vpop.f32.mrf.mxu0
        %v6370 = vadd.f32 %v6257, %v6369
        %v6371 = vpop.f32.mrf.mxu0
        %v6372 = vadd.f32 %v6259, %v6371
        %v6373 = vpop.f32.mrf.mxu0
        %v6374 = vadd.f32 %v6261, %v6373
        %6375 = vmatprep.mubr.bf16.mxu0 %v5584
        %6376 = vmatmul.mubr.bf16.gmra.mxu0 %v5583
        %v6377 = vpop.f32.mrf.mxu0
        %v6378 = vadd.f32 %v6265, %v6377
        %v6379 = vpop.f32.mrf.mxu0
        %v6380 = vadd.f32 %v6267, %v6379
        %v6381 = vpop.f32.mrf.mxu0
        %v6382 = vadd.f32 %v6269, %v6381
        %v6383 = vpop.f32.mrf.mxu0
        %v6384 = vadd.f32 %v6271, %v6383
        %6385 = vmatprep.mubr.bf16.mxu0 %v5590
        %6386 = vmatmul.mubr.bf16.gmra.mxu0 %v5589
        %v6387 = vpop.f32.mrf.mxu0
        %v6388 = vadd.f32 %v6275, %v6387
        %v6389 = vpop.f32.mrf.mxu0
        %v6390 = vadd.f32 %v6277, %v6389
        %v6391 = vpop.f32.mrf.mxu0
        %v6392 = vadd.f32 %v6279, %v6391
        %v6393 = vpop.f32.mrf.mxu0
        %v6394 = vadd.f32 %v6281, %v6393
        %6395 = vdwg.mxu0
        %6396 = vmatprep.subr.bf16.mxu0 %v6057
        %6397 = vmatpush1.bf16.msra.mxu0 %v6056
        %6398 = vmatprep.subr.bf16.mxu0 %v6055
        %6399 = vmatpush1.bf16.msra.mxu0 %v6054
        %6400 = vmatprep.subr.bf16.mxu0 %v6053
        %6401 = vmatpush1.bf16.msra.mxu0 %v6052
        %6402 = vmatprep.subr.bf16.mxu0 %v6051
        %6403 = vmatpush1.bf16.msra.mxu0 %v6050
        %6404 = vmatprep.subr.bf16.mxu0 %v6049
        %6405 = vmatpush1.bf16.msra.mxu0 %v6048
        %6406 = vmatprep.subr.bf16.mxu0 %v6047
        %6407 = vmatpush1.bf16.msra.mxu0 %v6046
        %6408 = vmatprep.subr.bf16.mxu0 %v6045
        %6409 = vmatpush1.bf16.msra.mxu0 %v6044
        %6410 = vmatprep.subr.bf16.mxu0 %v6043
        %6411 = vmatpush1.bf16.msra.mxu0 %v6042
        %6412 = vmatprep.subr.bf16.mxu0 %v6073
        %6413 = vmatpush2.bf16.msra.mxu0 %v6072
        %6414 = vmatprep.subr.bf16.mxu0 %v6071
        %6415 = vmatpush2.bf16.msra.mxu0 %v6070
        %6416 = vmatprep.subr.bf16.mxu0 %v6069
        %6417 = vmatpush2.bf16.msra.mxu0 %v6068
        %6418 = vmatprep.subr.bf16.mxu0 %v6067
        %6419 = vmatpush2.bf16.msra.mxu0 %v6066
        %6420 = vmatprep.subr.bf16.mxu0 %v6065
        %6421 = vmatpush2.bf16.msra.mxu0 %v6064
        %6422 = vmatprep.subr.bf16.mxu0 %v6063
        %6423 = vmatpush2.bf16.msra.mxu0 %v6062
        %6424 = vmatprep.subr.bf16.mxu0 %v6061
        %6425 = vmatpush2.bf16.msra.mxu0 %v6060
        %6426 = vmatprep.subr.bf16.mxu0 %v6059
        %6427 = vmatpush2.bf16.msra.mxu0 %v6058
        %6428 = vmatprep.mubr.bf16.mxu0 %v5550
        %6429 = vmatmul.mubr.bf16.gmra.mxu0 %v5549
        %v6430 = vpop.f32.mrf.mxu0
        %v6431 = vadd.f32 %v6318, %v6430
        %v6432 = vpop.f32.mrf.mxu0
        %v6433 = vadd.f32 %v6320, %v6432
        %v6434 = vpop.f32.mrf.mxu0
        %v6435 = vadd.f32 %v6322, %v6434
        %v6436 = vpop.f32.mrf.mxu0
        %v6437 = vadd.f32 %v6324, %v6436
        %6438 = vmatprep.mubr.bf16.mxu0 %v5556
        %6439 = vmatmul.mubr.bf16.gmra.mxu0 %v5555
        %v6440 = vpop.f32.mrf.mxu0
        %v6441 = vadd.f32 %v6328, %v6440
        %v6442 = vpop.f32.mrf.mxu0
        %v6443 = vadd.f32 %v6330, %v6442
        %v6444 = vpop.f32.mrf.mxu0
        %v6445 = vadd.f32 %v6332, %v6444
        %v6446 = vpop.f32.mrf.mxu0
        %v6447 = vadd.f32 %v6334, %v6446
        %6448 = vmatprep.mubr.bf16.mxu0 %v5562
        %6449 = vmatmul.mubr.bf16.gmra.mxu0 %v5561
        %v6450 = vpop.f32.mrf.mxu0
        %v6451 = vadd.f32 %v6338, %v6450
        %v6452 = vpop.f32.mrf.mxu0
        %v6453 = vadd.f32 %v6340, %v6452
        %v6454 = vpop.f32.mrf.mxu0
        %v6455 = vadd.f32 %v6342, %v6454
        %v6456 = vpop.f32.mrf.mxu0
        %v6457 = vadd.f32 %v6344, %v6456
        %6458 = vmatprep.mubr.bf16.mxu0 %v5568
        %6459 = vmatmul.mubr.bf16.gmra.mxu0 %v5567
        %v6460 = vpop.f32.mrf.mxu0
        %v6461 = vadd.f32 %v6348, %v6460
        %v6462 = vpop.f32.mrf.mxu0
        %v6463 = vadd.f32 %v6350, %v6462
        %v6464 = vpop.f32.mrf.mxu0
        %v6465 = vadd.f32 %v6352, %v6464
        %v6466 = vpop.f32.mrf.mxu0
        %v6467 = vadd.f32 %v6354, %v6466
        %6468 = vmatprep.mubr.bf16.mxu0 %v5574
        %6469 = vmatmul.mubr.bf16.gmra.mxu0 %v5573
        %v6470 = vpop.f32.mrf.mxu0
        %v6471 = vadd.f32 %v6358, %v6470
        %v6472 = vpop.f32.mrf.mxu0
        %v6473 = vadd.f32 %v6360, %v6472
        %v6474 = vpop.f32.mrf.mxu0
        %v6475 = vadd.f32 %v6362, %v6474
        %v6476 = vpop.f32.mrf.mxu0
        %v6477 = vadd.f32 %v6364, %v6476
        %6478 = vmatprep.mubr.bf16.mxu0 %v5580
        %6479 = vmatmul.mubr.bf16.gmra.mxu0 %v5579
        %v6480 = vpop.f32.mrf.mxu0
        %v6481 = vadd.f32 %v6368, %v6480
        %v6482 = vpop.f32.mrf.mxu0
        %v6483 = vadd.f32 %v6370, %v6482
        %v6484 = vpop.f32.mrf.mxu0
        %v6485 = vadd.f32 %v6372, %v6484
        %v6486 = vpop.f32.mrf.mxu0
        %v6487 = vadd.f32 %v6374, %v6486
        %6488 = vmatprep.mubr.bf16.mxu0 %v5586
        %6489 = vmatmul.mubr.bf16.gmra.mxu0 %v5585
        %v6490 = vpop.f32.mrf.mxu0
        %v6491 = vadd.f32 %v6378, %v6490
        %v6492 = vpop.f32.mrf.mxu0
        %v6493 = vadd.f32 %v6380, %v6492
        %v6494 = vpop.f32.mrf.mxu0
        %v6495 = vadd.f32 %v6382, %v6494
        %v6496 = vpop.f32.mrf.mxu0
        %v6497 = vadd.f32 %v6384, %v6496
        %6498 = vmatprep.mubr.bf16.mxu0 %v5592
        %6499 = vmatmul.mubr.bf16.gmra.mxu0 %v5591
        %v6500 = vpop.f32.mrf.mxu0
        %v6501 = vadd.f32 %v6388, %v6500
        %v6502 = vpop.f32.mrf.mxu0
        %v6503 = vadd.f32 %v6390, %v6502
        %v6504 = vpop.f32.mrf.mxu0
        %v6505 = vadd.f32 %v6392, %v6504
        %v6506 = vpop.f32.mrf.mxu0
        %v6507 = vadd.f32 %v6394, %v6506
        %6508 = vdwg.mxu0
        %v6509 = vld [vmem:[#allocation3] sm:$0xff]
        %v6510 = vld [vmem:[#allocation3 + $0x8] sm:$0xff]
        %v6511 = vld [vmem:[#allocation3 + $0x10] sm:$0xff]
        %v6512 = vld [vmem:[#allocation3 + $0x18] sm:$0xff]
        %v6513 = vld [vmem:[#allocation3 + $0x20] sm:$0xff]
        %v6514 = vld [vmem:[#allocation3 + $0x28] sm:$0xff]
        %v6515 = vld [vmem:[#allocation3 + $0x30] sm:$0xff]
        %v6516 = vld [vmem:[#allocation3 + $0x38] sm:$0xff]
        %v6517 = vld [vmem:[#allocation3 + $0x40] sm:$0xff]
        %v6518 = vld [vmem:[#allocation3 + $0x48] sm:$0xff]
        %v6519 = vld [vmem:[#allocation3 + $0x50] sm:$0xff]
        %v6520 = vld [vmem:[#allocation3 + $0x58] sm:$0xff]
        %v6521 = vld [vmem:[#allocation3 + $0x60] sm:$0xff]
        %v6522 = vld [vmem:[#allocation3 + $0x68] sm:$0xff]
        %v6523 = vld [vmem:[#allocation3 + $0x70] sm:$0xff]
        %v6524 = vld [vmem:[#allocation3 + $0x78] sm:$0xff]
        %v6525 = vld [vmem:[#allocation3 + $0x80] sm:$0xff]
        %v6526 = vld [vmem:[#allocation3 + $0x88] sm:$0xff]
        %v6527 = vld [vmem:[#allocation3 + $0x90] sm:$0xff]
        %v6528 = vld [vmem:[#allocation3 + $0x98] sm:$0xff]
        %v6529 = vld [vmem:[#allocation3 + $0xa0] sm:$0xff]
        %v6530 = vld [vmem:[#allocation3 + $0xa8] sm:$0xff]
        %v6531 = vld [vmem:[#allocation3 + $0xb0] sm:$0xff]
        %v6532 = vld [vmem:[#allocation3 + $0xb8] sm:$0xff]
        %v6533 = vld [vmem:[#allocation3 + $0xc0] sm:$0xff]
        %v6534 = vld [vmem:[#allocation3 + $0xc8] sm:$0xff]
        %v6535 = vld [vmem:[#allocation3 + $0xd0] sm:$0xff]
        %v6536 = vld [vmem:[#allocation3 + $0xd8] sm:$0xff]
        %v6537 = vld [vmem:[#allocation3 + $0xe0] sm:$0xff]
        %v6538 = vld [vmem:[#allocation3 + $0xe8] sm:$0xff]
        %v6539 = vld [vmem:[#allocation3 + $0xf0] sm:$0xff]
        %v6540 = vld [vmem:[#allocation3 + $0xf8] sm:$0xff]
        %v6541 = vadd.f32 %v6509, %v6431
        %v6542 = vadd.f32 %v6510, %v6433
        %v6543 = vadd.f32 %v6511, %v6435
        %v6544 = vadd.f32 %v6512, %v6437
        %v6545 = vadd.f32 %v6513, %v6441
        %v6546 = vadd.f32 %v6514, %v6443
        %v6547 = vadd.f32 %v6515, %v6445
        %v6548 = vadd.f32 %v6516, %v6447
        %v6549 = vadd.f32 %v6517, %v6451
        %v6550 = vadd.f32 %v6518, %v6453
        %v6551 = vadd.f32 %v6519, %v6455
        %v6552 = vadd.f32 %v6520, %v6457
        %v6553 = vadd.f32 %v6521, %v6461
        %v6554 = vadd.f32 %v6522, %v6463
        %v6555 = vadd.f32 %v6523, %v6465
        %v6556 = vadd.f32 %v6524, %v6467
        %v6557 = vadd.f32 %v6525, %v6471
        %v6558 = vadd.f32 %v6526, %v6473
        %v6559 = vadd.f32 %v6527, %v6475
        %v6560 = vadd.f32 %v6528, %v6477
        %v6561 = vadd.f32 %v6529, %v6481
        %v6562 = vadd.f32 %v6530, %v6483
        %v6563 = vadd.f32 %v6531, %v6485
        %v6564 = vadd.f32 %v6532, %v6487
        %v6565 = vadd.f32 %v6533, %v6491
        %v6566 = vadd.f32 %v6534, %v6493
        %v6567 = vadd.f32 %v6535, %v6495
        %v6568 = vadd.f32 %v6536, %v6497
        %v6569 = vadd.f32 %v6537, %v6501
        %v6570 = vadd.f32 %v6538, %v6503
        %v6571 = vadd.f32 %v6539, %v6505
        %v6572 = vadd.f32 %v6540, %v6507
        %6573 = vst [vmem:[#allocation3] sm:$0xff] %v6541
        %6574 = vst [vmem:[#allocation3 + $0x8] sm:$0xff] %v6542
        %6575 = vst [vmem:[#allocation3 + $0x10] sm:$0xff] %v6543
        %6576 = vst [vmem:[#allocation3 + $0x18] sm:$0xff] %v6544
        %6577 = vst [vmem:[#allocation3 + $0x20] sm:$0xff] %v6545
        %6578 = vst [vmem:[#allocation3 + $0x28] sm:$0xff] %v6546
        %6579 = vst [vmem:[#allocation3 + $0x30] sm:$0xff] %v6547
        %6580 = vst [vmem:[#allocation3 + $0x38] sm:$0xff] %v6548
        %6581 = vst [vmem:[#allocation3 + $0x40] sm:$0xff] %v6549
        %6582 = vst [vmem:[#allocation3 + $0x48] sm:$0xff] %v6550
        %6583 = vst [vmem:[#allocation3 + $0x50] sm:$0xff] %v6551
        %6584 = vst [vmem:[#allocation3 + $0x58] sm:$0xff] %v6552
        %6585 = vst [vmem:[#allocation3 + $0x60] sm:$0xff] %v6553
        %6586 = vst [vmem:[#allocation3 + $0x68] sm:$0xff] %v6554
        %6587 = vst [vmem:[#allocation3 + $0x70] sm:$0xff] %v6555
        %6588 = vst [vmem:[#allocation3 + $0x78] sm:$0xff] %v6556
        %6589 = vst [vmem:[#allocation3 + $0x80] sm:$0xff] %v6557
        %6590 = vst [vmem:[#allocation3 + $0x88] sm:$0xff] %v6558
        %6591 = vst [vmem:[#allocation3 + $0x90] sm:$0xff] %v6559
        %6592 = vst [vmem:[#allocation3 + $0x98] sm:$0xff] %v6560
        %6593 = vst [vmem:[#allocation3 + $0xa0] sm:$0xff] %v6561
        %6594 = vst [vmem:[#allocation3 + $0xa8] sm:$0xff] %v6562
        %6595 = vst [vmem:[#allocation3 + $0xb0] sm:$0xff] %v6563
        %6596 = vst [vmem:[#allocation3 + $0xb8] sm:$0xff] %v6564
        %6597 = vst [vmem:[#allocation3 + $0xc0] sm:$0xff] %v6565
        %6598 = vst [vmem:[#allocation3 + $0xc8] sm:$0xff] %v6566
        %6599 = vst [vmem:[#allocation3 + $0xd0] sm:$0xff] %v6567
        %6600 = vst [vmem:[#allocation3 + $0xd8] sm:$0xff] %v6568
        %6601 = vst [vmem:[#allocation3 + $0xe0] sm:$0xff] %v6569
        %6602 = vst [vmem:[#allocation3 + $0xe8] sm:$0xff] %v6570
        %6603 = vst [vmem:[#allocation3 + $0xf0] sm:$0xff] %v6571
        %6604 = vst [vmem:[#allocation3 + $0xf8] sm:$0xff] %v6572
        %v6605 = vld [vmem:[%s2881] sm:$0xff]
        %v6606 = vld [vmem:[%s2881 + $0x8] sm:$0xff]
        %v6607 = vld [vmem:[%s2881 + $0x10] sm:$0xff]
        %v6608 = vld [vmem:[%s2881 + $0x18] sm:$0xff]
        %v6609 = vld [vmem:[%s2881 + $0x20] sm:$0xff]
        %v6610 = vld [vmem:[%s2881 + $0x28] sm:$0xff]
        %v6611 = vld [vmem:[%s2881 + $0x30] sm:$0xff]
        %v6612 = vld [vmem:[%s2881 + $0x38] sm:$0xff]
        %v6613 = vld [vmem:[%s2881 + $0x40] sm:$0xff]
        %v6614 = vld [vmem:[%s2881 + $0x48] sm:$0xff]
        %v6615 = vld [vmem:[%s2881 + $0x50] sm:$0xff]
        %v6616 = vld [vmem:[%s2881 + $0x58] sm:$0xff]
        %v6617 = vld [vmem:[%s2881 + $0x60] sm:$0xff]
        %v6618 = vld [vmem:[%s2881 + $0x68] sm:$0xff]
        %v6619 = vld [vmem:[%s2881 + $0x70] sm:$0xff]
        %v6620 = vld [vmem:[%s2881 + $0x78] sm:$0xff]
        %v6621 = vld [vmem:[%s2881 + $0x80] sm:$0xff]
        %v6622 = vld [vmem:[%s2881 + $0x88] sm:$0xff]
        %v6623 = vld [vmem:[%s2881 + $0x90] sm:$0xff]
        %v6624 = vld [vmem:[%s2881 + $0x98] sm:$0xff]
        %v6625 = vld [vmem:[%s2881 + $0xa0] sm:$0xff]
        %v6626 = vld [vmem:[%s2881 + $0xa8] sm:$0xff]
        %v6627 = vld [vmem:[%s2881 + $0xb0] sm:$0xff]
        %v6628 = vld [vmem:[%s2881 + $0xb8] sm:$0xff]
        %v6629 = vld [vmem:[%s2881 + $0xc0] sm:$0xff]
        %v6630 = vld [vmem:[%s2881 + $0xc8] sm:$0xff]
        %v6631 = vld [vmem:[%s2881 + $0xd0] sm:$0xff]
        %v6632 = vld [vmem:[%s2881 + $0xd8] sm:$0xff]
        %v6633 = vld [vmem:[%s2881 + $0xe0] sm:$0xff]
        %v6634 = vld [vmem:[%s2881 + $0xe8] sm:$0xff]
        %v6635 = vld [vmem:[%s2881 + $0xf0] sm:$0xff]
        %v6636 = vld [vmem:[%s2881 + $0xf8] sm:$0xff]
        %v6637 = vld [vmem:[%s2881 + $0x100] sm:$0xff]
        %v6638 = vld [vmem:[%s2881 + $0x108] sm:$0xff]
        %v6639 = vld [vmem:[%s2881 + $0x110] sm:$0xff]
        %v6640 = vld [vmem:[%s2881 + $0x118] sm:$0xff]
        %v6641 = vld [vmem:[%s2881 + $0x120] sm:$0xff]
        %v6642 = vld [vmem:[%s2881 + $0x128] sm:$0xff]
        %v6643 = vld [vmem:[%s2881 + $0x130] sm:$0xff]
        %v6644 = vld [vmem:[%s2881 + $0x138] sm:$0xff]
        %v6645 = vld [vmem:[%s2881 + $0x140] sm:$0xff]
        %v6646 = vld [vmem:[%s2881 + $0x148] sm:$0xff]
        %v6647 = vld [vmem:[%s2881 + $0x150] sm:$0xff]
        %v6648 = vld [vmem:[%s2881 + $0x158] sm:$0xff]
        %v6649 = vld [vmem:[%s2881 + $0x160] sm:$0xff]
        %v6650 = vld [vmem:[%s2881 + $0x168] sm:$0xff]
        %v6651 = vld [vmem:[%s2881 + $0x170] sm:$0xff]
        %v6652 = vld [vmem:[%s2881 + $0x178] sm:$0xff]
        %v6653 = vld [vmem:[%s2881 + $0x1e0] sm:$0xff]
        %v6654 = vld [vmem:[%s2881 + $0x1e8] sm:$0xff]
        %v6655 = vld [vmem:[%s2881 + $0x1f0] sm:$0xff]
        %v6656 = vld [vmem:[%s2881 + $0x1f8] sm:$0xff]
        %v6657 = vld [vmem:[%s2881 + $0x200] sm:$0xff]
        %v6658 = vld [vmem:[%s2881 + $0x208] sm:$0xff]
        %v6659 = vld [vmem:[%s2881 + $0x210] sm:$0xff]
        %v6660 = vld [vmem:[%s2881 + $0x218] sm:$0xff]
        %v6661 = vld [vmem:[%s2881 + $0x220] sm:$0xff]
        %v6662 = vld [vmem:[%s2881 + $0x228] sm:$0xff]
        %v6663 = vld [vmem:[%s2881 + $0x230] sm:$0xff]
        %v6664 = vld [vmem:[%s2881 + $0x238] sm:$0xff]
        %v6665 = vld [vmem:[%s2881 + $0x240] sm:$0xff]
        %v6666 = vld [vmem:[%s2881 + $0x248] sm:$0xff]
        %v6667 = vld [vmem:[%s2881 + $0x250] sm:$0xff]
        %v6668 = vld [vmem:[%s2881 + $0x258] sm:$0xff]
        %v6669 = vld [vmem:[%s2881 + $0x260] sm:$0xff]
        %v6670 = vld [vmem:[%s2881 + $0x268] sm:$0xff]
        %v6671 = vld [vmem:[%s2881 + $0x270] sm:$0xff]
        %v6672 = vld [vmem:[%s2881 + $0x278] sm:$0xff]
        %v6673 = vld [vmem:[%s2881 + $0x280] sm:$0xff]
        %v6674 = vld [vmem:[%s2881 + $0x288] sm:$0xff]
        %v6675 = vld [vmem:[%s2881 + $0x290] sm:$0xff]
        %v6676 = vld [vmem:[%s2881 + $0x298] sm:$0xff]
        %v6677 = vld [vmem:[%s2881 + $0x2a0] sm:$0xff]
        %v6678 = vld [vmem:[%s2881 + $0x2a8] sm:$0xff]
        %v6679 = vld [vmem:[%s2881 + $0x2b0] sm:$0xff]
        %v6680 = vld [vmem:[%s2881 + $0x2b8] sm:$0xff]
        %v6681 = vld [vmem:[%s2881 + $0x2c0] sm:$0xff]
        %v6682 = vld [vmem:[%s2881 + $0x2c8] sm:$0xff]
        %v6683 = vld [vmem:[%s2881 + $0x2d0] sm:$0xff]
        %v6684 = vld [vmem:[%s2881 + $0x2d8] sm:$0xff]
        %v6685 = vld [vmem:[%s2881 + $0x2e0] sm:$0xff]
        %v6686 = vld [vmem:[%s2881 + $0x2e8] sm:$0xff]
        %v6687 = vld [vmem:[%s2881 + $0x2f0] sm:$0xff]
        %v6688 = vld [vmem:[%s2881 + $0x2f8] sm:$0xff]
        %v6689 = vld [vmem:[%s2881 + $0x300] sm:$0xff]
        %v6690 = vld [vmem:[%s2881 + $0x308] sm:$0xff]
        %v6691 = vld [vmem:[%s2881 + $0x310] sm:$0xff]
        %v6692 = vld [vmem:[%s2881 + $0x318] sm:$0xff]
        %v6693 = vld [vmem:[%s2881 + $0x320] sm:$0xff]
        %v6694 = vld [vmem:[%s2881 + $0x328] sm:$0xff]
        %v6695 = vld [vmem:[%s2881 + $0x330] sm:$0xff]
        %v6696 = vld [vmem:[%s2881 + $0x338] sm:$0xff]
        %v6697 = vld [vmem:[%s2881 + $0x340] sm:$0xff]
        %v6698 = vld [vmem:[%s2881 + $0x348] sm:$0xff]
        %v6699 = vld [vmem:[%s2881 + $0x350] sm:$0xff]
        %v6700 = vld [vmem:[%s2881 + $0x358] sm:$0xff]
        %v6701 = vpack.c.bf16 %v6611, %v6605
        %v6702 = vpack.c.bf16 %v6612, %v6606
        %v6703 = vpack.c.bf16 %v6613, %v6607
        %v6704 = vpack.c.bf16 %v6614, %v6608
        %v6705 = vpack.c.bf16 %v6615, %v6609
        %v6706 = vpack.c.bf16 %v6616, %v6610
        %v6707 = vpack.c.bf16 %v6623, %v6617
        %v6708 = vpack.c.bf16 %v6624, %v6618
        %v6709 = vpack.c.bf16 %v6625, %v6619
        %v6710 = vpack.c.bf16 %v6626, %v6620
        %v6711 = vpack.c.bf16 %v6627, %v6621
        %v6712 = vpack.c.bf16 %v6628, %v6622
        %v6713 = vpack.c.bf16 %v6635, %v6629
        %v6714 = vpack.c.bf16 %v6636, %v6630
        %v6715 = vpack.c.bf16 %v6637, %v6631
        %v6716 = vpack.c.bf16 %v6638, %v6632
        %v6717 = vpack.c.bf16 %v6639, %v6633
        %v6718 = vpack.c.bf16 %v6640, %v6634
        %v6719 = vpack.c.bf16 %v6647, %v6641
        %v6720 = vpack.c.bf16 %v6648, %v6642
        %v6721 = vpack.c.bf16 %v6649, %v6643
        %v6722 = vpack.c.bf16 %v6650, %v6644
        %v6723 = vpack.c.bf16 %v6651, %v6645
        %v6724 = vpack.c.bf16 %v6652, %v6646
        %v6725 = vpack.c.bf16 %v6659, %v6653
        %v6726 = vpack.c.bf16 %v6660, %v6654
        %v6727 = vpack.c.bf16 %v6661, %v6655
        %v6728 = vpack.c.bf16 %v6662, %v6656
        %v6729 = vpack.c.bf16 %v6663, %v6657
        %v6730 = vpack.c.bf16 %v6664, %v6658
        %v6731 = vpack.c.bf16 %v6671, %v6665
        %v6732 = vpack.c.bf16 %v6672, %v6666
        %v6733 = vpack.c.bf16 %v6673, %v6667
        %v6734 = vpack.c.bf16 %v6674, %v6668
        %v6735 = vpack.c.bf16 %v6675, %v6669
        %v6736 = vpack.c.bf16 %v6676, %v6670
        %v6737 = vpack.c.bf16 %v6683, %v6677
        %v6738 = vpack.c.bf16 %v6684, %v6678
        %v6739 = vpack.c.bf16 %v6685, %v6679
        %v6740 = vpack.c.bf16 %v6686, %v6680
        %v6741 = vpack.c.bf16 %v6687, %v6681
        %v6742 = vpack.c.bf16 %v6688, %v6682
        %v6743 = vpack.c.bf16 %v6695, %v6689
        %v6744 = vpack.c.bf16 %v6696, %v6690
        %v6745 = vpack.c.bf16 %v6697, %v6691
        %v6746 = vpack.c.bf16 %v6698, %v6692
        %v6747 = vpack.c.bf16 %v6699, %v6693
        %v6748 = vpack.c.bf16 %v6700, %v6694
        %s6749 = scalar_lea.vmem [#allocation9], 1536
        %v6750 = vld [vmem:[%s6749] sm:$0xff]
        %v6751 = vld [vmem:[%s6749 + $0x8] sm:$0xff]
        %v6752 = vld [vmem:[%s6749 + $0x10] sm:$0xff]
        %v6753 = vld [vmem:[%s6749 + $0x18] sm:$0xff]
        %v6754 = vld [vmem:[%s6749 + $0x20] sm:$0xff]
        %v6755 = vld [vmem:[%s6749 + $0x28] sm:$0xff]
        %v6756 = vld [vmem:[%s6749 + $0x30] sm:$0xff]
        %v6757 = vld [vmem:[%s6749 + $0x38] sm:$0xff]
        %v6758 = vld [vmem:[%s6749 + $0x40] sm:$0xff]
        %v6759 = vld [vmem:[%s6749 + $0x48] sm:$0xff]
        %v6760 = vld [vmem:[%s6749 + $0x50] sm:$0xff]
        %v6761 = vld [vmem:[%s6749 + $0x58] sm:$0xff]
        %v6762 = vld [vmem:[%s6749 + $0x60] sm:$0xff]
        %v6763 = vld [vmem:[%s6749 + $0x68] sm:$0xff]
        %v6764 = vld [vmem:[%s6749 + $0x70] sm:$0xff]
        %v6765 = vld [vmem:[%s6749 + $0x78] sm:$0xff]
        %v6766 = vld [vmem:[%s6749 + $0x80] sm:$0xff]
        %v6767 = vld [vmem:[%s6749 + $0x88] sm:$0xff]
        %v6768 = vld [vmem:[%s6749 + $0x90] sm:$0xff]
        %v6769 = vld [vmem:[%s6749 + $0x98] sm:$0xff]
        %v6770 = vld [vmem:[%s6749 + $0xa0] sm:$0xff]
        %v6771 = vld [vmem:[%s6749 + $0xa8] sm:$0xff]
        %v6772 = vld [vmem:[%s6749 + $0xb0] sm:$0xff]
        %v6773 = vld [vmem:[%s6749 + $0xb8] sm:$0xff]
        %v6774 = vld [vmem:[%s6749 + $0xc0] sm:$0xff]
        %v6775 = vld [vmem:[%s6749 + $0xc8] sm:$0xff]
        %v6776 = vld [vmem:[%s6749 + $0xd0] sm:$0xff]
        %v6777 = vld [vmem:[%s6749 + $0xd8] sm:$0xff]
        %v6778 = vld [vmem:[%s6749 + $0xe0] sm:$0xff]
        %v6779 = vld [vmem:[%s6749 + $0xe8] sm:$0xff]
        %v6780 = vld [vmem:[%s6749 + $0xf0] sm:$0xff]
        %v6781 = vld [vmem:[%s6749 + $0xf8] sm:$0xff]
        %v6782 = vld [vmem:[%s6749 + $0x100] sm:$0xff]
        %v6783 = vld [vmem:[%s6749 + $0x108] sm:$0xff]
        %v6784 = vld [vmem:[%s6749 + $0x110] sm:$0xff]
        %v6785 = vld [vmem:[%s6749 + $0x118] sm:$0xff]
        %v6786 = vld [vmem:[%s6749 + $0x120] sm:$0xff]
        %v6787 = vld [vmem:[%s6749 + $0x128] sm:$0xff]
        %v6788 = vld [vmem:[%s6749 + $0x130] sm:$0xff]
        %v6789 = vld [vmem:[%s6749 + $0x138] sm:$0xff]
        %v6790 = vld [vmem:[%s6749 + $0x140] sm:$0xff]
        %v6791 = vld [vmem:[%s6749 + $0x148] sm:$0xff]
        %v6792 = vld [vmem:[%s6749 + $0x150] sm:$0xff]
        %v6793 = vld [vmem:[%s6749 + $0x158] sm:$0xff]
        %v6794 = vld [vmem:[%s6749 + $0x160] sm:$0xff]
        %v6795 = vld [vmem:[%s6749 + $0x168] sm:$0xff]
        %v6796 = vld [vmem:[%s6749 + $0x170] sm:$0xff]
        %v6797 = vld [vmem:[%s6749 + $0x178] sm:$0xff]
        %v6798 = vld [vmem:[%s6749 + $0x180] sm:$0xff]
        %v6799 = vld [vmem:[%s6749 + $0x188] sm:$0xff]
        %v6800 = vld [vmem:[%s6749 + $0x190] sm:$0xff]
        %v6801 = vld [vmem:[%s6749 + $0x198] sm:$0xff]
        %v6802 = vld [vmem:[%s6749 + $0x1a0] sm:$0xff]
        %v6803 = vld [vmem:[%s6749 + $0x1a8] sm:$0xff]
        %v6804 = vld [vmem:[%s6749 + $0x1b0] sm:$0xff]
        %v6805 = vld [vmem:[%s6749 + $0x1b8] sm:$0xff]
        %v6806 = vld [vmem:[%s6749 + $0x1c0] sm:$0xff]
        %v6807 = vld [vmem:[%s6749 + $0x1c8] sm:$0xff]
        %v6808 = vld [vmem:[%s6749 + $0x1d0] sm:$0xff]
        %v6809 = vld [vmem:[%s6749 + $0x1d8] sm:$0xff]
        %v6810 = vld [vmem:[%s6749 + $0x1e0] sm:$0xff]
        %v6811 = vld [vmem:[%s6749 + $0x1e8] sm:$0xff]
        %v6812 = vld [vmem:[%s6749 + $0x1f0] sm:$0xff]
        %v6813 = vld [vmem:[%s6749 + $0x1f8] sm:$0xff]
        %v6814 = vld [vmem:[%s6749 + $0x200] sm:$0xff]
        %v6815 = vld [vmem:[%s6749 + $0x208] sm:$0xff]
        %v6816 = vld [vmem:[%s6749 + $0x210] sm:$0xff]
        %v6817 = vld [vmem:[%s6749 + $0x218] sm:$0xff]
        %v6818 = vld [vmem:[%s6749 + $0x220] sm:$0xff]
        %v6819 = vld [vmem:[%s6749 + $0x228] sm:$0xff]
        %v6820 = vld [vmem:[%s6749 + $0x230] sm:$0xff]
        %v6821 = vld [vmem:[%s6749 + $0x238] sm:$0xff]
        %v6822 = vld [vmem:[%s6749 + $0x240] sm:$0xff]
        %v6823 = vld [vmem:[%s6749 + $0x248] sm:$0xff]
        %v6824 = vld [vmem:[%s6749 + $0x250] sm:$0xff]
        %v6825 = vld [vmem:[%s6749 + $0x258] sm:$0xff]
        %v6826 = vld [vmem:[%s6749 + $0x260] sm:$0xff]
        %v6827 = vld [vmem:[%s6749 + $0x268] sm:$0xff]
        %v6828 = vld [vmem:[%s6749 + $0x270] sm:$0xff]
        %v6829 = vld [vmem:[%s6749 + $0x278] sm:$0xff]
        %v6830 = vld [vmem:[%s6749 + $0x280] sm:$0xff]
        %v6831 = vld [vmem:[%s6749 + $0x288] sm:$0xff]
        %v6832 = vld [vmem:[%s6749 + $0x290] sm:$0xff]
        %v6833 = vld [vmem:[%s6749 + $0x298] sm:$0xff]
        %v6834 = vld [vmem:[%s6749 + $0x2a0] sm:$0xff]
        %v6835 = vld [vmem:[%s6749 + $0x2a8] sm:$0xff]
        %v6836 = vld [vmem:[%s6749 + $0x2b0] sm:$0xff]
        %v6837 = vld [vmem:[%s6749 + $0x2b8] sm:$0xff]
        %v6838 = vld [vmem:[%s6749 + $0x2c0] sm:$0xff]
        %v6839 = vld [vmem:[%s6749 + $0x2c8] sm:$0xff]
        %v6840 = vld [vmem:[%s6749 + $0x2d0] sm:$0xff]
        %v6841 = vld [vmem:[%s6749 + $0x2d8] sm:$0xff]
        %v6842 = vld [vmem:[%s6749 + $0x2e0] sm:$0xff]
        %v6843 = vld [vmem:[%s6749 + $0x2e8] sm:$0xff]
        %v6844 = vld [vmem:[%s6749 + $0x2f0] sm:$0xff]
        %v6845 = vld [vmem:[%s6749 + $0x2f8] sm:$0xff]
        %v6942 = vunpack.c.l.b16 %v6750
        %v6943 = vunpack.c.h.b16 %v6750
        %v6944 = vunpack.c.l.b16 %v6751
        %v6945 = vunpack.c.h.b16 %v6751
        %v6946 = vunpack.c.l.b16 %v6752
        %v6947 = vunpack.c.h.b16 %v6752
        %v6948 = vunpack.c.l.b16 %v6753
        %v6949 = vunpack.c.h.b16 %v6753
        %v6950 = vunpack.c.l.b16 %v6754
        %v6951 = vunpack.c.h.b16 %v6754
        %v6952 = vunpack.c.l.b16 %v6755
        %v6953 = vunpack.c.h.b16 %v6755
        %v6954 = vunpack.c.l.b16 %v6756
        %v6955 = vunpack.c.h.b16 %v6756
        %v6956 = vunpack.c.l.b16 %v6757
        %v6957 = vunpack.c.h.b16 %v6757
        %v6958 = vunpack.c.l.b16 %v6758
        %v6959 = vunpack.c.h.b16 %v6758
        %v6960 = vunpack.c.l.b16 %v6759
        %v6961 = vunpack.c.h.b16 %v6759
        %v6962 = vunpack.c.l.b16 %v6760
        %v6963 = vunpack.c.h.b16 %v6760
        %v6964 = vunpack.c.l.b16 %v6761
        %v6965 = vunpack.c.h.b16 %v6761
        %v6966 = vunpack.c.l.b16 %v6762
        %v6967 = vunpack.c.h.b16 %v6762
        %v6968 = vunpack.c.l.b16 %v6763
        %v6969 = vunpack.c.h.b16 %v6763
        %v6970 = vunpack.c.l.b16 %v6764
        %v6971 = vunpack.c.h.b16 %v6764
        %v6972 = vunpack.c.l.b16 %v6765
        %v6973 = vunpack.c.h.b16 %v6765
        %v6974 = vunpack.c.l.b16 %v6766
        %v6975 = vunpack.c.h.b16 %v6766
        %v6976 = vunpack.c.l.b16 %v6767
        %v6977 = vunpack.c.h.b16 %v6767
        %v6978 = vunpack.c.l.b16 %v6768
        %v6979 = vunpack.c.h.b16 %v6768
        %v6980 = vunpack.c.l.b16 %v6769
        %v6981 = vunpack.c.h.b16 %v6769
        %v6982 = vunpack.c.l.b16 %v6770
        %v6983 = vunpack.c.h.b16 %v6770
        %v6984 = vunpack.c.l.b16 %v6771
        %v6985 = vunpack.c.h.b16 %v6771
        %v6986 = vunpack.c.l.b16 %v6772
        %v6987 = vunpack.c.h.b16 %v6772
        %v6988 = vunpack.c.l.b16 %v6773
        %v6989 = vunpack.c.h.b16 %v6773
        %v6990 = vunpack.c.l.b16 %v6774
        %v6991 = vunpack.c.h.b16 %v6774
        %v6992 = vunpack.c.l.b16 %v6775
        %v6993 = vunpack.c.h.b16 %v6775
        %v6994 = vunpack.c.l.b16 %v6776
        %v6995 = vunpack.c.h.b16 %v6776
        %v6996 = vunpack.c.l.b16 %v6777
        %v6997 = vunpack.c.h.b16 %v6777
        %v6998 = vunpack.c.l.b16 %v6778
        %v6999 = vunpack.c.h.b16 %v6778
        %v7000 = vunpack.c.l.b16 %v6779
        %v7001 = vunpack.c.h.b16 %v6779
        %v7002 = vunpack.c.l.b16 %v6780
        %v7003 = vunpack.c.h.b16 %v6780
        %v7004 = vunpack.c.l.b16 %v6781
        %v7005 = vunpack.c.h.b16 %v6781
        %v7006 = vunpack.c.l.b16 %v6782
        %v7007 = vunpack.c.h.b16 %v6782
        %v7008 = vunpack.c.l.b16 %v6783
        %v7009 = vunpack.c.h.b16 %v6783
        %v7010 = vunpack.c.l.b16 %v6784
        %v7011 = vunpack.c.h.b16 %v6784
        %v7012 = vunpack.c.l.b16 %v6785
        %v7013 = vunpack.c.h.b16 %v6785
        %v7014 = vunpack.c.l.b16 %v6786
        %v7015 = vunpack.c.h.b16 %v6786
        %v7016 = vunpack.c.l.b16 %v6787
        %v7017 = vunpack.c.h.b16 %v6787
        %v7018 = vunpack.c.l.b16 %v6788
        %v7019 = vunpack.c.h.b16 %v6788
        %v7020 = vunpack.c.l.b16 %v6789
        %v7021 = vunpack.c.h.b16 %v6789
        %v7022 = vunpack.c.l.b16 %v6790
        %v7023 = vunpack.c.h.b16 %v6790
        %v7024 = vunpack.c.l.b16 %v6791
        %v7025 = vunpack.c.h.b16 %v6791
        %v7026 = vunpack.c.l.b16 %v6792
        %v7027 = vunpack.c.h.b16 %v6792
        %v7028 = vunpack.c.l.b16 %v6793
        %v7029 = vunpack.c.h.b16 %v6793
        %v7030 = vunpack.c.l.b16 %v6794
        %v7031 = vunpack.c.h.b16 %v6794
        %v7032 = vunpack.c.l.b16 %v6795
        %v7033 = vunpack.c.h.b16 %v6795
        %v7034 = vunpack.c.l.b16 %v6796
        %v7035 = vunpack.c.h.b16 %v6796
        %v7036 = vunpack.c.l.b16 %v6797
        %v7037 = vunpack.c.h.b16 %v6797
        %v7038 = vunpack.c.l.b16 %v6798
        %v7039 = vunpack.c.h.b16 %v6798
        %v7040 = vunpack.c.l.b16 %v6799
        %v7041 = vunpack.c.h.b16 %v6799
        %v7042 = vunpack.c.l.b16 %v6800
        %v7043 = vunpack.c.h.b16 %v6800
        %v7044 = vunpack.c.l.b16 %v6801
        %v7045 = vunpack.c.h.b16 %v6801
        %v7046 = vunpack.c.l.b16 %v6802
        %v7047 = vunpack.c.h.b16 %v6802
        %v7048 = vunpack.c.l.b16 %v6803
        %v7049 = vunpack.c.h.b16 %v6803
        %v7050 = vunpack.c.l.b16 %v6804
        %v7051 = vunpack.c.h.b16 %v6804
        %v7052 = vunpack.c.l.b16 %v6805
        %v7053 = vunpack.c.h.b16 %v6805
        %v7054 = vunpack.c.l.b16 %v6806
        %v7055 = vunpack.c.h.b16 %v6806
        %v7056 = vunpack.c.l.b16 %v6807
        %v7057 = vunpack.c.h.b16 %v6807
        %v7058 = vunpack.c.l.b16 %v6808
        %v7059 = vunpack.c.h.b16 %v6808
        %v7060 = vunpack.c.l.b16 %v6809
        %v7061 = vunpack.c.h.b16 %v6809
        %v7062 = vunpack.c.l.b16 %v6810
        %v7063 = vunpack.c.h.b16 %v6810
        %v7064 = vunpack.c.l.b16 %v6811
        %v7065 = vunpack.c.h.b16 %v6811
        %v7066 = vunpack.c.l.b16 %v6812
        %v7067 = vunpack.c.h.b16 %v6812
        %v7068 = vunpack.c.l.b16 %v6813
        %v7069 = vunpack.c.h.b16 %v6813
        %v7070 = vunpack.c.l.b16 %v6814
        %v7071 = vunpack.c.h.b16 %v6814
        %v7072 = vunpack.c.l.b16 %v6815
        %v7073 = vunpack.c.h.b16 %v6815
        %v7074 = vunpack.c.l.b16 %v6816
        %v7075 = vunpack.c.h.b16 %v6816
        %v7076 = vunpack.c.l.b16 %v6817
        %v7077 = vunpack.c.h.b16 %v6817
        %v7078 = vunpack.c.l.b16 %v6818
        %v7079 = vunpack.c.h.b16 %v6818
        %v7080 = vunpack.c.l.b16 %v6819
        %v7081 = vunpack.c.h.b16 %v6819
        %v7082 = vunpack.c.l.b16 %v6820
        %v7083 = vunpack.c.h.b16 %v6820
        %v7084 = vunpack.c.l.b16 %v6821
        %v7085 = vunpack.c.h.b16 %v6821
        %v7086 = vunpack.c.l.b16 %v6822
        %v7087 = vunpack.c.h.b16 %v6822
        %v7088 = vunpack.c.l.b16 %v6823
        %v7089 = vunpack.c.h.b16 %v6823
        %v7090 = vunpack.c.l.b16 %v6824
        %v7091 = vunpack.c.h.b16 %v6824
        %v7092 = vunpack.c.l.b16 %v6825
        %v7093 = vunpack.c.h.b16 %v6825
        %v7094 = vunpack.c.l.b16 %v6826
        %v7095 = vunpack.c.h.b16 %v6826
        %v7096 = vunpack.c.l.b16 %v6827
        %v7097 = vunpack.c.h.b16 %v6827
        %v7098 = vunpack.c.l.b16 %v6828
        %v7099 = vunpack.c.h.b16 %v6828
        %v7100 = vunpack.c.l.b16 %v6829
        %v7101 = vunpack.c.h.b16 %v6829
        %v7102 = vunpack.c.l.b16 %v6830
        %v7103 = vunpack.c.h.b16 %v6830
        %v7104 = vunpack.c.l.b16 %v6831
        %v7105 = vunpack.c.h.b16 %v6831
        %v7106 = vunpack.c.l.b16 %v6832
        %v7107 = vunpack.c.h.b16 %v6832
        %v7108 = vunpack.c.l.b16 %v6833
        %v7109 = vunpack.c.h.b16 %v6833
        %v7110 = vunpack.c.l.b16 %v6834
        %v7111 = vunpack.c.h.b16 %v6834
        %v7112 = vunpack.c.l.b16 %v6835
        %v7113 = vunpack.c.h.b16 %v6835
        %v7114 = vunpack.c.l.b16 %v6836
        %v7115 = vunpack.c.h.b16 %v6836
        %v7116 = vunpack.c.l.b16 %v6837
        %v7117 = vunpack.c.h.b16 %v6837
        %v7118 = vunpack.c.l.b16 %v6838
        %v7119 = vunpack.c.h.b16 %v6838
        %v7120 = vunpack.c.l.b16 %v6839
        %v7121 = vunpack.c.h.b16 %v6839
        %v7122 = vunpack.c.l.b16 %v6840
        %v7123 = vunpack.c.h.b16 %v6840
        %v7124 = vunpack.c.l.b16 %v6841
        %v7125 = vunpack.c.h.b16 %v6841
        %v7126 = vunpack.c.l.b16 %v6842
        %v7127 = vunpack.c.h.b16 %v6842
        %v7128 = vunpack.c.l.b16 %v6843
        %v7129 = vunpack.c.h.b16 %v6843
        %v7130 = vunpack.c.l.b16 %v6844
        %v7131 = vunpack.c.h.b16 %v6844
        %v7132 = vunpack.c.l.b16 %v6845
        %v7133 = vunpack.c.h.b16 %v6845
        %v7134 = vpack.c.b16 %v6944, %v6942
        %v7135 = vpack.c.b16 %v6945, %v6943
        %v7136 = vpack.c.b16 %v6948, %v6946
        %v7137 = vpack.c.b16 %v6949, %v6947
        %v7138 = vpack.c.b16 %v6952, %v6950
        %v7139 = vpack.c.b16 %v6953, %v6951
        %v7140 = vpack.c.b16 %v6956, %v6954
        %v7141 = vpack.c.b16 %v6957, %v6955
        %v7142 = vpack.c.b16 %v6960, %v6958
        %v7143 = vpack.c.b16 %v6961, %v6959
        %v7144 = vpack.c.b16 %v6964, %v6962
        %v7145 = vpack.c.b16 %v6965, %v6963
        %v7146 = vpack.c.b16 %v6968, %v6966
        %v7147 = vpack.c.b16 %v6969, %v6967
        %v7148 = vpack.c.b16 %v6972, %v6970
        %v7149 = vpack.c.b16 %v6973, %v6971
        %v7150 = vpack.c.b16 %v6976, %v6974
        %v7151 = vpack.c.b16 %v6977, %v6975
        %v7152 = vpack.c.b16 %v6980, %v6978
        %v7153 = vpack.c.b16 %v6981, %v6979
        %v7154 = vpack.c.b16 %v6984, %v6982
        %v7155 = vpack.c.b16 %v6985, %v6983
        %v7156 = vpack.c.b16 %v6988, %v6986
        %v7157 = vpack.c.b16 %v6989, %v6987
        %v7158 = vpack.c.b16 %v6992, %v6990
        %v7159 = vpack.c.b16 %v6993, %v6991
        %v7160 = vpack.c.b16 %v6996, %v6994
        %v7161 = vpack.c.b16 %v6997, %v6995
        %v7162 = vpack.c.b16 %v7000, %v6998
        %v7163 = vpack.c.b16 %v7001, %v6999
        %v7164 = vpack.c.b16 %v7004, %v7002
        %v7165 = vpack.c.b16 %v7005, %v7003
        %v7166 = vpack.c.b16 %v7008, %v7006
        %v7167 = vpack.c.b16 %v7009, %v7007
        %v7168 = vpack.c.b16 %v7012, %v7010
        %v7169 = vpack.c.b16 %v7013, %v7011
        %v7170 = vpack.c.b16 %v7016, %v7014
        %v7171 = vpack.c.b16 %v7017, %v7015
        %v7172 = vpack.c.b16 %v7020, %v7018
        %v7173 = vpack.c.b16 %v7021, %v7019
        %v7174 = vpack.c.b16 %v7024, %v7022
        %v7175 = vpack.c.b16 %v7025, %v7023
        %v7176 = vpack.c.b16 %v7028, %v7026
        %v7177 = vpack.c.b16 %v7029, %v7027
        %v7178 = vpack.c.b16 %v7032, %v7030
        %v7179 = vpack.c.b16 %v7033, %v7031
        %v7180 = vpack.c.b16 %v7036, %v7034
        %v7181 = vpack.c.b16 %v7037, %v7035
        %v7182 = vpack.c.b16 %v7040, %v7038
        %v7183 = vpack.c.b16 %v7041, %v7039
        %v7184 = vpack.c.b16 %v7044, %v7042
        %v7185 = vpack.c.b16 %v7045, %v7043
        %v7186 = vpack.c.b16 %v7048, %v7046
        %v7187 = vpack.c.b16 %v7049, %v7047
        %v7188 = vpack.c.b16 %v7052, %v7050
        %v7189 = vpack.c.b16 %v7053, %v7051
        %v7190 = vpack.c.b16 %v7056, %v7054
        %v7191 = vpack.c.b16 %v7057, %v7055
        %v7192 = vpack.c.b16 %v7060, %v7058
        %v7193 = vpack.c.b16 %v7061, %v7059
        %v7194 = vpack.c.b16 %v7064, %v7062
        %v7195 = vpack.c.b16 %v7065, %v7063
        %v7196 = vpack.c.b16 %v7068, %v7066
        %v7197 = vpack.c.b16 %v7069, %v7067
        %v7198 = vpack.c.b16 %v7072, %v7070
        %v7199 = vpack.c.b16 %v7073, %v7071
        %v7200 = vpack.c.b16 %v7076, %v7074
        %v7201 = vpack.c.b16 %v7077, %v7075
        %v7202 = vpack.c.b16 %v7080, %v7078
        %v7203 = vpack.c.b16 %v7081, %v7079
        %v7204 = vpack.c.b16 %v7084, %v7082
        %v7205 = vpack.c.b16 %v7085, %v7083
        %v7206 = vpack.c.b16 %v7088, %v7086
        %v7207 = vpack.c.b16 %v7089, %v7087
        %v7208 = vpack.c.b16 %v7092, %v7090
        %v7209 = vpack.c.b16 %v7093, %v7091
        %v7210 = vpack.c.b16 %v7096, %v7094
        %v7211 = vpack.c.b16 %v7097, %v7095
        %v7212 = vpack.c.b16 %v7100, %v7098
        %v7213 = vpack.c.b16 %v7101, %v7099
        %v7214 = vpack.c.b16 %v7104, %v7102
        %v7215 = vpack.c.b16 %v7105, %v7103
        %v7216 = vpack.c.b16 %v7108, %v7106
        %v7217 = vpack.c.b16 %v7109, %v7107
        %v7218 = vpack.c.b16 %v7112, %v7110
        %v7219 = vpack.c.b16 %v7113, %v7111
        %v7220 = vpack.c.b16 %v7116, %v7114
        %v7221 = vpack.c.b16 %v7117, %v7115
        %v7222 = vpack.c.b16 %v7120, %v7118
        %v7223 = vpack.c.b16 %v7121, %v7119
        %v7224 = vpack.c.b16 %v7124, %v7122
        %v7225 = vpack.c.b16 %v7125, %v7123
        %v7226 = vpack.c.b16 %v7128, %v7126
        %v7227 = vpack.c.b16 %v7129, %v7127
        %v7228 = vpack.c.b16 %v7132, %v7130
        %v7229 = vpack.c.b16 %v7133, %v7131
        %7326 = vmatprep.subr.bf16.mxu0 %v7149
        %7327 = vmatpush1.bf16.msra.mxu0 %v7148
        %7328 = vmatprep.subr.bf16.mxu0 %v7147
        %7329 = vmatpush1.bf16.msra.mxu0 %v7146
        %7330 = vmatprep.subr.bf16.mxu0 %v7145
        %7331 = vmatpush1.bf16.msra.mxu0 %v7144
        %7332 = vmatprep.subr.bf16.mxu0 %v7143
        %7333 = vmatpush1.bf16.msra.mxu0 %v7142
        %7334 = vmatprep.subr.bf16.mxu0 %v7141
        %7335 = vmatpush1.bf16.msra.mxu0 %v7140
        %7336 = vmatprep.subr.bf16.mxu0 %v7139
        %7337 = vmatpush1.bf16.msra.mxu0 %v7138
        %7338 = vmatprep.subr.bf16.mxu0 %v7137
        %7339 = vmatpush1.bf16.msra.mxu0 %v7136
        %7340 = vmatprep.subr.bf16.mxu0 %v7135
        %7341 = vmatpush1.bf16.msra.mxu0 %v7134
        %7342 = vmatprep.subr.bf16.mxu0 %v7165
        %7343 = vmatpush2.bf16.msra.mxu0 %v7164
        %7344 = vmatprep.subr.bf16.mxu0 %v7163
        %7345 = vmatpush2.bf16.msra.mxu0 %v7162
        %7346 = vmatprep.subr.bf16.mxu0 %v7161
        %7347 = vmatpush2.bf16.msra.mxu0 %v7160
        %7348 = vmatprep.subr.bf16.mxu0 %v7159
        %7349 = vmatpush2.bf16.msra.mxu0 %v7158
        %7350 = vmatprep.subr.bf16.mxu0 %v7157
        %7351 = vmatpush2.bf16.msra.mxu0 %v7156
        %7352 = vmatprep.subr.bf16.mxu0 %v7155
        %7353 = vmatpush2.bf16.msra.mxu0 %v7154
        %7354 = vmatprep.subr.bf16.mxu0 %v7153
        %7355 = vmatpush2.bf16.msra.mxu0 %v7152
        %7356 = vmatprep.subr.bf16.mxu0 %v7151
        %7357 = vmatpush2.bf16.msra.mxu0 %v7150
        %7358 = vmatprep.mubr.bf16.mxu0 %v6702
        %7359 = vmatmul.mubr.bf16.gmra.mxu0 %v6701
        %v7360 = vpop.f32.mrf.mxu0
        %v7361 = vadd.f32 0.0, %v7360
        %v7362 = vpop.f32.mrf.mxu0
        %v7363 = vadd.f32 0.0, %v7362
        %v7364 = vpop.f32.mrf.mxu0
        %v7365 = vadd.f32 0.0, %v7364
        %v7366 = vpop.f32.mrf.mxu0
        %v7367 = vadd.f32 0.0, %v7366
        %7368 = vmatprep.mubr.bf16.mxu0 %v6708
        %7369 = vmatmul.mubr.bf16.gmra.mxu0 %v6707
        %v7370 = vpop.f32.mrf.mxu0
        %v7371 = vadd.f32 0.0, %v7370
        %v7372 = vpop.f32.mrf.mxu0
        %v7373 = vadd.f32 0.0, %v7372
        %v7374 = vpop.f32.mrf.mxu0
        %v7375 = vadd.f32 0.0, %v7374
        %v7376 = vpop.f32.mrf.mxu0
        %v7377 = vadd.f32 0.0, %v7376
        %7378 = vmatprep.mubr.bf16.mxu0 %v6714
        %7379 = vmatmul.mubr.bf16.gmra.mxu0 %v6713
        %v7380 = vpop.f32.mrf.mxu0
        %v7381 = vadd.f32 0.0, %v7380
        %v7382 = vpop.f32.mrf.mxu0
        %v7383 = vadd.f32 0.0, %v7382
        %v7384 = vpop.f32.mrf.mxu0
        %v7385 = vadd.f32 0.0, %v7384
        %v7386 = vpop.f32.mrf.mxu0
        %v7387 = vadd.f32 0.0, %v7386
        %7388 = vmatprep.mubr.bf16.mxu0 %v6720
        %7389 = vmatmul.mubr.bf16.gmra.mxu0 %v6719
        %v7390 = vpop.f32.mrf.mxu0
        %v7391 = vadd.f32 0.0, %v7390
        %v7392 = vpop.f32.mrf.mxu0
        %v7393 = vadd.f32 0.0, %v7392
        %v7394 = vpop.f32.mrf.mxu0
        %v7395 = vadd.f32 0.0, %v7394
        %v7396 = vpop.f32.mrf.mxu0
        %v7397 = vadd.f32 0.0, %v7396
        %7398 = vmatprep.mubr.bf16.mxu0 %v6726
        %7399 = vmatmul.mubr.bf16.gmra.mxu0 %v6725
        %v7400 = vpop.f32.mrf.mxu0
        %v7401 = vadd.f32 0.0, %v7400
        %v7402 = vpop.f32.mrf.mxu0
        %v7403 = vadd.f32 0.0, %v7402
        %v7404 = vpop.f32.mrf.mxu0
        %v7405 = vadd.f32 0.0, %v7404
        %v7406 = vpop.f32.mrf.mxu0
        %v7407 = vadd.f32 0.0, %v7406
        %7408 = vmatprep.mubr.bf16.mxu0 %v6732
        %7409 = vmatmul.mubr.bf16.gmra.mxu0 %v6731
        %v7410 = vpop.f32.mrf.mxu0
        %v7411 = vadd.f32 0.0, %v7410
        %v7412 = vpop.f32.mrf.mxu0
        %v7413 = vadd.f32 0.0, %v7412
        %v7414 = vpop.f32.mrf.mxu0
        %v7415 = vadd.f32 0.0, %v7414
        %v7416 = vpop.f32.mrf.mxu0
        %v7417 = vadd.f32 0.0, %v7416
        %7418 = vmatprep.mubr.bf16.mxu0 %v6738
        %7419 = vmatmul.mubr.bf16.gmra.mxu0 %v6737
        %v7420 = vpop.f32.mrf.mxu0
        %v7421 = vadd.f32 0.0, %v7420
        %v7422 = vpop.f32.mrf.mxu0
        %v7423 = vadd.f32 0.0, %v7422
        %v7424 = vpop.f32.mrf.mxu0
        %v7425 = vadd.f32 0.0, %v7424
        %v7426 = vpop.f32.mrf.mxu0
        %v7427 = vadd.f32 0.0, %v7426
        %7428 = vmatprep.mubr.bf16.mxu0 %v6744
        %7429 = vmatmul.mubr.bf16.gmra.mxu0 %v6743
        %v7430 = vpop.f32.mrf.mxu0
        %v7431 = vadd.f32 0.0, %v7430
        %v7432 = vpop.f32.mrf.mxu0
        %v7433 = vadd.f32 0.0, %v7432
        %v7434 = vpop.f32.mrf.mxu0
        %v7435 = vadd.f32 0.0, %v7434
        %v7436 = vpop.f32.mrf.mxu0
        %v7437 = vadd.f32 0.0, %v7436
        %7438 = vdwg.mxu0
        %7439 = vmatprep.subr.bf16.mxu0 %v7181
        %7440 = vmatpush1.bf16.msra.mxu0 %v7180
        %7441 = vmatprep.subr.bf16.mxu0 %v7179
        %7442 = vmatpush1.bf16.msra.mxu0 %v7178
        %7443 = vmatprep.subr.bf16.mxu0 %v7177
        %7444 = vmatpush1.bf16.msra.mxu0 %v7176
        %7445 = vmatprep.subr.bf16.mxu0 %v7175
        %7446 = vmatpush1.bf16.msra.mxu0 %v7174
        %7447 = vmatprep.subr.bf16.mxu0 %v7173
        %7448 = vmatpush1.bf16.msra.mxu0 %v7172
        %7449 = vmatprep.subr.bf16.mxu0 %v7171
        %7450 = vmatpush1.bf16.msra.mxu0 %v7170
        %7451 = vmatprep.subr.bf16.mxu0 %v7169
        %7452 = vmatpush1.bf16.msra.mxu0 %v7168
        %7453 = vmatprep.subr.bf16.mxu0 %v7167
        %7454 = vmatpush1.bf16.msra.mxu0 %v7166
        %7455 = vmatprep.subr.bf16.mxu0 %v7197
        %7456 = vmatpush2.bf16.msra.mxu0 %v7196
        %7457 = vmatprep.subr.bf16.mxu0 %v7195
        %7458 = vmatpush2.bf16.msra.mxu0 %v7194
        %7459 = vmatprep.subr.bf16.mxu0 %v7193
        %7460 = vmatpush2.bf16.msra.mxu0 %v7192
        %7461 = vmatprep.subr.bf16.mxu0 %v7191
        %7462 = vmatpush2.bf16.msra.mxu0 %v7190
        %7463 = vmatprep.subr.bf16.mxu0 %v7189
        %7464 = vmatpush2.bf16.msra.mxu0 %v7188
        %7465 = vmatprep.subr.bf16.mxu0 %v7187
        %7466 = vmatpush2.bf16.msra.mxu0 %v7186
        %7467 = vmatprep.subr.bf16.mxu0 %v7185
        %7468 = vmatpush2.bf16.msra.mxu0 %v7184
        %7469 = vmatprep.subr.bf16.mxu0 %v7183
        %7470 = vmatpush2.bf16.msra.mxu0 %v7182
        %7471 = vmatprep.mubr.bf16.mxu0 %v6704
        %7472 = vmatmul.mubr.bf16.gmra.mxu0 %v6703
        %v7473 = vpop.f32.mrf.mxu0
        %v7474 = vadd.f32 %v7361, %v7473
        %v7475 = vpop.f32.mrf.mxu0
        %v7476 = vadd.f32 %v7363, %v7475
        %v7477 = vpop.f32.mrf.mxu0
        %v7478 = vadd.f32 %v7365, %v7477
        %v7479 = vpop.f32.mrf.mxu0
        %v7480 = vadd.f32 %v7367, %v7479
        %7481 = vmatprep.mubr.bf16.mxu0 %v6710
        %7482 = vmatmul.mubr.bf16.gmra.mxu0 %v6709
        %v7483 = vpop.f32.mrf.mxu0
        %v7484 = vadd.f32 %v7371, %v7483
        %v7485 = vpop.f32.mrf.mxu0
        %v7486 = vadd.f32 %v7373, %v7485
        %v7487 = vpop.f32.mrf.mxu0
        %v7488 = vadd.f32 %v7375, %v7487
        %v7489 = vpop.f32.mrf.mxu0
        %v7490 = vadd.f32 %v7377, %v7489
        %7491 = vmatprep.mubr.bf16.mxu0 %v6716
        %7492 = vmatmul.mubr.bf16.gmra.mxu0 %v6715
        %v7493 = vpop.f32.mrf.mxu0
        %v7494 = vadd.f32 %v7381, %v7493
        %v7495 = vpop.f32.mrf.mxu0
        %v7496 = vadd.f32 %v7383, %v7495
        %v7497 = vpop.f32.mrf.mxu0
        %v7498 = vadd.f32 %v7385, %v7497
        %v7499 = vpop.f32.mrf.mxu0
        %v7500 = vadd.f32 %v7387, %v7499
        %7501 = vmatprep.mubr.bf16.mxu0 %v6722
        %7502 = vmatmul.mubr.bf16.gmra.mxu0 %v6721
        %v7503 = vpop.f32.mrf.mxu0
        %v7504 = vadd.f32 %v7391, %v7503
        %v7505 = vpop.f32.mrf.mxu0
        %v7506 = vadd.f32 %v7393, %v7505
        %v7507 = vpop.f32.mrf.mxu0
        %v7508 = vadd.f32 %v7395, %v7507
        %v7509 = vpop.f32.mrf.mxu0
        %v7510 = vadd.f32 %v7397, %v7509
        %7511 = vmatprep.mubr.bf16.mxu0 %v6728
        %7512 = vmatmul.mubr.bf16.gmra.mxu0 %v6727
        %v7513 = vpop.f32.mrf.mxu0
        %v7514 = vadd.f32 %v7401, %v7513
        %v7515 = vpop.f32.mrf.mxu0
        %v7516 = vadd.f32 %v7403, %v7515
        %v7517 = vpop.f32.mrf.mxu0
        %v7518 = vadd.f32 %v7405, %v7517
        %v7519 = vpop.f32.mrf.mxu0
        %v7520 = vadd.f32 %v7407, %v7519
        %7521 = vmatprep.mubr.bf16.mxu0 %v6734
        %7522 = vmatmul.mubr.bf16.gmra.mxu0 %v6733
        %v7523 = vpop.f32.mrf.mxu0
        %v7524 = vadd.f32 %v7411, %v7523
        %v7525 = vpop.f32.mrf.mxu0
        %v7526 = vadd.f32 %v7413, %v7525
        %v7527 = vpop.f32.mrf.mxu0
        %v7528 = vadd.f32 %v7415, %v7527
        %v7529 = vpop.f32.mrf.mxu0
        %v7530 = vadd.f32 %v7417, %v7529
        %7531 = vmatprep.mubr.bf16.mxu0 %v6740
        %7532 = vmatmul.mubr.bf16.gmra.mxu0 %v6739
        %v7533 = vpop.f32.mrf.mxu0
        %v7534 = vadd.f32 %v7421, %v7533
        %v7535 = vpop.f32.mrf.mxu0
        %v7536 = vadd.f32 %v7423, %v7535
        %v7537 = vpop.f32.mrf.mxu0
        %v7538 = vadd.f32 %v7425, %v7537
        %v7539 = vpop.f32.mrf.mxu0
        %v7540 = vadd.f32 %v7427, %v7539
        %7541 = vmatprep.mubr.bf16.mxu0 %v6746
        %7542 = vmatmul.mubr.bf16.gmra.mxu0 %v6745
        %v7543 = vpop.f32.mrf.mxu0
        %v7544 = vadd.f32 %v7431, %v7543
        %v7545 = vpop.f32.mrf.mxu0
        %v7546 = vadd.f32 %v7433, %v7545
        %v7547 = vpop.f32.mrf.mxu0
        %v7548 = vadd.f32 %v7435, %v7547
        %v7549 = vpop.f32.mrf.mxu0
        %v7550 = vadd.f32 %v7437, %v7549
        %7551 = vdwg.mxu0
        %7552 = vmatprep.subr.bf16.mxu0 %v7213
        %7553 = vmatpush1.bf16.msra.mxu0 %v7212
        %7554 = vmatprep.subr.bf16.mxu0 %v7211
        %7555 = vmatpush1.bf16.msra.mxu0 %v7210
        %7556 = vmatprep.subr.bf16.mxu0 %v7209
        %7557 = vmatpush1.bf16.msra.mxu0 %v7208
        %7558 = vmatprep.subr.bf16.mxu0 %v7207
        %7559 = vmatpush1.bf16.msra.mxu0 %v7206
        %7560 = vmatprep.subr.bf16.mxu0 %v7205
        %7561 = vmatpush1.bf16.msra.mxu0 %v7204
        %7562 = vmatprep.subr.bf16.mxu0 %v7203
        %7563 = vmatpush1.bf16.msra.mxu0 %v7202
        %7564 = vmatprep.subr.bf16.mxu0 %v7201
        %7565 = vmatpush1.bf16.msra.mxu0 %v7200
        %7566 = vmatprep.subr.bf16.mxu0 %v7199
        %7567 = vmatpush1.bf16.msra.mxu0 %v7198
        %7568 = vmatprep.subr.bf16.mxu0 %v7229
        %7569 = vmatpush2.bf16.msra.mxu0 %v7228
        %7570 = vmatprep.subr.bf16.mxu0 %v7227
        %7571 = vmatpush2.bf16.msra.mxu0 %v7226
        %7572 = vmatprep.subr.bf16.mxu0 %v7225
        %7573 = vmatpush2.bf16.msra.mxu0 %v7224
        %7574 = vmatprep.subr.bf16.mxu0 %v7223
        %7575 = vmatpush2.bf16.msra.mxu0 %v7222
        %7576 = vmatprep.subr.bf16.mxu0 %v7221
        %7577 = vmatpush2.bf16.msra.mxu0 %v7220
        %7578 = vmatprep.subr.bf16.mxu0 %v7219
        %7579 = vmatpush2.bf16.msra.mxu0 %v7218
        %7580 = vmatprep.subr.bf16.mxu0 %v7217
        %7581 = vmatpush2.bf16.msra.mxu0 %v7216
        %7582 = vmatprep.subr.bf16.mxu0 %v7215
        %7583 = vmatpush2.bf16.msra.mxu0 %v7214
        %7584 = vmatprep.mubr.bf16.mxu0 %v6706
        %7585 = vmatmul.mubr.bf16.gmra.mxu0 %v6705
        %v7586 = vpop.f32.mrf.mxu0
        %v7587 = vadd.f32 %v7474, %v7586
        %v7588 = vpop.f32.mrf.mxu0
        %v7589 = vadd.f32 %v7476, %v7588
        %v7590 = vpop.f32.mrf.mxu0
        %v7591 = vadd.f32 %v7478, %v7590
        %v7592 = vpop.f32.mrf.mxu0
        %v7593 = vadd.f32 %v7480, %v7592
        %7594 = vmatprep.mubr.bf16.mxu0 %v6712
        %7595 = vmatmul.mubr.bf16.gmra.mxu0 %v6711
        %v7596 = vpop.f32.mrf.mxu0
        %v7597 = vadd.f32 %v7484, %v7596
        %v7598 = vpop.f32.mrf.mxu0
        %v7599 = vadd.f32 %v7486, %v7598
        %v7600 = vpop.f32.mrf.mxu0
        %v7601 = vadd.f32 %v7488, %v7600
        %v7602 = vpop.f32.mrf.mxu0
        %v7603 = vadd.f32 %v7490, %v7602
        %7604 = vmatprep.mubr.bf16.mxu0 %v6718
        %7605 = vmatmul.mubr.bf16.gmra.mxu0 %v6717
        %v7606 = vpop.f32.mrf.mxu0
        %v7607 = vadd.f32 %v7494, %v7606
        %v7608 = vpop.f32.mrf.mxu0
        %v7609 = vadd.f32 %v7496, %v7608
        %v7610 = vpop.f32.mrf.mxu0
        %v7611 = vadd.f32 %v7498, %v7610
        %v7612 = vpop.f32.mrf.mxu0
        %v7613 = vadd.f32 %v7500, %v7612
        %7614 = vmatprep.mubr.bf16.mxu0 %v6724
        %7615 = vmatmul.mubr.bf16.gmra.mxu0 %v6723
        %v7616 = vpop.f32.mrf.mxu0
        %v7617 = vadd.f32 %v7504, %v7616
        %v7618 = vpop.f32.mrf.mxu0
        %v7619 = vadd.f32 %v7506, %v7618
        %v7620 = vpop.f32.mrf.mxu0
        %v7621 = vadd.f32 %v7508, %v7620
        %v7622 = vpop.f32.mrf.mxu0
        %v7623 = vadd.f32 %v7510, %v7622
        %7624 = vmatprep.mubr.bf16.mxu0 %v6730
        %7625 = vmatmul.mubr.bf16.gmra.mxu0 %v6729
        %v7626 = vpop.f32.mrf.mxu0
        %v7627 = vadd.f32 %v7514, %v7626
        %v7628 = vpop.f32.mrf.mxu0
        %v7629 = vadd.f32 %v7516, %v7628
        %v7630 = vpop.f32.mrf.mxu0
        %v7631 = vadd.f32 %v7518, %v7630
        %v7632 = vpop.f32.mrf.mxu0
        %v7633 = vadd.f32 %v7520, %v7632
        %7634 = vmatprep.mubr.bf16.mxu0 %v6736
        %7635 = vmatmul.mubr.bf16.gmra.mxu0 %v6735
        %v7636 = vpop.f32.mrf.mxu0
        %v7637 = vadd.f32 %v7524, %v7636
        %v7638 = vpop.f32.mrf.mxu0
        %v7639 = vadd.f32 %v7526, %v7638
        %v7640 = vpop.f32.mrf.mxu0
        %v7641 = vadd.f32 %v7528, %v7640
        %v7642 = vpop.f32.mrf.mxu0
        %v7643 = vadd.f32 %v7530, %v7642
        %7644 = vmatprep.mubr.bf16.mxu0 %v6742
        %7645 = vmatmul.mubr.bf16.gmra.mxu0 %v6741
        %v7646 = vpop.f32.mrf.mxu0
        %v7647 = vadd.f32 %v7534, %v7646
        %v7648 = vpop.f32.mrf.mxu0
        %v7649 = vadd.f32 %v7536, %v7648
        %v7650 = vpop.f32.mrf.mxu0
        %v7651 = vadd.f32 %v7538, %v7650
        %v7652 = vpop.f32.mrf.mxu0
        %v7653 = vadd.f32 %v7540, %v7652
        %7654 = vmatprep.mubr.bf16.mxu0 %v6748
        %7655 = vmatmul.mubr.bf16.gmra.mxu0 %v6747
        %v7656 = vpop.f32.mrf.mxu0
        %v7657 = vadd.f32 %v7544, %v7656
        %v7658 = vpop.f32.mrf.mxu0
        %v7659 = vadd.f32 %v7546, %v7658
        %v7660 = vpop.f32.mrf.mxu0
        %v7661 = vadd.f32 %v7548, %v7660
        %v7662 = vpop.f32.mrf.mxu0
        %v7663 = vadd.f32 %v7550, %v7662
        %7664 = vdwg.mxu0
        %v7665 = vld [vmem:[#allocation3] sm:$0xff]
        %v7666 = vld [vmem:[#allocation3 + $0x8] sm:$0xff]
        %v7667 = vld [vmem:[#allocation3 + $0x10] sm:$0xff]
        %v7668 = vld [vmem:[#allocation3 + $0x18] sm:$0xff]
        %v7669 = vld [vmem:[#allocation3 + $0x20] sm:$0xff]
        %v7670 = vld [vmem:[#allocation3 + $0x28] sm:$0xff]
        %v7671 = vld [vmem:[#allocation3 + $0x30] sm:$0xff]
        %v7672 = vld [vmem:[#allocation3 + $0x38] sm:$0xff]
        %v7673 = vld [vmem:[#allocation3 + $0x40] sm:$0xff]
        %v7674 = vld [vmem:[#allocation3 + $0x48] sm:$0xff]
        %v7675 = vld [vmem:[#allocation3 + $0x50] sm:$0xff]
        %v7676 = vld [vmem:[#allocation3 + $0x58] sm:$0xff]
        %v7677 = vld [vmem:[#allocation3 + $0x60] sm:$0xff]
        %v7678 = vld [vmem:[#allocation3 + $0x68] sm:$0xff]
        %v7679 = vld [vmem:[#allocation3 + $0x70] sm:$0xff]
        %v7680 = vld [vmem:[#allocation3 + $0x78] sm:$0xff]
        %v7681 = vld [vmem:[#allocation3 + $0x80] sm:$0xff]
        %v7682 = vld [vmem:[#allocation3 + $0x88] sm:$0xff]
        %v7683 = vld [vmem:[#allocation3 + $0x90] sm:$0xff]
        %v7684 = vld [vmem:[#allocation3 + $0x98] sm:$0xff]
        %v7685 = vld [vmem:[#allocation3 + $0xa0] sm:$0xff]
        %v7686 = vld [vmem:[#allocation3 + $0xa8] sm:$0xff]
        %v7687 = vld [vmem:[#allocation3 + $0xb0] sm:$0xff]
        %v7688 = vld [vmem:[#allocation3 + $0xb8] sm:$0xff]
        %v7689 = vld [vmem:[#allocation3 + $0xc0] sm:$0xff]
        %v7690 = vld [vmem:[#allocation3 + $0xc8] sm:$0xff]
        %v7691 = vld [vmem:[#allocation3 + $0xd0] sm:$0xff]
        %v7692 = vld [vmem:[#allocation3 + $0xd8] sm:$0xff]
        %v7693 = vld [vmem:[#allocation3 + $0xe0] sm:$0xff]
        %v7694 = vld [vmem:[#allocation3 + $0xe8] sm:$0xff]
        %v7695 = vld [vmem:[#allocation3 + $0xf0] sm:$0xff]
        %v7696 = vld [vmem:[#allocation3 + $0xf8] sm:$0xff]
        %v7697 = vadd.f32 %v7665, %v7587
        %v7698 = vadd.f32 %v7666, %v7589
        %v7699 = vadd.f32 %v7667, %v7591
        %v7700 = vadd.f32 %v7668, %v7593
        %v7701 = vadd.f32 %v7669, %v7597
        %v7702 = vadd.f32 %v7670, %v7599
        %v7703 = vadd.f32 %v7671, %v7601
        %v7704 = vadd.f32 %v7672, %v7603
        %v7705 = vadd.f32 %v7673, %v7607
        %v7706 = vadd.f32 %v7674, %v7609
        %v7707 = vadd.f32 %v7675, %v7611
        %v7708 = vadd.f32 %v7676, %v7613
        %v7709 = vadd.f32 %v7677, %v7617
        %v7710 = vadd.f32 %v7678, %v7619
        %v7711 = vadd.f32 %v7679, %v7621
        %v7712 = vadd.f32 %v7680, %v7623
        %v7713 = vadd.f32 %v7681, %v7627
        %v7714 = vadd.f32 %v7682, %v7629
        %v7715 = vadd.f32 %v7683, %v7631
        %v7716 = vadd.f32 %v7684, %v7633
        %v7717 = vadd.f32 %v7685, %v7637
        %v7718 = vadd.f32 %v7686, %v7639
        %v7719 = vadd.f32 %v7687, %v7641
        %v7720 = vadd.f32 %v7688, %v7643
        %v7721 = vadd.f32 %v7689, %v7647
        %v7722 = vadd.f32 %v7690, %v7649
        %v7723 = vadd.f32 %v7691, %v7651
        %v7724 = vadd.f32 %v7692, %v7653
        %v7725 = vadd.f32 %v7693, %v7657
        %v7726 = vadd.f32 %v7694, %v7659
        %v7727 = vadd.f32 %v7695, %v7661
        %v7728 = vadd.f32 %v7696, %v7663
        %7729 = vst [vmem:[#allocation3] sm:$0xff] %v7697
        %7730 = vst [vmem:[#allocation3 + $0x8] sm:$0xff] %v7698
        %7731 = vst [vmem:[#allocation3 + $0x10] sm:$0xff] %v7699
        %7732 = vst [vmem:[#allocation3 + $0x18] sm:$0xff] %v7700
        %7733 = vst [vmem:[#allocation3 + $0x20] sm:$0xff] %v7701
        %7734 = vst [vmem:[#allocation3 + $0x28] sm:$0xff] %v7702
        %7735 = vst [vmem:[#allocation3 + $0x30] sm:$0xff] %v7703
        %7736 = vst [vmem:[#allocation3 + $0x38] sm:$0xff] %v7704
        %7737 = vst [vmem:[#allocation3 + $0x40] sm:$0xff] %v7705
        %7738 = vst [vmem:[#allocation3 + $0x48] sm:$0xff] %v7706
        %7739 = vst [vmem:[#allocation3 + $0x50] sm:$0xff] %v7707
        %7740 = vst [vmem:[#allocation3 + $0x58] sm:$0xff] %v7708
        %7741 = vst [vmem:[#allocation3 + $0x60] sm:$0xff] %v7709
        %7742 = vst [vmem:[#allocation3 + $0x68] sm:$0xff] %v7710
        %7743 = vst [vmem:[#allocation3 + $0x70] sm:$0xff] %v7711
        %7744 = vst [vmem:[#allocation3 + $0x78] sm:$0xff] %v7712
        %7745 = vst [vmem:[#allocation3 + $0x80] sm:$0xff] %v7713
        %7746 = vst [vmem:[#allocation3 + $0x88] sm:$0xff] %v7714
        %7747 = vst [vmem:[#allocation3 + $0x90] sm:$0xff] %v7715
        %7748 = vst [vmem:[#allocation3 + $0x98] sm:$0xff] %v7716
        %7749 = vst [vmem:[#allocation3 + $0xa0] sm:$0xff] %v7717
        %7750 = vst [vmem:[#allocation3 + $0xa8] sm:$0xff] %v7718
        %7751 = vst [vmem:[#allocation3 + $0xb0] sm:$0xff] %v7719
        %7752 = vst [vmem:[#allocation3 + $0xb8] sm:$0xff] %v7720
        %7753 = vst [vmem:[#allocation3 + $0xc0] sm:$0xff] %v7721
        %7754 = vst [vmem:[#allocation3 + $0xc8] sm:$0xff] %v7722
        %7755 = vst [vmem:[#allocation3 + $0xd0] sm:$0xff] %v7723
        %7756 = vst [vmem:[#allocation3 + $0xd8] sm:$0xff] %v7724
        %7757 = vst [vmem:[#allocation3 + $0xe0] sm:$0xff] %v7725
        %7758 = vst [vmem:[#allocation3 + $0xe8] sm:$0xff] %v7726
        %7759 = vst [vmem:[#allocation3 + $0xf0] sm:$0xff] %v7727
        %7760 = vst [vmem:[#allocation3 + $0xf8] sm:$0xff] %v7728
        %v7761 = vld [vmem:[#allocation3] sm:$0xff]
        %v7762 = vld [vmem:[#allocation3 + $0x8] sm:$0xff]
        %v7763 = vld [vmem:[#allocation3 + $0x10] sm:$0xff]
        %v7764 = vld [vmem:[#allocation3 + $0x18] sm:$0xff]
        %v7765 = vld [vmem:[#allocation3 + $0x20] sm:$0xff]
        %v7766 = vld [vmem:[#allocation3 + $0x28] sm:$0xff]
        %v7767 = vld [vmem:[#allocation3 + $0x30] sm:$0xff]
        %v7768 = vld [vmem:[#allocation3 + $0x38] sm:$0xff]
        %v7769 = vld [vmem:[#allocation3 + $0x40] sm:$0xff]
        %v7770 = vld [vmem:[#allocation3 + $0x48] sm:$0xff]
        %v7771 = vld [vmem:[#allocation3 + $0x50] sm:$0xff]
        %v7772 = vld [vmem:[#allocation3 + $0x58] sm:$0xff]
        %v7773 = vld [vmem:[#allocation3 + $0x60] sm:$0xff]
        %v7774 = vld [vmem:[#allocation3 + $0x68] sm:$0xff]
        %v7775 = vld [vmem:[#allocation3 + $0x70] sm:$0xff]
        %v7776 = vld [vmem:[#allocation3 + $0x78] sm:$0xff]
        %v7777 = vld [vmem:[#allocation3 + $0x80] sm:$0xff]
        %v7778 = vld [vmem:[#allocation3 + $0x88] sm:$0xff]
        %v7779 = vld [vmem:[#allocation3 + $0x90] sm:$0xff]
        %v7780 = vld [vmem:[#allocation3 + $0x98] sm:$0xff]
        %v7781 = vld [vmem:[#allocation3 + $0xa0] sm:$0xff]
        %v7782 = vld [vmem:[#allocation3 + $0xa8] sm:$0xff]
        %v7783 = vld [vmem:[#allocation3 + $0xb0] sm:$0xff]
        %v7784 = vld [vmem:[#allocation3 + $0xb8] sm:$0xff]
        %v7785 = vld [vmem:[#allocation3 + $0xc0] sm:$0xff]
        %v7786 = vld [vmem:[#allocation3 + $0xc8] sm:$0xff]
        %v7787 = vld [vmem:[#allocation3 + $0xd0] sm:$0xff]
        %v7788 = vld [vmem:[#allocation3 + $0xd8] sm:$0xff]
        %v7789 = vld [vmem:[#allocation3 + $0xe0] sm:$0xff]
        %v7790 = vld [vmem:[#allocation3 + $0xe8] sm:$0xff]
        %v7791 = vld [vmem:[#allocation3 + $0xf0] sm:$0xff]
        %v7792 = vld [vmem:[#allocation3 + $0xf8] sm:$0xff]
        %v7793 = vld [vmem:[%s188] sm:$0xff]
        %v7794 = vld [vmem:[%s188 + $0x8] sm:$0xff]
        %v7795 = vld [vmem:[%s188 + $0x10] sm:$0xff]
        %v7796 = vld [vmem:[%s188 + $0x18] sm:$0xff]
        %v7797 = vld [vmem:[%s188 + $0x20] sm:$0xff]
        %v7798 = vld [vmem:[%s188 + $0x28] sm:$0xff]
        %v7799 = vld [vmem:[%s188 + $0x30] sm:$0xff]
        %v7800 = vld [vmem:[%s188 + $0x38] sm:$0xff]
        %v7801 = vld [vmem:[%s188 + $0x40] sm:$0xff]
        %v7802 = vld [vmem:[%s188 + $0x48] sm:$0xff]
        %v7803 = vld [vmem:[%s188 + $0x50] sm:$0xff]
        %v7804 = vld [vmem:[%s188 + $0x58] sm:$0xff]
        %v7805 = vld [vmem:[%s188 + $0x60] sm:$0xff]
        %v7806 = vld [vmem:[%s188 + $0x68] sm:$0xff]
        %v7807 = vld [vmem:[%s188 + $0x70] sm:$0xff]
        %v7808 = vld [vmem:[%s188 + $0x78] sm:$0xff]
        %v7809 = vld [vmem:[%s188 + $0x80] sm:$0xff]
        %v7810 = vld [vmem:[%s188 + $0x88] sm:$0xff]
        %v7811 = vld [vmem:[%s188 + $0x90] sm:$0xff]
        %v7812 = vld [vmem:[%s188 + $0x98] sm:$0xff]
        %v7813 = vld [vmem:[%s188 + $0xa0] sm:$0xff]
        %v7814 = vld [vmem:[%s188 + $0xa8] sm:$0xff]
        %v7815 = vld [vmem:[%s188 + $0xb0] sm:$0xff]
        %v7816 = vld [vmem:[%s188 + $0xb8] sm:$0xff]
        %v7817 = vld [vmem:[%s188 + $0xc0] sm:$0xff]
        %v7818 = vld [vmem:[%s188 + $0xc8] sm:$0xff]
        %v7819 = vld [vmem:[%s188 + $0xd0] sm:$0xff]
        %v7820 = vld [vmem:[%s188 + $0xd8] sm:$0xff]
        %v7821 = vld [vmem:[%s188 + $0xe0] sm:$0xff]
        %v7822 = vld [vmem:[%s188 + $0xe8] sm:$0xff]
        %v7823 = vld [vmem:[%s188 + $0xf0] sm:$0xff]
        %v7824 = vld [vmem:[%s188 + $0xf8] sm:$0xff]
        %v7825 = vadd.f32 %v7761, %v7793
        %v7826 = vadd.f32 %v7762, %v7794
        %v7827 = vadd.f32 %v7763, %v7795
        %v7828 = vadd.f32 %v7764, %v7796
        %v7829 = vadd.f32 %v7765, %v7797
        %v7830 = vadd.f32 %v7766, %v7798
        %v7831 = vadd.f32 %v7767, %v7799
        %v7832 = vadd.f32 %v7768, %v7800
        %v7833 = vadd.f32 %v7769, %v7801
        %v7834 = vadd.f32 %v7770, %v7802
        %v7835 = vadd.f32 %v7771, %v7803
        %v7836 = vadd.f32 %v7772, %v7804
        %v7837 = vadd.f32 %v7773, %v7805
        %v7838 = vadd.f32 %v7774, %v7806
        %v7839 = vadd.f32 %v7775, %v7807
        %v7840 = vadd.f32 %v7776, %v7808
        %v7841 = vadd.f32 %v7777, %v7809
        %v7842 = vadd.f32 %v7778, %v7810
        %v7843 = vadd.f32 %v7779, %v7811
        %v7844 = vadd.f32 %v7780, %v7812
        %v7845 = vadd.f32 %v7781, %v7813
        %v7846 = vadd.f32 %v7782, %v7814
        %v7847 = vadd.f32 %v7783, %v7815
        %v7848 = vadd.f32 %v7784, %v7816
        %v7849 = vadd.f32 %v7785, %v7817
        %v7850 = vadd.f32 %v7786, %v7818
        %v7851 = vadd.f32 %v7787, %v7819
        %v7852 = vadd.f32 %v7788, %v7820
        %v7853 = vadd.f32 %v7789, %v7821
        %v7854 = vadd.f32 %v7790, %v7822
        %v7855 = vadd.f32 %v7791, %v7823
        %v7856 = vadd.f32 %v7792, %v7824
        %7857 = vst [vmem:[%s218] sm:$0xff] %v7825
        %7858 = vst [vmem:[%s218 + $0x8] sm:$0xff] %v7826
        %7859 = vst [vmem:[%s218 + $0x10] sm:$0xff] %v7827
        %7860 = vst [vmem:[%s218 + $0x18] sm:$0xff] %v7828
        %7861 = vst [vmem:[%s218 + $0x20] sm:$0xff] %v7829
        %7862 = vst [vmem:[%s218 + $0x28] sm:$0xff] %v7830
        %7863 = vst [vmem:[%s218 + $0x30] sm:$0xff] %v7831
        %7864 = vst [vmem:[%s218 + $0x38] sm:$0xff] %v7832
        %7865 = vst [vmem:[%s218 + $0x40] sm:$0xff] %v7833
        %7866 = vst [vmem:[%s218 + $0x48] sm:$0xff] %v7834
        %7867 = vst [vmem:[%s218 + $0x50] sm:$0xff] %v7835
        %7868 = vst [vmem:[%s218 + $0x58] sm:$0xff] %v7836
        %7869 = vst [vmem:[%s218 + $0x60] sm:$0xff] %v7837
        %7870 = vst [vmem:[%s218 + $0x68] sm:$0xff] %v7838
        %7871 = vst [vmem:[%s218 + $0x70] sm:$0xff] %v7839
        %7872 = vst [vmem:[%s218 + $0x78] sm:$0xff] %v7840
        %7873 = vst [vmem:[%s218 + $0x80] sm:$0xff] %v7841
        %7874 = vst [vmem:[%s218 + $0x88] sm:$0xff] %v7842
        %7875 = vst [vmem:[%s218 + $0x90] sm:$0xff] %v7843
        %7876 = vst [vmem:[%s218 + $0x98] sm:$0xff] %v7844
        %7877 = vst [vmem:[%s218 + $0xa0] sm:$0xff] %v7845
        %7878 = vst [vmem:[%s218 + $0xa8] sm:$0xff] %v7846
        %7879 = vst [vmem:[%s218 + $0xb0] sm:$0xff] %v7847
        %7880 = vst [vmem:[%s218 + $0xb8] sm:$0xff] %v7848
        %7881 = vst [vmem:[%s218 + $0xc0] sm:$0xff] %v7849
        %7882 = vst [vmem:[%s218 + $0xc8] sm:$0xff] %v7850
        %7883 = vst [vmem:[%s218 + $0xd0] sm:$0xff] %v7851
        %7884 = vst [vmem:[%s218 + $0xd8] sm:$0xff] %v7852
        %7885 = vst [vmem:[%s218 + $0xe0] sm:$0xff] %v7853
        %7886 = vst [vmem:[%s218 + $0xe8] sm:$0xff] %v7854
        %7887 = vst [vmem:[%s218 + $0xf0] sm:$0xff] %v7855
        %7888 = vst [vmem:[%s218 + $0xf8] sm:$0xff] %v7856
        %s7889 = sand.u32 %s97, 1
        %s7890 = scalar_lea.sflag [#allocation6], %s7889
        %s7891 = sand.u32 %s97, 1
        %s7892 = smul.addr %s7891, 256
        %s7893 = scalar_lea.vmem [#allocation10], %s7892
        // Predicated region
        $region45: #{tpu_custom_call.1} parent=31 // pred_check
          %p7894 = pneg %p107
        $region46: #{tpu_custom_call.1} parent=31 // pred_check_branch
          %7896 = sbr.rel (%p7894) target = $region48
        $region47: #{tpu_custom_call.1} parent=31 // pred_region
          %s7897 = smul.u32 2, %s21
          %s7899 = ssub.s32 4096, 4096
          %7900 = vsyncadd %s7890, %s7899
          %s7901 = smul.addr %s7897, 16
          %s7902 = smul.addr %s7901, 128
          %s7903 = scalar_lea.hbm %s3, %s7902
          %s7904 = sshll.u32 %s7893, 4
          %s7905 = int_to_ptr.vmem [resolvable:$true] %s7904
          %7910 = dma.vmem_to_hbm [thread:$0]  %s7905, 4096, %s7903, %s7890, 256, 256, 16
        $region48: #{tpu_custom_call.1} parent=31 // pred_fallthru
          _
      $region32: #{tpu_custom_call.1} parent=5 // pred_fallthru
        _
      %p7911 = scmp.le.s32.totalorder 2, %s16
      // Predicated region
      $region49: #{tpu_custom_call.1} parent=5 // pred_check
        %p7912 = pneg %p7911
      $region50: #{tpu_custom_call.1} parent=5 // pred_check_branch
        %7914 = sbr.rel (%p7912) target = $region52
      $region51: #{tpu_custom_call.1} parent=5 // pred_region
        %s7915 = ssub.s32 %s16, 2
        // Predicated region
        $region53: #{tpu_custom_call.1} parent=51 // pred_check
          %p7916 = pneg %p113
        $region54: #{tpu_custom_call.1} parent=51 // pred_check_branch
          %7918 = sbr.rel (%p7916) target = $region56
        $region55: #{tpu_custom_call.1} parent=51 // pred_region
          %s7919 = sand.u32 %s98, 1
          %s7920 = scalar_lea.sflag [#allocation6], %s7919
          %s7921 = sand.u32 %s98, 1
          %s7922 = smul.addr %s7921, 256
          %s7923 = scalar_lea.vmem [#allocation10], %s7922
          %7924 = dma.done %s7920, 4096
        $region56: #{tpu_custom_call.1} parent=51 // pred_fallthru
          _
      $region52: #{tpu_custom_call.1} parent=5 // pred_fallthru
        _
    $region6: #{tpu_custom_call.1} parent=1 // loop_footer
      %s20 = sadd.s32 1, %s16
    $region7: #{tpu_custom_call.1} parent=1 // loop_footer_branch
      %15 = sbr.rel target = $region3
    $region8: #{tpu_custom_call.1} parent=1 // loop_exit
      _
    %7925 = vsyncpa [#allocation5], 1
    %s7926 = scalar_lea.sflag [#allocation5], 1
    %7927 = vsyncpa %s7926, 1
    %7928 = vsyncpa [#allocation8], 1
    %7929 = vsyncpa [#allocation6], 1
    %s7930 = scalar_lea.sflag [#allocation6], 1
    %7931 = vsyncpa %s7930, 1

</llo_original>
